<compile_context>
chip_gen: v7x
topology: tpu7x:2x2x1
jax: 0.10.0
libtpu: 0.0.40
codegen_flags: <defaults>
</compile_context>

<pallas_src>
import functools
import math

import jax
import jax.numpy as jnp
import numpy as np
from jax.experimental import pallas as pl
from jax.experimental.pallas import tpu as pltpu


def _round_up(x, m):
    return (x + m - 1) // m * m


# ----------------------------------------------------------------------------
# Fused kernel: one batch image per grid step.
# refs (in order): x, w1, s1, b1, w2, s2, b2, [wsc, ssc, bsc], out, y1_scratch
# ----------------------------------------------------------------------------
def _resblock_kernel(*refs, stride, H1, W1, has_proj):
    if has_proj:
        (x_ref, w1_ref, s1_ref, b1_ref, w2_ref, s2_ref, b2_ref,
         wsc_ref, ssc_ref, bsc_ref, o_ref, y1_ref) = refs
    else:
        (x_ref, w1_ref, s1_ref, b1_ref, w2_ref, s2_ref, b2_ref,
         o_ref, y1_ref) = refs

    Cp = w1_ref.shape[-1]                     # padded out-channels (multiple of 128)
    x = x_ref[0].astype(jnp.float32)          # (Hp, Wp, Cin_p), spatially padded by 1

    def conv3x3(src, w_ref, s):
        # src: (Hs, Ws, C) value;  w_ref: (9, C, Cp);  returns (H1*W1, Cp) f32
        acc = jnp.zeros((H1 * W1, Cp), jnp.float32)
        for kh in range(3):                   # static, fully unrolled taps
            for kw in range(3):
                patch = src[kh: kh + s * (H1 - 1) + 1: s,
                            kw: kw + s * (W1 - 1) + 1: s, :]
                acc += jnp.dot(patch.reshape(H1 * W1, patch.shape[-1]),
                               w_ref[kh * 3 + kw],
                               preferred_element_type=jnp.float32)
        return acc

    # ---- left branch, first conv: conv3x3(stride) + BN + ReLU ----------------
    y1 = conv3x3(x, w1_ref, stride)
    y1 = jnp.maximum(y1 * s1_ref[...] + b1_ref[...], 0.0)

    # stash into spatially padded VMEM scratch (this provides conv2's padding=1)
    y1_ref[...] = jnp.zeros_like(y1_ref)
    y1_ref[1:1 + H1, 1:1 + W1, :] = y1.reshape(H1, W1, Cp)

    # ---- shortcut -------------------------------------------------------------
    if has_proj:
        xs = x[1: 1 + stride * (H1 - 1) + 1: stride,
               1: 1 + stride * (W1 - 1) + 1: stride, :]
        sc = jnp.dot(xs.reshape(H1 * W1, xs.shape[-1]), wsc_ref[...],
                     preferred_element_type=jnp.float32)
        sc = sc * ssc_ref[...] + bsc_ref[...]
    else:
        # identity shortcut: stride == 1 and Cin_p == Cp; padded channels are zero
        sc = x[1:1 + H1, 1:1 + W1, :].reshape(H1 * W1, Cp)

    # ---- left branch, second conv: conv3x3(1) + BN, residual add, final ReLU --
    y2 = conv3x3(y1_ref[...], w2_ref, 1)
    y2 = jnp.maximum(y2 * s2_ref[...] + b2_ref[...] + sc, 0.0)
    o_ref[0] = y2.reshape(H1, W1, Cp).astype(o_ref.dtype)


# ----------------------------------------------------------------------------
# Wrapper: NCHW in / NCHW out, like the PyTorch module.
# ----------------------------------------------------------------------------
def residual_block_forward(x_nchw, params, stride):
    x = jnp.transpose(x_nchw, (0, 2, 3, 1))        # NCHW -> NHWC
    N, H, W, Cin = x.shape
    Cout = params['w1'].shape[0]
    H1 = (H + 2 - 3) // stride + 1
    W1 = (W + 2 - 3) // stride + 1

    Cin_p = _round_up(Cin, 128)
    Cout_p = _round_up(Cout, 128)
    Hp, Wp = H + 2, W + 2

    # pad ONCE: spatial halo of 1 (conv1's padding) + lane-dense channel pad
    xp = jnp.pad(x, ((0, 0), (1, 1), (1, 1), (0, Cin_p - Cin)))

    def prep_w3x3(w_oihw, cin_p):
        w = jnp.transpose(w_oihw, (2, 3, 1, 0))    # OIHW -> HWIO
        w = jnp.pad(w, ((0, 0), (0, 0),
                        (0, cin_p - w.shape[2]), (0, Cout_p - w.shape[3])))
        return w.reshape(9, cin_p, Cout_p)

    def prep_vec(v):
        return jnp.pad(v, (0, Cout_p - v.shape[0])).reshape(1, Cout_p)

    has_proj = 'wsc' in params

    args = [xp,
            prep_w3x3(params['w1'], Cin_p), prep_vec(params['scale1']), prep_vec(params['bias1']),
            prep_w3x3(params['w2'], Cout_p), prep_vec(params['scale2']), prep_vec(params['bias2'])]
    in_specs = [
        pl.BlockSpec((1, Hp, Wp, Cin_p), lambda n: (n, 0, 0, 0)),
        pl.BlockSpec((9, Cin_p, Cout_p), lambda n: (0, 0, 0)),
        pl.BlockSpec((1, Cout_p), lambda n: (0, 0)),
        pl.BlockSpec((1, Cout_p), lambda n: (0, 0)),
        pl.BlockSpec((9, Cout_p, Cout_p), lambda n: (0, 0, 0)),
        pl.BlockSpec((1, Cout_p), lambda n: (0, 0)),
        pl.BlockSpec((1, Cout_p), lambda n: (0, 0)),
    ]
    if has_proj:
        wsc = jnp.transpose(params['wsc'], (2, 3, 1, 0))[0, 0]      # (Cin, Cout)
        wsc = jnp.pad(wsc, ((0, Cin_p - Cin), (0, Cout_p - Cout)))
        args += [wsc, prep_vec(params['scale_sc']), prep_vec(params['bias_sc'])]
        in_specs += [
            pl.BlockSpec((Cin_p, Cout_p), lambda n: (0, 0)),
            pl.BlockSpec((1, Cout_p), lambda n: (0, 0)),
            pl.BlockSpec((1, Cout_p), lambda n: (0, 0)),
        ]

    kernel = functools.partial(_resblock_kernel, stride=stride, H1=H1, W1=W1,
                               has_proj=has_proj)

    out = pl.pallas_call(
        kernel,
        out_shape=jax.ShapeDtypeStruct((N, H1, W1, Cout_p), x.dtype),
        grid_spec=pltpu.PrefetchScalarGridSpec(
            num_scalar_prefetch=0,
            grid=(N,),
            in_specs=in_specs,
            out_specs=pl.BlockSpec((1, H1, W1, Cout_p), lambda n: (n, 0, 0, 0)),
            scratch_shapes=[pltpu.VMEM((H1 + 2, W1 + 2, Cout_p), jnp.float32)],
        ),
        compiler_params=pltpu.CompilerParams(dimension_semantics=("parallel",)),
    )(*args)

    out = out[:, :, :, :Cout]                       # drop channel padding
    return jnp.transpose(out, (0, 3, 1, 2))         # NHWC -> NCHW


# ----------------------------------------------------------------------------
# Parameter construction (deterministic, shapes follow the PyTorch __init__)
# ----------------------------------------------------------------------------
def make_params(key, inchannel, outchannel, stride):
    ks = jax.random.split(key, 16)
    eps = 1e-5

    def conv_w(k, cout, cin, kh, kw):
        bound = 1.0 / math.sqrt(cin * kh * kw)
        return jax.random.uniform(k, (cout, cin, kh, kw), jnp.float32, -bound, bound)

    def bn_fold(kg, kb, km, kv, c):
        gamma = 1.0 + 0.1 * jax.random.normal(kg, (c,), jnp.float32)
        beta = 0.1 * jax.random.normal(kb, (c,), jnp.float32)
        mean = 0.1 * jax.random.normal(km, (c,), jnp.float32)
        var = 1.0 + 0.1 * jnp.abs(jax.random.normal(kv, (c,), jnp.float32))
        scale = gamma / jnp.sqrt(var + eps)
        bias = beta - mean * scale
        return scale, bias

    p = {}
    p['w1'] = conv_w(ks[0], outchannel, inchannel, 3, 3)          # OIHW
    p['scale1'], p['bias1'] = bn_fold(ks[1], ks[2], ks[3], ks[4], outchannel)
    p['w2'] = conv_w(ks[5], outchannel, outchannel, 3, 3)
    p['scale2'], p['bias2'] = bn_fold(ks[6], ks[7], ks[8], ks[9], outchannel)
    if stride != 1 or inchannel != outchannel:
        p['wsc'] = conv_w(ks[10], outchannel, inchannel, 1, 1)
        p['scale_sc'], p['bias_sc'] = bn_fold(ks[11], ks[12], ks[13], ks[14], outchannel)
    return p


# ----------------------------------------------------------------------------
# Pure-JAX reference (for correctness check)
# ----------------------------------------------------------------------------
def ref_forward(x_nchw, p, stride):
    def conv(x, w, s, pad):
        return jax.lax.conv_general_dilated(
            x, w, (s, s), [(pad, pad), (pad, pad)],
            dimension_numbers=('NCHW', 'OIHW', 'NCHW'))

    def bn(x, scale, bias):
        return x * scale[None, :, None, None] + bias[None, :, None, None]

    out = jnp.maximum(bn(conv(x_nchw, p['w1'], stride, 1), p['scale1'], p['bias1']), 0.0)
    out = bn(conv(out, p['w2'], 1, 1), p['scale2'], p['bias2'])
    if 'wsc' in p:
        sc = bn(conv(x_nchw, p['wsc'], stride, 0), p['scale_sc'], p['bias_sc'])
    else:
        sc = x_nchw
    return jnp.maximum(out + sc, 0.0)


if __name__ == "__main__":
    key = jax.random.PRNGKey(0)
    k_x1, k_p1, k_x2, k_p2 = jax.random.split(key, 4)

    # case 1: projection shortcut (inchannel != outchannel) -> conv1x1 + BN path
    x1 = jax.random.normal(k_x1, (2, 4, 16, 16), jnp.float32)      # NCHW
    p1 = make_params(k_p1, 4, 8, 1)
    out1 = jax.block_until_ready(residual_block_forward(x1, p1, 1))
    ref1 = jax.block_until_ready(ref_forward(x1, p1, 1))
    assert out1.shape == ref1.shape, (out1.shape, ref1.shape)
    np.testing.assert_allclose(np.asarray(out1), np.asarray(ref1), atol=1e-4, rtol=1e-4)

    # case 2: identity shortcut (stride=1, inchannel == outchannel)
    x2 = jax.random.normal(k_x2, (2, 8, 16, 16), jnp.float32)
    p2 = make_params(k_p2, 8, 8, 1)
    out2 = jax.block_until_ready(residual_block_forward(x2, p2, 1))
    ref2 = jax.block_until_ready(ref_forward(x2, p2, 1))
    assert out2.shape == ref2.shape, (out2.shape, ref2.shape)
    np.testing.assert_allclose(np.asarray(out2), np.asarray(ref2), atol=1e-4, rtol=1e-4)

    print("KERNEL_OK")
</pallas_src>

<mosaic_0001>
module attributes {stable_mosaic.version = 11 : i64} {
  func.func @_resblock_kernel(%arg0: i32, %arg1: memref<1x18x18x128xf32, #tpu.memory_space<vmem>>, %arg2: memref<9x128x128xf32, #tpu.memory_space<vmem>>, %arg3: memref<1x128xf32, #tpu.memory_space<vmem>>, %arg4: memref<1x128xf32, #tpu.memory_space<vmem>>, %arg5: memref<9x128x128xf32, #tpu.memory_space<vmem>>, %arg6: memref<1x128xf32, #tpu.memory_space<vmem>>, %arg7: memref<1x128xf32, #tpu.memory_space<vmem>>, %arg8: memref<128x128xf32, #tpu.memory_space<vmem>>, %arg9: memref<1x128xf32, #tpu.memory_space<vmem>>, %arg10: memref<1x128xf32, #tpu.memory_space<vmem>>, %arg11: memref<1x16x16x128xf32, #tpu.memory_space<vmem>>, %arg12: memref<18x18x128xf32, #tpu.memory_space<vmem>>) attributes {dimension_semantics = [#tpu.dimension_semantics<parallel>], iteration_bounds = array<i64: 2>, scalar_prefetch = 0 : i64, scratch_operands = 1 : i64, tpu.core_type = #tpu.core_type<tc>, window_params = [{transform_indices = @transform_0, window_bounds = array<i64: 1, 18, 18, 128>}, {pipeline_mode = #tpu.pipeline_mode<synchronous>, transform_indices = @transform_1, window_bounds = array<i64: 9, 128, 128>}, {pipeline_mode = #tpu.pipeline_mode<synchronous>, transform_indices = @transform_2, window_bounds = array<i64: 1, 128>}, {pipeline_mode = #tpu.pipeline_mode<synchronous>, transform_indices = @transform_3, window_bounds = array<i64: 1, 128>}, {pipeline_mode = #tpu.pipeline_mode<synchronous>, transform_indices = @transform_4, window_bounds = array<i64: 9, 128, 128>}, {pipeline_mode = #tpu.pipeline_mode<synchronous>, transform_indices = @transform_5, window_bounds = array<i64: 1, 128>}, {pipeline_mode = #tpu.pipeline_mode<synchronous>, transform_indices = @transform_6, window_bounds = array<i64: 1, 128>}, {pipeline_mode = #tpu.pipeline_mode<synchronous>, transform_indices = @transform_7, window_bounds = array<i64: 128, 128>}, {pipeline_mode = #tpu.pipeline_mode<synchronous>, transform_indices = @transform_8, window_bounds = array<i64: 1, 128>}, {pipeline_mode = #tpu.pipeline_mode<synchronous>, transform_indices = @transform_9, window_bounds = array<i64: 1, 128>}, {transform_indices = @transform_10, window_bounds = array<i64: 1, 16, 16, 128>}]} {
    %c0 = arith.constant 0 : index
    %c0_0 = arith.constant 0 : index
    %c0_1 = arith.constant 0 : index
    %c0_2 = arith.constant 0 : index
    %0 = vector.load %arg1[%c0, %c0_0, %c0_1, %c0_2] : memref<1x18x18x128xf32, #tpu.memory_space<vmem>>, vector<1x18x18x128xf32>
    %1 = vector.shape_cast %0 : vector<1x18x18x128xf32> to vector<18x18x128xf32>
    %cst = arith.constant 0.000000e+00 : f32
    %2 = vector.broadcast %cst : f32 to vector<256x128xf32>
    %3 = vector.extract_strided_slice %1 {offsets = [0, 0, 0], sizes = [16, 16, 128], strides = [1, 1, 1]} : vector<18x18x128xf32> to vector<16x16x128xf32>
    %4 = vector.shape_cast %3 : vector<16x16x128xf32> to vector<256x128xf32>
    %c0_3 = arith.constant 0 : index
    %c0_4 = arith.constant 0 : index
    %c0_5 = arith.constant 0 : index
    %5 = vector.load %arg2[%c0_3, %c0_4, %c0_5] : memref<9x128x128xf32, #tpu.memory_space<vmem>>, vector<1x128x128xf32>
    %6 = vector.shape_cast %5 : vector<1x128x128xf32> to vector<128x128xf32>
    %cst_6 = arith.constant dense<0.000000e+00> : vector<256x128xf32>
    %7 = tpu.matmul %4, %6, %cst_6 {dimension_numbers = #tpu.dot_dimension_numbers<[1], [0], [0], [1], [0, 0, 1, 1], [], []>} : vector<256x128xf32>, vector<128x128xf32>, vector<256x128xf32> -> vector<256x128xf32>
    %8 = arith.addf %2, %7 : vector<256x128xf32>
    %9 = vector.extract_strided_slice %1 {offsets = [0, 1, 0], sizes = [16, 16, 128], strides = [1, 1, 1]} : vector<18x18x128xf32> to vector<16x16x128xf32>
    %10 = vector.shape_cast %9 : vector<16x16x128xf32> to vector<256x128xf32>
    %c1 = arith.constant 1 : index
    %c0_7 = arith.constant 0 : index
    %c0_8 = arith.constant 0 : index
    %11 = vector.load %arg2[%c1, %c0_7, %c0_8] : memref<9x128x128xf32, #tpu.memory_space<vmem>>, vector<1x128x128xf32>
    %12 = vector.shape_cast %11 : vector<1x128x128xf32> to vector<128x128xf32>
    %cst_9 = arith.constant dense<0.000000e+00> : vector<256x128xf32>
    %13 = tpu.matmul %10, %12, %cst_9 {dimension_numbers = #tpu.dot_dimension_numbers<[1], [0], [0], [1], [0, 0, 1, 1], [], []>} : vector<256x128xf32>, vector<128x128xf32>, vector<256x128xf32> -> vector<256x128xf32>
    %14 = arith.addf %8, %13 : vector<256x128xf32>
    %15 = vector.extract_strided_slice %1 {offsets = [0, 2, 0], sizes = [16, 16, 128], strides = [1, 1, 1]} : vector<18x18x128xf32> to vector<16x16x128xf32>
    %16 = vector.shape_cast %15 : vector<16x16x128xf32> to vector<256x128xf32>
    %c2 = arith.constant 2 : index
    %c0_10 = arith.constant 0 : index
    %c0_11 = arith.constant 0 : index
    %17 = vector.load %arg2[%c2, %c0_10, %c0_11] : memref<9x128x128xf32, #tpu.memory_space<vmem>>, vector<1x128x128xf32>
    %18 = vector.shape_cast %17 : vector<1x128x128xf32> to vector<128x128xf32>
    %cst_12 = arith.constant dense<0.000000e+00> : vector<256x128xf32>
    %19 = tpu.matmul %16, %18, %cst_12 {dimension_numbers = #tpu.dot_dimension_numbers<[1], [0], [0], [1], [0, 0, 1, 1], [], []>} : vector<256x128xf32>, vector<128x128xf32>, vector<256x128xf32> -> vector<256x128xf32>
    %20 = arith.addf %14, %19 : vector<256x128xf32>
    %21 = vector.extract_strided_slice %1 {offsets = [1, 0, 0], sizes = [16, 16, 128], strides = [1, 1, 1]} : vector<18x18x128xf32> to vector<16x16x128xf32>
    %22 = vector.shape_cast %21 : vector<16x16x128xf32> to vector<256x128xf32>
    %c3 = arith.constant 3 : index
    %c0_13 = arith.constant 0 : index
    %c0_14 = arith.constant 0 : index
    %23 = vector.load %arg2[%c3, %c0_13, %c0_14] : memref<9x128x128xf32, #tpu.memory_space<vmem>>, vector<1x128x128xf32>
    %24 = vector.shape_cast %23 : vector<1x128x128xf32> to vector<128x128xf32>
    %cst_15 = arith.constant dense<0.000000e+00> : vector<256x128xf32>
    %25 = tpu.matmul %22, %24, %cst_15 {dimension_numbers = #tpu.dot_dimension_numbers<[1], [0], [0], [1], [0, 0, 1, 1], [], []>} : vector<256x128xf32>, vector<128x128xf32>, vector<256x128xf32> -> vector<256x128xf32>
    %26 = arith.addf %20, %25 : vector<256x128xf32>
    %27 = vector.extract_strided_slice %1 {offsets = [1, 1, 0], sizes = [16, 16, 128], strides = [1, 1, 1]} : vector<18x18x128xf32> to vector<16x16x128xf32>
    %28 = vector.shape_cast %27 : vector<16x16x128xf32> to vector<256x128xf32>
    %c4 = arith.constant 4 : index
    %c0_16 = arith.constant 0 : index
    %c0_17 = arith.constant 0 : index
    %29 = vector.load %arg2[%c4, %c0_16, %c0_17] : memref<9x128x128xf32, #tpu.memory_space<vmem>>, vector<1x128x128xf32>
    %30 = vector.shape_cast %29 : vector<1x128x128xf32> to vector<128x128xf32>
    %cst_18 = arith.constant dense<0.000000e+00> : vector<256x128xf32>
    %31 = tpu.matmul %28, %30, %cst_18 {dimension_numbers = #tpu.dot_dimension_numbers<[1], [0], [0], [1], [0, 0, 1, 1], [], []>} : vector<256x128xf32>, vector<128x128xf32>, vector<256x128xf32> -> vector<256x128xf32>
    %32 = arith.addf %26, %31 : vector<256x128xf32>
    %33 = vector.extract_strided_slice %1 {offsets = [1, 2, 0], sizes = [16, 16, 128], strides = [1, 1, 1]} : vector<18x18x128xf32> to vector<16x16x128xf32>
    %34 = vector.shape_cast %33 : vector<16x16x128xf32> to vector<256x128xf32>
    %c5 = arith.constant 5 : index
    %c0_19 = arith.constant 0 : index
    %c0_20 = arith.constant 0 : index
    %35 = vector.load %arg2[%c5, %c0_19, %c0_20] : memref<9x128x128xf32, #tpu.memory_space<vmem>>, vector<1x128x128xf32>
    %36 = vector.shape_cast %35 : vector<1x128x128xf32> to vector<128x128xf32>
    %cst_21 = arith.constant dense<0.000000e+00> : vector<256x128xf32>
    %37 = tpu.matmul %34, %36, %cst_21 {dimension_numbers = #tpu.dot_dimension_numbers<[1], [0], [0], [1], [0, 0, 1, 1], [], []>} : vector<256x128xf32>, vector<128x128xf32>, vector<256x128xf32> -> vector<256x128xf32>
    %38 = arith.addf %32, %37 : vector<256x128xf32>
    %39 = vector.extract_strided_slice %1 {offsets = [2, 0, 0], sizes = [16, 16, 128], strides = [1, 1, 1]} : vector<18x18x128xf32> to vector<16x16x128xf32>
    %40 = vector.shape_cast %39 : vector<16x16x128xf32> to vector<256x128xf32>
    %c6 = arith.constant 6 : index
    %c0_22 = arith.constant 0 : index
    %c0_23 = arith.constant 0 : index
    %41 = vector.load %arg2[%c6, %c0_22, %c0_23] : memref<9x128x128xf32, #tpu.memory_space<vmem>>, vector<1x128x128xf32>
    %42 = vector.shape_cast %41 : vector<1x128x128xf32> to vector<128x128xf32>
    %cst_24 = arith.constant dense<0.000000e+00> : vector<256x128xf32>
    %43 = tpu.matmul %40, %42, %cst_24 {dimension_numbers = #tpu.dot_dimension_numbers<[1], [0], [0], [1], [0, 0, 1, 1], [], []>} : vector<256x128xf32>, vector<128x128xf32>, vector<256x128xf32> -> vector<256x128xf32>
    %44 = arith.addf %38, %43 : vector<256x128xf32>
    %45 = vector.extract_strided_slice %1 {offsets = [2, 1, 0], sizes = [16, 16, 128], strides = [1, 1, 1]} : vector<18x18x128xf32> to vector<16x16x128xf32>
    %46 = vector.shape_cast %45 : vector<16x16x128xf32> to vector<256x128xf32>
    %c7 = arith.constant 7 : index
    %c0_25 = arith.constant 0 : index
    %c0_26 = arith.constant 0 : index
    %47 = vector.load %arg2[%c7, %c0_25, %c0_26] : memref<9x128x128xf32, #tpu.memory_space<vmem>>, vector<1x128x128xf32>
    %48 = vector.shape_cast %47 : vector<1x128x128xf32> to vector<128x128xf32>
    %cst_27 = arith.constant dense<0.000000e+00> : vector<256x128xf32>
    %49 = tpu.matmul %46, %48, %cst_27 {dimension_numbers = #tpu.dot_dimension_numbers<[1], [0], [0], [1], [0, 0, 1, 1], [], []>} : vector<256x128xf32>, vector<128x128xf32>, vector<256x128xf32> -> vector<256x128xf32>
    %50 = arith.addf %44, %49 : vector<256x128xf32>
    %51 = vector.extract_strided_slice %1 {offsets = [2, 2, 0], sizes = [16, 16, 128], strides = [1, 1, 1]} : vector<18x18x128xf32> to vector<16x16x128xf32>
    %52 = vector.shape_cast %51 : vector<16x16x128xf32> to vector<256x128xf32>
    %c8 = arith.constant 8 : index
    %c0_28 = arith.constant 0 : index
    %c0_29 = arith.constant 0 : index
    %53 = vector.load %arg2[%c8, %c0_28, %c0_29] : memref<9x128x128xf32, #tpu.memory_space<vmem>>, vector<1x128x128xf32>
    %54 = vector.shape_cast %53 : vector<1x128x128xf32> to vector<128x128xf32>
    %cst_30 = arith.constant dense<0.000000e+00> : vector<256x128xf32>
    %55 = tpu.matmul %52, %54, %cst_30 {dimension_numbers = #tpu.dot_dimension_numbers<[1], [0], [0], [1], [0, 0, 1, 1], [], []>} : vector<256x128xf32>, vector<128x128xf32>, vector<256x128xf32> -> vector<256x128xf32>
    %56 = arith.addf %50, %55 : vector<256x128xf32>
    %c0_31 = arith.constant 0 : index
    %c0_32 = arith.constant 0 : index
    %57 = vector.load %arg3[%c0_31, %c0_32] : memref<1x128xf32, #tpu.memory_space<vmem>>, vector<1x128xf32>
    %58 = vector.broadcast %57 : vector<1x128xf32> to vector<256x128xf32>
    %59 = arith.mulf %56, %58 : vector<256x128xf32>
    %c0_33 = arith.constant 0 : index
    %c0_34 = arith.constant 0 : index
    %60 = vector.load %arg4[%c0_33, %c0_34] : memref<1x128xf32, #tpu.memory_space<vmem>>, vector<1x128xf32>
    %61 = vector.broadcast %60 : vector<1x128xf32> to vector<256x128xf32>
    %62 = arith.addf %59, %61 : vector<256x128xf32>
    %cst_35 = arith.constant 0.000000e+00 : f32
    %63 = vector.broadcast %cst_35 : f32 to vector<256x128xf32>
    %64 = arith.maximumf %62, %63 : vector<256x128xf32>
    %cst_36 = arith.constant 0.000000e+00 : f32
    %65 = vector.broadcast %cst_36 : f32 to vector<18x18x128xf32>
    %c0_37 = arith.constant 0 : index
    %c0_38 = arith.constant 0 : index
    %c0_39 = arith.constant 0 : index
    %66 = vector.load %arg12[%c0_37, %c0_38, %c0_39] : memref<18x18x128xf32, #tpu.memory_space<vmem>>, vector<18x18x128xf32>
    tpu.vector_store %arg12[%c0_37, %c0_38, %c0_39], %65 {strides = array<i32>} : memref<18x18x128xf32, #tpu.memory_space<vmem>>, vector<18x18x128xf32>,
    %67 = vector.shape_cast %64 : vector<256x128xf32> to vector<16x16x128xf32>
    %c1_40 = arith.constant 1 : index
    %c1_41 = arith.constant 1 : index
    %c0_42 = arith.constant 0 : index
    %68 = vector.load %arg12[%c1_40, %c1_41, %c0_42] : memref<18x18x128xf32, #tpu.memory_space<vmem>>, vector<16x16x128xf32>
    tpu.vector_store %arg12[%c1_40, %c1_41, %c0_42], %67 {strides = array<i32>} : memref<18x18x128xf32, #tpu.memory_space<vmem>>, vector<16x16x128xf32>,
    %69 = vector.extract_strided_slice %1 {offsets = [1, 1, 0], sizes = [16, 16, 128], strides = [1, 1, 1]} : vector<18x18x128xf32> to vector<16x16x128xf32>
    %70 = vector.shape_cast %69 : vector<16x16x128xf32> to vector<256x128xf32>
    %c0_43 = arith.constant 0 : index
    %c0_44 = arith.constant 0 : index
    %71 = vector.load %arg8[%c0_43, %c0_44] : memref<128x128xf32, #tpu.memory_space<vmem>>, vector<128x128xf32>
    %cst_45 = arith.constant dense<0.000000e+00> : vector<256x128xf32>
    %72 = tpu.matmul %70, %71, %cst_45 {dimension_numbers = #tpu.dot_dimension_numbers<[1], [0], [0], [1], [0, 0, 1, 1], [], []>} : vector<256x128xf32>, vector<128x128xf32>, vector<256x128xf32> -> vector<256x128xf32>
    %c0_46 = arith.constant 0 : index
    %c0_47 = arith.constant 0 : index
    %73 = vector.load %arg9[%c0_46, %c0_47] : memref<1x128xf32, #tpu.memory_space<vmem>>, vector<1x128xf32>
    %74 = vector.broadcast %73 : vector<1x128xf32> to vector<256x128xf32>
    %75 = arith.mulf %72, %74 : vector<256x128xf32>
    %c0_48 = arith.constant 0 : index
    %c0_49 = arith.constant 0 : index
    %76 = vector.load %arg10[%c0_48, %c0_49] : memref<1x128xf32, #tpu.memory_space<vmem>>, vector<1x128xf32>
    %77 = vector.broadcast %76 : vector<1x128xf32> to vector<256x128xf32>
    %78 = arith.addf %75, %77 : vector<256x128xf32>
    %c0_50 = arith.constant 0 : index
    %c0_51 = arith.constant 0 : index
    %c0_52 = arith.constant 0 : index
    %79 = vector.load %arg12[%c0_50, %c0_51, %c0_52] : memref<18x18x128xf32, #tpu.memory_space<vmem>>, vector<18x18x128xf32>
    %cst_53 = arith.constant 0.000000e+00 : f32
    %80 = vector.broadcast %cst_53 : f32 to vector<256x128xf32>
    %81 = vector.extract_strided_slice %79 {offsets = [0, 0, 0], sizes = [16, 16, 128], strides = [1, 1, 1]} : vector<18x18x128xf32> to vector<16x16x128xf32>
    %82 = vector.shape_cast %81 : vector<16x16x128xf32> to vector<256x128xf32>
    %c0_54 = arith.constant 0 : index
    %c0_55 = arith.constant 0 : index
    %c0_56 = arith.constant 0 : index
    %83 = vector.load %arg5[%c0_54, %c0_55, %c0_56] : memref<9x128x128xf32, #tpu.memory_space<vmem>>, vector<1x128x128xf32>
    %84 = vector.shape_cast %83 : vector<1x128x128xf32> to vector<128x128xf32>
    %cst_57 = arith.constant dense<0.000000e+00> : vector<256x128xf32>
    %85 = tpu.matmul %82, %84, %cst_57 {dimension_numbers = #tpu.dot_dimension_numbers<[1], [0], [0], [1], [0, 0, 1, 1], [], []>} : vector<256x128xf32>, vector<128x128xf32>, vector<256x128xf32> -> vector<256x128xf32>
    %86 = arith.addf %80, %85 : vector<256x128xf32>
    %87 = vector.extract_strided_slice %79 {offsets = [0, 1, 0], sizes = [16, 16, 128], strides = [1, 1, 1]} : vector<18x18x128xf32> to vector<16x16x128xf32>
    %88 = vector.shape_cast %87 : vector<16x16x128xf32> to vector<256x128xf32>
    %c1_58 = arith.constant 1 : index
    %c0_59 = arith.constant 0 : index
    %c0_60 = arith.constant 0 : index
    %89 = vector.load %arg5[%c1_58, %c0_59, %c0_60] : memref<9x128x128xf32, #tpu.memory_space<vmem>>, vector<1x128x128xf32>
    %90 = vector.shape_cast %89 : vector<1x128x128xf32> to vector<128x128xf32>
    %cst_61 = arith.constant dense<0.000000e+00> : vector<256x128xf32>
    %91 = tpu.matmul %88, %90, %cst_61 {dimension_numbers = #tpu.dot_dimension_numbers<[1], [0], [0], [1], [0, 0, 1, 1], [], []>} : vector<256x128xf32>, vector<128x128xf32>, vector<256x128xf32> -> vector<256x128xf32>
    %92 = arith.addf %86, %91 : vector<256x128xf32>
    %93 = vector.extract_strided_slice %79 {offsets = [0, 2, 0], sizes = [16, 16, 128], strides = [1, 1, 1]} : vector<18x18x128xf32> to vector<16x16x128xf32>
    %94 = vector.shape_cast %93 : vector<16x16x128xf32> to vector<256x128xf32>
    %c2_62 = arith.constant 2 : index
    %c0_63 = arith.constant 0 : index
    %c0_64 = arith.constant 0 : index
    %95 = vector.load %arg5[%c2_62, %c0_63, %c0_64] : memref<9x128x128xf32, #tpu.memory_space<vmem>>, vector<1x128x128xf32>
    %96 = vector.shape_cast %95 : vector<1x128x128xf32> to vector<128x128xf32>
    %cst_65 = arith.constant dense<0.000000e+00> : vector<256x128xf32>
    %97 = tpu.matmul %94, %96, %cst_65 {dimension_numbers = #tpu.dot_dimension_numbers<[1], [0], [0], [1], [0, 0, 1, 1], [], []>} : vector<256x128xf32>, vector<128x128xf32>, vector<256x128xf32> -> vector<256x128xf32>
    %98 = arith.addf %92, %97 : vector<256x128xf32>
    %99 = vector.extract_strided_slice %79 {offsets = [1, 0, 0], sizes = [16, 16, 128], strides = [1, 1, 1]} : vector<18x18x128xf32> to vector<16x16x128xf32>
    %100 = vector.shape_cast %99 : vector<16x16x128xf32> to vector<256x128xf32>
    %c3_66 = arith.constant 3 : index
    %c0_67 = arith.constant 0 : index
    %c0_68 = arith.constant 0 : index
    %101 = vector.load %arg5[%c3_66, %c0_67, %c0_68] : memref<9x128x128xf32, #tpu.memory_space<vmem>>, vector<1x128x128xf32>
    %102 = vector.shape_cast %101 : vector<1x128x128xf32> to vector<128x128xf32>
    %cst_69 = arith.constant dense<0.000000e+00> : vector<256x128xf32>
    %103 = tpu.matmul %100, %102, %cst_69 {dimension_numbers = #tpu.dot_dimension_numbers<[1], [0], [0], [1], [0, 0, 1, 1], [], []>} : vector<256x128xf32>, vector<128x128xf32>, vector<256x128xf32> -> vector<256x128xf32>
    %104 = arith.addf %98, %103 : vector<256x128xf32>
    %105 = vector.extract_strided_slice %79 {offsets = [1, 1, 0], sizes = [16, 16, 128], strides = [1, 1, 1]} : vector<18x18x128xf32> to vector<16x16x128xf32>
    %106 = vector.shape_cast %105 : vector<16x16x128xf32> to vector<256x128xf32>
    %c4_70 = arith.constant 4 : index
    %c0_71 = arith.constant 0 : index
    %c0_72 = arith.constant 0 : index
    %107 = vector.load %arg5[%c4_70, %c0_71, %c0_72] : memref<9x128x128xf32, #tpu.memory_space<vmem>>, vector<1x128x128xf32>
    %108 = vector.shape_cast %107 : vector<1x128x128xf32> to vector<128x128xf32>
    %cst_73 = arith.constant dense<0.000000e+00> : vector<256x128xf32>
    %109 = tpu.matmul %106, %108, %cst_73 {dimension_numbers = #tpu.dot_dimension_numbers<[1], [0], [0], [1], [0, 0, 1, 1], [], []>} : vector<256x128xf32>, vector<128x128xf32>, vector<256x128xf32> -> vector<256x128xf32>
    %110 = arith.addf %104, %109 : vector<256x128xf32>
    %111 = vector.extract_strided_slice %79 {offsets = [1, 2, 0], sizes = [16, 16, 128], strides = [1, 1, 1]} : vector<18x18x128xf32> to vector<16x16x128xf32>
    %112 = vector.shape_cast %111 : vector<16x16x128xf32> to vector<256x128xf32>
    %c5_74 = arith.constant 5 : index
    %c0_75 = arith.constant 0 : index
    %c0_76 = arith.constant 0 : index
    %113 = vector.load %arg5[%c5_74, %c0_75, %c0_76] : memref<9x128x128xf32, #tpu.memory_space<vmem>>, vector<1x128x128xf32>
    %114 = vector.shape_cast %113 : vector<1x128x128xf32> to vector<128x128xf32>
    %cst_77 = arith.constant dense<0.000000e+00> : vector<256x128xf32>
    %115 = tpu.matmul %112, %114, %cst_77 {dimension_numbers = #tpu.dot_dimension_numbers<[1], [0], [0], [1], [0, 0, 1, 1], [], []>} : vector<256x128xf32>, vector<128x128xf32>, vector<256x128xf32> -> vector<256x128xf32>
    %116 = arith.addf %110, %115 : vector<256x128xf32>
    %117 = vector.extract_strided_slice %79 {offsets = [2, 0, 0], sizes = [16, 16, 128], strides = [1, 1, 1]} : vector<18x18x128xf32> to vector<16x16x128xf32>
    %118 = vector.shape_cast %117 : vector<16x16x128xf32> to vector<256x128xf32>
    %c6_78 = arith.constant 6 : index
    %c0_79 = arith.constant 0 : index
    %c0_80 = arith.constant 0 : index
    %119 = vector.load %arg5[%c6_78, %c0_79, %c0_80] : memref<9x128x128xf32, #tpu.memory_space<vmem>>, vector<1x128x128xf32>
    %120 = vector.shape_cast %119 : vector<1x128x128xf32> to vector<128x128xf32>
    %cst_81 = arith.constant dense<0.000000e+00> : vector<256x128xf32>
    %121 = tpu.matmul %118, %120, %cst_81 {dimension_numbers = #tpu.dot_dimension_numbers<[1], [0], [0], [1], [0, 0, 1, 1], [], []>} : vector<256x128xf32>, vector<128x128xf32>, vector<256x128xf32> -> vector<256x128xf32>
    %122 = arith.addf %116, %121 : vector<256x128xf32>
    %123 = vector.extract_strided_slice %79 {offsets = [2, 1, 0], sizes = [16, 16, 128], strides = [1, 1, 1]} : vector<18x18x128xf32> to vector<16x16x128xf32>
    %124 = vector.shape_cast %123 : vector<16x16x128xf32> to vector<256x128xf32>
    %c7_82 = arith.constant 7 : index
    %c0_83 = arith.constant 0 : index
    %c0_84 = arith.constant 0 : index
    %125 = vector.load %arg5[%c7_82, %c0_83, %c0_84] : memref<9x128x128xf32, #tpu.memory_space<vmem>>, vector<1x128x128xf32>
    %126 = vector.shape_cast %125 : vector<1x128x128xf32> to vector<128x128xf32>
    %cst_85 = arith.constant dense<0.000000e+00> : vector<256x128xf32>
    %127 = tpu.matmul %124, %126, %cst_85 {dimension_numbers = #tpu.dot_dimension_numbers<[1], [0], [0], [1], [0, 0, 1, 1], [], []>} : vector<256x128xf32>, vector<128x128xf32>, vector<256x128xf32> -> vector<256x128xf32>
    %128 = arith.addf %122, %127 : vector<256x128xf32>
    %129 = vector.extract_strided_slice %79 {offsets = [2, 2, 0], sizes = [16, 16, 128], strides = [1, 1, 1]} : vector<18x18x128xf32> to vector<16x16x128xf32>
    %130 = vector.shape_cast %129 : vector<16x16x128xf32> to vector<256x128xf32>
    %c8_86 = arith.constant 8 : index
    %c0_87 = arith.constant 0 : index
    %c0_88 = arith.constant 0 : index
    %131 = vector.load %arg5[%c8_86, %c0_87, %c0_88] : memref<9x128x128xf32, #tpu.memory_space<vmem>>, vector<1x128x128xf32>
    %132 = vector.shape_cast %131 : vector<1x128x128xf32> to vector<128x128xf32>
    %cst_89 = arith.constant dense<0.000000e+00> : vector<256x128xf32>
    %133 = tpu.matmul %130, %132, %cst_89 {dimension_numbers = #tpu.dot_dimension_numbers<[1], [0], [0], [1], [0, 0, 1, 1], [], []>} : vector<256x128xf32>, vector<128x128xf32>, vector<256x128xf32> -> vector<256x128xf32>
    %134 = arith.addf %128, %133 : vector<256x128xf32>
    %c0_90 = arith.constant 0 : index
    %c0_91 = arith.constant 0 : index
    %135 = vector.load %arg6[%c0_90, %c0_91] : memref<1x128xf32, #tpu.memory_space<vmem>>, vector<1x128xf32>
    %136 = vector.broadcast %135 : vector<1x128xf32> to vector<256x128xf32>
    %137 = arith.mulf %134, %136 : vector<256x128xf32>
    %c0_92 = arith.constant 0 : index
    %c0_93 = arith.constant 0 : index
    %138 = vector.load %arg7[%c0_92, %c0_93] : memref<1x128xf32, #tpu.memory_space<vmem>>, vector<1x128xf32>
    %139 = vector.broadcast %138 : vector<1x128xf32> to vector<256x128xf32>
    %140 = arith.addf %137, %139 : vector<256x128xf32>
    %141 = arith.addf %140, %78 : vector<256x128xf32>
    %cst_94 = arith.constant 0.000000e+00 : f32
    %142 = vector.broadcast %cst_94 : f32 to vector<256x128xf32>
    %143 = arith.maximumf %141, %142 : vector<256x128xf32>
    %144 = vector.shape_cast %143 : vector<256x128xf32> to vector<16x16x128xf32>
    %c0_95 = arith.constant 0 : index
    %c0_96 = arith.constant 0 : index
    %c0_97 = arith.constant 0 : index
    %c0_98 = arith.constant 0 : index
    %145 = vector.load %arg11[%c0_95, %c0_96, %c0_97, %c0_98] : memref<1x16x16x128xf32, #tpu.memory_space<vmem>>, vector<1x16x16x128xf32>
    %146 = vector.shape_cast %145 : vector<1x16x16x128xf32> to vector<16x16x128xf32>
    %147 = vector.shape_cast %144 : vector<16x16x128xf32> to vector<1x16x16x128xf32>
    tpu.vector_store %arg11[%c0_95, %c0_96, %c0_97, %c0_98], %147 {strides = array<i32>} : memref<1x16x16x128xf32, #tpu.memory_space<vmem>>, vector<1x16x16x128xf32>,
    return
  }
  func.func @transform_0(%arg0: i32) -> (i32, i32, i32, i32) {
    %c0_i32 = arith.constant 0 : i32
    %c0_i32_0 = arith.constant 0 : i32
    %c0_i32_1 = arith.constant 0 : i32
    %c0_i32_2 = arith.constant 0 : i32
    return %arg0, %c0_i32, %c0_i32_0, %c0_i32_1 : i32, i32, i32, i32
  }
  func.func @transform_1(%arg0: i32) -> (i32, i32, i32) {
    %c0_i32 = arith.constant 0 : i32
    %c0_i32_0 = arith.constant 0 : i32
    %c0_i32_1 = arith.constant 0 : i32
    %c0_i32_2 = arith.constant 0 : i32
    return %c0_i32, %c0_i32_0, %c0_i32_1 : i32, i32, i32
  }
  func.func @transform_2(%arg0: i32) -> (i32, i32) {
    %c0_i32 = arith.constant 0 : i32
    %c0_i32_0 = arith.constant 0 : i32
    %c0_i32_1 = arith.constant 0 : i32
    return %c0_i32, %c0_i32_0 : i32, i32
  }
  func.func @transform_3(%arg0: i32) -> (i32, i32) {
    %c0_i32 = arith.constant 0 : i32
    %c0_i32_0 = arith.constant 0 : i32
    %c0_i32_1 = arith.constant 0 : i32
    return %c0_i32, %c0_i32_0 : i32, i32
  }
  func.func @transform_4(%arg0: i32) -> (i32, i32, i32) {
    %c0_i32 = arith.constant 0 : i32
    %c0_i32_0 = arith.constant 0 : i32
    %c0_i32_1 = arith.constant 0 : i32
    %c0_i32_2 = arith.constant 0 : i32
    return %c0_i32, %c0_i32_0, %c0_i32_1 : i32, i32, i32
  }
  func.func @transform_5(%arg0: i32) -> (i32, i32) {
    %c0_i32 = arith.constant 0 : i32
    %c0_i32_0 = arith.constant 0 : i32
    %c0_i32_1 = arith.constant 0 : i32
    return %c0_i32, %c0_i32_0 : i32, i32
  }
  func.func @transform_6(%arg0: i32) -> (i32, i32) {
    %c0_i32 = arith.constant 0 : i32
    %c0_i32_0 = arith.constant 0 : i32
    %c0_i32_1 = arith.constant 0 : i32
    return %c0_i32, %c0_i32_0 : i32, i32
  }
  func.func @transform_7(%arg0: i32) -> (i32, i32) {
    %c0_i32 = arith.constant 0 : i32
    %c0_i32_0 = arith.constant 0 : i32
    %c0_i32_1 = arith.constant 0 : i32
    return %c0_i32, %c0_i32_0 : i32, i32
  }
  func.func @transform_8(%arg0: i32) -> (i32, i32) {
    %c0_i32 = arith.constant 0 : i32
    %c0_i32_0 = arith.constant 0 : i32
    %c0_i32_1 = arith.constant 0 : i32
    return %c0_i32, %c0_i32_0 : i32, i32
  }
  func.func @transform_9(%arg0: i32) -> (i32, i32) {
    %c0_i32 = arith.constant 0 : i32
    %c0_i32_0 = arith.constant 0 : i32
    %c0_i32_1 = arith.constant 0 : i32
    return %c0_i32, %c0_i32_0 : i32, i32
  }
  func.func @transform_10(%arg0: i32) -> (i32, i32, i32, i32) {
    %c0_i32 = arith.constant 0 : i32
    %c0_i32_0 = arith.constant 0 : i32
    %c0_i32_1 = arith.constant 0 : i32
    %c0_i32_2 = arith.constant 0 : i32
    return %arg0, %c0_i32, %c0_i32_0, %c0_i32_1 : i32, i32, i32, i32
  }
}

</mosaic_0001>

<llo_original>
// kernel: tpu_custom_call.1
$region0: #{tpu_custom_call.1}
  #allocation0 [shape = 'u32[]', space=smem, size = 0x4, offset = 0x4, fixed_abs, tag = 'smem constant byte address 0x4 - core index']
  #allocation1 [shape = 'u32[144,128]{1,0:T(1,128)}', space=vmem, size = 0x12000, scoped, tag = 'internal scratch']
  #allocation2 [shape = 'f32[18,18,128]{2,1,0:T(8,128)}', space=vmem, size = 0x36000, scoped, tag = 'scratch operand']
  %s0 = inlined_call_operand.vmem [shape: f32[2,18,18,128], index: 0, kind: input, shape index: {}]
  %s1 = inlined_call_operand.vmem [shape: f32[9,128,128], index: 1, kind: input, shape index: {}]
  %s2 = inlined_call_operand.vmem [shape: f32[1,128], index: 2, kind: input, shape index: {}]
  %s3 = inlined_call_operand.vmem [shape: f32[1,128], index: 3, kind: input, shape index: {}]
  %s4 = inlined_call_operand.hbm [shape: f32[9,128,128], index: 4, kind: input, shape index: {}]
  %s5 = inlined_call_operand.vmem [shape: f32[1,128], index: 5, kind: input, shape index: {}]
  %s6 = inlined_call_operand.vmem [shape: f32[1,128], index: 6, kind: input, shape index: {}]
  %s7 = inlined_call_operand.vmem [shape: f32[128,128], index: 7, kind: input, shape index: {}]
  %s8 = inlined_call_operand.vmem [shape: f32[1,128], index: 8, kind: input, shape index: {}]
  %s9 = inlined_call_operand.vmem [shape: f32[1,128], index: 9, kind: input, shape index: {}]
  %s10 = inlined_call_operand.hbm [shape: f32[2,16,16,128], index: 10, kind: output, shape index: {}]
  %s11 = sld [smem:[#allocation0]]
  $region77: #{tpu_custom_call.1} parent=0
    _
  %s13 = ssub.s32 1, %s11
  %s14 = scalar_select 0, %s13, %s11
  $region1: #{tpu_custom_call.1} parent=0
    #allocation3 [shape = 'u8[589824]{0}', space=vmem, size = 0x90000, scoped, tag = 'input window, operand 4, single buffered']
    #allocation4 [shape = 's32[2]{0}', space=sflag, size = 0x8, scoped, tag = 'scoped memory for tpu_custom_call.1']
    #allocation5 [shape = 's32[2]{0}', space=sflag, size = 0x8, scoped, tag = 'scoped memory for tpu_custom_call.1']
    #allocation6 [shape = 'u8[262144]{0}', space=vmem, size = 0x40000, scoped, tag = 'output window, operand 0']
    %15 = vsyncpa [#allocation4], 0
    %16 = vsyncpa [#allocation5], 0
    %s17 = scalar_lea.sflag [#allocation5], 1
    %18 = vsyncpa %s17, 0
    loop: start=0, step=1, limit=4
    $region2: #{tpu_custom_call.1} parent=1 // loop_pre_header
      _
    $region3: #{tpu_custom_call.1} parent=1 // loop_header
      %s20 = sphi 0, %s24
      %p21 = scmp.ge.s32.totalorder %s20, 4
      %s30 = sphi 0, %s32
      %s33 = sphi 0, %s30
      %s34 = sphi 0, %s33
      %s50 = sphi 0, %s34
      %s54 = sphi 0, %s54
      %s56 = sphi 0, %s54
      %s57 = sphi 0, %s56
      %s71 = sphi 0, %s57
      %s75 = sphi 0, %s75
      %s77 = sphi 0, %s75
      %s78 = sphi 0, %s77
      %s92 = sphi 0, %s78
      %s96 = sphi 0, %s96
      %s98 = sphi 0, %s96
      %s99 = sphi 0, %s98
      %s113 = sphi 0, %s99
      %s117 = sphi 0, %s117
      %s119 = sphi 0, %s117
      %s120 = sphi 0, %s119
      %s134 = sphi 0, %s120
      %s138 = sphi 0, %s138
      %s140 = sphi 0, %s138
      %s141 = sphi 0, %s140
      %s155 = sphi 0, %s141
      %s159 = sphi 0, %s159
      %s161 = sphi 0, %s159
      %s162 = sphi 0, %s161
      %s176 = sphi 0, %s162
      %s180 = sphi 0, %s180
      %s182 = sphi 0, %s180
      %s183 = sphi 0, %s182
      %s197 = sphi 0, %s183
      %s201 = sphi 0, %s201
      %s203 = sphi 0, %s201
      %s204 = sphi 0, %s203
      %s218 = sphi 0, %s204
      %s222 = sphi 0, %s222
      %s224 = sphi 0, %s222
      %s225 = sphi 0, %s224
      %s239 = sphi 0, %s225
      %s245 = sphi 0, %s247
      %s248 = sphi 0, %s245
      %s249 = sphi 0, %s248
      %s265 = sphi 0, %s249
    $region4: #{tpu_custom_call.1} parent=1 // loop_header_branch
      %23 = sbr.rel (%p21) target = $region8
    $region5: #{tpu_custom_call.1} parent=1 // loop_body
      %s25 = ssub.s32 %s20, 1
      %s26 = ssub.s32 %s20, 2
      %s27 = sadd.s32 %s20, 1
      %s28 = ssub.s32 %s20, %s27
      %p29 = scmp.eq.s32.totalorder %s28, 0
      %s31 = sadd.s32 %s30, 1
      %s32 = scalar_select %p29, %s30, %s31
      %p35 = pneg %p29
      %p36 = scmp.eq.s32.totalorder %s20, 1
      %p37 = por %p35, %p36
      %p38 = scmp.ne.s32.totalorder %s30, %s33
      %p39 = scmp.eq.s32.totalorder %s20, 0
      %p40 = por %p38, %p39
      %p41 = scmp.ne.s32.totalorder %s30, %s33
      %p42 = scmp.eq.s32.totalorder %s25, 1
      %p43 = por %p41, %p42
      %p44 = scmp.ne.s32.totalorder %s33, %s34
      %p45 = scmp.eq.s32.totalorder %s25, 0
      %p46 = por %p44, %p45
      %p47 = scmp.ne.s32.totalorder %s33, %s34
      %p48 = scmp.eq.s32.totalorder %s26, 1
      %p49 = por %p47, %p48
      %p51 = scmp.ne.s32.totalorder %s34, %s50
      %p52 = scmp.eq.s32.totalorder %s26, 0
      %p53 = por %p51, %p52
      %s55 = sadd.s32 %s54, 1
      %p58 = scmp.eq.s32.totalorder %s20, 1
      %p59 = scmp.ne.s32.totalorder %s54, %s56
      %p60 = scmp.eq.s32.totalorder %s20, 0
      %p61 = por %p59, %p60
      %p62 = scmp.ne.s32.totalorder %s54, %s56
      %p63 = scmp.eq.s32.totalorder %s25, 1
      %p64 = por %p62, %p63
      %p65 = scmp.ne.s32.totalorder %s56, %s57
      %p66 = scmp.eq.s32.totalorder %s25, 0
      %p67 = por %p65, %p66
      %p68 = scmp.ne.s32.totalorder %s56, %s57
      %p69 = scmp.eq.s32.totalorder %s26, 1
      %p70 = por %p68, %p69
      %p72 = scmp.ne.s32.totalorder %s57, %s71
      %p73 = scmp.eq.s32.totalorder %s26, 0
      %p74 = por %p72, %p73
      %s76 = sadd.s32 %s75, 1
      %p79 = scmp.eq.s32.totalorder %s20, 1
      %p80 = scmp.ne.s32.totalorder %s75, %s77
      %p81 = scmp.eq.s32.totalorder %s20, 0
      %p82 = por %p80, %p81
      %p83 = scmp.ne.s32.totalorder %s75, %s77
      %p84 = scmp.eq.s32.totalorder %s25, 1
      %p85 = por %p83, %p84
      %p86 = scmp.ne.s32.totalorder %s77, %s78
      %p87 = scmp.eq.s32.totalorder %s25, 0
      %p88 = por %p86, %p87
      %p89 = scmp.ne.s32.totalorder %s77, %s78
      %p90 = scmp.eq.s32.totalorder %s26, 1
      %p91 = por %p89, %p90
      %p93 = scmp.ne.s32.totalorder %s78, %s92
      %p94 = scmp.eq.s32.totalorder %s26, 0
      %p95 = por %p93, %p94
      %s97 = sadd.s32 %s96, 1
      %p100 = scmp.eq.s32.totalorder %s20, 1
      %p101 = scmp.ne.s32.totalorder %s96, %s98
      %p102 = scmp.eq.s32.totalorder %s20, 0
      %p103 = por %p101, %p102
      %p104 = scmp.ne.s32.totalorder %s96, %s98
      %p105 = scmp.eq.s32.totalorder %s25, 1
      %p106 = por %p104, %p105
      %p107 = scmp.ne.s32.totalorder %s98, %s99
      %p108 = scmp.eq.s32.totalorder %s25, 0
      %p109 = por %p107, %p108
      %p110 = scmp.ne.s32.totalorder %s98, %s99
      %p111 = scmp.eq.s32.totalorder %s26, 1
      %p112 = por %p110, %p111
      %p114 = scmp.ne.s32.totalorder %s99, %s113
      %p115 = scmp.eq.s32.totalorder %s26, 0
      %p116 = por %p114, %p115
      %s118 = sadd.s32 %s117, 1
      %p121 = scmp.eq.s32.totalorder %s20, 1
      %p122 = scmp.ne.s32.totalorder %s117, %s119
      %p123 = scmp.eq.s32.totalorder %s20, 0
      %p124 = por %p122, %p123
      %p125 = scmp.ne.s32.totalorder %s117, %s119
      %p126 = scmp.eq.s32.totalorder %s25, 1
      %p127 = por %p125, %p126
      %p128 = scmp.ne.s32.totalorder %s119, %s120
      %p129 = scmp.eq.s32.totalorder %s25, 0
      %p130 = por %p128, %p129
      %p131 = scmp.ne.s32.totalorder %s119, %s120
      %p132 = scmp.eq.s32.totalorder %s26, 1
      %p133 = por %p131, %p132
      %p135 = scmp.ne.s32.totalorder %s120, %s134
      %p136 = scmp.eq.s32.totalorder %s26, 0
      %p137 = por %p135, %p136
      %s139 = sadd.s32 %s138, 1
      %p142 = scmp.eq.s32.totalorder %s20, 1
      %p143 = scmp.ne.s32.totalorder %s138, %s140
      %p144 = scmp.eq.s32.totalorder %s20, 0
      %p145 = por %p143, %p144
      %p146 = scmp.ne.s32.totalorder %s138, %s140
      %p147 = scmp.eq.s32.totalorder %s25, 1
      %p148 = por %p146, %p147
      %p149 = scmp.ne.s32.totalorder %s140, %s141
      %p150 = scmp.eq.s32.totalorder %s25, 0
      %p151 = por %p149, %p150
      %p152 = scmp.ne.s32.totalorder %s140, %s141
      %p153 = scmp.eq.s32.totalorder %s26, 1
      %p154 = por %p152, %p153
      %p156 = scmp.ne.s32.totalorder %s141, %s155
      %p157 = scmp.eq.s32.totalorder %s26, 0
      %p158 = por %p156, %p157
      %s160 = sadd.s32 %s159, 1
      %p163 = scmp.eq.s32.totalorder %s20, 1
      %p164 = scmp.ne.s32.totalorder %s159, %s161
      %p165 = scmp.eq.s32.totalorder %s20, 0
      %p166 = por %p164, %p165
      %p167 = scmp.ne.s32.totalorder %s159, %s161
      %p168 = scmp.eq.s32.totalorder %s25, 1
      %p169 = por %p167, %p168
      %p170 = scmp.ne.s32.totalorder %s161, %s162
      %p171 = scmp.eq.s32.totalorder %s25, 0
      %p172 = por %p170, %p171
      %p173 = scmp.ne.s32.totalorder %s161, %s162
      %p174 = scmp.eq.s32.totalorder %s26, 1
      %p175 = por %p173, %p174
      %p177 = scmp.ne.s32.totalorder %s162, %s176
      %p178 = scmp.eq.s32.totalorder %s26, 0
      %p179 = por %p177, %p178
      %s181 = sadd.s32 %s180, 1
      %p184 = scmp.eq.s32.totalorder %s20, 1
      %p185 = scmp.ne.s32.totalorder %s180, %s182
      %p186 = scmp.eq.s32.totalorder %s20, 0
      %p187 = por %p185, %p186
      %p188 = scmp.ne.s32.totalorder %s180, %s182
      %p189 = scmp.eq.s32.totalorder %s25, 1
      %p190 = por %p188, %p189
      %p191 = scmp.ne.s32.totalorder %s182, %s183
      %p192 = scmp.eq.s32.totalorder %s25, 0
      %p193 = por %p191, %p192
      %p194 = scmp.ne.s32.totalorder %s182, %s183
      %p195 = scmp.eq.s32.totalorder %s26, 1
      %p196 = por %p194, %p195
      %p198 = scmp.ne.s32.totalorder %s183, %s197
      %p199 = scmp.eq.s32.totalorder %s26, 0
      %p200 = por %p198, %p199
      %s202 = sadd.s32 %s201, 1
      %p205 = scmp.eq.s32.totalorder %s20, 1
      %p206 = scmp.ne.s32.totalorder %s201, %s203
      %p207 = scmp.eq.s32.totalorder %s20, 0
      %p208 = por %p206, %p207
      %p209 = scmp.ne.s32.totalorder %s201, %s203
      %p210 = scmp.eq.s32.totalorder %s25, 1
      %p211 = por %p209, %p210
      %p212 = scmp.ne.s32.totalorder %s203, %s204
      %p213 = scmp.eq.s32.totalorder %s25, 0
      %p214 = por %p212, %p213
      %p215 = scmp.ne.s32.totalorder %s203, %s204
      %p216 = scmp.eq.s32.totalorder %s26, 1
      %p217 = por %p215, %p216
      %p219 = scmp.ne.s32.totalorder %s204, %s218
      %p220 = scmp.eq.s32.totalorder %s26, 0
      %p221 = por %p219, %p220
      %s223 = sadd.s32 %s222, 1
      %p226 = scmp.eq.s32.totalorder %s20, 1
      %p227 = scmp.ne.s32.totalorder %s222, %s224
      %p228 = scmp.eq.s32.totalorder %s20, 0
      %p229 = por %p227, %p228
      %p230 = scmp.ne.s32.totalorder %s222, %s224
      %p231 = scmp.eq.s32.totalorder %s25, 1
      %p232 = por %p230, %p231
      %p233 = scmp.ne.s32.totalorder %s224, %s225
      %p234 = scmp.eq.s32.totalorder %s25, 0
      %p235 = por %p233, %p234
      %p236 = scmp.ne.s32.totalorder %s224, %s225
      %p237 = scmp.eq.s32.totalorder %s26, 1
      %p238 = por %p236, %p237
      %p240 = scmp.ne.s32.totalorder %s225, %s239
      %p241 = scmp.eq.s32.totalorder %s26, 0
      %p242 = por %p240, %p241
      %s243 = ssub.s32 %s20, %s27
      %p244 = scmp.eq.s32.totalorder %s243, 0
      %s246 = sadd.s32 %s245, 1
      %s247 = scalar_select %p244, %s245, %s246
      %p250 = pneg %p244
      %p251 = scmp.eq.s32.totalorder %s20, 1
      %p252 = por %p250, %p251
      %p253 = scmp.ne.s32.totalorder %s245, %s248
      %p254 = scmp.eq.s32.totalorder %s20, 0
      %p255 = por %p253, %p254
      %p256 = scmp.ne.s32.totalorder %s245, %s248
      %p257 = scmp.eq.s32.totalorder %s25, 1
      %p258 = por %p256, %p257
      %p259 = scmp.ne.s32.totalorder %s248, %s249
      %p260 = scmp.eq.s32.totalorder %s25, 0
      %p261 = por %p259, %p260
      %p262 = scmp.ne.s32.totalorder %s248, %s249
      %p263 = scmp.eq.s32.totalorder %s26, 1
      %p264 = por %p262, %p263
      %p266 = scmp.ne.s32.totalorder %s249, %s265
      %p267 = scmp.eq.s32.totalorder %s26, 0
      %p268 = por %p266, %p267
      %p269 = scmp.le.s32.totalorder 1, %s20
      %p270 = scmp.lt.s32.totalorder %s20, 3
      %p271 = pnand %p269, %p270
      %p272 = pneg %p271
      // Predicated region
      $region9: #{tpu_custom_call.1} parent=5 // pred_check
        _
      $region10: #{tpu_custom_call.1} parent=5 // pred_check_branch
        %274 = sbr.rel (%p271) target = $region12
      $region11: #{tpu_custom_call.1} parent=5 // pred_region
        %s275 = ssub.s32 %s20, 1
        // Predicated region
        $region13: #{tpu_custom_call.1} parent=11 // pred_check
          %p276 = pneg %p67
        $region14: #{tpu_custom_call.1} parent=11 // pred_check_branch
          %278 = sbr.rel (%p276) target = $region16
        $region15: #{tpu_custom_call.1} parent=11 // pred_region
          _
        $region16: #{tpu_custom_call.1} parent=11 // pred_fallthru
          _
        // Predicated region
        $region17: #{tpu_custom_call.1} parent=11 // pred_check
          %p279 = pneg %p88
        $region18: #{tpu_custom_call.1} parent=11 // pred_check_branch
          %281 = sbr.rel (%p279) target = $region20
        $region19: #{tpu_custom_call.1} parent=11 // pred_region
          _
        $region20: #{tpu_custom_call.1} parent=11 // pred_fallthru
          _
        // Predicated region
        $region21: #{tpu_custom_call.1} parent=11 // pred_check
          %p282 = pneg %p109
        $region22: #{tpu_custom_call.1} parent=11 // pred_check_branch
          %284 = sbr.rel (%p282) target = $region24
        $region23: #{tpu_custom_call.1} parent=11 // pred_region
          _
        $region24: #{tpu_custom_call.1} parent=11 // pred_fallthru
          _
        // Predicated region
        $region25: #{tpu_custom_call.1} parent=11 // pred_check
          %p285 = pneg %p130
        $region26: #{tpu_custom_call.1} parent=11 // pred_check_branch
          %287 = sbr.rel (%p285) target = $region28
        $region27: #{tpu_custom_call.1} parent=11 // pred_region
          %s289 = ssub.s32 18432, 18432
          %290 = vsyncadd [#allocation4], %s289
          %s291 = sshll.u32 [#allocation3], 4
          %s292 = int_to_ptr.vmem [resolvable:$true] %s291
          %297 = dma.hbm_to_vmem [thread:$0]  %s4, 18432, %s292, [#allocation4], 128, 128, 8
        $region28: #{tpu_custom_call.1} parent=11 // pred_fallthru
          _
        // Predicated region
        $region29: #{tpu_custom_call.1} parent=11 // pred_check
          %p298 = pneg %p151
        $region30: #{tpu_custom_call.1} parent=11 // pred_check_branch
          %300 = sbr.rel (%p298) target = $region32
        $region31: #{tpu_custom_call.1} parent=11 // pred_region
          _
        $region32: #{tpu_custom_call.1} parent=11 // pred_fallthru
          _
        // Predicated region
        $region33: #{tpu_custom_call.1} parent=11 // pred_check
          %p301 = pneg %p172
        $region34: #{tpu_custom_call.1} parent=11 // pred_check_branch
          %303 = sbr.rel (%p301) target = $region36
        $region35: #{tpu_custom_call.1} parent=11 // pred_region
          _
        $region36: #{tpu_custom_call.1} parent=11 // pred_fallthru
          _
        // Predicated region
        $region37: #{tpu_custom_call.1} parent=11 // pred_check
          %p304 = pneg %p193
        $region38: #{tpu_custom_call.1} parent=11 // pred_check_branch
          %306 = sbr.rel (%p304) target = $region40
        $region39: #{tpu_custom_call.1} parent=11 // pred_region
          _
        $region40: #{tpu_custom_call.1} parent=11 // pred_fallthru
          _
        // Predicated region
        $region41: #{tpu_custom_call.1} parent=11 // pred_check
          %p307 = pneg %p214
        $region42: #{tpu_custom_call.1} parent=11 // pred_check_branch
          %309 = sbr.rel (%p307) target = $region44
        $region43: #{tpu_custom_call.1} parent=11 // pred_region
          _
        $region44: #{tpu_custom_call.1} parent=11 // pred_fallthru
          _
        // Predicated region
        $region45: #{tpu_custom_call.1} parent=11 // pred_check
          %p310 = pneg %p235
        $region46: #{tpu_custom_call.1} parent=11 // pred_check_branch
          %312 = sbr.rel (%p310) target = $region48
        $region47: #{tpu_custom_call.1} parent=11 // pred_region
          _
        $region48: #{tpu_custom_call.1} parent=11 // pred_fallthru
          _
      $region12: #{tpu_custom_call.1} parent=5 // pred_fallthru
        _
      %p313 = scmp.lt.s32.totalorder %s20, 2
      // Predicated region
      $region49: #{tpu_custom_call.1} parent=5 // pred_check
        %p314 = pneg %p313
      $region50: #{tpu_custom_call.1} parent=5 // pred_check_branch
        %316 = sbr.rel (%p314) target = $region52
      $region51: #{tpu_custom_call.1} parent=5 // pred_region
        // Predicated region
        $region53: #{tpu_custom_call.1} parent=51 // pred_check
          %p317 = pneg %p40
        $region54: #{tpu_custom_call.1} parent=51 // pred_check_branch
          %319 = sbr.rel (%p317) target = $region56
        $region55: #{tpu_custom_call.1} parent=51 // pred_region
          %p320 = scmp.lt.s32.totalorder %s20, 1
          %s321 = scalar_select %p320, %s20, 1
          %s322 = smul.addr %s321, 54
          %s323 = smul.addr %s322, 8
          %s324 = scalar_lea.vmem %s0, %s323
        $region56: #{tpu_custom_call.1} parent=51 // pred_fallthru
          _
      $region52: #{tpu_custom_call.1} parent=5 // pred_fallthru
        _
      %p325 = scmp.le.s32.totalorder 1, %s20
      %p326 = scmp.lt.s32.totalorder %s20, 3
      %p327 = pnand %p325, %p326
      %p328 = pneg %p327
      // Predicated region
      $region57: #{tpu_custom_call.1} parent=5 // pred_check
        _
      $region58: #{tpu_custom_call.1} parent=5 // pred_check_branch
        %330 = sbr.rel (%p327) target = $region60
      $region59: #{tpu_custom_call.1} parent=5 // pred_region
        %s331 = ssub.s32 %s20, 1
        // Predicated region
        $region61: #{tpu_custom_call.1} parent=59 // pred_check
          %p332 = pneg %p130
        $region62: #{tpu_custom_call.1} parent=59 // pred_check_branch
          %334 = sbr.rel (%p332) target = $region64
        $region63: #{tpu_custom_call.1} parent=59 // pred_region
          %335 = dma.done [#allocation4], 18432
        $region64: #{tpu_custom_call.1} parent=59 // pred_fallthru
          _
        %p336 = scmp.lt.s32.totalorder %s25, 1
        %s337 = scalar_select %p336, %s25, 1
        %s338 = smul.addr %s337, 54
        %s339 = smul.addr %s338, 8
        %s340 = scalar_lea.vmem %s0, %s339
        %p341 = pneg %p46
        %p342 = pneg %p43
        %p343 = pneg %p67
        %p344 = pneg %p64
        %p345 = pneg %p88
        %p346 = pneg %p85
        %p347 = pneg %p109
        %p348 = pneg %p106
        %p349 = pneg %p130
        %p350 = pneg %p127
        %p351 = pneg %p151
        %p352 = pneg %p148
        %p353 = pneg %p172
        %p354 = pneg %p169
        %p355 = pneg %p193
        %p356 = pneg %p190
        %p357 = pneg %p214
        %p358 = pneg %p211
        %p359 = pneg %p235
        %p360 = pneg %p232
        %p361 = pneg %p261
        %p362 = pneg %p258
        %s363 = sand.u32 %s248, 1
        %s364 = scalar_lea.sflag [#allocation5], %s363
        %s365 = sand.u32 %s248, 1
        %s366 = smul.addr %s365, 256
        %s367 = scalar_lea.vmem [#allocation6], %s366
        %p368 = scmp.lt.s32.totalorder %s25, 1
        %s369 = scalar_select %p368, %s25, 1
        %s370 = smul.addr %s369, 54
        %s371 = smul.addr %s370, 8
        %s372 = scalar_lea.vmem %s0, %s371
        %v373 = vld [vmem:[%s372] sm:$0xff]
        %v374 = vld [vmem:[%s372 + $0x8] sm:$0xff]
        %v375 = vld [vmem:[%s372 + $0x10] sm:$0x3]
        %v376 = vld [vmem:[%s372 + $0x18] sm:$0xff]
        %v377 = vld [vmem:[%s372 + $0x20] sm:$0xff]
        %v378 = vld [vmem:[%s372 + $0x28] sm:$0x3]
        %v379 = vld [vmem:[%s372 + $0x30] sm:$0xff]
        %v380 = vld [vmem:[%s372 + $0x38] sm:$0xff]
        %v381 = vld [vmem:[%s372 + $0x40] sm:$0x3]
        %v382 = vld [vmem:[%s372 + $0x48] sm:$0xff]
        %v383 = vld [vmem:[%s372 + $0x50] sm:$0xff]
        %v384 = vld [vmem:[%s372 + $0x58] sm:$0x3]
        %v385 = vld [vmem:[%s372 + $0x60] sm:$0xff]
        %v386 = vld [vmem:[%s372 + $0x68] sm:$0xff]
        %v387 = vld [vmem:[%s372 + $0x70] sm:$0x3]
        %v388 = vld [vmem:[%s372 + $0x78] sm:$0xff]
        %v389 = vld [vmem:[%s372 + $0x80] sm:$0xff]
        %v390 = vld [vmem:[%s372 + $0x88] sm:$0x3]
        %v391 = vld [vmem:[%s372 + $0x90] sm:$0xff]
        %v392 = vld [vmem:[%s372 + $0x98] sm:$0xff]
        %v393 = vld [vmem:[%s372 + $0xa0] sm:$0x3]
        %v394 = vld [vmem:[%s372 + $0xa8] sm:$0xff]
        %v395 = vld [vmem:[%s372 + $0xb0] sm:$0xff]
        %v396 = vld [vmem:[%s372 + $0xb8] sm:$0x3]
        %v397 = vld [vmem:[%s372 + $0xc0] sm:$0xff]
        %v398 = vld [vmem:[%s372 + $0xc8] sm:$0xff]
        %v399 = vld [vmem:[%s372 + $0xd0] sm:$0x3]
        %v400 = vld [vmem:[%s372 + $0xd8] sm:$0xff]
        %v401 = vld [vmem:[%s372 + $0xe0] sm:$0xff]
        %v402 = vld [vmem:[%s372 + $0xe8] sm:$0x3]
        %v403 = vld [vmem:[%s372 + $0xf0] sm:$0xff]
        %v404 = vld [vmem:[%s372 + $0xf8] sm:$0xff]
        %v405 = vld [vmem:[%s372 + $0x100] sm:$0x3]
        %v406 = vld [vmem:[%s372 + $0x108] sm:$0xff]
        %v407 = vld [vmem:[%s372 + $0x110] sm:$0xff]
        %v408 = vld [vmem:[%s372 + $0x118] sm:$0x3]
        %v409 = vld [vmem:[%s372 + $0x120] sm:$0xff]
        %v410 = vld [vmem:[%s372 + $0x128] sm:$0xff]
        %v411 = vld [vmem:[%s372 + $0x130] sm:$0x3]
        %v412 = vld [vmem:[%s372 + $0x138] sm:$0xff]
        %v413 = vld [vmem:[%s372 + $0x140] sm:$0xff]
        %v414 = vld [vmem:[%s372 + $0x148] sm:$0x3]
        %v415 = vld [vmem:[%s372 + $0x150] sm:$0xff]
        %v416 = vld [vmem:[%s372 + $0x158] sm:$0xff]
        %v417 = vld [vmem:[%s372 + $0x160] sm:$0x3]
        %v418 = vld [vmem:[%s372 + $0x168] sm:$0xff]
        %v419 = vld [vmem:[%s372 + $0x170] sm:$0xff]
        %v420 = vld [vmem:[%s372 + $0x178] sm:$0x3]
        %v421 = vld [vmem:[%s372 + $0x180] sm:$0xff]
        %v422 = vld [vmem:[%s372 + $0x188] sm:$0xff]
        %v423 = vld [vmem:[%s372 + $0x190] sm:$0x3]
        %v424 = vld [vmem:[%s372 + $0x198] sm:$0xff]
        %v425 = vld [vmem:[%s372 + $0x1a0] sm:$0xff]
        %v426 = vld [vmem:[%s372 + $0x1a8] sm:$0x3]
        %v427 = vld [vmem:[%s1] sm:$0xff]
        %v428 = vld [vmem:[%s1 + $0x8] sm:$0xff]
        %v429 = vld [vmem:[%s1 + $0x10] sm:$0xff]
        %v430 = vld [vmem:[%s1 + $0x18] sm:$0xff]
        %v431 = vld [vmem:[%s1 + $0x20] sm:$0xff]
        %v432 = vld [vmem:[%s1 + $0x28] sm:$0xff]
        %v433 = vld [vmem:[%s1 + $0x30] sm:$0xff]
        %v434 = vld [vmem:[%s1 + $0x38] sm:$0xff]
        %v435 = vld [vmem:[%s1 + $0x40] sm:$0xff]
        %v436 = vld [vmem:[%s1 + $0x48] sm:$0xff]
        %v437 = vld [vmem:[%s1 + $0x50] sm:$0xff]
        %v438 = vld [vmem:[%s1 + $0x58] sm:$0xff]
        %v439 = vld [vmem:[%s1 + $0x60] sm:$0xff]
        %v440 = vld [vmem:[%s1 + $0x68] sm:$0xff]
        %v441 = vld [vmem:[%s1 + $0x70] sm:$0xff]
        %v442 = vld [vmem:[%s1 + $0x78] sm:$0xff]
        %vm491 = vcmask 1046528
        %v492 = vrot.slane %v373, 1
        %v493 = vrot.slane %v374, 1
        %v494 = vsel %vm491, %v492, %v493
        %v495 = vrot.slane %v375, 1
        %v496 = vsel %vm491, %v493, %v495
        %v497 = vrot.slane %v376, 1
        %v498 = vrot.slane %v377, 1
        %v499 = vsel %vm491, %v497, %v498
        %v500 = vrot.slane %v378, 1
        %v501 = vsel %vm491, %v498, %v500
        %v502 = vrot.slane %v379, 1
        %v503 = vrot.slane %v380, 1
        %v504 = vsel %vm491, %v502, %v503
        %v505 = vrot.slane %v381, 1
        %v506 = vsel %vm491, %v503, %v505
        %v507 = vrot.slane %v382, 1
        %v508 = vrot.slane %v383, 1
        %v509 = vsel %vm491, %v507, %v508
        %v510 = vrot.slane %v384, 1
        %v511 = vsel %vm491, %v508, %v510
        %v512 = vrot.slane %v385, 1
        %v513 = vrot.slane %v386, 1
        %v514 = vsel %vm491, %v512, %v513
        %v515 = vrot.slane %v387, 1
        %v516 = vsel %vm491, %v513, %v515
        %v517 = vrot.slane %v388, 1
        %v518 = vrot.slane %v389, 1
        %v519 = vsel %vm491, %v517, %v518
        %v520 = vrot.slane %v390, 1
        %v521 = vsel %vm491, %v518, %v520
        %v522 = vrot.slane %v391, 1
        %v523 = vrot.slane %v392, 1
        %v524 = vsel %vm491, %v522, %v523
        %v525 = vrot.slane %v393, 1
        %v526 = vsel %vm491, %v523, %v525
        %v527 = vrot.slane %v394, 1
        %v528 = vrot.slane %v395, 1
        %v529 = vsel %vm491, %v527, %v528
        %v530 = vrot.slane %v396, 1
        %v531 = vsel %vm491, %v528, %v530
        %v532 = vrot.slane %v397, 1
        %v533 = vrot.slane %v398, 1
        %v534 = vsel %vm491, %v532, %v533
        %v535 = vrot.slane %v399, 1
        %v536 = vsel %vm491, %v533, %v535
        %v537 = vrot.slane %v400, 1
        %v538 = vrot.slane %v401, 1
        %v539 = vsel %vm491, %v537, %v538
        %v540 = vrot.slane %v402, 1
        %v541 = vsel %vm491, %v538, %v540
        %v542 = vrot.slane %v403, 1
        %v543 = vrot.slane %v404, 1
        %v544 = vsel %vm491, %v542, %v543
        %v545 = vrot.slane %v405, 1
        %v546 = vsel %vm491, %v543, %v545
        %v547 = vrot.slane %v406, 1
        %v548 = vrot.slane %v407, 1
        %v549 = vsel %vm491, %v547, %v548
        %v550 = vrot.slane %v408, 1
        %v551 = vsel %vm491, %v548, %v550
        %v552 = vrot.slane %v409, 1
        %v553 = vrot.slane %v410, 1
        %v554 = vsel %vm491, %v552, %v553
        %v555 = vrot.slane %v411, 1
        %v556 = vsel %vm491, %v553, %v555
        %v557 = vrot.slane %v412, 1
        %v558 = vrot.slane %v413, 1
        %v559 = vsel %vm491, %v557, %v558
        %v560 = vrot.slane %v414, 1
        %v561 = vsel %vm491, %v558, %v560
        %v562 = vrot.slane %v415, 1
        %v563 = vrot.slane %v416, 1
        %v564 = vsel %vm491, %v562, %v563
        %v565 = vrot.slane %v417, 1
        %v566 = vsel %vm491, %v563, %v565
        %v567 = vrot.slane %v418, 1
        %v568 = vrot.slane %v419, 1
        %v569 = vsel %vm491, %v567, %v568
        %v570 = vrot.slane %v420, 1
        %v571 = vsel %vm491, %v568, %v570
        %s604 = scalar_lea.vmem %s1, 128
        %v605 = vld [vmem:[%s604] sm:$0xff]
        %v606 = vld [vmem:[%s604 + $0x8] sm:$0xff]
        %v607 = vld [vmem:[%s604 + $0x10] sm:$0xff]
        %v608 = vld [vmem:[%s604 + $0x18] sm:$0xff]
        %v609 = vld [vmem:[%s604 + $0x20] sm:$0xff]
        %v610 = vld [vmem:[%s604 + $0x28] sm:$0xff]
        %v611 = vld [vmem:[%s604 + $0x30] sm:$0xff]
        %v612 = vld [vmem:[%s604 + $0x38] sm:$0xff]
        %v613 = vld [vmem:[%s604 + $0x40] sm:$0xff]
        %v614 = vld [vmem:[%s604 + $0x48] sm:$0xff]
        %v615 = vld [vmem:[%s604 + $0x50] sm:$0xff]
        %v616 = vld [vmem:[%s604 + $0x58] sm:$0xff]
        %v617 = vld [vmem:[%s604 + $0x60] sm:$0xff]
        %v618 = vld [vmem:[%s604 + $0x68] sm:$0xff]
        %v619 = vld [vmem:[%s604 + $0x70] sm:$0xff]
        %v620 = vld [vmem:[%s604 + $0x78] sm:$0xff]
        %621 = vmatprep.subr.mxu0 0.0
        %622 = vmatpush1.msra.mxu0 %v605
        %623 = vmatprep.subr.mxu0 0.0
        %624 = vmatpush1.msra.mxu0 %v606
        %625 = vmatprep.subr.mxu0 0.0
        %626 = vmatpush1.msra.mxu0 %v607
        %627 = vmatprep.subr.mxu0 0.0
        %628 = vmatpush1.msra.mxu0 %v608
        %629 = vmatprep.subr.mxu0 0.0
        %630 = vmatpush1.msra.mxu0 %v609
        %631 = vmatprep.subr.mxu0 0.0
        %632 = vmatpush1.msra.mxu0 %v610
        %633 = vmatprep.subr.mxu0 0.0
        %634 = vmatpush1.msra.mxu0 %v611
        %635 = vmatprep.subr.mxu0 0.0
        %636 = vmatpush1.msra.mxu0 %v612
        %637 = vmatprep.subr.mxu0 0.0
        %638 = vmatpush1.msra.mxu0 %v613
        %639 = vmatprep.subr.mxu0 0.0
        %640 = vmatpush1.msra.mxu0 %v614
        %641 = vmatprep.subr.mxu0 0.0
        %642 = vmatpush1.msra.mxu0 %v615
        %643 = vmatprep.subr.mxu0 0.0
        %644 = vmatpush1.msra.mxu0 %v616
        %645 = vmatprep.subr.mxu0 0.0
        %646 = vmatpush1.msra.mxu0 %v617
        %647 = vmatprep.subr.mxu0 0.0
        %648 = vmatpush1.msra.mxu0 %v618
        %649 = vmatprep.subr.mxu0 0.0
        %650 = vmatpush1.msra.mxu0 %v619
        %651 = vmatprep.subr.mxu0 0.0
        %652 = vmatpush1.msra.mxu0 %v620
        %653 = vmatprep.subr.mxu0 0.0
        %654 = vmatpush1.msra.mxu0 0.0
        %655 = vmatprep.subr.mxu0 0.0
        %656 = vmatpush1.msra.mxu0 0.0
        %657 = vmatprep.subr.mxu0 0.0
        %658 = vmatpush1.msra.mxu0 0.0
        %659 = vmatprep.subr.mxu0 0.0
        %660 = vmatpush1.msra.mxu0 0.0
        %661 = vmatprep.subr.mxu0 0.0
        %662 = vmatpush1.msra.mxu0 0.0
        %663 = vmatprep.subr.mxu0 0.0
        %664 = vmatpush1.msra.mxu0 0.0
        %665 = vmatprep.subr.mxu0 0.0
        %666 = vmatpush1.msra.mxu0 0.0
        %667 = vmatprep.subr.mxu0 0.0
        %668 = vmatpush1.msra.mxu0 0.0
        %669 = vmatprep.subr.mxu0 0.0
        %670 = vmatpush1.msra.mxu0 0.0
        %671 = vmatprep.subr.mxu0 0.0
        %672 = vmatpush1.msra.mxu0 0.0
        %673 = vmatprep.subr.mxu0 0.0
        %674 = vmatpush1.msra.mxu0 0.0
        %675 = vmatprep.subr.mxu0 0.0
        %676 = vmatpush1.msra.mxu0 0.0
        %677 = vmatprep.subr.mxu0 0.0
        %678 = vmatpush1.msra.mxu0 0.0
        %679 = vmatprep.subr.mxu0 0.0
        %680 = vmatpush1.msra.mxu0 0.0
        %681 = vmatprep.subr.mxu0 0.0
        %682 = vmatpush1.msra.mxu0 0.0
        %683 = vmatprep.subr.mxu0 0.0
        %684 = vmatpush1.msra.mxu0 0.0
        %685 = vmatprep.mubr.f32.mxu0 0.0
        %686 = vmatmul.mubr.f32.gmra.mrb[0].mxu0 %v494
        %v687 = vpop.f32.mrb[0].mxu0
        %v688 = vadd.f32 0.0, %v687
        %v689 = vpop.f32.mrb[0].mxu0
        %690 = vmatprep.mubr.f32.mxu0 0.0
        %691 = vmatmul.mubr.f32.gmra.mrb[0].mxu0 %v496
        %v692 = vpop.f32.mrb[0].mxu0
        %v693 = vadd.f32 0.0, %v692
        %v694 = vpop.f32.mrb[0].mxu0
        %695 = vmatprep.mubr.f32.mxu0 0.0
        %696 = vmatmul.mubr.f32.gmra.mrb[0].mxu0 %v499
        %v697 = vpop.f32.mrb[0].mxu0
        %v698 = vadd.f32 0.0, %v697
        %v699 = vpop.f32.mrb[0].mxu0
        %700 = vmatprep.mubr.f32.mxu0 0.0
        %701 = vmatmul.mubr.f32.gmra.mrb[0].mxu0 %v501
        %v702 = vpop.f32.mrb[0].mxu0
        %v703 = vadd.f32 0.0, %v702
        %v704 = vpop.f32.mrb[0].mxu0
        %705 = vmatprep.mubr.f32.mxu0 0.0
        %706 = vmatmul.mubr.f32.gmra.mrb[0].mxu0 %v504
        %v707 = vpop.f32.mrb[0].mxu0
        %v708 = vadd.f32 0.0, %v707
        %v709 = vpop.f32.mrb[0].mxu0
        %710 = vmatprep.mubr.f32.mxu0 0.0
        %711 = vmatmul.mubr.f32.gmra.mrb[0].mxu0 %v506
        %v712 = vpop.f32.mrb[0].mxu0
        %v713 = vadd.f32 0.0, %v712
        %v714 = vpop.f32.mrb[0].mxu0
        %715 = vmatprep.mubr.f32.mxu0 0.0
        %716 = vmatmul.mubr.f32.gmra.mrb[0].mxu0 %v509
        %v717 = vpop.f32.mrb[0].mxu0
        %v718 = vadd.f32 0.0, %v717
        %v719 = vpop.f32.mrb[0].mxu0
        %720 = vmatprep.mubr.f32.mxu0 0.0
        %721 = vmatmul.mubr.f32.gmra.mrb[0].mxu0 %v511
        %v722 = vpop.f32.mrb[0].mxu0
        %v723 = vadd.f32 0.0, %v722
        %v724 = vpop.f32.mrb[0].mxu0
        %725 = vmatprep.mubr.f32.mxu0 0.0
        %726 = vmatmul.mubr.f32.gmra.mrb[0].mxu0 %v514
        %v727 = vpop.f32.mrb[0].mxu0
        %v728 = vadd.f32 0.0, %v727
        %v729 = vpop.f32.mrb[0].mxu0
        %730 = vmatprep.mubr.f32.mxu0 0.0
        %731 = vmatmul.mubr.f32.gmra.mrb[0].mxu0 %v516
        %v732 = vpop.f32.mrb[0].mxu0
        %v733 = vadd.f32 0.0, %v732
        %v734 = vpop.f32.mrb[0].mxu0
        %735 = vmatprep.mubr.f32.mxu0 0.0
        %736 = vmatmul.mubr.f32.gmra.mrb[0].mxu0 %v519
        %v737 = vpop.f32.mrb[0].mxu0
        %v738 = vadd.f32 0.0, %v737
        %v739 = vpop.f32.mrb[0].mxu0
        %740 = vmatprep.mubr.f32.mxu0 0.0
        %741 = vmatmul.mubr.f32.gmra.mrb[0].mxu0 %v521
        %v742 = vpop.f32.mrb[0].mxu0
        %v743 = vadd.f32 0.0, %v742
        %v744 = vpop.f32.mrb[0].mxu0
        %745 = vmatprep.mubr.f32.mxu0 0.0
        %746 = vmatmul.mubr.f32.gmra.mrb[0].mxu0 %v524
        %v747 = vpop.f32.mrb[0].mxu0
        %v748 = vadd.f32 0.0, %v747
        %v749 = vpop.f32.mrb[0].mxu0
        %750 = vmatprep.mubr.f32.mxu0 0.0
        %751 = vmatmul.mubr.f32.gmra.mrb[0].mxu0 %v526
        %v752 = vpop.f32.mrb[0].mxu0
        %v753 = vadd.f32 0.0, %v752
        %v754 = vpop.f32.mrb[0].mxu0
        %755 = vmatprep.mubr.f32.mxu0 0.0
        %756 = vmatmul.mubr.f32.gmra.mrb[0].mxu0 %v529
        %v757 = vpop.f32.mrb[0].mxu0
        %v758 = vadd.f32 0.0, %v757
        %v759 = vpop.f32.mrb[0].mxu0
        %760 = vmatprep.mubr.f32.mxu0 0.0
        %761 = vmatmul.mubr.f32.gmra.mrb[0].mxu0 %v531
        %v762 = vpop.f32.mrb[0].mxu0
        %v763 = vadd.f32 0.0, %v762
        %v764 = vpop.f32.mrb[0].mxu0
        %765 = vmatprep.mubr.f32.mxu0 0.0
        %766 = vmatmul.mubr.f32.gmra.mrb[0].mxu0 %v534
        %v767 = vpop.f32.mrb[0].mxu0
        %v768 = vadd.f32 0.0, %v767
        %v769 = vpop.f32.mrb[0].mxu0
        %770 = vmatprep.mubr.f32.mxu0 0.0
        %771 = vmatmul.mubr.f32.gmra.mrb[0].mxu0 %v536
        %v772 = vpop.f32.mrb[0].mxu0
        %v773 = vadd.f32 0.0, %v772
        %v774 = vpop.f32.mrb[0].mxu0
        %775 = vmatprep.mubr.f32.mxu0 0.0
        %776 = vmatmul.mubr.f32.gmra.mrb[0].mxu0 %v539
        %v777 = vpop.f32.mrb[0].mxu0
        %v778 = vadd.f32 0.0, %v777
        %v779 = vpop.f32.mrb[0].mxu0
        %780 = vmatprep.mubr.f32.mxu0 0.0
        %781 = vmatmul.mubr.f32.gmra.mrb[0].mxu0 %v541
        %v782 = vpop.f32.mrb[0].mxu0
        %v783 = vadd.f32 0.0, %v782
        %v784 = vpop.f32.mrb[0].mxu0
        %785 = vmatprep.mubr.f32.mxu0 0.0
        %786 = vmatmul.mubr.f32.gmra.mrb[0].mxu0 %v544
        %v787 = vpop.f32.mrb[0].mxu0
        %v788 = vadd.f32 0.0, %v787
        %v789 = vpop.f32.mrb[0].mxu0
        %790 = vmatprep.mubr.f32.mxu0 0.0
        %791 = vmatmul.mubr.f32.gmra.mrb[0].mxu0 %v546
        %v792 = vpop.f32.mrb[0].mxu0
        %v793 = vadd.f32 0.0, %v792
        %v794 = vpop.f32.mrb[0].mxu0
        %795 = vmatprep.mubr.f32.mxu0 0.0
        %796 = vmatmul.mubr.f32.gmra.mrb[0].mxu0 %v549
        %v797 = vpop.f32.mrb[0].mxu0
        %v798 = vadd.f32 0.0, %v797
        %v799 = vpop.f32.mrb[0].mxu0
        %800 = vmatprep.mubr.f32.mxu0 0.0
        %801 = vmatmul.mubr.f32.gmra.mrb[0].mxu0 %v551
        %v802 = vpop.f32.mrb[0].mxu0
        %v803 = vadd.f32 0.0, %v802
        %v804 = vpop.f32.mrb[0].mxu0
        %805 = vmatprep.mubr.f32.mxu0 0.0
        %806 = vmatmul.mubr.f32.gmra.mrb[0].mxu0 %v554
        %v807 = vpop.f32.mrb[0].mxu0
        %v808 = vadd.f32 0.0, %v807
        %v809 = vpop.f32.mrb[0].mxu0
        %810 = vmatprep.mubr.f32.mxu0 0.0
        %811 = vmatmul.mubr.f32.gmra.mrb[0].mxu0 %v556
        %v812 = vpop.f32.mrb[0].mxu0
        %v813 = vadd.f32 0.0, %v812
        %v814 = vpop.f32.mrb[0].mxu0
        %815 = vmatprep.mubr.f32.mxu0 0.0
        %816 = vmatmul.mubr.f32.gmra.mrb[0].mxu0 %v559
        %v817 = vpop.f32.mrb[0].mxu0
        %v818 = vadd.f32 0.0, %v817
        %v819 = vpop.f32.mrb[0].mxu0
        %820 = vmatprep.mubr.f32.mxu0 0.0
        %821 = vmatmul.mubr.f32.gmra.mrb[0].mxu0 %v561
        %v822 = vpop.f32.mrb[0].mxu0
        %v823 = vadd.f32 0.0, %v822
        %v824 = vpop.f32.mrb[0].mxu0
        %825 = vmatprep.mubr.f32.mxu0 0.0
        %826 = vmatmul.mubr.f32.gmra.mrb[0].mxu0 %v564
        %v827 = vpop.f32.mrb[0].mxu0
        %v828 = vadd.f32 0.0, %v827
        %v829 = vpop.f32.mrb[0].mxu0
        %830 = vmatprep.mubr.f32.mxu0 0.0
        %831 = vmatmul.mubr.f32.gmra.mrb[0].mxu0 %v566
        %v832 = vpop.f32.mrb[0].mxu0
        %v833 = vadd.f32 0.0, %v832
        %v834 = vpop.f32.mrb[0].mxu0
        %835 = vmatprep.mubr.f32.mxu0 0.0
        %836 = vmatmul.mubr.f32.gmra.mrb[0].mxu0 %v569
        %v837 = vpop.f32.mrb[0].mxu0
        %v838 = vadd.f32 0.0, %v837
        %v839 = vpop.f32.mrb[0].mxu0
        %840 = vmatprep.mubr.f32.mxu0 0.0
        %841 = vmatmul.mubr.f32.gmra.mrb[0].mxu0 %v571
        %v842 = vpop.f32.mrb[0].mxu0
        %v843 = vadd.f32 0.0, %v842
        %v844 = vpop.f32.mrb[0].mxu0
        %845 = vdwg.mxu0
        %846 = vmatprep.subr.mxu0 0.0
        %847 = vmatpush1.msra.mxu0 %v427
        %848 = vmatprep.subr.mxu0 0.0
        %849 = vmatpush1.msra.mxu0 %v428
        %850 = vmatprep.subr.mxu0 0.0
        %851 = vmatpush1.msra.mxu0 %v429
        %852 = vmatprep.subr.mxu0 0.0
        %853 = vmatpush1.msra.mxu0 %v430
        %854 = vmatprep.subr.mxu0 0.0
        %855 = vmatpush1.msra.mxu0 %v431
        %856 = vmatprep.subr.mxu0 0.0
        %857 = vmatpush1.msra.mxu0 %v432
        %858 = vmatprep.subr.mxu0 0.0
        %859 = vmatpush1.msra.mxu0 %v433
        %860 = vmatprep.subr.mxu0 0.0
        %861 = vmatpush1.msra.mxu0 %v434
        %862 = vmatprep.subr.mxu0 0.0
        %863 = vmatpush1.msra.mxu0 %v435
        %864 = vmatprep.subr.mxu0 0.0
        %865 = vmatpush1.msra.mxu0 %v436
        %866 = vmatprep.subr.mxu0 0.0
        %867 = vmatpush1.msra.mxu0 %v437
        %868 = vmatprep.subr.mxu0 0.0
        %869 = vmatpush1.msra.mxu0 %v438
        %870 = vmatprep.subr.mxu0 0.0
        %871 = vmatpush1.msra.mxu0 %v439
        %872 = vmatprep.subr.mxu0 0.0
        %873 = vmatpush1.msra.mxu0 %v440
        %874 = vmatprep.subr.mxu0 0.0
        %875 = vmatpush1.msra.mxu0 %v441
        %876 = vmatprep.subr.mxu0 0.0
        %877 = vmatpush1.msra.mxu0 %v442
        %878 = vmatprep.subr.mxu0 0.0
        %879 = vmatpush1.msra.mxu0 0.0
        %880 = vmatprep.subr.mxu0 0.0
        %881 = vmatpush1.msra.mxu0 0.0
        %882 = vmatprep.subr.mxu0 0.0
        %883 = vmatpush1.msra.mxu0 0.0
        %884 = vmatprep.subr.mxu0 0.0
        %885 = vmatpush1.msra.mxu0 0.0
        %886 = vmatprep.subr.mxu0 0.0
        %887 = vmatpush1.msra.mxu0 0.0
        %888 = vmatprep.subr.mxu0 0.0
        %889 = vmatpush1.msra.mxu0 0.0
        %890 = vmatprep.subr.mxu0 0.0
        %891 = vmatpush1.msra.mxu0 0.0
        %892 = vmatprep.subr.mxu0 0.0
        %893 = vmatpush1.msra.mxu0 0.0
        %894 = vmatprep.subr.mxu0 0.0
        %895 = vmatpush1.msra.mxu0 0.0
        %896 = vmatprep.subr.mxu0 0.0
        %897 = vmatpush1.msra.mxu0 0.0
        %898 = vmatprep.subr.mxu0 0.0
        %899 = vmatpush1.msra.mxu0 0.0
        %900 = vmatprep.subr.mxu0 0.0
        %901 = vmatpush1.msra.mxu0 0.0
        %902 = vmatprep.subr.mxu0 0.0
        %903 = vmatpush1.msra.mxu0 0.0
        %904 = vmatprep.subr.mxu0 0.0
        %905 = vmatpush1.msra.mxu0 0.0
        %906 = vmatprep.subr.mxu0 0.0
        %907 = vmatpush1.msra.mxu0 0.0
        %908 = vmatprep.subr.mxu0 0.0
        %909 = vmatpush1.msra.mxu0 0.0
        %910 = vmatprep.mubr.f32.mxu0 0.0
        %911 = vmatmul.mubr.f32.gmra.mrb[0].mxu0 %v373
        %v912 = vpop.f32.mrb[0].mxu0
        %v913 = vadd.f32 %v688, %v912
        %v914 = vpop.f32.mrb[0].mxu0
        %915 = vmatprep.mubr.f32.mxu0 0.0
        %916 = vmatmul.mubr.f32.gmra.mrb[0].mxu0 %v374
        %v917 = vpop.f32.mrb[0].mxu0
        %v918 = vadd.f32 %v693, %v917
        %v919 = vpop.f32.mrb[0].mxu0
        %920 = vmatprep.mubr.f32.mxu0 0.0
        %921 = vmatmul.mubr.f32.gmra.mrb[0].mxu0 %v376
        %v922 = vpop.f32.mrb[0].mxu0
        %v923 = vadd.f32 %v698, %v922
        %v924 = vpop.f32.mrb[0].mxu0
        %925 = vmatprep.mubr.f32.mxu0 0.0
        %926 = vmatmul.mubr.f32.gmra.mrb[0].mxu0 %v377
        %v927 = vpop.f32.mrb[0].mxu0
        %v928 = vadd.f32 %v703, %v927
        %v929 = vpop.f32.mrb[0].mxu0
        %930 = vmatprep.mubr.f32.mxu0 0.0
        %931 = vmatmul.mubr.f32.gmra.mrb[0].mxu0 %v379
        %v932 = vpop.f32.mrb[0].mxu0
        %v933 = vadd.f32 %v708, %v932
        %v934 = vpop.f32.mrb[0].mxu0
        %935 = vmatprep.mubr.f32.mxu0 0.0
        %936 = vmatmul.mubr.f32.gmra.mrb[0].mxu0 %v380
        %v937 = vpop.f32.mrb[0].mxu0
        %v938 = vadd.f32 %v713, %v937
        %v939 = vpop.f32.mrb[0].mxu0
        %940 = vmatprep.mubr.f32.mxu0 0.0
        %941 = vmatmul.mubr.f32.gmra.mrb[0].mxu0 %v382
        %v942 = vpop.f32.mrb[0].mxu0
        %v943 = vadd.f32 %v718, %v942
        %v944 = vpop.f32.mrb[0].mxu0
        %945 = vmatprep.mubr.f32.mxu0 0.0
        %946 = vmatmul.mubr.f32.gmra.mrb[0].mxu0 %v383
        %v947 = vpop.f32.mrb[0].mxu0
        %v948 = vadd.f32 %v723, %v947
        %v949 = vpop.f32.mrb[0].mxu0
        %950 = vmatprep.mubr.f32.mxu0 0.0
        %951 = vmatmul.mubr.f32.gmra.mrb[0].mxu0 %v385
        %v952 = vpop.f32.mrb[0].mxu0
        %v953 = vadd.f32 %v728, %v952
        %v954 = vpop.f32.mrb[0].mxu0
        %955 = vmatprep.mubr.f32.mxu0 0.0
        %956 = vmatmul.mubr.f32.gmra.mrb[0].mxu0 %v386
        %v957 = vpop.f32.mrb[0].mxu0
        %v958 = vadd.f32 %v733, %v957
        %v959 = vpop.f32.mrb[0].mxu0
        %960 = vmatprep.mubr.f32.mxu0 0.0
        %961 = vmatmul.mubr.f32.gmra.mrb[0].mxu0 %v388
        %v962 = vpop.f32.mrb[0].mxu0
        %v963 = vadd.f32 %v738, %v962
        %v964 = vpop.f32.mrb[0].mxu0
        %965 = vmatprep.mubr.f32.mxu0 0.0
        %966 = vmatmul.mubr.f32.gmra.mrb[0].mxu0 %v389
        %v967 = vpop.f32.mrb[0].mxu0
        %v968 = vadd.f32 %v743, %v967
        %v969 = vpop.f32.mrb[0].mxu0
        %970 = vmatprep.mubr.f32.mxu0 0.0
        %971 = vmatmul.mubr.f32.gmra.mrb[0].mxu0 %v391
        %v972 = vpop.f32.mrb[0].mxu0
        %v973 = vadd.f32 %v748, %v972
        %v974 = vpop.f32.mrb[0].mxu0
        %975 = vmatprep.mubr.f32.mxu0 0.0
        %976 = vmatmul.mubr.f32.gmra.mrb[0].mxu0 %v392
        %v977 = vpop.f32.mrb[0].mxu0
        %v978 = vadd.f32 %v753, %v977
        %v979 = vpop.f32.mrb[0].mxu0
        %980 = vmatprep.mubr.f32.mxu0 0.0
        %981 = vmatmul.mubr.f32.gmra.mrb[0].mxu0 %v394
        %v982 = vpop.f32.mrb[0].mxu0
        %v983 = vadd.f32 %v758, %v982
        %v984 = vpop.f32.mrb[0].mxu0
        %985 = vmatprep.mubr.f32.mxu0 0.0
        %986 = vmatmul.mubr.f32.gmra.mrb[0].mxu0 %v395
        %v987 = vpop.f32.mrb[0].mxu0
        %v988 = vadd.f32 %v763, %v987
        %v989 = vpop.f32.mrb[0].mxu0
        %990 = vmatprep.mubr.f32.mxu0 0.0
        %991 = vmatmul.mubr.f32.gmra.mrb[0].mxu0 %v397
        %v992 = vpop.f32.mrb[0].mxu0
        %v993 = vadd.f32 %v768, %v992
        %v994 = vpop.f32.mrb[0].mxu0
        %995 = vmatprep.mubr.f32.mxu0 0.0
        %996 = vmatmul.mubr.f32.gmra.mrb[0].mxu0 %v398
        %v997 = vpop.f32.mrb[0].mxu0
        %v998 = vadd.f32 %v773, %v997
        %v999 = vpop.f32.mrb[0].mxu0
        %1000 = vmatprep.mubr.f32.mxu0 0.0
        %1001 = vmatmul.mubr.f32.gmra.mrb[0].mxu0 %v400
        %v1002 = vpop.f32.mrb[0].mxu0
        %v1003 = vadd.f32 %v778, %v1002
        %v1004 = vpop.f32.mrb[0].mxu0
        %1005 = vmatprep.mubr.f32.mxu0 0.0
        %1006 = vmatmul.mubr.f32.gmra.mrb[0].mxu0 %v401
        %v1007 = vpop.f32.mrb[0].mxu0
        %v1008 = vadd.f32 %v783, %v1007
        %v1009 = vpop.f32.mrb[0].mxu0
        %1010 = vmatprep.mubr.f32.mxu0 0.0
        %1011 = vmatmul.mubr.f32.gmra.mrb[0].mxu0 %v403
        %v1012 = vpop.f32.mrb[0].mxu0
        %v1013 = vadd.f32 %v788, %v1012
        %v1014 = vpop.f32.mrb[0].mxu0
        %1015 = vmatprep.mubr.f32.mxu0 0.0
        %1016 = vmatmul.mubr.f32.gmra.mrb[0].mxu0 %v404
        %v1017 = vpop.f32.mrb[0].mxu0
        %v1018 = vadd.f32 %v793, %v1017
        %v1019 = vpop.f32.mrb[0].mxu0
        %1020 = vmatprep.mubr.f32.mxu0 0.0
        %1021 = vmatmul.mubr.f32.gmra.mrb[0].mxu0 %v406
        %v1022 = vpop.f32.mrb[0].mxu0
        %v1023 = vadd.f32 %v798, %v1022
        %v1024 = vpop.f32.mrb[0].mxu0
        %1025 = vmatprep.mubr.f32.mxu0 0.0
        %1026 = vmatmul.mubr.f32.gmra.mrb[0].mxu0 %v407
        %v1027 = vpop.f32.mrb[0].mxu0
        %v1028 = vadd.f32 %v803, %v1027
        %v1029 = vpop.f32.mrb[0].mxu0
        %1030 = vmatprep.mubr.f32.mxu0 0.0
        %1031 = vmatmul.mubr.f32.gmra.mrb[0].mxu0 %v409
        %v1032 = vpop.f32.mrb[0].mxu0
        %v1033 = vadd.f32 %v808, %v1032
        %v1034 = vpop.f32.mrb[0].mxu0
        %1035 = vmatprep.mubr.f32.mxu0 0.0
        %1036 = vmatmul.mubr.f32.gmra.mrb[0].mxu0 %v410
        %v1037 = vpop.f32.mrb[0].mxu0
        %v1038 = vadd.f32 %v813, %v1037
        %v1039 = vpop.f32.mrb[0].mxu0
        %1040 = vmatprep.mubr.f32.mxu0 0.0
        %1041 = vmatmul.mubr.f32.gmra.mrb[0].mxu0 %v412
        %v1042 = vpop.f32.mrb[0].mxu0
        %v1043 = vadd.f32 %v818, %v1042
        %v1044 = vpop.f32.mrb[0].mxu0
        %1045 = vmatprep.mubr.f32.mxu0 0.0
        %1046 = vmatmul.mubr.f32.gmra.mrb[0].mxu0 %v413
        %v1047 = vpop.f32.mrb[0].mxu0
        %v1048 = vadd.f32 %v823, %v1047
        %v1049 = vpop.f32.mrb[0].mxu0
        %1050 = vmatprep.mubr.f32.mxu0 0.0
        %1051 = vmatmul.mubr.f32.gmra.mrb[0].mxu0 %v415
        %v1052 = vpop.f32.mrb[0].mxu0
        %v1053 = vadd.f32 %v828, %v1052
        %v1054 = vpop.f32.mrb[0].mxu0
        %1055 = vmatprep.mubr.f32.mxu0 0.0
        %1056 = vmatmul.mubr.f32.gmra.mrb[0].mxu0 %v416
        %v1057 = vpop.f32.mrb[0].mxu0
        %v1058 = vadd.f32 %v833, %v1057
        %v1059 = vpop.f32.mrb[0].mxu0
        %1060 = vmatprep.mubr.f32.mxu0 0.0
        %1061 = vmatmul.mubr.f32.gmra.mrb[0].mxu0 %v418
        %v1062 = vpop.f32.mrb[0].mxu0
        %v1063 = vadd.f32 %v838, %v1062
        %v1064 = vpop.f32.mrb[0].mxu0
        %1065 = vmatprep.mubr.f32.mxu0 0.0
        %1066 = vmatmul.mubr.f32.gmra.mrb[0].mxu0 %v419
        %v1067 = vpop.f32.mrb[0].mxu0
        %v1068 = vadd.f32 %v843, %v1067
        %v1069 = vpop.f32.mrb[0].mxu0
        %1070 = vdwg.mxu0
        %vm1071 = vcmask 1045504
        %v1072 = vrot.slane %v373, 2
        %v1073 = vrot.slane %v374, 2
        %v1074 = vsel %vm1071, %v1072, %v1073
        %v1075 = vrot.slane %v375, 2
        %v1076 = vsel %vm1071, %v1073, %v1075
        %v1077 = vrot.slane %v376, 2
        %v1078 = vrot.slane %v377, 2
        %v1079 = vsel %vm1071, %v1077, %v1078
        %v1080 = vrot.slane %v378, 2
        %v1081 = vsel %vm1071, %v1078, %v1080
        %v1082 = vrot.slane %v379, 2
        %v1083 = vrot.slane %v380, 2
        %v1084 = vsel %vm1071, %v1082, %v1083
        %v1085 = vrot.slane %v381, 2
        %v1086 = vsel %vm1071, %v1083, %v1085
        %v1087 = vrot.slane %v382, 2
        %v1088 = vrot.slane %v383, 2
        %v1089 = vsel %vm1071, %v1087, %v1088
        %v1090 = vrot.slane %v384, 2
        %v1091 = vsel %vm1071, %v1088, %v1090
        %v1092 = vrot.slane %v385, 2
        %v1093 = vrot.slane %v386, 2
        %v1094 = vsel %vm1071, %v1092, %v1093
        %v1095 = vrot.slane %v387, 2
        %v1096 = vsel %vm1071, %v1093, %v1095
        %v1097 = vrot.slane %v388, 2
        %v1098 = vrot.slane %v389, 2
        %v1099 = vsel %vm1071, %v1097, %v1098
        %v1100 = vrot.slane %v390, 2
        %v1101 = vsel %vm1071, %v1098, %v1100
        %v1102 = vrot.slane %v391, 2
        %v1103 = vrot.slane %v392, 2
        %v1104 = vsel %vm1071, %v1102, %v1103
        %v1105 = vrot.slane %v393, 2
        %v1106 = vsel %vm1071, %v1103, %v1105
        %v1107 = vrot.slane %v394, 2
        %v1108 = vrot.slane %v395, 2
        %v1109 = vsel %vm1071, %v1107, %v1108
        %v1110 = vrot.slane %v396, 2
        %v1111 = vsel %vm1071, %v1108, %v1110
        %v1112 = vrot.slane %v397, 2
        %v1113 = vrot.slane %v398, 2
        %v1114 = vsel %vm1071, %v1112, %v1113
        %v1115 = vrot.slane %v399, 2
        %v1116 = vsel %vm1071, %v1113, %v1115
        %v1117 = vrot.slane %v400, 2
        %v1118 = vrot.slane %v401, 2
        %v1119 = vsel %vm1071, %v1117, %v1118
        %v1120 = vrot.slane %v402, 2
        %v1121 = vsel %vm1071, %v1118, %v1120
        %v1122 = vrot.slane %v403, 2
        %v1123 = vrot.slane %v404, 2
        %v1124 = vsel %vm1071, %v1122, %v1123
        %v1125 = vrot.slane %v405, 2
        %v1126 = vsel %vm1071, %v1123, %v1125
        %v1127 = vrot.slane %v406, 2
        %v1128 = vrot.slane %v407, 2
        %v1129 = vsel %vm1071, %v1127, %v1128
        %v1130 = vrot.slane %v408, 2
        %v1131 = vsel %vm1071, %v1128, %v1130
        %v1132 = vrot.slane %v409, 2
        %v1133 = vrot.slane %v410, 2
        %v1134 = vsel %vm1071, %v1132, %v1133
        %v1135 = vrot.slane %v411, 2
        %v1136 = vsel %vm1071, %v1133, %v1135
        %v1137 = vrot.slane %v412, 2
        %v1138 = vrot.slane %v413, 2
        %v1139 = vsel %vm1071, %v1137, %v1138
        %v1140 = vrot.slane %v414, 2
        %v1141 = vsel %vm1071, %v1138, %v1140
        %v1142 = vrot.slane %v415, 2
        %v1143 = vrot.slane %v416, 2
        %v1144 = vsel %vm1071, %v1142, %v1143
        %v1145 = vrot.slane %v417, 2
        %v1146 = vsel %vm1071, %v1143, %v1145
        %v1147 = vrot.slane %v418, 2
        %v1148 = vrot.slane %v419, 2
        %v1149 = vsel %vm1071, %v1147, %v1148
        %v1150 = vrot.slane %v420, 2
        %v1151 = vsel %vm1071, %v1148, %v1150
        %s1184 = scalar_lea.vmem %s1, 256
        %v1185 = vld [vmem:[%s1184] sm:$0xff]
        %v1186 = vld [vmem:[%s1184 + $0x8] sm:$0xff]
        %v1187 = vld [vmem:[%s1184 + $0x10] sm:$0xff]
        %v1188 = vld [vmem:[%s1184 + $0x18] sm:$0xff]
        %v1189 = vld [vmem:[%s1184 + $0x20] sm:$0xff]
        %v1190 = vld [vmem:[%s1184 + $0x28] sm:$0xff]
        %v1191 = vld [vmem:[%s1184 + $0x30] sm:$0xff]
        %v1192 = vld [vmem:[%s1184 + $0x38] sm:$0xff]
        %v1193 = vld [vmem:[%s1184 + $0x40] sm:$0xff]
        %v1194 = vld [vmem:[%s1184 + $0x48] sm:$0xff]
        %v1195 = vld [vmem:[%s1184 + $0x50] sm:$0xff]
        %v1196 = vld [vmem:[%s1184 + $0x58] sm:$0xff]
        %v1197 = vld [vmem:[%s1184 + $0x60] sm:$0xff]
        %v1198 = vld [vmem:[%s1184 + $0x68] sm:$0xff]
        %v1199 = vld [vmem:[%s1184 + $0x70] sm:$0xff]
        %v1200 = vld [vmem:[%s1184 + $0x78] sm:$0xff]
        %1201 = vmatprep.subr.mxu0 0.0
        %1202 = vmatpush1.msra.mxu0 %v1185
        %1203 = vmatprep.subr.mxu0 0.0
        %1204 = vmatpush1.msra.mxu0 %v1186
        %1205 = vmatprep.subr.mxu0 0.0
        %1206 = vmatpush1.msra.mxu0 %v1187
        %1207 = vmatprep.subr.mxu0 0.0
        %1208 = vmatpush1.msra.mxu0 %v1188
        %1209 = vmatprep.subr.mxu0 0.0
        %1210 = vmatpush1.msra.mxu0 %v1189
        %1211 = vmatprep.subr.mxu0 0.0
        %1212 = vmatpush1.msra.mxu0 %v1190
        %1213 = vmatprep.subr.mxu0 0.0
        %1214 = vmatpush1.msra.mxu0 %v1191
        %1215 = vmatprep.subr.mxu0 0.0
        %1216 = vmatpush1.msra.mxu0 %v1192
        %1217 = vmatprep.subr.mxu0 0.0
        %1218 = vmatpush1.msra.mxu0 %v1193
        %1219 = vmatprep.subr.mxu0 0.0
        %1220 = vmatpush1.msra.mxu0 %v1194
        %1221 = vmatprep.subr.mxu0 0.0
        %1222 = vmatpush1.msra.mxu0 %v1195
        %1223 = vmatprep.subr.mxu0 0.0
        %1224 = vmatpush1.msra.mxu0 %v1196
        %1225 = vmatprep.subr.mxu0 0.0
        %1226 = vmatpush1.msra.mxu0 %v1197
        %1227 = vmatprep.subr.mxu0 0.0
        %1228 = vmatpush1.msra.mxu0 %v1198
        %1229 = vmatprep.subr.mxu0 0.0
        %1230 = vmatpush1.msra.mxu0 %v1199
        %1231 = vmatprep.subr.mxu0 0.0
        %1232 = vmatpush1.msra.mxu0 %v1200
        %1233 = vmatprep.subr.mxu0 0.0
        %1234 = vmatpush1.msra.mxu0 0.0
        %1235 = vmatprep.subr.mxu0 0.0
        %1236 = vmatpush1.msra.mxu0 0.0
        %1237 = vmatprep.subr.mxu0 0.0
        %1238 = vmatpush1.msra.mxu0 0.0
        %1239 = vmatprep.subr.mxu0 0.0
        %1240 = vmatpush1.msra.mxu0 0.0
        %1241 = vmatprep.subr.mxu0 0.0
        %1242 = vmatpush1.msra.mxu0 0.0
        %1243 = vmatprep.subr.mxu0 0.0
        %1244 = vmatpush1.msra.mxu0 0.0
        %1245 = vmatprep.subr.mxu0 0.0
        %1246 = vmatpush1.msra.mxu0 0.0
        %1247 = vmatprep.subr.mxu0 0.0
        %1248 = vmatpush1.msra.mxu0 0.0
        %1249 = vmatprep.subr.mxu0 0.0
        %1250 = vmatpush1.msra.mxu0 0.0
        %1251 = vmatprep.subr.mxu0 0.0
        %1252 = vmatpush1.msra.mxu0 0.0
        %1253 = vmatprep.subr.mxu0 0.0
        %1254 = vmatpush1.msra.mxu0 0.0
        %1255 = vmatprep.subr.mxu0 0.0
        %1256 = vmatpush1.msra.mxu0 0.0
        %1257 = vmatprep.subr.mxu0 0.0
        %1258 = vmatpush1.msra.mxu0 0.0
        %1259 = vmatprep.subr.mxu0 0.0
        %1260 = vmatpush1.msra.mxu0 0.0
        %1261 = vmatprep.subr.mxu0 0.0
        %1262 = vmatpush1.msra.mxu0 0.0
        %1263 = vmatprep.subr.mxu0 0.0
        %1264 = vmatpush1.msra.mxu0 0.0
        %1265 = vmatprep.mubr.f32.mxu0 0.0
        %1266 = vmatmul.mubr.f32.gmra.mrb[0].mxu0 %v1074
        %v1267 = vpop.f32.mrb[0].mxu0
        %v1268 = vadd.f32 0.0, %v1267
        %v1269 = vpop.f32.mrb[0].mxu0
        %1270 = vmatprep.mubr.f32.mxu0 0.0
        %1271 = vmatmul.mubr.f32.gmra.mrb[0].mxu0 %v1076
        %v1272 = vpop.f32.mrb[0].mxu0
        %v1273 = vadd.f32 0.0, %v1272
        %v1274 = vpop.f32.mrb[0].mxu0
        %1275 = vmatprep.mubr.f32.mxu0 0.0
        %1276 = vmatmul.mubr.f32.gmra.mrb[0].mxu0 %v1079
        %v1277 = vpop.f32.mrb[0].mxu0
        %v1278 = vadd.f32 0.0, %v1277
        %v1279 = vpop.f32.mrb[0].mxu0
        %1280 = vmatprep.mubr.f32.mxu0 0.0
        %1281 = vmatmul.mubr.f32.gmra.mrb[0].mxu0 %v1081
        %v1282 = vpop.f32.mrb[0].mxu0
        %v1283 = vadd.f32 0.0, %v1282
        %v1284 = vpop.f32.mrb[0].mxu0
        %1285 = vmatprep.mubr.f32.mxu0 0.0
        %1286 = vmatmul.mubr.f32.gmra.mrb[0].mxu0 %v1084
        %v1287 = vpop.f32.mrb[0].mxu0
        %v1288 = vadd.f32 0.0, %v1287
        %v1289 = vpop.f32.mrb[0].mxu0
        %1290 = vmatprep.mubr.f32.mxu0 0.0
        %1291 = vmatmul.mubr.f32.gmra.mrb[0].mxu0 %v1086
        %v1292 = vpop.f32.mrb[0].mxu0
        %v1293 = vadd.f32 0.0, %v1292
        %v1294 = vpop.f32.mrb[0].mxu0
        %1295 = vmatprep.mubr.f32.mxu0 0.0
        %1296 = vmatmul.mubr.f32.gmra.mrb[0].mxu0 %v1089
        %v1297 = vpop.f32.mrb[0].mxu0
        %v1298 = vadd.f32 0.0, %v1297
        %v1299 = vpop.f32.mrb[0].mxu0
        %1300 = vmatprep.mubr.f32.mxu0 0.0
        %1301 = vmatmul.mubr.f32.gmra.mrb[0].mxu0 %v1091
        %v1302 = vpop.f32.mrb[0].mxu0
        %v1303 = vadd.f32 0.0, %v1302
        %v1304 = vpop.f32.mrb[0].mxu0
        %1305 = vmatprep.mubr.f32.mxu0 0.0
        %1306 = vmatmul.mubr.f32.gmra.mrb[0].mxu0 %v1094
        %v1307 = vpop.f32.mrb[0].mxu0
        %v1308 = vadd.f32 0.0, %v1307
        %v1309 = vpop.f32.mrb[0].mxu0
        %1310 = vmatprep.mubr.f32.mxu0 0.0
        %1311 = vmatmul.mubr.f32.gmra.mrb[0].mxu0 %v1096
        %v1312 = vpop.f32.mrb[0].mxu0
        %v1313 = vadd.f32 0.0, %v1312
        %v1314 = vpop.f32.mrb[0].mxu0
        %1315 = vmatprep.mubr.f32.mxu0 0.0
        %1316 = vmatmul.mubr.f32.gmra.mrb[0].mxu0 %v1099
        %v1317 = vpop.f32.mrb[0].mxu0
        %v1318 = vadd.f32 0.0, %v1317
        %v1319 = vpop.f32.mrb[0].mxu0
        %1320 = vmatprep.mubr.f32.mxu0 0.0
        %1321 = vmatmul.mubr.f32.gmra.mrb[0].mxu0 %v1101
        %v1322 = vpop.f32.mrb[0].mxu0
        %v1323 = vadd.f32 0.0, %v1322
        %v1324 = vpop.f32.mrb[0].mxu0
        %1325 = vmatprep.mubr.f32.mxu0 0.0
        %1326 = vmatmul.mubr.f32.gmra.mrb[0].mxu0 %v1104
        %v1327 = vpop.f32.mrb[0].mxu0
        %v1328 = vadd.f32 0.0, %v1327
        %v1329 = vpop.f32.mrb[0].mxu0
        %1330 = vmatprep.mubr.f32.mxu0 0.0
        %1331 = vmatmul.mubr.f32.gmra.mrb[0].mxu0 %v1106
        %v1332 = vpop.f32.mrb[0].mxu0
        %v1333 = vadd.f32 0.0, %v1332
        %v1334 = vpop.f32.mrb[0].mxu0
        %1335 = vmatprep.mubr.f32.mxu0 0.0
        %1336 = vmatmul.mubr.f32.gmra.mrb[0].mxu0 %v1109
        %v1337 = vpop.f32.mrb[0].mxu0
        %v1338 = vadd.f32 0.0, %v1337
        %v1339 = vpop.f32.mrb[0].mxu0
        %1340 = vmatprep.mubr.f32.mxu0 0.0
        %1341 = vmatmul.mubr.f32.gmra.mrb[0].mxu0 %v1111
        %v1342 = vpop.f32.mrb[0].mxu0
        %v1343 = vadd.f32 0.0, %v1342
        %v1344 = vpop.f32.mrb[0].mxu0
        %1345 = vmatprep.mubr.f32.mxu0 0.0
        %1346 = vmatmul.mubr.f32.gmra.mrb[0].mxu0 %v1114
        %v1347 = vpop.f32.mrb[0].mxu0
        %v1348 = vadd.f32 0.0, %v1347
        %v1349 = vpop.f32.mrb[0].mxu0
        %1350 = vmatprep.mubr.f32.mxu0 0.0
        %1351 = vmatmul.mubr.f32.gmra.mrb[0].mxu0 %v1116
        %v1352 = vpop.f32.mrb[0].mxu0
        %v1353 = vadd.f32 0.0, %v1352
        %v1354 = vpop.f32.mrb[0].mxu0
        %1355 = vmatprep.mubr.f32.mxu0 0.0
        %1356 = vmatmul.mubr.f32.gmra.mrb[0].mxu0 %v1119
        %v1357 = vpop.f32.mrb[0].mxu0
        %v1358 = vadd.f32 0.0, %v1357
        %v1359 = vpop.f32.mrb[0].mxu0
        %1360 = vmatprep.mubr.f32.mxu0 0.0
        %1361 = vmatmul.mubr.f32.gmra.mrb[0].mxu0 %v1121
        %v1362 = vpop.f32.mrb[0].mxu0
        %v1363 = vadd.f32 0.0, %v1362
        %v1364 = vpop.f32.mrb[0].mxu0
        %1365 = vmatprep.mubr.f32.mxu0 0.0
        %1366 = vmatmul.mubr.f32.gmra.mrb[0].mxu0 %v1124
        %v1367 = vpop.f32.mrb[0].mxu0
        %v1368 = vadd.f32 0.0, %v1367
        %v1369 = vpop.f32.mrb[0].mxu0
        %1370 = vmatprep.mubr.f32.mxu0 0.0
        %1371 = vmatmul.mubr.f32.gmra.mrb[0].mxu0 %v1126
        %v1372 = vpop.f32.mrb[0].mxu0
        %v1373 = vadd.f32 0.0, %v1372
        %v1374 = vpop.f32.mrb[0].mxu0
        %1375 = vmatprep.mubr.f32.mxu0 0.0
        %1376 = vmatmul.mubr.f32.gmra.mrb[0].mxu0 %v1129
        %v1377 = vpop.f32.mrb[0].mxu0
        %v1378 = vadd.f32 0.0, %v1377
        %v1379 = vpop.f32.mrb[0].mxu0
        %1380 = vmatprep.mubr.f32.mxu0 0.0
        %1381 = vmatmul.mubr.f32.gmra.mrb[0].mxu0 %v1131
        %v1382 = vpop.f32.mrb[0].mxu0
        %v1383 = vadd.f32 0.0, %v1382
        %v1384 = vpop.f32.mrb[0].mxu0
        %1385 = vmatprep.mubr.f32.mxu0 0.0
        %1386 = vmatmul.mubr.f32.gmra.mrb[0].mxu0 %v1134
        %v1387 = vpop.f32.mrb[0].mxu0
        %v1388 = vadd.f32 0.0, %v1387
        %v1389 = vpop.f32.mrb[0].mxu0
        %1390 = vmatprep.mubr.f32.mxu0 0.0
        %1391 = vmatmul.mubr.f32.gmra.mrb[0].mxu0 %v1136
        %v1392 = vpop.f32.mrb[0].mxu0
        %v1393 = vadd.f32 0.0, %v1392
        %v1394 = vpop.f32.mrb[0].mxu0
        %1395 = vmatprep.mubr.f32.mxu0 0.0
        %1396 = vmatmul.mubr.f32.gmra.mrb[0].mxu0 %v1139
        %v1397 = vpop.f32.mrb[0].mxu0
        %v1398 = vadd.f32 0.0, %v1397
        %v1399 = vpop.f32.mrb[0].mxu0
        %1400 = vmatprep.mubr.f32.mxu0 0.0
        %1401 = vmatmul.mubr.f32.gmra.mrb[0].mxu0 %v1141
        %v1402 = vpop.f32.mrb[0].mxu0
        %v1403 = vadd.f32 0.0, %v1402
        %v1404 = vpop.f32.mrb[0].mxu0
        %1405 = vmatprep.mubr.f32.mxu0 0.0
        %1406 = vmatmul.mubr.f32.gmra.mrb[0].mxu0 %v1144
        %v1407 = vpop.f32.mrb[0].mxu0
        %v1408 = vadd.f32 0.0, %v1407
        %v1409 = vpop.f32.mrb[0].mxu0
        %1410 = vmatprep.mubr.f32.mxu0 0.0
        %1411 = vmatmul.mubr.f32.gmra.mrb[0].mxu0 %v1146
        %v1412 = vpop.f32.mrb[0].mxu0
        %v1413 = vadd.f32 0.0, %v1412
        %v1414 = vpop.f32.mrb[0].mxu0
        %1415 = vmatprep.mubr.f32.mxu0 0.0
        %1416 = vmatmul.mubr.f32.gmra.mrb[0].mxu0 %v1149
        %v1417 = vpop.f32.mrb[0].mxu0
        %v1418 = vadd.f32 0.0, %v1417
        %v1419 = vpop.f32.mrb[0].mxu0
        %1420 = vmatprep.mubr.f32.mxu0 0.0
        %1421 = vmatmul.mubr.f32.gmra.mrb[0].mxu0 %v1151
        %v1422 = vpop.f32.mrb[0].mxu0
        %v1423 = vadd.f32 0.0, %v1422
        %v1424 = vpop.f32.mrb[0].mxu0
        %1425 = vdwg.mxu0
        %v1426 = vadd.f32 %v913, %v1268
        %v1427 = vadd.f32 %v918, %v1273
        %v1428 = vadd.f32 %v923, %v1278
        %v1429 = vadd.f32 %v928, %v1283
        %v1430 = vadd.f32 %v933, %v1288
        %v1431 = vadd.f32 %v938, %v1293
        %v1432 = vadd.f32 %v943, %v1298
        %v1433 = vadd.f32 %v948, %v1303
        %v1434 = vadd.f32 %v953, %v1308
        %v1435 = vadd.f32 %v958, %v1313
        %v1436 = vadd.f32 %v963, %v1318
        %v1437 = vadd.f32 %v968, %v1323
        %v1438 = vadd.f32 %v973, %v1328
        %v1439 = vadd.f32 %v978, %v1333
        %v1440 = vadd.f32 %v983, %v1338
        %v1441 = vadd.f32 %v988, %v1343
        %v1442 = vadd.f32 %v993, %v1348
        %v1443 = vadd.f32 %v998, %v1353
        %v1444 = vadd.f32 %v1003, %v1358
        %v1445 = vadd.f32 %v1008, %v1363
        %v1446 = vadd.f32 %v1013, %v1368
        %v1447 = vadd.f32 %v1018, %v1373
        %v1448 = vadd.f32 %v1023, %v1378
        %v1449 = vadd.f32 %v1028, %v1383
        %v1450 = vadd.f32 %v1033, %v1388
        %v1451 = vadd.f32 %v1038, %v1393
        %v1452 = vadd.f32 %v1043, %v1398
        %v1453 = vadd.f32 %v1048, %v1403
        %v1454 = vadd.f32 %v1053, %v1408
        %v1455 = vadd.f32 %v1058, %v1413
        %v1456 = vadd.f32 %v1063, %v1418
        %v1457 = vadd.f32 %v1068, %v1423
        %s1458 = scalar_lea.vmem %s1, 384
        %v1459 = vld [vmem:[%s1458] sm:$0xff]
        %v1460 = vld [vmem:[%s1458 + $0x8] sm:$0xff]
        %v1461 = vld [vmem:[%s1458 + $0x10] sm:$0xff]
        %v1462 = vld [vmem:[%s1458 + $0x18] sm:$0xff]
        %v1463 = vld [vmem:[%s1458 + $0x20] sm:$0xff]
        %v1464 = vld [vmem:[%s1458 + $0x28] sm:$0xff]
        %v1465 = vld [vmem:[%s1458 + $0x30] sm:$0xff]
        %v1466 = vld [vmem:[%s1458 + $0x38] sm:$0xff]
        %v1467 = vld [vmem:[%s1458 + $0x40] sm:$0xff]
        %v1468 = vld [vmem:[%s1458 + $0x48] sm:$0xff]
        %v1469 = vld [vmem:[%s1458 + $0x50] sm:$0xff]
        %v1470 = vld [vmem:[%s1458 + $0x58] sm:$0xff]
        %v1471 = vld [vmem:[%s1458 + $0x60] sm:$0xff]
        %v1472 = vld [vmem:[%s1458 + $0x68] sm:$0xff]
        %v1473 = vld [vmem:[%s1458 + $0x70] sm:$0xff]
        %v1474 = vld [vmem:[%s1458 + $0x78] sm:$0xff]
        %1475 = vmatprep.subr.mxu0 0.0
        %1476 = vmatpush1.msra.mxu0 %v1459
        %1477 = vmatprep.subr.mxu0 0.0
        %1478 = vmatpush1.msra.mxu0 %v1460
        %1479 = vmatprep.subr.mxu0 0.0
        %1480 = vmatpush1.msra.mxu0 %v1461
        %1481 = vmatprep.subr.mxu0 0.0
        %1482 = vmatpush1.msra.mxu0 %v1462
        %1483 = vmatprep.subr.mxu0 0.0
        %1484 = vmatpush1.msra.mxu0 %v1463
        %1485 = vmatprep.subr.mxu0 0.0
        %1486 = vmatpush1.msra.mxu0 %v1464
        %1487 = vmatprep.subr.mxu0 0.0
        %1488 = vmatpush1.msra.mxu0 %v1465
        %1489 = vmatprep.subr.mxu0 0.0
        %1490 = vmatpush1.msra.mxu0 %v1466
        %1491 = vmatprep.subr.mxu0 0.0
        %1492 = vmatpush1.msra.mxu0 %v1467
        %1493 = vmatprep.subr.mxu0 0.0
        %1494 = vmatpush1.msra.mxu0 %v1468
        %1495 = vmatprep.subr.mxu0 0.0
        %1496 = vmatpush1.msra.mxu0 %v1469
        %1497 = vmatprep.subr.mxu0 0.0
        %1498 = vmatpush1.msra.mxu0 %v1470
        %1499 = vmatprep.subr.mxu0 0.0
        %1500 = vmatpush1.msra.mxu0 %v1471
        %1501 = vmatprep.subr.mxu0 0.0
        %1502 = vmatpush1.msra.mxu0 %v1472
        %1503 = vmatprep.subr.mxu0 0.0
        %1504 = vmatpush1.msra.mxu0 %v1473
        %1505 = vmatprep.subr.mxu0 0.0
        %1506 = vmatpush1.msra.mxu0 %v1474
        %1507 = vmatprep.subr.mxu0 0.0
        %1508 = vmatpush1.msra.mxu0 0.0
        %1509 = vmatprep.subr.mxu0 0.0
        %1510 = vmatpush1.msra.mxu0 0.0
        %1511 = vmatprep.subr.mxu0 0.0
        %1512 = vmatpush1.msra.mxu0 0.0
        %1513 = vmatprep.subr.mxu0 0.0
        %1514 = vmatpush1.msra.mxu0 0.0
        %1515 = vmatprep.subr.mxu0 0.0
        %1516 = vmatpush1.msra.mxu0 0.0
        %1517 = vmatprep.subr.mxu0 0.0
        %1518 = vmatpush1.msra.mxu0 0.0
        %1519 = vmatprep.subr.mxu0 0.0
        %1520 = vmatpush1.msra.mxu0 0.0
        %1521 = vmatprep.subr.mxu0 0.0
        %1522 = vmatpush1.msra.mxu0 0.0
        %1523 = vmatprep.subr.mxu0 0.0
        %1524 = vmatpush1.msra.mxu0 0.0
        %1525 = vmatprep.subr.mxu0 0.0
        %1526 = vmatpush1.msra.mxu0 0.0
        %1527 = vmatprep.subr.mxu0 0.0
        %1528 = vmatpush1.msra.mxu0 0.0
        %1529 = vmatprep.subr.mxu0 0.0
        %1530 = vmatpush1.msra.mxu0 0.0
        %1531 = vmatprep.subr.mxu0 0.0
        %1532 = vmatpush1.msra.mxu0 0.0
        %1533 = vmatprep.subr.mxu0 0.0
        %1534 = vmatpush1.msra.mxu0 0.0
        %1535 = vmatprep.subr.mxu0 0.0
        %1536 = vmatpush1.msra.mxu0 0.0
        %1537 = vmatprep.subr.mxu0 0.0
        %1538 = vmatpush1.msra.mxu0 0.0
        %1539 = vmatprep.mubr.f32.mxu0 0.0
        %1540 = vmatmul.mubr.f32.gmra.mrb[0].mxu0 %v376
        %v1541 = vpop.f32.mrb[0].mxu0
        %v1542 = vadd.f32 0.0, %v1541
        %v1543 = vpop.f32.mrb[0].mxu0
        %1544 = vmatprep.mubr.f32.mxu0 0.0
        %1545 = vmatmul.mubr.f32.gmra.mrb[0].mxu0 %v377
        %v1546 = vpop.f32.mrb[0].mxu0
        %v1547 = vadd.f32 0.0, %v1546
        %v1548 = vpop.f32.mrb[0].mxu0
        %1549 = vmatprep.mubr.f32.mxu0 0.0
        %1550 = vmatmul.mubr.f32.gmra.mrb[0].mxu0 %v379
        %v1551 = vpop.f32.mrb[0].mxu0
        %v1552 = vadd.f32 0.0, %v1551
        %v1553 = vpop.f32.mrb[0].mxu0
        %1554 = vmatprep.mubr.f32.mxu0 0.0
        %1555 = vmatmul.mubr.f32.gmra.mrb[0].mxu0 %v380
        %v1556 = vpop.f32.mrb[0].mxu0
        %v1557 = vadd.f32 0.0, %v1556
        %v1558 = vpop.f32.mrb[0].mxu0
        %1559 = vmatprep.mubr.f32.mxu0 0.0
        %1560 = vmatmul.mubr.f32.gmra.mrb[0].mxu0 %v382
        %v1561 = vpop.f32.mrb[0].mxu0
        %v1562 = vadd.f32 0.0, %v1561
        %v1563 = vpop.f32.mrb[0].mxu0
        %1564 = vmatprep.mubr.f32.mxu0 0.0
        %1565 = vmatmul.mubr.f32.gmra.mrb[0].mxu0 %v383
        %v1566 = vpop.f32.mrb[0].mxu0
        %v1567 = vadd.f32 0.0, %v1566
        %v1568 = vpop.f32.mrb[0].mxu0
        %1569 = vmatprep.mubr.f32.mxu0 0.0
        %1570 = vmatmul.mubr.f32.gmra.mrb[0].mxu0 %v385
        %v1571 = vpop.f32.mrb[0].mxu0
        %v1572 = vadd.f32 0.0, %v1571
        %v1573 = vpop.f32.mrb[0].mxu0
        %1574 = vmatprep.mubr.f32.mxu0 0.0
        %1575 = vmatmul.mubr.f32.gmra.mrb[0].mxu0 %v386
        %v1576 = vpop.f32.mrb[0].mxu0
        %v1577 = vadd.f32 0.0, %v1576
        %v1578 = vpop.f32.mrb[0].mxu0
        %1579 = vmatprep.mubr.f32.mxu0 0.0
        %1580 = vmatmul.mubr.f32.gmra.mrb[0].mxu0 %v388
        %v1581 = vpop.f32.mrb[0].mxu0
        %v1582 = vadd.f32 0.0, %v1581
        %v1583 = vpop.f32.mrb[0].mxu0
        %1584 = vmatprep.mubr.f32.mxu0 0.0
        %1585 = vmatmul.mubr.f32.gmra.mrb[0].mxu0 %v389
        %v1586 = vpop.f32.mrb[0].mxu0
        %v1587 = vadd.f32 0.0, %v1586
        %v1588 = vpop.f32.mrb[0].mxu0
        %1589 = vmatprep.mubr.f32.mxu0 0.0
        %1590 = vmatmul.mubr.f32.gmra.mrb[0].mxu0 %v391
        %v1591 = vpop.f32.mrb[0].mxu0
        %v1592 = vadd.f32 0.0, %v1591
        %v1593 = vpop.f32.mrb[0].mxu0
        %1594 = vmatprep.mubr.f32.mxu0 0.0
        %1595 = vmatmul.mubr.f32.gmra.mrb[0].mxu0 %v392
        %v1596 = vpop.f32.mrb[0].mxu0
        %v1597 = vadd.f32 0.0, %v1596
        %v1598 = vpop.f32.mrb[0].mxu0
        %1599 = vmatprep.mubr.f32.mxu0 0.0
        %1600 = vmatmul.mubr.f32.gmra.mrb[0].mxu0 %v394
        %v1601 = vpop.f32.mrb[0].mxu0
        %v1602 = vadd.f32 0.0, %v1601
        %v1603 = vpop.f32.mrb[0].mxu0
        %1604 = vmatprep.mubr.f32.mxu0 0.0
        %1605 = vmatmul.mubr.f32.gmra.mrb[0].mxu0 %v395
        %v1606 = vpop.f32.mrb[0].mxu0
        %v1607 = vadd.f32 0.0, %v1606
        %v1608 = vpop.f32.mrb[0].mxu0
        %1609 = vmatprep.mubr.f32.mxu0 0.0
        %1610 = vmatmul.mubr.f32.gmra.mrb[0].mxu0 %v397
        %v1611 = vpop.f32.mrb[0].mxu0
        %v1612 = vadd.f32 0.0, %v1611
        %v1613 = vpop.f32.mrb[0].mxu0
        %1614 = vmatprep.mubr.f32.mxu0 0.0
        %1615 = vmatmul.mubr.f32.gmra.mrb[0].mxu0 %v398
        %v1616 = vpop.f32.mrb[0].mxu0
        %v1617 = vadd.f32 0.0, %v1616
        %v1618 = vpop.f32.mrb[0].mxu0
        %1619 = vmatprep.mubr.f32.mxu0 0.0
        %1620 = vmatmul.mubr.f32.gmra.mrb[0].mxu0 %v400
        %v1621 = vpop.f32.mrb[0].mxu0
        %v1622 = vadd.f32 0.0, %v1621
        %v1623 = vpop.f32.mrb[0].mxu0
        %1624 = vmatprep.mubr.f32.mxu0 0.0
        %1625 = vmatmul.mubr.f32.gmra.mrb[0].mxu0 %v401
        %v1626 = vpop.f32.mrb[0].mxu0
        %v1627 = vadd.f32 0.0, %v1626
        %v1628 = vpop.f32.mrb[0].mxu0
        %1629 = vmatprep.mubr.f32.mxu0 0.0
        %1630 = vmatmul.mubr.f32.gmra.mrb[0].mxu0 %v403
        %v1631 = vpop.f32.mrb[0].mxu0
        %v1632 = vadd.f32 0.0, %v1631
        %v1633 = vpop.f32.mrb[0].mxu0
        %1634 = vmatprep.mubr.f32.mxu0 0.0
        %1635 = vmatmul.mubr.f32.gmra.mrb[0].mxu0 %v404
        %v1636 = vpop.f32.mrb[0].mxu0
        %v1637 = vadd.f32 0.0, %v1636
        %v1638 = vpop.f32.mrb[0].mxu0
        %1639 = vmatprep.mubr.f32.mxu0 0.0
        %1640 = vmatmul.mubr.f32.gmra.mrb[0].mxu0 %v406
        %v1641 = vpop.f32.mrb[0].mxu0
        %v1642 = vadd.f32 0.0, %v1641
        %v1643 = vpop.f32.mrb[0].mxu0
        %1644 = vmatprep.mubr.f32.mxu0 0.0
        %1645 = vmatmul.mubr.f32.gmra.mrb[0].mxu0 %v407
        %v1646 = vpop.f32.mrb[0].mxu0
        %v1647 = vadd.f32 0.0, %v1646
        %v1648 = vpop.f32.mrb[0].mxu0
        %1649 = vmatprep.mubr.f32.mxu0 0.0
        %1650 = vmatmul.mubr.f32.gmra.mrb[0].mxu0 %v409
        %v1651 = vpop.f32.mrb[0].mxu0
        %v1652 = vadd.f32 0.0, %v1651
        %v1653 = vpop.f32.mrb[0].mxu0
        %1654 = vmatprep.mubr.f32.mxu0 0.0
        %1655 = vmatmul.mubr.f32.gmra.mrb[0].mxu0 %v410
        %v1656 = vpop.f32.mrb[0].mxu0
        %v1657 = vadd.f32 0.0, %v1656
        %v1658 = vpop.f32.mrb[0].mxu0
        %1659 = vmatprep.mubr.f32.mxu0 0.0
        %1660 = vmatmul.mubr.f32.gmra.mrb[0].mxu0 %v412
        %v1661 = vpop.f32.mrb[0].mxu0
        %v1662 = vadd.f32 0.0, %v1661
        %v1663 = vpop.f32.mrb[0].mxu0
        %1664 = vmatprep.mubr.f32.mxu0 0.0
        %1665 = vmatmul.mubr.f32.gmra.mrb[0].mxu0 %v413
        %v1666 = vpop.f32.mrb[0].mxu0
        %v1667 = vadd.f32 0.0, %v1666
        %v1668 = vpop.f32.mrb[0].mxu0
        %1669 = vmatprep.mubr.f32.mxu0 0.0
        %1670 = vmatmul.mubr.f32.gmra.mrb[0].mxu0 %v415
        %v1671 = vpop.f32.mrb[0].mxu0
        %v1672 = vadd.f32 0.0, %v1671
        %v1673 = vpop.f32.mrb[0].mxu0
        %1674 = vmatprep.mubr.f32.mxu0 0.0
        %1675 = vmatmul.mubr.f32.gmra.mrb[0].mxu0 %v416
        %v1676 = vpop.f32.mrb[0].mxu0
        %v1677 = vadd.f32 0.0, %v1676
        %v1678 = vpop.f32.mrb[0].mxu0
        %1679 = vmatprep.mubr.f32.mxu0 0.0
        %1680 = vmatmul.mubr.f32.gmra.mrb[0].mxu0 %v418
        %v1681 = vpop.f32.mrb[0].mxu0
        %v1682 = vadd.f32 0.0, %v1681
        %v1683 = vpop.f32.mrb[0].mxu0
        %1684 = vmatprep.mubr.f32.mxu0 0.0
        %1685 = vmatmul.mubr.f32.gmra.mrb[0].mxu0 %v419
        %v1686 = vpop.f32.mrb[0].mxu0
        %v1687 = vadd.f32 0.0, %v1686
        %v1688 = vpop.f32.mrb[0].mxu0
        %1689 = vmatprep.mubr.f32.mxu0 0.0
        %1690 = vmatmul.mubr.f32.gmra.mrb[0].mxu0 %v421
        %v1691 = vpop.f32.mrb[0].mxu0
        %v1692 = vadd.f32 0.0, %v1691
        %v1693 = vpop.f32.mrb[0].mxu0
        %1694 = vmatprep.mubr.f32.mxu0 0.0
        %1695 = vmatmul.mubr.f32.gmra.mrb[0].mxu0 %v422
        %v1696 = vpop.f32.mrb[0].mxu0
        %v1697 = vadd.f32 0.0, %v1696
        %v1698 = vpop.f32.mrb[0].mxu0
        %1699 = vdwg.mxu0
        %v1700 = vadd.f32 %v1426, %v1542
        %v1701 = vadd.f32 %v1427, %v1547
        %v1702 = vadd.f32 %v1428, %v1552
        %v1703 = vadd.f32 %v1429, %v1557
        %v1704 = vadd.f32 %v1430, %v1562
        %v1705 = vadd.f32 %v1431, %v1567
        %v1706 = vadd.f32 %v1432, %v1572
        %v1707 = vadd.f32 %v1433, %v1577
        %v1708 = vadd.f32 %v1434, %v1582
        %v1709 = vadd.f32 %v1435, %v1587
        %v1710 = vadd.f32 %v1436, %v1592
        %v1711 = vadd.f32 %v1437, %v1597
        %v1712 = vadd.f32 %v1438, %v1602
        %v1713 = vadd.f32 %v1439, %v1607
        %v1714 = vadd.f32 %v1440, %v1612
        %v1715 = vadd.f32 %v1441, %v1617
        %v1716 = vadd.f32 %v1442, %v1622
        %v1717 = vadd.f32 %v1443, %v1627
        %v1718 = vadd.f32 %v1444, %v1632
        %v1719 = vadd.f32 %v1445, %v1637
        %v1720 = vadd.f32 %v1446, %v1642
        %v1721 = vadd.f32 %v1447, %v1647
        %v1722 = vadd.f32 %v1448, %v1652
        %v1723 = vadd.f32 %v1449, %v1657
        %v1724 = vadd.f32 %v1450, %v1662
        %v1725 = vadd.f32 %v1451, %v1667
        %v1726 = vadd.f32 %v1452, %v1672
        %v1727 = vadd.f32 %v1453, %v1677
        %v1728 = vadd.f32 %v1454, %v1682
        %v1729 = vadd.f32 %v1455, %v1687
        %v1730 = vadd.f32 %v1456, %v1692
        %v1731 = vadd.f32 %v1457, %v1697
        %v1735 = vrot.slane %v421, 1
        %v1736 = vrot.slane %v422, 1
        %v1737 = vsel %vm491, %v1735, %v1736
        %v1738 = vrot.slane %v423, 1
        %v1739 = vsel %vm491, %v1736, %v1738
        %s1742 = scalar_lea.vmem %s1, 512
        %v1743 = vld [vmem:[%s1742] sm:$0xff]
        %v1744 = vld [vmem:[%s1742 + $0x8] sm:$0xff]
        %v1745 = vld [vmem:[%s1742 + $0x10] sm:$0xff]
        %v1746 = vld [vmem:[%s1742 + $0x18] sm:$0xff]
        %v1747 = vld [vmem:[%s1742 + $0x20] sm:$0xff]
        %v1748 = vld [vmem:[%s1742 + $0x28] sm:$0xff]
        %v1749 = vld [vmem:[%s1742 + $0x30] sm:$0xff]
        %v1750 = vld [vmem:[%s1742 + $0x38] sm:$0xff]
        %v1751 = vld [vmem:[%s1742 + $0x40] sm:$0xff]
        %v1752 = vld [vmem:[%s1742 + $0x48] sm:$0xff]
        %v1753 = vld [vmem:[%s1742 + $0x50] sm:$0xff]
        %v1754 = vld [vmem:[%s1742 + $0x58] sm:$0xff]
        %v1755 = vld [vmem:[%s1742 + $0x60] sm:$0xff]
        %v1756 = vld [vmem:[%s1742 + $0x68] sm:$0xff]
        %v1757 = vld [vmem:[%s1742 + $0x70] sm:$0xff]
        %v1758 = vld [vmem:[%s1742 + $0x78] sm:$0xff]
        %1759 = vmatprep.subr.mxu0 0.0
        %1760 = vmatpush1.msra.mxu0 %v1743
        %1761 = vmatprep.subr.mxu0 0.0
        %1762 = vmatpush1.msra.mxu0 %v1744
        %1763 = vmatprep.subr.mxu0 0.0
        %1764 = vmatpush1.msra.mxu0 %v1745
        %1765 = vmatprep.subr.mxu0 0.0
        %1766 = vmatpush1.msra.mxu0 %v1746
        %1767 = vmatprep.subr.mxu0 0.0
        %1768 = vmatpush1.msra.mxu0 %v1747
        %1769 = vmatprep.subr.mxu0 0.0
        %1770 = vmatpush1.msra.mxu0 %v1748
        %1771 = vmatprep.subr.mxu0 0.0
        %1772 = vmatpush1.msra.mxu0 %v1749
        %1773 = vmatprep.subr.mxu0 0.0
        %1774 = vmatpush1.msra.mxu0 %v1750
        %1775 = vmatprep.subr.mxu0 0.0
        %1776 = vmatpush1.msra.mxu0 %v1751
        %1777 = vmatprep.subr.mxu0 0.0
        %1778 = vmatpush1.msra.mxu0 %v1752
        %1779 = vmatprep.subr.mxu0 0.0
        %1780 = vmatpush1.msra.mxu0 %v1753
        %1781 = vmatprep.subr.mxu0 0.0
        %1782 = vmatpush1.msra.mxu0 %v1754
        %1783 = vmatprep.subr.mxu0 0.0
        %1784 = vmatpush1.msra.mxu0 %v1755
        %1785 = vmatprep.subr.mxu0 0.0
        %1786 = vmatpush1.msra.mxu0 %v1756
        %1787 = vmatprep.subr.mxu0 0.0
        %1788 = vmatpush1.msra.mxu0 %v1757
        %1789 = vmatprep.subr.mxu0 0.0
        %1790 = vmatpush1.msra.mxu0 %v1758
        %1791 = vmatprep.subr.mxu0 0.0
        %1792 = vmatpush1.msra.mxu0 0.0
        %1793 = vmatprep.subr.mxu0 0.0
        %1794 = vmatpush1.msra.mxu0 0.0
        %1795 = vmatprep.subr.mxu0 0.0
        %1796 = vmatpush1.msra.mxu0 0.0
        %1797 = vmatprep.subr.mxu0 0.0
        %1798 = vmatpush1.msra.mxu0 0.0
        %1799 = vmatprep.subr.mxu0 0.0
        %1800 = vmatpush1.msra.mxu0 0.0
        %1801 = vmatprep.subr.mxu0 0.0
        %1802 = vmatpush1.msra.mxu0 0.0
        %1803 = vmatprep.subr.mxu0 0.0
        %1804 = vmatpush1.msra.mxu0 0.0
        %1805 = vmatprep.subr.mxu0 0.0
        %1806 = vmatpush1.msra.mxu0 0.0
        %1807 = vmatprep.subr.mxu0 0.0
        %1808 = vmatpush1.msra.mxu0 0.0
        %1809 = vmatprep.subr.mxu0 0.0
        %1810 = vmatpush1.msra.mxu0 0.0
        %1811 = vmatprep.subr.mxu0 0.0
        %1812 = vmatpush1.msra.mxu0 0.0
        %1813 = vmatprep.subr.mxu0 0.0
        %1814 = vmatpush1.msra.mxu0 0.0
        %1815 = vmatprep.subr.mxu0 0.0
        %1816 = vmatpush1.msra.mxu0 0.0
        %1817 = vmatprep.subr.mxu0 0.0
        %1818 = vmatpush1.msra.mxu0 0.0
        %1819 = vmatprep.subr.mxu0 0.0
        %1820 = vmatpush1.msra.mxu0 0.0
        %1821 = vmatprep.subr.mxu0 0.0
        %1822 = vmatpush1.msra.mxu0 0.0
        %1823 = vmatprep.mubr.f32.mxu0 0.0
        %1824 = vmatmul.mubr.f32.gmra.mrb[0].mxu0 %v499
        %v1825 = vpop.f32.mrb[0].mxu0
        %v1826 = vadd.f32 0.0, %v1825
        %v1827 = vpop.f32.mrb[0].mxu0
        %1828 = vmatprep.mubr.f32.mxu0 0.0
        %1829 = vmatmul.mubr.f32.gmra.mrb[0].mxu0 %v501
        %v1830 = vpop.f32.mrb[0].mxu0
        %v1831 = vadd.f32 0.0, %v1830
        %v1832 = vpop.f32.mrb[0].mxu0
        %1833 = vmatprep.mubr.f32.mxu0 0.0
        %1834 = vmatmul.mubr.f32.gmra.mrb[0].mxu0 %v504
        %v1835 = vpop.f32.mrb[0].mxu0
        %v1836 = vadd.f32 0.0, %v1835
        %v1837 = vpop.f32.mrb[0].mxu0
        %1838 = vmatprep.mubr.f32.mxu0 0.0
        %1839 = vmatmul.mubr.f32.gmra.mrb[0].mxu0 %v506
        %v1840 = vpop.f32.mrb[0].mxu0
        %v1841 = vadd.f32 0.0, %v1840
        %v1842 = vpop.f32.mrb[0].mxu0
        %1843 = vmatprep.mubr.f32.mxu0 0.0
        %1844 = vmatmul.mubr.f32.gmra.mrb[0].mxu0 %v509
        %v1845 = vpop.f32.mrb[0].mxu0
        %v1846 = vadd.f32 0.0, %v1845
        %v1847 = vpop.f32.mrb[0].mxu0
        %1848 = vmatprep.mubr.f32.mxu0 0.0
        %1849 = vmatmul.mubr.f32.gmra.mrb[0].mxu0 %v511
        %v1850 = vpop.f32.mrb[0].mxu0
        %v1851 = vadd.f32 0.0, %v1850
        %v1852 = vpop.f32.mrb[0].mxu0
        %1853 = vmatprep.mubr.f32.mxu0 0.0
        %1854 = vmatmul.mubr.f32.gmra.mrb[0].mxu0 %v514
        %v1855 = vpop.f32.mrb[0].mxu0
        %v1856 = vadd.f32 0.0, %v1855
        %v1857 = vpop.f32.mrb[0].mxu0
        %1858 = vmatprep.mubr.f32.mxu0 0.0
        %1859 = vmatmul.mubr.f32.gmra.mrb[0].mxu0 %v516
        %v1860 = vpop.f32.mrb[0].mxu0
        %v1861 = vadd.f32 0.0, %v1860
        %v1862 = vpop.f32.mrb[0].mxu0
        %1863 = vmatprep.mubr.f32.mxu0 0.0
        %1864 = vmatmul.mubr.f32.gmra.mrb[0].mxu0 %v519
        %v1865 = vpop.f32.mrb[0].mxu0
        %v1866 = vadd.f32 0.0, %v1865
        %v1867 = vpop.f32.mrb[0].mxu0
        %1868 = vmatprep.mubr.f32.mxu0 0.0
        %1869 = vmatmul.mubr.f32.gmra.mrb[0].mxu0 %v521
        %v1870 = vpop.f32.mrb[0].mxu0
        %v1871 = vadd.f32 0.0, %v1870
        %v1872 = vpop.f32.mrb[0].mxu0
        %1873 = vmatprep.mubr.f32.mxu0 0.0
        %1874 = vmatmul.mubr.f32.gmra.mrb[0].mxu0 %v524
        %v1875 = vpop.f32.mrb[0].mxu0
        %v1876 = vadd.f32 0.0, %v1875
        %v1877 = vpop.f32.mrb[0].mxu0
        %1878 = vmatprep.mubr.f32.mxu0 0.0
        %1879 = vmatmul.mubr.f32.gmra.mrb[0].mxu0 %v526
        %v1880 = vpop.f32.mrb[0].mxu0
        %v1881 = vadd.f32 0.0, %v1880
        %v1882 = vpop.f32.mrb[0].mxu0
        %1883 = vmatprep.mubr.f32.mxu0 0.0
        %1884 = vmatmul.mubr.f32.gmra.mrb[0].mxu0 %v529
        %v1885 = vpop.f32.mrb[0].mxu0
        %v1886 = vadd.f32 0.0, %v1885
        %v1887 = vpop.f32.mrb[0].mxu0
        %1888 = vmatprep.mubr.f32.mxu0 0.0
        %1889 = vmatmul.mubr.f32.gmra.mrb[0].mxu0 %v531
        %v1890 = vpop.f32.mrb[0].mxu0
        %v1891 = vadd.f32 0.0, %v1890
        %v1892 = vpop.f32.mrb[0].mxu0
        %1893 = vmatprep.mubr.f32.mxu0 0.0
        %1894 = vmatmul.mubr.f32.gmra.mrb[0].mxu0 %v534
        %v1895 = vpop.f32.mrb[0].mxu0
        %v1896 = vadd.f32 0.0, %v1895
        %v1897 = vpop.f32.mrb[0].mxu0
        %1898 = vmatprep.mubr.f32.mxu0 0.0
        %1899 = vmatmul.mubr.f32.gmra.mrb[0].mxu0 %v536
        %v1900 = vpop.f32.mrb[0].mxu0
        %v1901 = vadd.f32 0.0, %v1900
        %v1902 = vpop.f32.mrb[0].mxu0
        %1903 = vmatprep.mubr.f32.mxu0 0.0
        %1904 = vmatmul.mubr.f32.gmra.mrb[0].mxu0 %v539
        %v1905 = vpop.f32.mrb[0].mxu0
        %v1906 = vadd.f32 0.0, %v1905
        %v1907 = vpop.f32.mrb[0].mxu0
        %1908 = vmatprep.mubr.f32.mxu0 0.0
        %1909 = vmatmul.mubr.f32.gmra.mrb[0].mxu0 %v541
        %v1910 = vpop.f32.mrb[0].mxu0
        %v1911 = vadd.f32 0.0, %v1910
        %v1912 = vpop.f32.mrb[0].mxu0
        %1913 = vmatprep.mubr.f32.mxu0 0.0
        %1914 = vmatmul.mubr.f32.gmra.mrb[0].mxu0 %v544
        %v1915 = vpop.f32.mrb[0].mxu0
        %v1916 = vadd.f32 0.0, %v1915
        %v1917 = vpop.f32.mrb[0].mxu0
        %1918 = vmatprep.mubr.f32.mxu0 0.0
        %1919 = vmatmul.mubr.f32.gmra.mrb[0].mxu0 %v546
        %v1920 = vpop.f32.mrb[0].mxu0
        %v1921 = vadd.f32 0.0, %v1920
        %v1922 = vpop.f32.mrb[0].mxu0
        %1923 = vmatprep.mubr.f32.mxu0 0.0
        %1924 = vmatmul.mubr.f32.gmra.mrb[0].mxu0 %v549
        %v1925 = vpop.f32.mrb[0].mxu0
        %v1926 = vadd.f32 0.0, %v1925
        %v1927 = vpop.f32.mrb[0].mxu0
        %1928 = vmatprep.mubr.f32.mxu0 0.0
        %1929 = vmatmul.mubr.f32.gmra.mrb[0].mxu0 %v551
        %v1930 = vpop.f32.mrb[0].mxu0
        %v1931 = vadd.f32 0.0, %v1930
        %v1932 = vpop.f32.mrb[0].mxu0
        %1933 = vmatprep.mubr.f32.mxu0 0.0
        %1934 = vmatmul.mubr.f32.gmra.mrb[0].mxu0 %v554
        %v1935 = vpop.f32.mrb[0].mxu0
        %v1936 = vadd.f32 0.0, %v1935
        %v1937 = vpop.f32.mrb[0].mxu0
        %1938 = vmatprep.mubr.f32.mxu0 0.0
        %1939 = vmatmul.mubr.f32.gmra.mrb[0].mxu0 %v556
        %v1940 = vpop.f32.mrb[0].mxu0
        %v1941 = vadd.f32 0.0, %v1940
        %v1942 = vpop.f32.mrb[0].mxu0
        %1943 = vmatprep.mubr.f32.mxu0 0.0
        %1944 = vmatmul.mubr.f32.gmra.mrb[0].mxu0 %v559
        %v1945 = vpop.f32.mrb[0].mxu0
        %v1946 = vadd.f32 0.0, %v1945
        %v1947 = vpop.f32.mrb[0].mxu0
        %1948 = vmatprep.mubr.f32.mxu0 0.0
        %1949 = vmatmul.mubr.f32.gmra.mrb[0].mxu0 %v561
        %v1950 = vpop.f32.mrb[0].mxu0
        %v1951 = vadd.f32 0.0, %v1950
        %v1952 = vpop.f32.mrb[0].mxu0
        %1953 = vmatprep.mubr.f32.mxu0 0.0
        %1954 = vmatmul.mubr.f32.gmra.mrb[0].mxu0 %v564
        %v1955 = vpop.f32.mrb[0].mxu0
        %v1956 = vadd.f32 0.0, %v1955
        %v1957 = vpop.f32.mrb[0].mxu0
        %1958 = vmatprep.mubr.f32.mxu0 0.0
        %1959 = vmatmul.mubr.f32.gmra.mrb[0].mxu0 %v566
        %v1960 = vpop.f32.mrb[0].mxu0
        %v1961 = vadd.f32 0.0, %v1960
        %v1962 = vpop.f32.mrb[0].mxu0
        %1963 = vmatprep.mubr.f32.mxu0 0.0
        %1964 = vmatmul.mubr.f32.gmra.mrb[0].mxu0 %v569
        %v1965 = vpop.f32.mrb[0].mxu0
        %v1966 = vadd.f32 0.0, %v1965
        %v1967 = vpop.f32.mrb[0].mxu0
        %1968 = vmatprep.mubr.f32.mxu0 0.0
        %1969 = vmatmul.mubr.f32.gmra.mrb[0].mxu0 %v571
        %v1970 = vpop.f32.mrb[0].mxu0
        %v1971 = vadd.f32 0.0, %v1970
        %v1972 = vpop.f32.mrb[0].mxu0
        %1973 = vmatprep.mubr.f32.mxu0 0.0
        %1974 = vmatmul.mubr.f32.gmra.mrb[0].mxu0 %v1737
        %v1975 = vpop.f32.mrb[0].mxu0
        %v1976 = vadd.f32 0.0, %v1975
        %v1977 = vpop.f32.mrb[0].mxu0
        %1978 = vmatprep.mubr.f32.mxu0 0.0
        %1979 = vmatmul.mubr.f32.gmra.mrb[0].mxu0 %v1739
        %v1980 = vpop.f32.mrb[0].mxu0
        %v1981 = vadd.f32 0.0, %v1980
        %v1982 = vpop.f32.mrb[0].mxu0
        %1983 = vdwg.mxu0
        %v1984 = vadd.f32 %v1700, %v1826
        %v1985 = vadd.f32 %v1701, %v1831
        %v1986 = vadd.f32 %v1702, %v1836
        %v1987 = vadd.f32 %v1703, %v1841
        %v1988 = vadd.f32 %v1704, %v1846
        %v1989 = vadd.f32 %v1705, %v1851
        %v1990 = vadd.f32 %v1706, %v1856
        %v1991 = vadd.f32 %v1707, %v1861
        %v1992 = vadd.f32 %v1708, %v1866
        %v1993 = vadd.f32 %v1709, %v1871
        %v1994 = vadd.f32 %v1710, %v1876
        %v1995 = vadd.f32 %v1711, %v1881
        %v1996 = vadd.f32 %v1712, %v1886
        %v1997 = vadd.f32 %v1713, %v1891
        %v1998 = vadd.f32 %v1714, %v1896
        %v1999 = vadd.f32 %v1715, %v1901
        %v2000 = vadd.f32 %v1716, %v1906
        %v2001 = vadd.f32 %v1717, %v1911
        %v2002 = vadd.f32 %v1718, %v1916
        %v2003 = vadd.f32 %v1719, %v1921
        %v2004 = vadd.f32 %v1720, %v1926
        %v2005 = vadd.f32 %v1721, %v1931
        %v2006 = vadd.f32 %v1722, %v1936
        %v2007 = vadd.f32 %v1723, %v1941
        %v2008 = vadd.f32 %v1724, %v1946
        %v2009 = vadd.f32 %v1725, %v1951
        %v2010 = vadd.f32 %v1726, %v1956
        %v2011 = vadd.f32 %v1727, %v1961
        %v2012 = vadd.f32 %v1728, %v1966
        %v2013 = vadd.f32 %v1729, %v1971
        %v2014 = vadd.f32 %v1730, %v1976
        %v2015 = vadd.f32 %v1731, %v1981
        %v2016 = vrot.slane %v421, 2
        %v2017 = vrot.slane %v422, 2
        %v2018 = vsel %vm1071, %v2016, %v2017
        %v2019 = vrot.slane %v423, 2
        %v2020 = vsel %vm1071, %v2017, %v2019
        %s2023 = scalar_lea.vmem %s1, 640
        %v2024 = vld [vmem:[%s2023] sm:$0xff]
        %v2025 = vld [vmem:[%s2023 + $0x8] sm:$0xff]
        %v2026 = vld [vmem:[%s2023 + $0x10] sm:$0xff]
        %v2027 = vld [vmem:[%s2023 + $0x18] sm:$0xff]
        %v2028 = vld [vmem:[%s2023 + $0x20] sm:$0xff]
        %v2029 = vld [vmem:[%s2023 + $0x28] sm:$0xff]
        %v2030 = vld [vmem:[%s2023 + $0x30] sm:$0xff]
        %v2031 = vld [vmem:[%s2023 + $0x38] sm:$0xff]
        %v2032 = vld [vmem:[%s2023 + $0x40] sm:$0xff]
        %v2033 = vld [vmem:[%s2023 + $0x48] sm:$0xff]
        %v2034 = vld [vmem:[%s2023 + $0x50] sm:$0xff]
        %v2035 = vld [vmem:[%s2023 + $0x58] sm:$0xff]
        %v2036 = vld [vmem:[%s2023 + $0x60] sm:$0xff]
        %v2037 = vld [vmem:[%s2023 + $0x68] sm:$0xff]
        %v2038 = vld [vmem:[%s2023 + $0x70] sm:$0xff]
        %v2039 = vld [vmem:[%s2023 + $0x78] sm:$0xff]
        %2040 = vmatprep.subr.mxu0 0.0
        %2041 = vmatpush1.msra.mxu0 %v2024
        %2042 = vmatprep.subr.mxu0 0.0
        %2043 = vmatpush1.msra.mxu0 %v2025
        %2044 = vmatprep.subr.mxu0 0.0
        %2045 = vmatpush1.msra.mxu0 %v2026
        %2046 = vmatprep.subr.mxu0 0.0
        %2047 = vmatpush1.msra.mxu0 %v2027
        %2048 = vmatprep.subr.mxu0 0.0
        %2049 = vmatpush1.msra.mxu0 %v2028
        %2050 = vmatprep.subr.mxu0 0.0
        %2051 = vmatpush1.msra.mxu0 %v2029
        %2052 = vmatprep.subr.mxu0 0.0
        %2053 = vmatpush1.msra.mxu0 %v2030
        %2054 = vmatprep.subr.mxu0 0.0
        %2055 = vmatpush1.msra.mxu0 %v2031
        %2056 = vmatprep.subr.mxu0 0.0
        %2057 = vmatpush1.msra.mxu0 %v2032
        %2058 = vmatprep.subr.mxu0 0.0
        %2059 = vmatpush1.msra.mxu0 %v2033
        %2060 = vmatprep.subr.mxu0 0.0
        %2061 = vmatpush1.msra.mxu0 %v2034
        %2062 = vmatprep.subr.mxu0 0.0
        %2063 = vmatpush1.msra.mxu0 %v2035
        %2064 = vmatprep.subr.mxu0 0.0
        %2065 = vmatpush1.msra.mxu0 %v2036
        %2066 = vmatprep.subr.mxu0 0.0
        %2067 = vmatpush1.msra.mxu0 %v2037
        %2068 = vmatprep.subr.mxu0 0.0
        %2069 = vmatpush1.msra.mxu0 %v2038
        %2070 = vmatprep.subr.mxu0 0.0
        %2071 = vmatpush1.msra.mxu0 %v2039
        %2072 = vmatprep.subr.mxu0 0.0
        %2073 = vmatpush1.msra.mxu0 0.0
        %2074 = vmatprep.subr.mxu0 0.0
        %2075 = vmatpush1.msra.mxu0 0.0
        %2076 = vmatprep.subr.mxu0 0.0
        %2077 = vmatpush1.msra.mxu0 0.0
        %2078 = vmatprep.subr.mxu0 0.0
        %2079 = vmatpush1.msra.mxu0 0.0
        %2080 = vmatprep.subr.mxu0 0.0
        %2081 = vmatpush1.msra.mxu0 0.0
        %2082 = vmatprep.subr.mxu0 0.0
        %2083 = vmatpush1.msra.mxu0 0.0
        %2084 = vmatprep.subr.mxu0 0.0
        %2085 = vmatpush1.msra.mxu0 0.0
        %2086 = vmatprep.subr.mxu0 0.0
        %2087 = vmatpush1.msra.mxu0 0.0
        %2088 = vmatprep.subr.mxu0 0.0
        %2089 = vmatpush1.msra.mxu0 0.0
        %2090 = vmatprep.subr.mxu0 0.0
        %2091 = vmatpush1.msra.mxu0 0.0
        %2092 = vmatprep.subr.mxu0 0.0
        %2093 = vmatpush1.msra.mxu0 0.0
        %2094 = vmatprep.subr.mxu0 0.0
        %2095 = vmatpush1.msra.mxu0 0.0
        %2096 = vmatprep.subr.mxu0 0.0
        %2097 = vmatpush1.msra.mxu0 0.0
        %2098 = vmatprep.subr.mxu0 0.0
        %2099 = vmatpush1.msra.mxu0 0.0
        %2100 = vmatprep.subr.mxu0 0.0
        %2101 = vmatpush1.msra.mxu0 0.0
        %2102 = vmatprep.subr.mxu0 0.0
        %2103 = vmatpush1.msra.mxu0 0.0
        %2104 = vmatprep.mubr.f32.mxu0 0.0
        %2105 = vmatmul.mubr.f32.gmra.mrb[0].mxu0 %v1079
        %v2106 = vpop.f32.mrb[0].mxu0
        %v2107 = vadd.f32 0.0, %v2106
        %v2108 = vpop.f32.mrb[0].mxu0
        %2109 = vmatprep.mubr.f32.mxu0 0.0
        %2110 = vmatmul.mubr.f32.gmra.mrb[0].mxu0 %v1081
        %v2111 = vpop.f32.mrb[0].mxu0
        %v2112 = vadd.f32 0.0, %v2111
        %v2113 = vpop.f32.mrb[0].mxu0
        %2114 = vmatprep.mubr.f32.mxu0 0.0
        %2115 = vmatmul.mubr.f32.gmra.mrb[0].mxu0 %v1084
        %v2116 = vpop.f32.mrb[0].mxu0
        %v2117 = vadd.f32 0.0, %v2116
        %v2118 = vpop.f32.mrb[0].mxu0
        %2119 = vmatprep.mubr.f32.mxu0 0.0
        %2120 = vmatmul.mubr.f32.gmra.mrb[0].mxu0 %v1086
        %v2121 = vpop.f32.mrb[0].mxu0
        %v2122 = vadd.f32 0.0, %v2121
        %v2123 = vpop.f32.mrb[0].mxu0
        %2124 = vmatprep.mubr.f32.mxu0 0.0
        %2125 = vmatmul.mubr.f32.gmra.mrb[0].mxu0 %v1089
        %v2126 = vpop.f32.mrb[0].mxu0
        %v2127 = vadd.f32 0.0, %v2126
        %v2128 = vpop.f32.mrb[0].mxu0
        %2129 = vmatprep.mubr.f32.mxu0 0.0
        %2130 = vmatmul.mubr.f32.gmra.mrb[0].mxu0 %v1091
        %v2131 = vpop.f32.mrb[0].mxu0
        %v2132 = vadd.f32 0.0, %v2131
        %v2133 = vpop.f32.mrb[0].mxu0
        %2134 = vmatprep.mubr.f32.mxu0 0.0
        %2135 = vmatmul.mubr.f32.gmra.mrb[0].mxu0 %v1094
        %v2136 = vpop.f32.mrb[0].mxu0
        %v2137 = vadd.f32 0.0, %v2136
        %v2138 = vpop.f32.mrb[0].mxu0
        %2139 = vmatprep.mubr.f32.mxu0 0.0
        %2140 = vmatmul.mubr.f32.gmra.mrb[0].mxu0 %v1096
        %v2141 = vpop.f32.mrb[0].mxu0
        %v2142 = vadd.f32 0.0, %v2141
        %v2143 = vpop.f32.mrb[0].mxu0
        %2144 = vmatprep.mubr.f32.mxu0 0.0
        %2145 = vmatmul.mubr.f32.gmra.mrb[0].mxu0 %v1099
        %v2146 = vpop.f32.mrb[0].mxu0
        %v2147 = vadd.f32 0.0, %v2146
        %v2148 = vpop.f32.mrb[0].mxu0
        %2149 = vmatprep.mubr.f32.mxu0 0.0
        %2150 = vmatmul.mubr.f32.gmra.mrb[0].mxu0 %v1101
        %v2151 = vpop.f32.mrb[0].mxu0
        %v2152 = vadd.f32 0.0, %v2151
        %v2153 = vpop.f32.mrb[0].mxu0
        %2154 = vmatprep.mubr.f32.mxu0 0.0
        %2155 = vmatmul.mubr.f32.gmra.mrb[0].mxu0 %v1104
        %v2156 = vpop.f32.mrb[0].mxu0
        %v2157 = vadd.f32 0.0, %v2156
        %v2158 = vpop.f32.mrb[0].mxu0
        %2159 = vmatprep.mubr.f32.mxu0 0.0
        %2160 = vmatmul.mubr.f32.gmra.mrb[0].mxu0 %v1106
        %v2161 = vpop.f32.mrb[0].mxu0
        %v2162 = vadd.f32 0.0, %v2161
        %v2163 = vpop.f32.mrb[0].mxu0
        %2164 = vmatprep.mubr.f32.mxu0 0.0
        %2165 = vmatmul.mubr.f32.gmra.mrb[0].mxu0 %v1109
        %v2166 = vpop.f32.mrb[0].mxu0
        %v2167 = vadd.f32 0.0, %v2166
        %v2168 = vpop.f32.mrb[0].mxu0
        %2169 = vmatprep.mubr.f32.mxu0 0.0
        %2170 = vmatmul.mubr.f32.gmra.mrb[0].mxu0 %v1111
        %v2171 = vpop.f32.mrb[0].mxu0
        %v2172 = vadd.f32 0.0, %v2171
        %v2173 = vpop.f32.mrb[0].mxu0
        %2174 = vmatprep.mubr.f32.mxu0 0.0
        %2175 = vmatmul.mubr.f32.gmra.mrb[0].mxu0 %v1114
        %v2176 = vpop.f32.mrb[0].mxu0
        %v2177 = vadd.f32 0.0, %v2176
        %v2178 = vpop.f32.mrb[0].mxu0
        %2179 = vmatprep.mubr.f32.mxu0 0.0
        %2180 = vmatmul.mubr.f32.gmra.mrb[0].mxu0 %v1116
        %v2181 = vpop.f32.mrb[0].mxu0
        %v2182 = vadd.f32 0.0, %v2181
        %v2183 = vpop.f32.mrb[0].mxu0
        %2184 = vmatprep.mubr.f32.mxu0 0.0
        %2185 = vmatmul.mubr.f32.gmra.mrb[0].mxu0 %v1119
        %v2186 = vpop.f32.mrb[0].mxu0
        %v2187 = vadd.f32 0.0, %v2186
        %v2188 = vpop.f32.mrb[0].mxu0
        %2189 = vmatprep.mubr.f32.mxu0 0.0
        %2190 = vmatmul.mubr.f32.gmra.mrb[0].mxu0 %v1121
        %v2191 = vpop.f32.mrb[0].mxu0
        %v2192 = vadd.f32 0.0, %v2191
        %v2193 = vpop.f32.mrb[0].mxu0
        %2194 = vmatprep.mubr.f32.mxu0 0.0
        %2195 = vmatmul.mubr.f32.gmra.mrb[0].mxu0 %v1124
        %v2196 = vpop.f32.mrb[0].mxu0
        %v2197 = vadd.f32 0.0, %v2196
        %v2198 = vpop.f32.mrb[0].mxu0
        %2199 = vmatprep.mubr.f32.mxu0 0.0
        %2200 = vmatmul.mubr.f32.gmra.mrb[0].mxu0 %v1126
        %v2201 = vpop.f32.mrb[0].mxu0
        %v2202 = vadd.f32 0.0, %v2201
        %v2203 = vpop.f32.mrb[0].mxu0
        %2204 = vmatprep.mubr.f32.mxu0 0.0
        %2205 = vmatmul.mubr.f32.gmra.mrb[0].mxu0 %v1129
        %v2206 = vpop.f32.mrb[0].mxu0
        %v2207 = vadd.f32 0.0, %v2206
        %v2208 = vpop.f32.mrb[0].mxu0
        %2209 = vmatprep.mubr.f32.mxu0 0.0
        %2210 = vmatmul.mubr.f32.gmra.mrb[0].mxu0 %v1131
        %v2211 = vpop.f32.mrb[0].mxu0
        %v2212 = vadd.f32 0.0, %v2211
        %v2213 = vpop.f32.mrb[0].mxu0
        %2214 = vmatprep.mubr.f32.mxu0 0.0
        %2215 = vmatmul.mubr.f32.gmra.mrb[0].mxu0 %v1134
        %v2216 = vpop.f32.mrb[0].mxu0
        %v2217 = vadd.f32 0.0, %v2216
        %v2218 = vpop.f32.mrb[0].mxu0
        %2219 = vmatprep.mubr.f32.mxu0 0.0
        %2220 = vmatmul.mubr.f32.gmra.mrb[0].mxu0 %v1136
        %v2221 = vpop.f32.mrb[0].mxu0
        %v2222 = vadd.f32 0.0, %v2221
        %v2223 = vpop.f32.mrb[0].mxu0
        %2224 = vmatprep.mubr.f32.mxu0 0.0
        %2225 = vmatmul.mubr.f32.gmra.mrb[0].mxu0 %v1139
        %v2226 = vpop.f32.mrb[0].mxu0
        %v2227 = vadd.f32 0.0, %v2226
        %v2228 = vpop.f32.mrb[0].mxu0
        %2229 = vmatprep.mubr.f32.mxu0 0.0
        %2230 = vmatmul.mubr.f32.gmra.mrb[0].mxu0 %v1141
        %v2231 = vpop.f32.mrb[0].mxu0
        %v2232 = vadd.f32 0.0, %v2231
        %v2233 = vpop.f32.mrb[0].mxu0
        %2234 = vmatprep.mubr.f32.mxu0 0.0
        %2235 = vmatmul.mubr.f32.gmra.mrb[0].mxu0 %v1144
        %v2236 = vpop.f32.mrb[0].mxu0
        %v2237 = vadd.f32 0.0, %v2236
        %v2238 = vpop.f32.mrb[0].mxu0
        %2239 = vmatprep.mubr.f32.mxu0 0.0
        %2240 = vmatmul.mubr.f32.gmra.mrb[0].mxu0 %v1146
        %v2241 = vpop.f32.mrb[0].mxu0
        %v2242 = vadd.f32 0.0, %v2241
        %v2243 = vpop.f32.mrb[0].mxu0
        %2244 = vmatprep.mubr.f32.mxu0 0.0
        %2245 = vmatmul.mubr.f32.gmra.mrb[0].mxu0 %v1149
        %v2246 = vpop.f32.mrb[0].mxu0
        %v2247 = vadd.f32 0.0, %v2246
        %v2248 = vpop.f32.mrb[0].mxu0
        %2249 = vmatprep.mubr.f32.mxu0 0.0
        %2250 = vmatmul.mubr.f32.gmra.mrb[0].mxu0 %v1151
        %v2251 = vpop.f32.mrb[0].mxu0
        %v2252 = vadd.f32 0.0, %v2251
        %v2253 = vpop.f32.mrb[0].mxu0
        %2254 = vmatprep.mubr.f32.mxu0 0.0
        %2255 = vmatmul.mubr.f32.gmra.mrb[0].mxu0 %v2018
        %v2256 = vpop.f32.mrb[0].mxu0
        %v2257 = vadd.f32 0.0, %v2256
        %v2258 = vpop.f32.mrb[0].mxu0
        %2259 = vmatprep.mubr.f32.mxu0 0.0
        %2260 = vmatmul.mubr.f32.gmra.mrb[0].mxu0 %v2020
        %v2261 = vpop.f32.mrb[0].mxu0
        %v2262 = vadd.f32 0.0, %v2261
        %v2263 = vpop.f32.mrb[0].mxu0
        %2264 = vdwg.mxu0
        %v2265 = vadd.f32 %v1984, %v2107
        %v2266 = vadd.f32 %v1985, %v2112
        %v2267 = vadd.f32 %v1986, %v2117
        %v2268 = vadd.f32 %v1987, %v2122
        %v2269 = vadd.f32 %v1988, %v2127
        %v2270 = vadd.f32 %v1989, %v2132
        %v2271 = vadd.f32 %v1990, %v2137
        %v2272 = vadd.f32 %v1991, %v2142
        %v2273 = vadd.f32 %v1992, %v2147
        %v2274 = vadd.f32 %v1993, %v2152
        %v2275 = vadd.f32 %v1994, %v2157
        %v2276 = vadd.f32 %v1995, %v2162
        %v2277 = vadd.f32 %v1996, %v2167
        %v2278 = vadd.f32 %v1997, %v2172
        %v2279 = vadd.f32 %v1998, %v2177
        %v2280 = vadd.f32 %v1999, %v2182
        %v2281 = vadd.f32 %v2000, %v2187
        %v2282 = vadd.f32 %v2001, %v2192
        %v2283 = vadd.f32 %v2002, %v2197
        %v2284 = vadd.f32 %v2003, %v2202
        %v2285 = vadd.f32 %v2004, %v2207
        %v2286 = vadd.f32 %v2005, %v2212
        %v2287 = vadd.f32 %v2006, %v2217
        %v2288 = vadd.f32 %v2007, %v2222
        %v2289 = vadd.f32 %v2008, %v2227
        %v2290 = vadd.f32 %v2009, %v2232
        %v2291 = vadd.f32 %v2010, %v2237
        %v2292 = vadd.f32 %v2011, %v2242
        %v2293 = vadd.f32 %v2012, %v2247
        %v2294 = vadd.f32 %v2013, %v2252
        %v2295 = vadd.f32 %v2014, %v2257
        %v2296 = vadd.f32 %v2015, %v2262
        %s2297 = scalar_lea.vmem %s1, 768
        %v2298 = vld [vmem:[%s2297] sm:$0xff]
        %v2299 = vld [vmem:[%s2297 + $0x8] sm:$0xff]
        %v2300 = vld [vmem:[%s2297 + $0x10] sm:$0xff]
        %v2301 = vld [vmem:[%s2297 + $0x18] sm:$0xff]
        %v2302 = vld [vmem:[%s2297 + $0x20] sm:$0xff]
        %v2303 = vld [vmem:[%s2297 + $0x28] sm:$0xff]
        %v2304 = vld [vmem:[%s2297 + $0x30] sm:$0xff]
        %v2305 = vld [vmem:[%s2297 + $0x38] sm:$0xff]
        %v2306 = vld [vmem:[%s2297 + $0x40] sm:$0xff]
        %v2307 = vld [vmem:[%s2297 + $0x48] sm:$0xff]
        %v2308 = vld [vmem:[%s2297 + $0x50] sm:$0xff]
        %v2309 = vld [vmem:[%s2297 + $0x58] sm:$0xff]
        %v2310 = vld [vmem:[%s2297 + $0x60] sm:$0xff]
        %v2311 = vld [vmem:[%s2297 + $0x68] sm:$0xff]
        %v2312 = vld [vmem:[%s2297 + $0x70] sm:$0xff]
        %v2313 = vld [vmem:[%s2297 + $0x78] sm:$0xff]
        %2314 = vmatprep.subr.mxu0 0.0
        %2315 = vmatpush1.msra.mxu0 %v2298
        %2316 = vmatprep.subr.mxu0 0.0
        %2317 = vmatpush1.msra.mxu0 %v2299
        %2318 = vmatprep.subr.mxu0 0.0
        %2319 = vmatpush1.msra.mxu0 %v2300
        %2320 = vmatprep.subr.mxu0 0.0
        %2321 = vmatpush1.msra.mxu0 %v2301
        %2322 = vmatprep.subr.mxu0 0.0
        %2323 = vmatpush1.msra.mxu0 %v2302
        %2324 = vmatprep.subr.mxu0 0.0
        %2325 = vmatpush1.msra.mxu0 %v2303
        %2326 = vmatprep.subr.mxu0 0.0
        %2327 = vmatpush1.msra.mxu0 %v2304
        %2328 = vmatprep.subr.mxu0 0.0
        %2329 = vmatpush1.msra.mxu0 %v2305
        %2330 = vmatprep.subr.mxu0 0.0
        %2331 = vmatpush1.msra.mxu0 %v2306
        %2332 = vmatprep.subr.mxu0 0.0
        %2333 = vmatpush1.msra.mxu0 %v2307
        %2334 = vmatprep.subr.mxu0 0.0
        %2335 = vmatpush1.msra.mxu0 %v2308
        %2336 = vmatprep.subr.mxu0 0.0
        %2337 = vmatpush1.msra.mxu0 %v2309
        %2338 = vmatprep.subr.mxu0 0.0
        %2339 = vmatpush1.msra.mxu0 %v2310
        %2340 = vmatprep.subr.mxu0 0.0
        %2341 = vmatpush1.msra.mxu0 %v2311
        %2342 = vmatprep.subr.mxu0 0.0
        %2343 = vmatpush1.msra.mxu0 %v2312
        %2344 = vmatprep.subr.mxu0 0.0
        %2345 = vmatpush1.msra.mxu0 %v2313
        %2346 = vmatprep.subr.mxu0 0.0
        %2347 = vmatpush1.msra.mxu0 0.0
        %2348 = vmatprep.subr.mxu0 0.0
        %2349 = vmatpush1.msra.mxu0 0.0
        %2350 = vmatprep.subr.mxu0 0.0
        %2351 = vmatpush1.msra.mxu0 0.0
        %2352 = vmatprep.subr.mxu0 0.0
        %2353 = vmatpush1.msra.mxu0 0.0
        %2354 = vmatprep.subr.mxu0 0.0
        %2355 = vmatpush1.msra.mxu0 0.0
        %2356 = vmatprep.subr.mxu0 0.0
        %2357 = vmatpush1.msra.mxu0 0.0
        %2358 = vmatprep.subr.mxu0 0.0
        %2359 = vmatpush1.msra.mxu0 0.0
        %2360 = vmatprep.subr.mxu0 0.0
        %2361 = vmatpush1.msra.mxu0 0.0
        %2362 = vmatprep.subr.mxu0 0.0
        %2363 = vmatpush1.msra.mxu0 0.0
        %2364 = vmatprep.subr.mxu0 0.0
        %2365 = vmatpush1.msra.mxu0 0.0
        %2366 = vmatprep.subr.mxu0 0.0
        %2367 = vmatpush1.msra.mxu0 0.0
        %2368 = vmatprep.subr.mxu0 0.0
        %2369 = vmatpush1.msra.mxu0 0.0
        %2370 = vmatprep.subr.mxu0 0.0
        %2371 = vmatpush1.msra.mxu0 0.0
        %2372 = vmatprep.subr.mxu0 0.0
        %2373 = vmatpush1.msra.mxu0 0.0
        %2374 = vmatprep.subr.mxu0 0.0
        %2375 = vmatpush1.msra.mxu0 0.0
        %2376 = vmatprep.subr.mxu0 0.0
        %2377 = vmatpush1.msra.mxu0 0.0
        %2378 = vmatprep.mubr.f32.mxu0 0.0
        %2379 = vmatmul.mubr.f32.gmra.mrb[0].mxu0 %v379
        %v2380 = vpop.f32.mrb[0].mxu0
        %v2381 = vadd.f32 0.0, %v2380
        %v2382 = vpop.f32.mrb[0].mxu0
        %2383 = vmatprep.mubr.f32.mxu0 0.0
        %2384 = vmatmul.mubr.f32.gmra.mrb[0].mxu0 %v380
        %v2385 = vpop.f32.mrb[0].mxu0
        %v2386 = vadd.f32 0.0, %v2385
        %v2387 = vpop.f32.mrb[0].mxu0
        %2388 = vmatprep.mubr.f32.mxu0 0.0
        %2389 = vmatmul.mubr.f32.gmra.mrb[0].mxu0 %v382
        %v2390 = vpop.f32.mrb[0].mxu0
        %v2391 = vadd.f32 0.0, %v2390
        %v2392 = vpop.f32.mrb[0].mxu0
        %2393 = vmatprep.mubr.f32.mxu0 0.0
        %2394 = vmatmul.mubr.f32.gmra.mrb[0].mxu0 %v383
        %v2395 = vpop.f32.mrb[0].mxu0
        %v2396 = vadd.f32 0.0, %v2395
        %v2397 = vpop.f32.mrb[0].mxu0
        %2398 = vmatprep.mubr.f32.mxu0 0.0
        %2399 = vmatmul.mubr.f32.gmra.mrb[0].mxu0 %v385
        %v2400 = vpop.f32.mrb[0].mxu0
        %v2401 = vadd.f32 0.0, %v2400
        %v2402 = vpop.f32.mrb[0].mxu0
        %2403 = vmatprep.mubr.f32.mxu0 0.0
        %2404 = vmatmul.mubr.f32.gmra.mrb[0].mxu0 %v386
        %v2405 = vpop.f32.mrb[0].mxu0
        %v2406 = vadd.f32 0.0, %v2405
        %v2407 = vpop.f32.mrb[0].mxu0
        %2408 = vmatprep.mubr.f32.mxu0 0.0
        %2409 = vmatmul.mubr.f32.gmra.mrb[0].mxu0 %v388
        %v2410 = vpop.f32.mrb[0].mxu0
        %v2411 = vadd.f32 0.0, %v2410
        %v2412 = vpop.f32.mrb[0].mxu0
        %2413 = vmatprep.mubr.f32.mxu0 0.0
        %2414 = vmatmul.mubr.f32.gmra.mrb[0].mxu0 %v389
        %v2415 = vpop.f32.mrb[0].mxu0
        %v2416 = vadd.f32 0.0, %v2415
        %v2417 = vpop.f32.mrb[0].mxu0
        %2418 = vmatprep.mubr.f32.mxu0 0.0
        %2419 = vmatmul.mubr.f32.gmra.mrb[0].mxu0 %v391
        %v2420 = vpop.f32.mrb[0].mxu0
        %v2421 = vadd.f32 0.0, %v2420
        %v2422 = vpop.f32.mrb[0].mxu0
        %2423 = vmatprep.mubr.f32.mxu0 0.0
        %2424 = vmatmul.mubr.f32.gmra.mrb[0].mxu0 %v392
        %v2425 = vpop.f32.mrb[0].mxu0
        %v2426 = vadd.f32 0.0, %v2425
        %v2427 = vpop.f32.mrb[0].mxu0
        %2428 = vmatprep.mubr.f32.mxu0 0.0
        %2429 = vmatmul.mubr.f32.gmra.mrb[0].mxu0 %v394
        %v2430 = vpop.f32.mrb[0].mxu0
        %v2431 = vadd.f32 0.0, %v2430
        %v2432 = vpop.f32.mrb[0].mxu0
        %2433 = vmatprep.mubr.f32.mxu0 0.0
        %2434 = vmatmul.mubr.f32.gmra.mrb[0].mxu0 %v395
        %v2435 = vpop.f32.mrb[0].mxu0
        %v2436 = vadd.f32 0.0, %v2435
        %v2437 = vpop.f32.mrb[0].mxu0
        %2438 = vmatprep.mubr.f32.mxu0 0.0
        %2439 = vmatmul.mubr.f32.gmra.mrb[0].mxu0 %v397
        %v2440 = vpop.f32.mrb[0].mxu0
        %v2441 = vadd.f32 0.0, %v2440
        %v2442 = vpop.f32.mrb[0].mxu0
        %2443 = vmatprep.mubr.f32.mxu0 0.0
        %2444 = vmatmul.mubr.f32.gmra.mrb[0].mxu0 %v398
        %v2445 = vpop.f32.mrb[0].mxu0
        %v2446 = vadd.f32 0.0, %v2445
        %v2447 = vpop.f32.mrb[0].mxu0
        %2448 = vmatprep.mubr.f32.mxu0 0.0
        %2449 = vmatmul.mubr.f32.gmra.mrb[0].mxu0 %v400
        %v2450 = vpop.f32.mrb[0].mxu0
        %v2451 = vadd.f32 0.0, %v2450
        %v2452 = vpop.f32.mrb[0].mxu0
        %2453 = vmatprep.mubr.f32.mxu0 0.0
        %2454 = vmatmul.mubr.f32.gmra.mrb[0].mxu0 %v401
        %v2455 = vpop.f32.mrb[0].mxu0
        %v2456 = vadd.f32 0.0, %v2455
        %v2457 = vpop.f32.mrb[0].mxu0
        %2458 = vmatprep.mubr.f32.mxu0 0.0
        %2459 = vmatmul.mubr.f32.gmra.mrb[0].mxu0 %v403
        %v2460 = vpop.f32.mrb[0].mxu0
        %v2461 = vadd.f32 0.0, %v2460
        %v2462 = vpop.f32.mrb[0].mxu0
        %2463 = vmatprep.mubr.f32.mxu0 0.0
        %2464 = vmatmul.mubr.f32.gmra.mrb[0].mxu0 %v404
        %v2465 = vpop.f32.mrb[0].mxu0
        %v2466 = vadd.f32 0.0, %v2465
        %v2467 = vpop.f32.mrb[0].mxu0
        %2468 = vmatprep.mubr.f32.mxu0 0.0
        %2469 = vmatmul.mubr.f32.gmra.mrb[0].mxu0 %v406
        %v2470 = vpop.f32.mrb[0].mxu0
        %v2471 = vadd.f32 0.0, %v2470
        %v2472 = vpop.f32.mrb[0].mxu0
        %2473 = vmatprep.mubr.f32.mxu0 0.0
        %2474 = vmatmul.mubr.f32.gmra.mrb[0].mxu0 %v407
        %v2475 = vpop.f32.mrb[0].mxu0
        %v2476 = vadd.f32 0.0, %v2475
        %v2477 = vpop.f32.mrb[0].mxu0
        %2478 = vmatprep.mubr.f32.mxu0 0.0
        %2479 = vmatmul.mubr.f32.gmra.mrb[0].mxu0 %v409
        %v2480 = vpop.f32.mrb[0].mxu0
        %v2481 = vadd.f32 0.0, %v2480
        %v2482 = vpop.f32.mrb[0].mxu0
        %2483 = vmatprep.mubr.f32.mxu0 0.0
        %2484 = vmatmul.mubr.f32.gmra.mrb[0].mxu0 %v410
        %v2485 = vpop.f32.mrb[0].mxu0
        %v2486 = vadd.f32 0.0, %v2485
        %v2487 = vpop.f32.mrb[0].mxu0
        %2488 = vmatprep.mubr.f32.mxu0 0.0
        %2489 = vmatmul.mubr.f32.gmra.mrb[0].mxu0 %v412
        %v2490 = vpop.f32.mrb[0].mxu0
        %v2491 = vadd.f32 0.0, %v2490
        %v2492 = vpop.f32.mrb[0].mxu0
        %2493 = vmatprep.mubr.f32.mxu0 0.0
        %2494 = vmatmul.mubr.f32.gmra.mrb[0].mxu0 %v413
        %v2495 = vpop.f32.mrb[0].mxu0
        %v2496 = vadd.f32 0.0, %v2495
        %v2497 = vpop.f32.mrb[0].mxu0
        %2498 = vmatprep.mubr.f32.mxu0 0.0
        %2499 = vmatmul.mubr.f32.gmra.mrb[0].mxu0 %v415
        %v2500 = vpop.f32.mrb[0].mxu0
        %v2501 = vadd.f32 0.0, %v2500
        %v2502 = vpop.f32.mrb[0].mxu0
        %2503 = vmatprep.mubr.f32.mxu0 0.0
        %2504 = vmatmul.mubr.f32.gmra.mrb[0].mxu0 %v416
        %v2505 = vpop.f32.mrb[0].mxu0
        %v2506 = vadd.f32 0.0, %v2505
        %v2507 = vpop.f32.mrb[0].mxu0
        %2508 = vmatprep.mubr.f32.mxu0 0.0
        %2509 = vmatmul.mubr.f32.gmra.mrb[0].mxu0 %v418
        %v2510 = vpop.f32.mrb[0].mxu0
        %v2511 = vadd.f32 0.0, %v2510
        %v2512 = vpop.f32.mrb[0].mxu0
        %2513 = vmatprep.mubr.f32.mxu0 0.0
        %2514 = vmatmul.mubr.f32.gmra.mrb[0].mxu0 %v419
        %v2515 = vpop.f32.mrb[0].mxu0
        %v2516 = vadd.f32 0.0, %v2515
        %v2517 = vpop.f32.mrb[0].mxu0
        %2518 = vmatprep.mubr.f32.mxu0 0.0
        %2519 = vmatmul.mubr.f32.gmra.mrb[0].mxu0 %v421
        %v2520 = vpop.f32.mrb[0].mxu0
        %v2521 = vadd.f32 0.0, %v2520
        %v2522 = vpop.f32.mrb[0].mxu0
        %2523 = vmatprep.mubr.f32.mxu0 0.0
        %2524 = vmatmul.mubr.f32.gmra.mrb[0].mxu0 %v422
        %v2525 = vpop.f32.mrb[0].mxu0
        %v2526 = vadd.f32 0.0, %v2525
        %v2527 = vpop.f32.mrb[0].mxu0
        %2528 = vmatprep.mubr.f32.mxu0 0.0
        %2529 = vmatmul.mubr.f32.gmra.mrb[0].mxu0 %v424
        %v2530 = vpop.f32.mrb[0].mxu0
        %v2531 = vadd.f32 0.0, %v2530
        %v2532 = vpop.f32.mrb[0].mxu0
        %2533 = vmatprep.mubr.f32.mxu0 0.0
        %2534 = vmatmul.mubr.f32.gmra.mrb[0].mxu0 %v425
        %v2535 = vpop.f32.mrb[0].mxu0
        %v2536 = vadd.f32 0.0, %v2535
        %v2537 = vpop.f32.mrb[0].mxu0
        %2538 = vdwg.mxu0
        %v2539 = vadd.f32 %v2265, %v2381
        %v2540 = vadd.f32 %v2266, %v2386
        %v2541 = vadd.f32 %v2267, %v2391
        %v2542 = vadd.f32 %v2268, %v2396
        %v2543 = vadd.f32 %v2269, %v2401
        %v2544 = vadd.f32 %v2270, %v2406
        %v2545 = vadd.f32 %v2271, %v2411
        %v2546 = vadd.f32 %v2272, %v2416
        %v2547 = vadd.f32 %v2273, %v2421
        %v2548 = vadd.f32 %v2274, %v2426
        %v2549 = vadd.f32 %v2275, %v2431
        %v2550 = vadd.f32 %v2276, %v2436
        %v2551 = vadd.f32 %v2277, %v2441
        %v2552 = vadd.f32 %v2278, %v2446
        %v2553 = vadd.f32 %v2279, %v2451
        %v2554 = vadd.f32 %v2280, %v2456
        %v2555 = vadd.f32 %v2281, %v2461
        %v2556 = vadd.f32 %v2282, %v2466
        %v2557 = vadd.f32 %v2283, %v2471
        %v2558 = vadd.f32 %v2284, %v2476
        %v2559 = vadd.f32 %v2285, %v2481
        %v2560 = vadd.f32 %v2286, %v2486
        %v2561 = vadd.f32 %v2287, %v2491
        %v2562 = vadd.f32 %v2288, %v2496
        %v2563 = vadd.f32 %v2289, %v2501
        %v2564 = vadd.f32 %v2290, %v2506
        %v2565 = vadd.f32 %v2291, %v2511
        %v2566 = vadd.f32 %v2292, %v2516
        %v2567 = vadd.f32 %v2293, %v2521
        %v2568 = vadd.f32 %v2294, %v2526
        %v2569 = vadd.f32 %v2295, %v2531
        %v2570 = vadd.f32 %v2296, %v2536
        %v2574 = vrot.slane %v424, 1
        %v2575 = vrot.slane %v425, 1
        %v2576 = vsel %vm491, %v2574, %v2575
        %v2577 = vrot.slane %v426, 1
        %v2578 = vsel %vm491, %v2575, %v2577
        %s2581 = scalar_lea.vmem %s1, 896
        %v2582 = vld [vmem:[%s2581] sm:$0xff]
        %v2583 = vld [vmem:[%s2581 + $0x8] sm:$0xff]
        %v2584 = vld [vmem:[%s2581 + $0x10] sm:$0xff]
        %v2585 = vld [vmem:[%s2581 + $0x18] sm:$0xff]
        %v2586 = vld [vmem:[%s2581 + $0x20] sm:$0xff]
        %v2587 = vld [vmem:[%s2581 + $0x28] sm:$0xff]
        %v2588 = vld [vmem:[%s2581 + $0x30] sm:$0xff]
        %v2589 = vld [vmem:[%s2581 + $0x38] sm:$0xff]
        %v2590 = vld [vmem:[%s2581 + $0x40] sm:$0xff]
        %v2591 = vld [vmem:[%s2581 + $0x48] sm:$0xff]
        %v2592 = vld [vmem:[%s2581 + $0x50] sm:$0xff]
        %v2593 = vld [vmem:[%s2581 + $0x58] sm:$0xff]
        %v2594 = vld [vmem:[%s2581 + $0x60] sm:$0xff]
        %v2595 = vld [vmem:[%s2581 + $0x68] sm:$0xff]
        %v2596 = vld [vmem:[%s2581 + $0x70] sm:$0xff]
        %v2597 = vld [vmem:[%s2581 + $0x78] sm:$0xff]
        %2598 = vmatprep.subr.mxu0 0.0
        %2599 = vmatpush1.msra.mxu0 %v2582
        %2600 = vmatprep.subr.mxu0 0.0
        %2601 = vmatpush1.msra.mxu0 %v2583
        %2602 = vmatprep.subr.mxu0 0.0
        %2603 = vmatpush1.msra.mxu0 %v2584
        %2604 = vmatprep.subr.mxu0 0.0
        %2605 = vmatpush1.msra.mxu0 %v2585
        %2606 = vmatprep.subr.mxu0 0.0
        %2607 = vmatpush1.msra.mxu0 %v2586
        %2608 = vmatprep.subr.mxu0 0.0
        %2609 = vmatpush1.msra.mxu0 %v2587
        %2610 = vmatprep.subr.mxu0 0.0
        %2611 = vmatpush1.msra.mxu0 %v2588
        %2612 = vmatprep.subr.mxu0 0.0
        %2613 = vmatpush1.msra.mxu0 %v2589
        %2614 = vmatprep.subr.mxu0 0.0
        %2615 = vmatpush1.msra.mxu0 %v2590
        %2616 = vmatprep.subr.mxu0 0.0
        %2617 = vmatpush1.msra.mxu0 %v2591
        %2618 = vmatprep.subr.mxu0 0.0
        %2619 = vmatpush1.msra.mxu0 %v2592
        %2620 = vmatprep.subr.mxu0 0.0
        %2621 = vmatpush1.msra.mxu0 %v2593
        %2622 = vmatprep.subr.mxu0 0.0
        %2623 = vmatpush1.msra.mxu0 %v2594
        %2624 = vmatprep.subr.mxu0 0.0
        %2625 = vmatpush1.msra.mxu0 %v2595
        %2626 = vmatprep.subr.mxu0 0.0
        %2627 = vmatpush1.msra.mxu0 %v2596
        %2628 = vmatprep.subr.mxu0 0.0
        %2629 = vmatpush1.msra.mxu0 %v2597
        %2630 = vmatprep.subr.mxu0 0.0
        %2631 = vmatpush1.msra.mxu0 0.0
        %2632 = vmatprep.subr.mxu0 0.0
        %2633 = vmatpush1.msra.mxu0 0.0
        %2634 = vmatprep.subr.mxu0 0.0
        %2635 = vmatpush1.msra.mxu0 0.0
        %2636 = vmatprep.subr.mxu0 0.0
        %2637 = vmatpush1.msra.mxu0 0.0
        %2638 = vmatprep.subr.mxu0 0.0
        %2639 = vmatpush1.msra.mxu0 0.0
        %2640 = vmatprep.subr.mxu0 0.0
        %2641 = vmatpush1.msra.mxu0 0.0
        %2642 = vmatprep.subr.mxu0 0.0
        %2643 = vmatpush1.msra.mxu0 0.0
        %2644 = vmatprep.subr.mxu0 0.0
        %2645 = vmatpush1.msra.mxu0 0.0
        %2646 = vmatprep.subr.mxu0 0.0
        %2647 = vmatpush1.msra.mxu0 0.0
        %2648 = vmatprep.subr.mxu0 0.0
        %2649 = vmatpush1.msra.mxu0 0.0
        %2650 = vmatprep.subr.mxu0 0.0
        %2651 = vmatpush1.msra.mxu0 0.0
        %2652 = vmatprep.subr.mxu0 0.0
        %2653 = vmatpush1.msra.mxu0 0.0
        %2654 = vmatprep.subr.mxu0 0.0
        %2655 = vmatpush1.msra.mxu0 0.0
        %2656 = vmatprep.subr.mxu0 0.0
        %2657 = vmatpush1.msra.mxu0 0.0
        %2658 = vmatprep.subr.mxu0 0.0
        %2659 = vmatpush1.msra.mxu0 0.0
        %2660 = vmatprep.subr.mxu0 0.0
        %2661 = vmatpush1.msra.mxu0 0.0
        %2662 = vmatprep.mubr.f32.mxu0 0.0
        %2663 = vmatmul.mubr.f32.gmra.mrb[0].mxu0 %v504
        %v2664 = vpop.f32.mrb[0].mxu0
        %v2665 = vadd.f32 0.0, %v2664
        %v2666 = vpop.f32.mrb[0].mxu0
        %2667 = vmatprep.mubr.f32.mxu0 0.0
        %2668 = vmatmul.mubr.f32.gmra.mrb[0].mxu0 %v506
        %v2669 = vpop.f32.mrb[0].mxu0
        %v2670 = vadd.f32 0.0, %v2669
        %v2671 = vpop.f32.mrb[0].mxu0
        %2672 = vmatprep.mubr.f32.mxu0 0.0
        %2673 = vmatmul.mubr.f32.gmra.mrb[0].mxu0 %v509
        %v2674 = vpop.f32.mrb[0].mxu0
        %v2675 = vadd.f32 0.0, %v2674
        %v2676 = vpop.f32.mrb[0].mxu0
        %2677 = vmatprep.mubr.f32.mxu0 0.0
        %2678 = vmatmul.mubr.f32.gmra.mrb[0].mxu0 %v511
        %v2679 = vpop.f32.mrb[0].mxu0
        %v2680 = vadd.f32 0.0, %v2679
        %v2681 = vpop.f32.mrb[0].mxu0
        %2682 = vmatprep.mubr.f32.mxu0 0.0
        %2683 = vmatmul.mubr.f32.gmra.mrb[0].mxu0 %v514
        %v2684 = vpop.f32.mrb[0].mxu0
        %v2685 = vadd.f32 0.0, %v2684
        %v2686 = vpop.f32.mrb[0].mxu0
        %2687 = vmatprep.mubr.f32.mxu0 0.0
        %2688 = vmatmul.mubr.f32.gmra.mrb[0].mxu0 %v516
        %v2689 = vpop.f32.mrb[0].mxu0
        %v2690 = vadd.f32 0.0, %v2689
        %v2691 = vpop.f32.mrb[0].mxu0
        %2692 = vmatprep.mubr.f32.mxu0 0.0
        %2693 = vmatmul.mubr.f32.gmra.mrb[0].mxu0 %v519
        %v2694 = vpop.f32.mrb[0].mxu0
        %v2695 = vadd.f32 0.0, %v2694
        %v2696 = vpop.f32.mrb[0].mxu0
        %2697 = vmatprep.mubr.f32.mxu0 0.0
        %2698 = vmatmul.mubr.f32.gmra.mrb[0].mxu0 %v521
        %v2699 = vpop.f32.mrb[0].mxu0
        %v2700 = vadd.f32 0.0, %v2699
        %v2701 = vpop.f32.mrb[0].mxu0
        %2702 = vmatprep.mubr.f32.mxu0 0.0
        %2703 = vmatmul.mubr.f32.gmra.mrb[0].mxu0 %v524
        %v2704 = vpop.f32.mrb[0].mxu0
        %v2705 = vadd.f32 0.0, %v2704
        %v2706 = vpop.f32.mrb[0].mxu0
        %2707 = vmatprep.mubr.f32.mxu0 0.0
        %2708 = vmatmul.mubr.f32.gmra.mrb[0].mxu0 %v526
        %v2709 = vpop.f32.mrb[0].mxu0
        %v2710 = vadd.f32 0.0, %v2709
        %v2711 = vpop.f32.mrb[0].mxu0
        %2712 = vmatprep.mubr.f32.mxu0 0.0
        %2713 = vmatmul.mubr.f32.gmra.mrb[0].mxu0 %v529
        %v2714 = vpop.f32.mrb[0].mxu0
        %v2715 = vadd.f32 0.0, %v2714
        %v2716 = vpop.f32.mrb[0].mxu0
        %2717 = vmatprep.mubr.f32.mxu0 0.0
        %2718 = vmatmul.mubr.f32.gmra.mrb[0].mxu0 %v531
        %v2719 = vpop.f32.mrb[0].mxu0
        %v2720 = vadd.f32 0.0, %v2719
        %v2721 = vpop.f32.mrb[0].mxu0
        %2722 = vmatprep.mubr.f32.mxu0 0.0
        %2723 = vmatmul.mubr.f32.gmra.mrb[0].mxu0 %v534
        %v2724 = vpop.f32.mrb[0].mxu0
        %v2725 = vadd.f32 0.0, %v2724
        %v2726 = vpop.f32.mrb[0].mxu0
        %2727 = vmatprep.mubr.f32.mxu0 0.0
        %2728 = vmatmul.mubr.f32.gmra.mrb[0].mxu0 %v536
        %v2729 = vpop.f32.mrb[0].mxu0
        %v2730 = vadd.f32 0.0, %v2729
        %v2731 = vpop.f32.mrb[0].mxu0
        %2732 = vmatprep.mubr.f32.mxu0 0.0
        %2733 = vmatmul.mubr.f32.gmra.mrb[0].mxu0 %v539
        %v2734 = vpop.f32.mrb[0].mxu0
        %v2735 = vadd.f32 0.0, %v2734
        %v2736 = vpop.f32.mrb[0].mxu0
        %2737 = vmatprep.mubr.f32.mxu0 0.0
        %2738 = vmatmul.mubr.f32.gmra.mrb[0].mxu0 %v541
        %v2739 = vpop.f32.mrb[0].mxu0
        %v2740 = vadd.f32 0.0, %v2739
        %v2741 = vpop.f32.mrb[0].mxu0
        %2742 = vmatprep.mubr.f32.mxu0 0.0
        %2743 = vmatmul.mubr.f32.gmra.mrb[0].mxu0 %v544
        %v2744 = vpop.f32.mrb[0].mxu0
        %v2745 = vadd.f32 0.0, %v2744
        %v2746 = vpop.f32.mrb[0].mxu0
        %2747 = vmatprep.mubr.f32.mxu0 0.0
        %2748 = vmatmul.mubr.f32.gmra.mrb[0].mxu0 %v546
        %v2749 = vpop.f32.mrb[0].mxu0
        %v2750 = vadd.f32 0.0, %v2749
        %v2751 = vpop.f32.mrb[0].mxu0
        %2752 = vmatprep.mubr.f32.mxu0 0.0
        %2753 = vmatmul.mubr.f32.gmra.mrb[0].mxu0 %v549
        %v2754 = vpop.f32.mrb[0].mxu0
        %v2755 = vadd.f32 0.0, %v2754
        %v2756 = vpop.f32.mrb[0].mxu0
        %2757 = vmatprep.mubr.f32.mxu0 0.0
        %2758 = vmatmul.mubr.f32.gmra.mrb[0].mxu0 %v551
        %v2759 = vpop.f32.mrb[0].mxu0
        %v2760 = vadd.f32 0.0, %v2759
        %v2761 = vpop.f32.mrb[0].mxu0
        %2762 = vmatprep.mubr.f32.mxu0 0.0
        %2763 = vmatmul.mubr.f32.gmra.mrb[0].mxu0 %v554
        %v2764 = vpop.f32.mrb[0].mxu0
        %v2765 = vadd.f32 0.0, %v2764
        %v2766 = vpop.f32.mrb[0].mxu0
        %2767 = vmatprep.mubr.f32.mxu0 0.0
        %2768 = vmatmul.mubr.f32.gmra.mrb[0].mxu0 %v556
        %v2769 = vpop.f32.mrb[0].mxu0
        %v2770 = vadd.f32 0.0, %v2769
        %v2771 = vpop.f32.mrb[0].mxu0
        %2772 = vmatprep.mubr.f32.mxu0 0.0
        %2773 = vmatmul.mubr.f32.gmra.mrb[0].mxu0 %v559
        %v2774 = vpop.f32.mrb[0].mxu0
        %v2775 = vadd.f32 0.0, %v2774
        %v2776 = vpop.f32.mrb[0].mxu0
        %2777 = vmatprep.mubr.f32.mxu0 0.0
        %2778 = vmatmul.mubr.f32.gmra.mrb[0].mxu0 %v561
        %v2779 = vpop.f32.mrb[0].mxu0
        %v2780 = vadd.f32 0.0, %v2779
        %v2781 = vpop.f32.mrb[0].mxu0
        %2782 = vmatprep.mubr.f32.mxu0 0.0
        %2783 = vmatmul.mubr.f32.gmra.mrb[0].mxu0 %v564
        %v2784 = vpop.f32.mrb[0].mxu0
        %v2785 = vadd.f32 0.0, %v2784
        %v2786 = vpop.f32.mrb[0].mxu0
        %2787 = vmatprep.mubr.f32.mxu0 0.0
        %2788 = vmatmul.mubr.f32.gmra.mrb[0].mxu0 %v566
        %v2789 = vpop.f32.mrb[0].mxu0
        %v2790 = vadd.f32 0.0, %v2789
        %v2791 = vpop.f32.mrb[0].mxu0
        %2792 = vmatprep.mubr.f32.mxu0 0.0
        %2793 = vmatmul.mubr.f32.gmra.mrb[0].mxu0 %v569
        %v2794 = vpop.f32.mrb[0].mxu0
        %v2795 = vadd.f32 0.0, %v2794
        %v2796 = vpop.f32.mrb[0].mxu0
        %2797 = vmatprep.mubr.f32.mxu0 0.0
        %2798 = vmatmul.mubr.f32.gmra.mrb[0].mxu0 %v571
        %v2799 = vpop.f32.mrb[0].mxu0
        %v2800 = vadd.f32 0.0, %v2799
        %v2801 = vpop.f32.mrb[0].mxu0
        %2802 = vmatprep.mubr.f32.mxu0 0.0
        %2803 = vmatmul.mubr.f32.gmra.mrb[0].mxu0 %v1737
        %v2804 = vpop.f32.mrb[0].mxu0
        %v2805 = vadd.f32 0.0, %v2804
        %v2806 = vpop.f32.mrb[0].mxu0
        %2807 = vmatprep.mubr.f32.mxu0 0.0
        %2808 = vmatmul.mubr.f32.gmra.mrb[0].mxu0 %v1739
        %v2809 = vpop.f32.mrb[0].mxu0
        %v2810 = vadd.f32 0.0, %v2809
        %v2811 = vpop.f32.mrb[0].mxu0
        %2812 = vmatprep.mubr.f32.mxu0 0.0
        %2813 = vmatmul.mubr.f32.gmra.mrb[0].mxu0 %v2576
        %v2814 = vpop.f32.mrb[0].mxu0
        %v2815 = vadd.f32 0.0, %v2814
        %v2816 = vpop.f32.mrb[0].mxu0
        %2817 = vmatprep.mubr.f32.mxu0 0.0
        %2818 = vmatmul.mubr.f32.gmra.mrb[0].mxu0 %v2578
        %v2819 = vpop.f32.mrb[0].mxu0
        %v2820 = vadd.f32 0.0, %v2819
        %v2821 = vpop.f32.mrb[0].mxu0
        %2822 = vdwg.mxu0
        %v2823 = vadd.f32 %v2539, %v2665
        %v2824 = vadd.f32 %v2540, %v2670
        %v2825 = vadd.f32 %v2541, %v2675
        %v2826 = vadd.f32 %v2542, %v2680
        %v2827 = vadd.f32 %v2543, %v2685
        %v2828 = vadd.f32 %v2544, %v2690
        %v2829 = vadd.f32 %v2545, %v2695
        %v2830 = vadd.f32 %v2546, %v2700
        %v2831 = vadd.f32 %v2547, %v2705
        %v2832 = vadd.f32 %v2548, %v2710
        %v2833 = vadd.f32 %v2549, %v2715
        %v2834 = vadd.f32 %v2550, %v2720
        %v2835 = vadd.f32 %v2551, %v2725
        %v2836 = vadd.f32 %v2552, %v2730
        %v2837 = vadd.f32 %v2553, %v2735
        %v2838 = vadd.f32 %v2554, %v2740
        %v2839 = vadd.f32 %v2555, %v2745
        %v2840 = vadd.f32 %v2556, %v2750
        %v2841 = vadd.f32 %v2557, %v2755
        %v2842 = vadd.f32 %v2558, %v2760
        %v2843 = vadd.f32 %v2559, %v2765
        %v2844 = vadd.f32 %v2560, %v2770
        %v2845 = vadd.f32 %v2561, %v2775
        %v2846 = vadd.f32 %v2562, %v2780
        %v2847 = vadd.f32 %v2563, %v2785
        %v2848 = vadd.f32 %v2564, %v2790
        %v2849 = vadd.f32 %v2565, %v2795
        %v2850 = vadd.f32 %v2566, %v2800
        %v2851 = vadd.f32 %v2567, %v2805
        %v2852 = vadd.f32 %v2568, %v2810
        %v2853 = vadd.f32 %v2569, %v2815
        %v2854 = vadd.f32 %v2570, %v2820
        %v2855 = vrot.slane %v424, 2
        %v2856 = vrot.slane %v425, 2
        %v2857 = vsel %vm1071, %v2855, %v2856
        %v2858 = vrot.slane %v426, 2
        %v2859 = vsel %vm1071, %v2856, %v2858
        %s2862 = scalar_lea.vmem %s1, 1024
        %v2863 = vld [vmem:[%s2862] sm:$0xff]
        %v2864 = vld [vmem:[%s2862 + $0x8] sm:$0xff]
        %v2865 = vld [vmem:[%s2862 + $0x10] sm:$0xff]
        %v2866 = vld [vmem:[%s2862 + $0x18] sm:$0xff]
        %v2867 = vld [vmem:[%s2862 + $0x20] sm:$0xff]
        %v2868 = vld [vmem:[%s2862 + $0x28] sm:$0xff]
        %v2869 = vld [vmem:[%s2862 + $0x30] sm:$0xff]
        %v2870 = vld [vmem:[%s2862 + $0x38] sm:$0xff]
        %v2871 = vld [vmem:[%s2862 + $0x40] sm:$0xff]
        %v2872 = vld [vmem:[%s2862 + $0x48] sm:$0xff]
        %v2873 = vld [vmem:[%s2862 + $0x50] sm:$0xff]
        %v2874 = vld [vmem:[%s2862 + $0x58] sm:$0xff]
        %v2875 = vld [vmem:[%s2862 + $0x60] sm:$0xff]
        %v2876 = vld [vmem:[%s2862 + $0x68] sm:$0xff]
        %v2877 = vld [vmem:[%s2862 + $0x70] sm:$0xff]
        %v2878 = vld [vmem:[%s2862 + $0x78] sm:$0xff]
        %2879 = vmatprep.subr.mxu0 0.0
        %2880 = vmatpush1.msra.mxu0 %v2863
        %2881 = vmatprep.subr.mxu0 0.0
        %2882 = vmatpush1.msra.mxu0 %v2864
        %2883 = vmatprep.subr.mxu0 0.0
        %2884 = vmatpush1.msra.mxu0 %v2865
        %2885 = vmatprep.subr.mxu0 0.0
        %2886 = vmatpush1.msra.mxu0 %v2866
        %2887 = vmatprep.subr.mxu0 0.0
        %2888 = vmatpush1.msra.mxu0 %v2867
        %2889 = vmatprep.subr.mxu0 0.0
        %2890 = vmatpush1.msra.mxu0 %v2868
        %2891 = vmatprep.subr.mxu0 0.0
        %2892 = vmatpush1.msra.mxu0 %v2869
        %2893 = vmatprep.subr.mxu0 0.0
        %2894 = vmatpush1.msra.mxu0 %v2870
        %2895 = vmatprep.subr.mxu0 0.0
        %2896 = vmatpush1.msra.mxu0 %v2871
        %2897 = vmatprep.subr.mxu0 0.0
        %2898 = vmatpush1.msra.mxu0 %v2872
        %2899 = vmatprep.subr.mxu0 0.0
        %2900 = vmatpush1.msra.mxu0 %v2873
        %2901 = vmatprep.subr.mxu0 0.0
        %2902 = vmatpush1.msra.mxu0 %v2874
        %2903 = vmatprep.subr.mxu0 0.0
        %2904 = vmatpush1.msra.mxu0 %v2875
        %2905 = vmatprep.subr.mxu0 0.0
        %2906 = vmatpush1.msra.mxu0 %v2876
        %2907 = vmatprep.subr.mxu0 0.0
        %2908 = vmatpush1.msra.mxu0 %v2877
        %2909 = vmatprep.subr.mxu0 0.0
        %2910 = vmatpush1.msra.mxu0 %v2878
        %2911 = vmatprep.subr.mxu0 0.0
        %2912 = vmatpush1.msra.mxu0 0.0
        %2913 = vmatprep.subr.mxu0 0.0
        %2914 = vmatpush1.msra.mxu0 0.0
        %2915 = vmatprep.subr.mxu0 0.0
        %2916 = vmatpush1.msra.mxu0 0.0
        %2917 = vmatprep.subr.mxu0 0.0
        %2918 = vmatpush1.msra.mxu0 0.0
        %2919 = vmatprep.subr.mxu0 0.0
        %2920 = vmatpush1.msra.mxu0 0.0
        %2921 = vmatprep.subr.mxu0 0.0
        %2922 = vmatpush1.msra.mxu0 0.0
        %2923 = vmatprep.subr.mxu0 0.0
        %2924 = vmatpush1.msra.mxu0 0.0
        %2925 = vmatprep.subr.mxu0 0.0
        %2926 = vmatpush1.msra.mxu0 0.0
        %2927 = vmatprep.subr.mxu0 0.0
        %2928 = vmatpush1.msra.mxu0 0.0
        %2929 = vmatprep.subr.mxu0 0.0
        %2930 = vmatpush1.msra.mxu0 0.0
        %2931 = vmatprep.subr.mxu0 0.0
        %2932 = vmatpush1.msra.mxu0 0.0
        %2933 = vmatprep.subr.mxu0 0.0
        %2934 = vmatpush1.msra.mxu0 0.0
        %2935 = vmatprep.subr.mxu0 0.0
        %2936 = vmatpush1.msra.mxu0 0.0
        %2937 = vmatprep.subr.mxu0 0.0
        %2938 = vmatpush1.msra.mxu0 0.0
        %2939 = vmatprep.subr.mxu0 0.0
        %2940 = vmatpush1.msra.mxu0 0.0
        %2941 = vmatprep.subr.mxu0 0.0
        %2942 = vmatpush1.msra.mxu0 0.0
        %2943 = vmatprep.mubr.f32.mxu0 0.0
        %2944 = vmatmul.mubr.f32.gmra.mrb[0].mxu0 %v1084
        %v2945 = vpop.f32.mrb[0].mxu0
        %v2946 = vadd.f32 0.0, %v2945
        %v2947 = vpop.f32.mrb[0].mxu0
        %2948 = vmatprep.mubr.f32.mxu0 0.0
        %2949 = vmatmul.mubr.f32.gmra.mrb[0].mxu0 %v1086
        %v2950 = vpop.f32.mrb[0].mxu0
        %v2951 = vadd.f32 0.0, %v2950
        %v2952 = vpop.f32.mrb[0].mxu0
        %2953 = vmatprep.mubr.f32.mxu0 0.0
        %2954 = vmatmul.mubr.f32.gmra.mrb[0].mxu0 %v1089
        %v2955 = vpop.f32.mrb[0].mxu0
        %v2956 = vadd.f32 0.0, %v2955
        %v2957 = vpop.f32.mrb[0].mxu0
        %2958 = vmatprep.mubr.f32.mxu0 0.0
        %2959 = vmatmul.mubr.f32.gmra.mrb[0].mxu0 %v1091
        %v2960 = vpop.f32.mrb[0].mxu0
        %v2961 = vadd.f32 0.0, %v2960
        %v2962 = vpop.f32.mrb[0].mxu0
        %2963 = vmatprep.mubr.f32.mxu0 0.0
        %2964 = vmatmul.mubr.f32.gmra.mrb[0].mxu0 %v1094
        %v2965 = vpop.f32.mrb[0].mxu0
        %v2966 = vadd.f32 0.0, %v2965
        %v2967 = vpop.f32.mrb[0].mxu0
        %2968 = vmatprep.mubr.f32.mxu0 0.0
        %2969 = vmatmul.mubr.f32.gmra.mrb[0].mxu0 %v1096
        %v2970 = vpop.f32.mrb[0].mxu0
        %v2971 = vadd.f32 0.0, %v2970
        %v2972 = vpop.f32.mrb[0].mxu0
        %2973 = vmatprep.mubr.f32.mxu0 0.0
        %2974 = vmatmul.mubr.f32.gmra.mrb[0].mxu0 %v1099
        %v2975 = vpop.f32.mrb[0].mxu0
        %v2976 = vadd.f32 0.0, %v2975
        %v2977 = vpop.f32.mrb[0].mxu0
        %2978 = vmatprep.mubr.f32.mxu0 0.0
        %2979 = vmatmul.mubr.f32.gmra.mrb[0].mxu0 %v1101
        %v2980 = vpop.f32.mrb[0].mxu0
        %v2981 = vadd.f32 0.0, %v2980
        %v2982 = vpop.f32.mrb[0].mxu0
        %2983 = vmatprep.mubr.f32.mxu0 0.0
        %2984 = vmatmul.mubr.f32.gmra.mrb[0].mxu0 %v1104
        %v2985 = vpop.f32.mrb[0].mxu0
        %v2986 = vadd.f32 0.0, %v2985
        %v2987 = vpop.f32.mrb[0].mxu0
        %2988 = vmatprep.mubr.f32.mxu0 0.0
        %2989 = vmatmul.mubr.f32.gmra.mrb[0].mxu0 %v1106
        %v2990 = vpop.f32.mrb[0].mxu0
        %v2991 = vadd.f32 0.0, %v2990
        %v2992 = vpop.f32.mrb[0].mxu0
        %2993 = vmatprep.mubr.f32.mxu0 0.0
        %2994 = vmatmul.mubr.f32.gmra.mrb[0].mxu0 %v1109
        %v2995 = vpop.f32.mrb[0].mxu0
        %v2996 = vadd.f32 0.0, %v2995
        %v2997 = vpop.f32.mrb[0].mxu0
        %2998 = vmatprep.mubr.f32.mxu0 0.0
        %2999 = vmatmul.mubr.f32.gmra.mrb[0].mxu0 %v1111
        %v3000 = vpop.f32.mrb[0].mxu0
        %v3001 = vadd.f32 0.0, %v3000
        %v3002 = vpop.f32.mrb[0].mxu0
        %3003 = vmatprep.mubr.f32.mxu0 0.0
        %3004 = vmatmul.mubr.f32.gmra.mrb[0].mxu0 %v1114
        %v3005 = vpop.f32.mrb[0].mxu0
        %v3006 = vadd.f32 0.0, %v3005
        %v3007 = vpop.f32.mrb[0].mxu0
        %3008 = vmatprep.mubr.f32.mxu0 0.0
        %3009 = vmatmul.mubr.f32.gmra.mrb[0].mxu0 %v1116
        %v3010 = vpop.f32.mrb[0].mxu0
        %v3011 = vadd.f32 0.0, %v3010
        %v3012 = vpop.f32.mrb[0].mxu0
        %3013 = vmatprep.mubr.f32.mxu0 0.0
        %3014 = vmatmul.mubr.f32.gmra.mrb[0].mxu0 %v1119
        %v3015 = vpop.f32.mrb[0].mxu0
        %v3016 = vadd.f32 0.0, %v3015
        %v3017 = vpop.f32.mrb[0].mxu0
        %3018 = vmatprep.mubr.f32.mxu0 0.0
        %3019 = vmatmul.mubr.f32.gmra.mrb[0].mxu0 %v1121
        %v3020 = vpop.f32.mrb[0].mxu0
        %v3021 = vadd.f32 0.0, %v3020
        %v3022 = vpop.f32.mrb[0].mxu0
        %3023 = vmatprep.mubr.f32.mxu0 0.0
        %3024 = vmatmul.mubr.f32.gmra.mrb[0].mxu0 %v1124
        %v3025 = vpop.f32.mrb[0].mxu0
        %v3026 = vadd.f32 0.0, %v3025
        %v3027 = vpop.f32.mrb[0].mxu0
        %3028 = vmatprep.mubr.f32.mxu0 0.0
        %3029 = vmatmul.mubr.f32.gmra.mrb[0].mxu0 %v1126
        %v3030 = vpop.f32.mrb[0].mxu0
        %v3031 = vadd.f32 0.0, %v3030
        %v3032 = vpop.f32.mrb[0].mxu0
        %3033 = vmatprep.mubr.f32.mxu0 0.0
        %3034 = vmatmul.mubr.f32.gmra.mrb[0].mxu0 %v1129
        %v3035 = vpop.f32.mrb[0].mxu0
        %v3036 = vadd.f32 0.0, %v3035
        %v3037 = vpop.f32.mrb[0].mxu0
        %3038 = vmatprep.mubr.f32.mxu0 0.0
        %3039 = vmatmul.mubr.f32.gmra.mrb[0].mxu0 %v1131
        %v3040 = vpop.f32.mrb[0].mxu0
        %v3041 = vadd.f32 0.0, %v3040
        %v3042 = vpop.f32.mrb[0].mxu0
        %3043 = vmatprep.mubr.f32.mxu0 0.0
        %3044 = vmatmul.mubr.f32.gmra.mrb[0].mxu0 %v1134
        %v3045 = vpop.f32.mrb[0].mxu0
        %v3046 = vadd.f32 0.0, %v3045
        %v3047 = vpop.f32.mrb[0].mxu0
        %3048 = vmatprep.mubr.f32.mxu0 0.0
        %3049 = vmatmul.mubr.f32.gmra.mrb[0].mxu0 %v1136
        %v3050 = vpop.f32.mrb[0].mxu0
        %v3051 = vadd.f32 0.0, %v3050
        %v3052 = vpop.f32.mrb[0].mxu0
        %3053 = vmatprep.mubr.f32.mxu0 0.0
        %3054 = vmatmul.mubr.f32.gmra.mrb[0].mxu0 %v1139
        %v3055 = vpop.f32.mrb[0].mxu0
        %v3056 = vadd.f32 0.0, %v3055
        %v3057 = vpop.f32.mrb[0].mxu0
        %3058 = vmatprep.mubr.f32.mxu0 0.0
        %3059 = vmatmul.mubr.f32.gmra.mrb[0].mxu0 %v1141
        %v3060 = vpop.f32.mrb[0].mxu0
        %v3061 = vadd.f32 0.0, %v3060
        %v3062 = vpop.f32.mrb[0].mxu0
        %3063 = vmatprep.mubr.f32.mxu0 0.0
        %3064 = vmatmul.mubr.f32.gmra.mrb[0].mxu0 %v1144
        %v3065 = vpop.f32.mrb[0].mxu0
        %v3066 = vadd.f32 0.0, %v3065
        %v3067 = vpop.f32.mrb[0].mxu0
        %3068 = vmatprep.mubr.f32.mxu0 0.0
        %3069 = vmatmul.mubr.f32.gmra.mrb[0].mxu0 %v1146
        %v3070 = vpop.f32.mrb[0].mxu0
        %v3071 = vadd.f32 0.0, %v3070
        %v3072 = vpop.f32.mrb[0].mxu0
        %3073 = vmatprep.mubr.f32.mxu0 0.0
        %3074 = vmatmul.mubr.f32.gmra.mrb[0].mxu0 %v1149
        %v3075 = vpop.f32.mrb[0].mxu0
        %v3076 = vadd.f32 0.0, %v3075
        %v3077 = vpop.f32.mrb[0].mxu0
        %3078 = vmatprep.mubr.f32.mxu0 0.0
        %3079 = vmatmul.mubr.f32.gmra.mrb[0].mxu0 %v1151
        %v3080 = vpop.f32.mrb[0].mxu0
        %v3081 = vadd.f32 0.0, %v3080
        %v3082 = vpop.f32.mrb[0].mxu0
        %3083 = vmatprep.mubr.f32.mxu0 0.0
        %3084 = vmatmul.mubr.f32.gmra.mrb[0].mxu0 %v2018
        %v3085 = vpop.f32.mrb[0].mxu0
        %v3086 = vadd.f32 0.0, %v3085
        %v3087 = vpop.f32.mrb[0].mxu0
        %3088 = vmatprep.mubr.f32.mxu0 0.0
        %3089 = vmatmul.mubr.f32.gmra.mrb[0].mxu0 %v2020
        %v3090 = vpop.f32.mrb[0].mxu0
        %v3091 = vadd.f32 0.0, %v3090
        %v3092 = vpop.f32.mrb[0].mxu0
        %3093 = vmatprep.mubr.f32.mxu0 0.0
        %3094 = vmatmul.mubr.f32.gmra.mrb[0].mxu0 %v2857
        %v3095 = vpop.f32.mrb[0].mxu0
        %v3096 = vadd.f32 0.0, %v3095
        %v3097 = vpop.f32.mrb[0].mxu0
        %3098 = vmatprep.mubr.f32.mxu0 0.0
        %3099 = vmatmul.mubr.f32.gmra.mrb[0].mxu0 %v2859
        %v3100 = vpop.f32.mrb[0].mxu0
        %v3101 = vadd.f32 0.0, %v3100
        %v3102 = vpop.f32.mrb[0].mxu0
        %3103 = vdwg.mxu0
        %v3104 = vadd.f32 %v2823, %v2946
        %v3105 = vadd.f32 %v2824, %v2951
        %v3106 = vadd.f32 %v2825, %v2956
        %v3107 = vadd.f32 %v2826, %v2961
        %v3108 = vadd.f32 %v2827, %v2966
        %v3109 = vadd.f32 %v2828, %v2971
        %v3110 = vadd.f32 %v2829, %v2976
        %v3111 = vadd.f32 %v2830, %v2981
        %v3112 = vadd.f32 %v2831, %v2986
        %v3113 = vadd.f32 %v2832, %v2991
        %v3114 = vadd.f32 %v2833, %v2996
        %v3115 = vadd.f32 %v2834, %v3001
        %v3116 = vadd.f32 %v2835, %v3006
        %v3117 = vadd.f32 %v2836, %v3011
        %v3118 = vadd.f32 %v2837, %v3016
        %v3119 = vadd.f32 %v2838, %v3021
        %v3120 = vadd.f32 %v2839, %v3026
        %v3121 = vadd.f32 %v2840, %v3031
        %v3122 = vadd.f32 %v2841, %v3036
        %v3123 = vadd.f32 %v2842, %v3041
        %v3124 = vadd.f32 %v2843, %v3046
        %v3125 = vadd.f32 %v2844, %v3051
        %v3126 = vadd.f32 %v2845, %v3056
        %v3127 = vadd.f32 %v2846, %v3061
        %v3128 = vadd.f32 %v2847, %v3066
        %v3129 = vadd.f32 %v2848, %v3071
        %v3130 = vadd.f32 %v2849, %v3076
        %v3131 = vadd.f32 %v2850, %v3081
        %v3132 = vadd.f32 %v2851, %v3086
        %v3133 = vadd.f32 %v2852, %v3091
        %v3134 = vadd.f32 %v2853, %v3096
        %v3135 = vadd.f32 %v2854, %v3101
        %v3136 = vld [vmem:[%s2] sm:$0x1]
        %v3138 = vlaneseq
        %v3139 = vshrl.u32 %v3138, 7
        %v3140 = vsub.s32 0, %v3139
        %v3141 = vrot.slane %v3136, %v3140
        %v3143 = vmul.f32 %v3104, %v3141
        %v3144 = vmul.f32 %v3105, %v3141
        %v3145 = vmul.f32 %v3106, %v3141
        %v3146 = vmul.f32 %v3107, %v3141
        %v3147 = vmul.f32 %v3108, %v3141
        %v3148 = vmul.f32 %v3109, %v3141
        %v3149 = vmul.f32 %v3110, %v3141
        %v3150 = vmul.f32 %v3111, %v3141
        %v3151 = vmul.f32 %v3112, %v3141
        %v3152 = vmul.f32 %v3113, %v3141
        %v3153 = vmul.f32 %v3114, %v3141
        %v3154 = vmul.f32 %v3115, %v3141
        %v3155 = vmul.f32 %v3116, %v3141
        %v3156 = vmul.f32 %v3117, %v3141
        %v3157 = vmul.f32 %v3118, %v3141
        %v3158 = vmul.f32 %v3119, %v3141
        %v3159 = vmul.f32 %v3120, %v3141
        %v3160 = vmul.f32 %v3121, %v3141
        %v3161 = vmul.f32 %v3122, %v3141
        %v3162 = vmul.f32 %v3123, %v3141
        %v3163 = vmul.f32 %v3124, %v3141
        %v3164 = vmul.f32 %v3125, %v3141
        %v3165 = vmul.f32 %v3126, %v3141
        %v3166 = vmul.f32 %v3127, %v3141
        %v3167 = vmul.f32 %v3128, %v3141
        %v3168 = vmul.f32 %v3129, %v3141
        %v3169 = vmul.f32 %v3130, %v3141
        %v3170 = vmul.f32 %v3131, %v3141
        %v3171 = vmul.f32 %v3132, %v3141
        %v3172 = vmul.f32 %v3133, %v3141
        %v3173 = vmul.f32 %v3134, %v3141
        %v3174 = vmul.f32 %v3135, %v3141
        %v3175 = vld [vmem:[%s3] sm:$0x1]
        %v3177 = vlaneseq
        %v3178 = vshrl.u32 %v3177, 7
        %v3179 = vsub.s32 0, %v3178
        %v3180 = vrot.slane %v3175, %v3179
        %v3182 = vadd.f32 %v3143, %v3180
        %v3183 = vadd.f32 %v3144, %v3180
        %v3184 = vadd.f32 %v3145, %v3180
        %v3185 = vadd.f32 %v3146, %v3180
        %v3186 = vadd.f32 %v3147, %v3180
        %v3187 = vadd.f32 %v3148, %v3180
        %v3188 = vadd.f32 %v3149, %v3180
        %v3189 = vadd.f32 %v3150, %v3180
        %v3190 = vadd.f32 %v3151, %v3180
        %v3191 = vadd.f32 %v3152, %v3180
        %v3192 = vadd.f32 %v3153, %v3180
        %v3193 = vadd.f32 %v3154, %v3180
        %v3194 = vadd.f32 %v3155, %v3180
        %v3195 = vadd.f32 %v3156, %v3180
        %v3196 = vadd.f32 %v3157, %v3180
        %v3197 = vadd.f32 %v3158, %v3180
        %v3198 = vadd.f32 %v3159, %v3180
        %v3199 = vadd.f32 %v3160, %v3180
        %v3200 = vadd.f32 %v3161, %v3180
        %v3201 = vadd.f32 %v3162, %v3180
        %v3202 = vadd.f32 %v3163, %v3180
        %v3203 = vadd.f32 %v3164, %v3180
        %v3204 = vadd.f32 %v3165, %v3180
        %v3205 = vadd.f32 %v3166, %v3180
        %v3206 = vadd.f32 %v3167, %v3180
        %v3207 = vadd.f32 %v3168, %v3180
        %v3208 = vadd.f32 %v3169, %v3180
        %v3209 = vadd.f32 %v3170, %v3180
        %v3210 = vadd.f32 %v3171, %v3180
        %v3211 = vadd.f32 %v3172, %v3180
        %v3212 = vadd.f32 %v3173, %v3180
        %v3213 = vadd.f32 %v3174, %v3180
        %v3214 = vmax.f32 %v3182, 0.0
        %v3215 = vmax.f32 %v3183, 0.0
        %v3216 = vmax.f32 %v3184, 0.0
        %v3217 = vmax.f32 %v3185, 0.0
        %v3218 = vmax.f32 %v3186, 0.0
        %v3219 = vmax.f32 %v3187, 0.0
        %v3220 = vmax.f32 %v3188, 0.0
        %v3221 = vmax.f32 %v3189, 0.0
        %v3222 = vmax.f32 %v3190, 0.0
        %v3223 = vmax.f32 %v3191, 0.0
        %v3224 = vmax.f32 %v3192, 0.0
        %v3225 = vmax.f32 %v3193, 0.0
        %v3226 = vmax.f32 %v3194, 0.0
        %v3227 = vmax.f32 %v3195, 0.0
        %v3228 = vmax.f32 %v3196, 0.0
        %v3229 = vmax.f32 %v3197, 0.0
        %v3230 = vmax.f32 %v3198, 0.0
        %v3231 = vmax.f32 %v3199, 0.0
        %v3232 = vmax.f32 %v3200, 0.0
        %v3233 = vmax.f32 %v3201, 0.0
        %v3234 = vmax.f32 %v3202, 0.0
        %v3235 = vmax.f32 %v3203, 0.0
        %v3236 = vmax.f32 %v3204, 0.0
        %v3237 = vmax.f32 %v3205, 0.0
        %v3238 = vmax.f32 %v3206, 0.0
        %v3239 = vmax.f32 %v3207, 0.0
        %v3240 = vmax.f32 %v3208, 0.0
        %v3241 = vmax.f32 %v3209, 0.0
        %v3242 = vmax.f32 %v3210, 0.0
        %v3243 = vmax.f32 %v3211, 0.0
        %v3244 = vmax.f32 %v3212, 0.0
        %v3245 = vmax.f32 %v3213, 0.0
        %3246 = vst [vmem:[#allocation2] sm:$0xff] 0.0
        %3247 = vst [vmem:[#allocation2 + $0x8] sm:$0xff] 0.0
        %3248 = vst [vmem:[#allocation2 + $0x10] sm:$0x3] 0.0
        %3249 = vst [vmem:[#allocation2 + $0x18] sm:$0xff] 0.0
        %3250 = vst [vmem:[#allocation2 + $0x20] sm:$0xff] 0.0
        %3251 = vst [vmem:[#allocation2 + $0x28] sm:$0x3] 0.0
        %3252 = vst [vmem:[#allocation2 + $0x30] sm:$0xff] 0.0
        %3253 = vst [vmem:[#allocation2 + $0x38] sm:$0xff] 0.0
        %3254 = vst [vmem:[#allocation2 + $0x40] sm:$0x3] 0.0
        %3255 = vst [vmem:[#allocation2 + $0x48] sm:$0xff] 0.0
        %3256 = vst [vmem:[#allocation2 + $0x50] sm:$0xff] 0.0
        %3257 = vst [vmem:[#allocation2 + $0x58] sm:$0x3] 0.0
        %3258 = vst [vmem:[#allocation2 + $0x60] sm:$0xff] 0.0
        %3259 = vst [vmem:[#allocation2 + $0x68] sm:$0xff] 0.0
        %3260 = vst [vmem:[#allocation2 + $0x70] sm:$0x3] 0.0
        %3261 = vst [vmem:[#allocation2 + $0x78] sm:$0xff] 0.0
        %3262 = vst [vmem:[#allocation2 + $0x80] sm:$0xff] 0.0
        %3263 = vst [vmem:[#allocation2 + $0x88] sm:$0x3] 0.0
        %3264 = vst [vmem:[#allocation2 + $0x90] sm:$0xff] 0.0
        %3265 = vst [vmem:[#allocation2 + $0x98] sm:$0xff] 0.0
        %3266 = vst [vmem:[#allocation2 + $0xa0] sm:$0x3] 0.0
        %3267 = vst [vmem:[#allocation2 + $0xa8] sm:$0xff] 0.0
        %3268 = vst [vmem:[#allocation2 + $0xb0] sm:$0xff] 0.0
        %3269 = vst [vmem:[#allocation2 + $0xb8] sm:$0x3] 0.0
        %3270 = vst [vmem:[#allocation2 + $0xc0] sm:$0xff] 0.0
        %3271 = vst [vmem:[#allocation2 + $0xc8] sm:$0xff] 0.0
        %3272 = vst [vmem:[#allocation2 + $0xd0] sm:$0x3] 0.0
        %3273 = vst [vmem:[#allocation2 + $0xd8] sm:$0xff] 0.0
        %3274 = vst [vmem:[#allocation2 + $0xe0] sm:$0xff] 0.0
        %3275 = vst [vmem:[#allocation2 + $0xe8] sm:$0x3] 0.0
        %3276 = vst [vmem:[#allocation2 + $0xf0] sm:$0xff] 0.0
        %3277 = vst [vmem:[#allocation2 + $0xf8] sm:$0xff] 0.0
        %3278 = vst [vmem:[#allocation2 + $0x100] sm:$0x3] 0.0
        %3279 = vst [vmem:[#allocation2 + $0x108] sm:$0xff] 0.0
        %3280 = vst [vmem:[#allocation2 + $0x110] sm:$0xff] 0.0
        %3281 = vst [vmem:[#allocation2 + $0x118] sm:$0x3] 0.0
        %3282 = vst [vmem:[#allocation2 + $0x120] sm:$0xff] 0.0
        %3283 = vst [vmem:[#allocation2 + $0x128] sm:$0xff] 0.0
        %3284 = vst [vmem:[#allocation2 + $0x130] sm:$0x3] 0.0
        %3285 = vst [vmem:[#allocation2 + $0x138] sm:$0xff] 0.0
        %3286 = vst [vmem:[#allocation2 + $0x140] sm:$0xff] 0.0
        %3287 = vst [vmem:[#allocation2 + $0x148] sm:$0x3] 0.0
        %3288 = vst [vmem:[#allocation2 + $0x150] sm:$0xff] 0.0
        %3289 = vst [vmem:[#allocation2 + $0x158] sm:$0xff] 0.0
        %3290 = vst [vmem:[#allocation2 + $0x160] sm:$0x3] 0.0
        %3291 = vst [vmem:[#allocation2 + $0x168] sm:$0xff] 0.0
        %3292 = vst [vmem:[#allocation2 + $0x170] sm:$0xff] 0.0
        %3293 = vst [vmem:[#allocation2 + $0x178] sm:$0x3] 0.0
        %3294 = vst [vmem:[#allocation2 + $0x180] sm:$0xff] 0.0
        %3295 = vst [vmem:[#allocation2 + $0x188] sm:$0xff] 0.0
        %3296 = vst [vmem:[#allocation2 + $0x190] sm:$0x3] 0.0
        %3297 = vst [vmem:[#allocation2 + $0x198] sm:$0xff] 0.0
        %3298 = vst [vmem:[#allocation2 + $0x1a0] sm:$0xff] 0.0
        %3299 = vst [vmem:[#allocation2 + $0x1a8] sm:$0x3] 0.0
        %s3300 = scalar_lea.vmem [#allocation2], 24
        %3301 = vst [vmem:[%s3300 + $0x1] sm:$0xff] %v3214
        %3302 = vst [vmem:[%s3300 + $0x9] sm:$0xff] %v3215
        %3303 = vst [vmem:[%s3300 + $0x19] sm:$0xff] %v3216
        %3304 = vst [vmem:[%s3300 + $0x21] sm:$0xff] %v3217
        %3305 = vst [vmem:[%s3300 + $0x31] sm:$0xff] %v3218
        %3306 = vst [vmem:[%s3300 + $0x39] sm:$0xff] %v3219
        %3307 = vst [vmem:[%s3300 + $0x49] sm:$0xff] %v3220
        %3308 = vst [vmem:[%s3300 + $0x51] sm:$0xff] %v3221
        %3309 = vst [vmem:[%s3300 + $0x61] sm:$0xff] %v3222
        %3310 = vst [vmem:[%s3300 + $0x69] sm:$0xff] %v3223
        %3311 = vst [vmem:[%s3300 + $0x79] sm:$0xff] %v3224
        %3312 = vst [vmem:[%s3300 + $0x81] sm:$0xff] %v3225
        %3313 = vst [vmem:[%s3300 + $0x91] sm:$0xff] %v3226
        %3314 = vst [vmem:[%s3300 + $0x99] sm:$0xff] %v3227
        %3315 = vst [vmem:[%s3300 + $0xa9] sm:$0xff] %v3228
        %3316 = vst [vmem:[%s3300 + $0xb1] sm:$0xff] %v3229
        %3317 = vst [vmem:[%s3300 + $0xc1] sm:$0xff] %v3230
        %3318 = vst [vmem:[%s3300 + $0xc9] sm:$0xff] %v3231
        %3319 = vst [vmem:[%s3300 + $0xd9] sm:$0xff] %v3232
        %3320 = vst [vmem:[%s3300 + $0xe1] sm:$0xff] %v3233
        %3321 = vst [vmem:[%s3300 + $0xf1] sm:$0xff] %v3234
        %3322 = vst [vmem:[%s3300 + $0xf9] sm:$0xff] %v3235
        %3323 = vst [vmem:[%s3300 + $0x109] sm:$0xff] %v3236
        %3324 = vst [vmem:[%s3300 + $0x111] sm:$0xff] %v3237
        %3325 = vst [vmem:[%s3300 + $0x121] sm:$0xff] %v3238
        %3326 = vst [vmem:[%s3300 + $0x129] sm:$0xff] %v3239
        %3327 = vst [vmem:[%s3300 + $0x139] sm:$0xff] %v3240
        %3328 = vst [vmem:[%s3300 + $0x141] sm:$0xff] %v3241
        %3329 = vst [vmem:[%s3300 + $0x151] sm:$0xff] %v3242
        %3330 = vst [vmem:[%s3300 + $0x159] sm:$0xff] %v3243
        %3331 = vst [vmem:[%s3300 + $0x169] sm:$0xff] %v3244
        %3332 = vst [vmem:[%s3300 + $0x171] sm:$0xff] %v3245
        %v3333 = vld [vmem:[%s7] sm:$0xff]
        %v3334 = vld [vmem:[%s7 + $0x8] sm:$0xff]
        %v3335 = vld [vmem:[%s7 + $0x10] sm:$0xff]
        %v3336 = vld [vmem:[%s7 + $0x18] sm:$0xff]
        %v3337 = vld [vmem:[%s7 + $0x20] sm:$0xff]
        %v3338 = vld [vmem:[%s7 + $0x28] sm:$0xff]
        %v3339 = vld [vmem:[%s7 + $0x30] sm:$0xff]
        %v3340 = vld [vmem:[%s7 + $0x38] sm:$0xff]
        %v3341 = vld [vmem:[%s7 + $0x40] sm:$0xff]
        %v3342 = vld [vmem:[%s7 + $0x48] sm:$0xff]
        %v3343 = vld [vmem:[%s7 + $0x50] sm:$0xff]
        %v3344 = vld [vmem:[%s7 + $0x58] sm:$0xff]
        %v3345 = vld [vmem:[%s7 + $0x60] sm:$0xff]
        %v3346 = vld [vmem:[%s7 + $0x68] sm:$0xff]
        %v3347 = vld [vmem:[%s7 + $0x70] sm:$0xff]
        %v3348 = vld [vmem:[%s7 + $0x78] sm:$0xff]
        %3349 = vmatprep.subr.mxu0 0.0
        %3350 = vmatpush1.msra.mxu0 %v3333
        %3351 = vmatprep.subr.mxu0 0.0
        %3352 = vmatpush1.msra.mxu0 %v3334
        %3353 = vmatprep.subr.mxu0 0.0
        %3354 = vmatpush1.msra.mxu0 %v3335
        %3355 = vmatprep.subr.mxu0 0.0
        %3356 = vmatpush1.msra.mxu0 %v3336
        %3357 = vmatprep.subr.mxu0 0.0
        %3358 = vmatpush1.msra.mxu0 %v3337
        %3359 = vmatprep.subr.mxu0 0.0
        %3360 = vmatpush1.msra.mxu0 %v3338
        %3361 = vmatprep.subr.mxu0 0.0
        %3362 = vmatpush1.msra.mxu0 %v3339
        %3363 = vmatprep.subr.mxu0 0.0
        %3364 = vmatpush1.msra.mxu0 %v3340
        %3365 = vmatprep.subr.mxu0 0.0
        %3366 = vmatpush1.msra.mxu0 %v3341
        %3367 = vmatprep.subr.mxu0 0.0
        %3368 = vmatpush1.msra.mxu0 %v3342
        %3369 = vmatprep.subr.mxu0 0.0
        %3370 = vmatpush1.msra.mxu0 %v3343
        %3371 = vmatprep.subr.mxu0 0.0
        %3372 = vmatpush1.msra.mxu0 %v3344
        %3373 = vmatprep.subr.mxu0 0.0
        %3374 = vmatpush1.msra.mxu0 %v3345
        %3375 = vmatprep.subr.mxu0 0.0
        %3376 = vmatpush1.msra.mxu0 %v3346
        %3377 = vmatprep.subr.mxu0 0.0
        %3378 = vmatpush1.msra.mxu0 %v3347
        %3379 = vmatprep.subr.mxu0 0.0
        %3380 = vmatpush1.msra.mxu0 %v3348
        %3381 = vmatprep.subr.mxu0 0.0
        %3382 = vmatpush1.msra.mxu0 0.0
        %3383 = vmatprep.subr.mxu0 0.0
        %3384 = vmatpush1.msra.mxu0 0.0
        %3385 = vmatprep.subr.mxu0 0.0
        %3386 = vmatpush1.msra.mxu0 0.0
        %3387 = vmatprep.subr.mxu0 0.0
        %3388 = vmatpush1.msra.mxu0 0.0
        %3389 = vmatprep.subr.mxu0 0.0
        %3390 = vmatpush1.msra.mxu0 0.0
        %3391 = vmatprep.subr.mxu0 0.0
        %3392 = vmatpush1.msra.mxu0 0.0
        %3393 = vmatprep.subr.mxu0 0.0
        %3394 = vmatpush1.msra.mxu0 0.0
        %3395 = vmatprep.subr.mxu0 0.0
        %3396 = vmatpush1.msra.mxu0 0.0
        %3397 = vmatprep.subr.mxu0 0.0
        %3398 = vmatpush1.msra.mxu0 0.0
        %3399 = vmatprep.subr.mxu0 0.0
        %3400 = vmatpush1.msra.mxu0 0.0
        %3401 = vmatprep.subr.mxu0 0.0
        %3402 = vmatpush1.msra.mxu0 0.0
        %3403 = vmatprep.subr.mxu0 0.0
        %3404 = vmatpush1.msra.mxu0 0.0
        %3405 = vmatprep.subr.mxu0 0.0
        %3406 = vmatpush1.msra.mxu0 0.0
        %3407 = vmatprep.subr.mxu0 0.0
        %3408 = vmatpush1.msra.mxu0 0.0
        %3409 = vmatprep.subr.mxu0 0.0
        %3410 = vmatpush1.msra.mxu0 0.0
        %3411 = vmatprep.subr.mxu0 0.0
        %3412 = vmatpush1.msra.mxu0 0.0
        %3413 = vmatprep.mubr.f32.mxu0 0.0
        %3414 = vmatmul.mubr.f32.gmra.mrb[0].mxu0 %v499
        %v3415 = vpop.f32.mrb[0].mxu0
        %v3416 = vadd.f32 0.0, %v3415
        %v3417 = vpop.f32.mrb[0].mxu0
        %3418 = vmatprep.mubr.f32.mxu0 0.0
        %3419 = vmatmul.mubr.f32.gmra.mrb[0].mxu0 %v501
        %v3420 = vpop.f32.mrb[0].mxu0
        %v3421 = vadd.f32 0.0, %v3420
        %v3422 = vpop.f32.mrb[0].mxu0
        %3423 = vmatprep.mubr.f32.mxu0 0.0
        %3424 = vmatmul.mubr.f32.gmra.mrb[0].mxu0 %v504
        %v3425 = vpop.f32.mrb[0].mxu0
        %v3426 = vadd.f32 0.0, %v3425
        %v3427 = vpop.f32.mrb[0].mxu0
        %3428 = vmatprep.mubr.f32.mxu0 0.0
        %3429 = vmatmul.mubr.f32.gmra.mrb[0].mxu0 %v506
        %v3430 = vpop.f32.mrb[0].mxu0
        %v3431 = vadd.f32 0.0, %v3430
        %v3432 = vpop.f32.mrb[0].mxu0
        %3433 = vmatprep.mubr.f32.mxu0 0.0
        %3434 = vmatmul.mubr.f32.gmra.mrb[0].mxu0 %v509
        %v3435 = vpop.f32.mrb[0].mxu0
        %v3436 = vadd.f32 0.0, %v3435
        %v3437 = vpop.f32.mrb[0].mxu0
        %3438 = vmatprep.mubr.f32.mxu0 0.0
        %3439 = vmatmul.mubr.f32.gmra.mrb[0].mxu0 %v511
        %v3440 = vpop.f32.mrb[0].mxu0
        %v3441 = vadd.f32 0.0, %v3440
        %v3442 = vpop.f32.mrb[0].mxu0
        %3443 = vmatprep.mubr.f32.mxu0 0.0
        %3444 = vmatmul.mubr.f32.gmra.mrb[0].mxu0 %v514
        %v3445 = vpop.f32.mrb[0].mxu0
        %v3446 = vadd.f32 0.0, %v3445
        %v3447 = vpop.f32.mrb[0].mxu0
        %3448 = vmatprep.mubr.f32.mxu0 0.0
        %3449 = vmatmul.mubr.f32.gmra.mrb[0].mxu0 %v516
        %v3450 = vpop.f32.mrb[0].mxu0
        %v3451 = vadd.f32 0.0, %v3450
        %v3452 = vpop.f32.mrb[0].mxu0
        %3453 = vmatprep.mubr.f32.mxu0 0.0
        %3454 = vmatmul.mubr.f32.gmra.mrb[0].mxu0 %v519
        %v3455 = vpop.f32.mrb[0].mxu0
        %v3456 = vadd.f32 0.0, %v3455
        %v3457 = vpop.f32.mrb[0].mxu0
        %3458 = vmatprep.mubr.f32.mxu0 0.0
        %3459 = vmatmul.mubr.f32.gmra.mrb[0].mxu0 %v521
        %v3460 = vpop.f32.mrb[0].mxu0
        %v3461 = vadd.f32 0.0, %v3460
        %v3462 = vpop.f32.mrb[0].mxu0
        %3463 = vmatprep.mubr.f32.mxu0 0.0
        %3464 = vmatmul.mubr.f32.gmra.mrb[0].mxu0 %v524
        %v3465 = vpop.f32.mrb[0].mxu0
        %v3466 = vadd.f32 0.0, %v3465
        %v3467 = vpop.f32.mrb[0].mxu0
        %3468 = vmatprep.mubr.f32.mxu0 0.0
        %3469 = vmatmul.mubr.f32.gmra.mrb[0].mxu0 %v526
        %v3470 = vpop.f32.mrb[0].mxu0
        %v3471 = vadd.f32 0.0, %v3470
        %v3472 = vpop.f32.mrb[0].mxu0
        %3473 = vmatprep.mubr.f32.mxu0 0.0
        %3474 = vmatmul.mubr.f32.gmra.mrb[0].mxu0 %v529
        %v3475 = vpop.f32.mrb[0].mxu0
        %v3476 = vadd.f32 0.0, %v3475
        %v3477 = vpop.f32.mrb[0].mxu0
        %3478 = vmatprep.mubr.f32.mxu0 0.0
        %3479 = vmatmul.mubr.f32.gmra.mrb[0].mxu0 %v531
        %v3480 = vpop.f32.mrb[0].mxu0
        %v3481 = vadd.f32 0.0, %v3480
        %v3482 = vpop.f32.mrb[0].mxu0
        %3483 = vmatprep.mubr.f32.mxu0 0.0
        %3484 = vmatmul.mubr.f32.gmra.mrb[0].mxu0 %v534
        %v3485 = vpop.f32.mrb[0].mxu0
        %v3486 = vadd.f32 0.0, %v3485
        %v3487 = vpop.f32.mrb[0].mxu0
        %3488 = vmatprep.mubr.f32.mxu0 0.0
        %3489 = vmatmul.mubr.f32.gmra.mrb[0].mxu0 %v536
        %v3490 = vpop.f32.mrb[0].mxu0
        %v3491 = vadd.f32 0.0, %v3490
        %v3492 = vpop.f32.mrb[0].mxu0
        %3493 = vmatprep.mubr.f32.mxu0 0.0
        %3494 = vmatmul.mubr.f32.gmra.mrb[0].mxu0 %v539
        %v3495 = vpop.f32.mrb[0].mxu0
        %v3496 = vadd.f32 0.0, %v3495
        %v3497 = vpop.f32.mrb[0].mxu0
        %3498 = vmatprep.mubr.f32.mxu0 0.0
        %3499 = vmatmul.mubr.f32.gmra.mrb[0].mxu0 %v541
        %v3500 = vpop.f32.mrb[0].mxu0
        %v3501 = vadd.f32 0.0, %v3500
        %v3502 = vpop.f32.mrb[0].mxu0
        %3503 = vmatprep.mubr.f32.mxu0 0.0
        %3504 = vmatmul.mubr.f32.gmra.mrb[0].mxu0 %v544
        %v3505 = vpop.f32.mrb[0].mxu0
        %v3506 = vadd.f32 0.0, %v3505
        %v3507 = vpop.f32.mrb[0].mxu0
        %3508 = vmatprep.mubr.f32.mxu0 0.0
        %3509 = vmatmul.mubr.f32.gmra.mrb[0].mxu0 %v546
        %v3510 = vpop.f32.mrb[0].mxu0
        %v3511 = vadd.f32 0.0, %v3510
        %v3512 = vpop.f32.mrb[0].mxu0
        %3513 = vmatprep.mubr.f32.mxu0 0.0
        %3514 = vmatmul.mubr.f32.gmra.mrb[0].mxu0 %v549
        %v3515 = vpop.f32.mrb[0].mxu0
        %v3516 = vadd.f32 0.0, %v3515
        %v3517 = vpop.f32.mrb[0].mxu0
        %3518 = vmatprep.mubr.f32.mxu0 0.0
        %3519 = vmatmul.mubr.f32.gmra.mrb[0].mxu0 %v551
        %v3520 = vpop.f32.mrb[0].mxu0
        %v3521 = vadd.f32 0.0, %v3520
        %v3522 = vpop.f32.mrb[0].mxu0
        %3523 = vmatprep.mubr.f32.mxu0 0.0
        %3524 = vmatmul.mubr.f32.gmra.mrb[0].mxu0 %v554
        %v3525 = vpop.f32.mrb[0].mxu0
        %v3526 = vadd.f32 0.0, %v3525
        %v3527 = vpop.f32.mrb[0].mxu0
        %3528 = vmatprep.mubr.f32.mxu0 0.0
        %3529 = vmatmul.mubr.f32.gmra.mrb[0].mxu0 %v556
        %v3530 = vpop.f32.mrb[0].mxu0
        %v3531 = vadd.f32 0.0, %v3530
        %v3532 = vpop.f32.mrb[0].mxu0
        %3533 = vmatprep.mubr.f32.mxu0 0.0
        %3534 = vmatmul.mubr.f32.gmra.mrb[0].mxu0 %v559
        %v3535 = vpop.f32.mrb[0].mxu0
        %v3536 = vadd.f32 0.0, %v3535
        %v3537 = vpop.f32.mrb[0].mxu0
        %3538 = vmatprep.mubr.f32.mxu0 0.0
        %3539 = vmatmul.mubr.f32.gmra.mrb[0].mxu0 %v561
        %v3540 = vpop.f32.mrb[0].mxu0
        %v3541 = vadd.f32 0.0, %v3540
        %v3542 = vpop.f32.mrb[0].mxu0
        %3543 = vmatprep.mubr.f32.mxu0 0.0
        %3544 = vmatmul.mubr.f32.gmra.mrb[0].mxu0 %v564
        %v3545 = vpop.f32.mrb[0].mxu0
        %v3546 = vadd.f32 0.0, %v3545
        %v3547 = vpop.f32.mrb[0].mxu0
        %3548 = vmatprep.mubr.f32.mxu0 0.0
        %3549 = vmatmul.mubr.f32.gmra.mrb[0].mxu0 %v566
        %v3550 = vpop.f32.mrb[0].mxu0
        %v3551 = vadd.f32 0.0, %v3550
        %v3552 = vpop.f32.mrb[0].mxu0
        %3553 = vmatprep.mubr.f32.mxu0 0.0
        %3554 = vmatmul.mubr.f32.gmra.mrb[0].mxu0 %v569
        %v3555 = vpop.f32.mrb[0].mxu0
        %v3556 = vadd.f32 0.0, %v3555
        %v3557 = vpop.f32.mrb[0].mxu0
        %3558 = vmatprep.mubr.f32.mxu0 0.0
        %3559 = vmatmul.mubr.f32.gmra.mrb[0].mxu0 %v571
        %v3560 = vpop.f32.mrb[0].mxu0
        %v3561 = vadd.f32 0.0, %v3560
        %v3562 = vpop.f32.mrb[0].mxu0
        %3563 = vmatprep.mubr.f32.mxu0 0.0
        %3564 = vmatmul.mubr.f32.gmra.mrb[0].mxu0 %v1737
        %v3565 = vpop.f32.mrb[0].mxu0
        %v3566 = vadd.f32 0.0, %v3565
        %v3567 = vpop.f32.mrb[0].mxu0
        %3568 = vmatprep.mubr.f32.mxu0 0.0
        %3569 = vmatmul.mubr.f32.gmra.mrb[0].mxu0 %v1739
        %v3570 = vpop.f32.mrb[0].mxu0
        %v3571 = vadd.f32 0.0, %v3570
        %v3572 = vpop.f32.mrb[0].mxu0
        %3573 = vdwg.mxu0
        %v3574 = vld [vmem:[%s8] sm:$0x1]
        %v3576 = vlaneseq
        %v3577 = vshrl.u32 %v3576, 7
        %v3578 = vsub.s32 0, %v3577
        %v3579 = vrot.slane %v3574, %v3578
        %v3581 = vmul.f32 %v3416, %v3579
        %v3582 = vmul.f32 %v3421, %v3579
        %v3583 = vmul.f32 %v3426, %v3579
        %v3584 = vmul.f32 %v3431, %v3579
        %v3585 = vmul.f32 %v3436, %v3579
        %v3586 = vmul.f32 %v3441, %v3579
        %v3587 = vmul.f32 %v3446, %v3579
        %v3588 = vmul.f32 %v3451, %v3579
        %v3589 = vmul.f32 %v3456, %v3579
        %v3590 = vmul.f32 %v3461, %v3579
        %v3591 = vmul.f32 %v3466, %v3579
        %v3592 = vmul.f32 %v3471, %v3579
        %v3593 = vmul.f32 %v3476, %v3579
        %v3594 = vmul.f32 %v3481, %v3579
        %v3595 = vmul.f32 %v3486, %v3579
        %v3596 = vmul.f32 %v3491, %v3579
        %v3597 = vmul.f32 %v3496, %v3579
        %v3598 = vmul.f32 %v3501, %v3579
        %v3599 = vmul.f32 %v3506, %v3579
        %v3600 = vmul.f32 %v3511, %v3579
        %v3601 = vmul.f32 %v3516, %v3579
        %v3602 = vmul.f32 %v3521, %v3579
        %v3603 = vmul.f32 %v3526, %v3579
        %v3604 = vmul.f32 %v3531, %v3579
        %v3605 = vmul.f32 %v3536, %v3579
        %v3606 = vmul.f32 %v3541, %v3579
        %v3607 = vmul.f32 %v3546, %v3579
        %v3608 = vmul.f32 %v3551, %v3579
        %v3609 = vmul.f32 %v3556, %v3579
        %v3610 = vmul.f32 %v3561, %v3579
        %v3611 = vmul.f32 %v3566, %v3579
        %v3612 = vmul.f32 %v3571, %v3579
        %v3613 = vld [vmem:[%s9] sm:$0x1]
        %v3615 = vlaneseq
        %v3616 = vshrl.u32 %v3615, 7
        %v3617 = vsub.s32 0, %v3616
        %v3618 = vrot.slane %v3613, %v3617
        %v3620 = vadd.f32 %v3581, %v3618
        %v3621 = vadd.f32 %v3582, %v3618
        %v3622 = vadd.f32 %v3583, %v3618
        %v3623 = vadd.f32 %v3584, %v3618
        %v3624 = vadd.f32 %v3585, %v3618
        %v3625 = vadd.f32 %v3586, %v3618
        %v3626 = vadd.f32 %v3587, %v3618
        %v3627 = vadd.f32 %v3588, %v3618
        %v3628 = vadd.f32 %v3589, %v3618
        %v3629 = vadd.f32 %v3590, %v3618
        %v3630 = vadd.f32 %v3591, %v3618
        %v3631 = vadd.f32 %v3592, %v3618
        %v3632 = vadd.f32 %v3593, %v3618
        %v3633 = vadd.f32 %v3594, %v3618
        %v3634 = vadd.f32 %v3595, %v3618
        %v3635 = vadd.f32 %v3596, %v3618
        %v3636 = vadd.f32 %v3597, %v3618
        %v3637 = vadd.f32 %v3598, %v3618
        %v3638 = vadd.f32 %v3599, %v3618
        %v3639 = vadd.f32 %v3600, %v3618
        %v3640 = vadd.f32 %v3601, %v3618
        %v3641 = vadd.f32 %v3602, %v3618
        %v3642 = vadd.f32 %v3603, %v3618
        %v3643 = vadd.f32 %v3604, %v3618
        %v3644 = vadd.f32 %v3605, %v3618
        %v3645 = vadd.f32 %v3606, %v3618
        %v3646 = vadd.f32 %v3607, %v3618
        %v3647 = vadd.f32 %v3608, %v3618
        %v3648 = vadd.f32 %v3609, %v3618
        %v3649 = vadd.f32 %v3610, %v3618
        %v3650 = vadd.f32 %v3611, %v3618
        %v3651 = vadd.f32 %v3612, %v3618
        %v3652 = vld [vmem:[#allocation2] sm:$0xff]
        %v3653 = vld [vmem:[#allocation2 + $0x8] sm:$0xff]
        %v3654 = vld [vmem:[#allocation2 + $0x10] sm:$0x3]
        %v3655 = vld [vmem:[#allocation2 + $0x18] sm:$0xff]
        %v3656 = vld [vmem:[#allocation2 + $0x20] sm:$0xff]
        %v3657 = vld [vmem:[#allocation2 + $0x28] sm:$0x3]
        %v3658 = vld [vmem:[#allocation2 + $0x30] sm:$0xff]
        %v3659 = vld [vmem:[#allocation2 + $0x38] sm:$0xff]
        %v3660 = vld [vmem:[#allocation2 + $0x40] sm:$0x3]
        %v3661 = vld [vmem:[#allocation2 + $0x48] sm:$0xff]
        %v3662 = vld [vmem:[#allocation2 + $0x50] sm:$0xff]
        %v3663 = vld [vmem:[#allocation2 + $0x58] sm:$0x3]
        %v3664 = vld [vmem:[#allocation2 + $0x60] sm:$0xff]
        %v3665 = vld [vmem:[#allocation2 + $0x68] sm:$0xff]
        %v3666 = vld [vmem:[#allocation2 + $0x70] sm:$0x3]
        %v3667 = vld [vmem:[#allocation2 + $0x78] sm:$0xff]
        %v3668 = vld [vmem:[#allocation2 + $0x80] sm:$0xff]
        %v3669 = vld [vmem:[#allocation2 + $0x88] sm:$0x3]
        %v3670 = vld [vmem:[#allocation2 + $0x90] sm:$0xff]
        %v3671 = vld [vmem:[#allocation2 + $0x98] sm:$0xff]
        %v3672 = vld [vmem:[#allocation2 + $0xa0] sm:$0x3]
        %v3673 = vld [vmem:[#allocation2 + $0xa8] sm:$0xff]
        %v3674 = vld [vmem:[#allocation2 + $0xb0] sm:$0xff]
        %v3675 = vld [vmem:[#allocation2 + $0xb8] sm:$0x3]
        %v3676 = vld [vmem:[#allocation2 + $0xc0] sm:$0xff]
        %v3677 = vld [vmem:[#allocation2 + $0xc8] sm:$0xff]
        %v3678 = vld [vmem:[#allocation2 + $0xd0] sm:$0x3]
        %v3679 = vld [vmem:[#allocation2 + $0xd8] sm:$0xff]
        %v3680 = vld [vmem:[#allocation2 + $0xe0] sm:$0xff]
        %v3681 = vld [vmem:[#allocation2 + $0xe8] sm:$0x3]
        %v3682 = vld [vmem:[#allocation2 + $0xf0] sm:$0xff]
        %v3683 = vld [vmem:[#allocation2 + $0xf8] sm:$0xff]
        %v3684 = vld [vmem:[#allocation2 + $0x100] sm:$0x3]
        %v3685 = vld [vmem:[#allocation2 + $0x108] sm:$0xff]
        %v3686 = vld [vmem:[#allocation2 + $0x110] sm:$0xff]
        %v3687 = vld [vmem:[#allocation2 + $0x118] sm:$0x3]
        %v3688 = vld [vmem:[#allocation2 + $0x120] sm:$0xff]
        %v3689 = vld [vmem:[#allocation2 + $0x128] sm:$0xff]
        %v3690 = vld [vmem:[#allocation2 + $0x130] sm:$0x3]
        %v3691 = vld [vmem:[#allocation2 + $0x138] sm:$0xff]
        %v3692 = vld [vmem:[#allocation2 + $0x140] sm:$0xff]
        %v3693 = vld [vmem:[#allocation2 + $0x148] sm:$0x3]
        %v3694 = vld [vmem:[#allocation2 + $0x150] sm:$0xff]
        %v3695 = vld [vmem:[#allocation2 + $0x158] sm:$0xff]
        %v3696 = vld [vmem:[#allocation2 + $0x160] sm:$0x3]
        %v3697 = vld [vmem:[#allocation2 + $0x168] sm:$0xff]
        %v3698 = vld [vmem:[#allocation2 + $0x170] sm:$0xff]
        %v3699 = vld [vmem:[#allocation2 + $0x178] sm:$0x3]
        %v3700 = vld [vmem:[#allocation2 + $0x180] sm:$0xff]
        %v3701 = vld [vmem:[#allocation2 + $0x188] sm:$0xff]
        %v3702 = vld [vmem:[#allocation2 + $0x190] sm:$0x3]
        %v3703 = vld [vmem:[#allocation2 + $0x198] sm:$0xff]
        %v3704 = vld [vmem:[#allocation2 + $0x1a0] sm:$0xff]
        %v3705 = vld [vmem:[#allocation2 + $0x1a8] sm:$0x3]
        %v3706 = vld [vmem:[#allocation3] sm:$0xff]
        %v3707 = vld [vmem:[#allocation3 + $0x8] sm:$0xff]
        %v3708 = vld [vmem:[#allocation3 + $0x10] sm:$0xff]
        %v3709 = vld [vmem:[#allocation3 + $0x18] sm:$0xff]
        %v3710 = vld [vmem:[#allocation3 + $0x20] sm:$0xff]
        %v3711 = vld [vmem:[#allocation3 + $0x28] sm:$0xff]
        %v3712 = vld [vmem:[#allocation3 + $0x30] sm:$0xff]
        %v3713 = vld [vmem:[#allocation3 + $0x38] sm:$0xff]
        %v3714 = vld [vmem:[#allocation3 + $0x40] sm:$0xff]
        %v3715 = vld [vmem:[#allocation3 + $0x48] sm:$0xff]
        %v3716 = vld [vmem:[#allocation3 + $0x50] sm:$0xff]
        %v3717 = vld [vmem:[#allocation3 + $0x58] sm:$0xff]
        %v3718 = vld [vmem:[#allocation3 + $0x60] sm:$0xff]
        %v3719 = vld [vmem:[#allocation3 + $0x68] sm:$0xff]
        %v3720 = vld [vmem:[#allocation3 + $0x70] sm:$0xff]
        %v3721 = vld [vmem:[#allocation3 + $0x78] sm:$0xff]
        %v3770 = vrot.slane %v3652, 1
        %v3771 = vrot.slane %v3653, 1
        %v3772 = vsel %vm491, %v3770, %v3771
        %v3773 = vrot.slane %v3654, 1
        %v3774 = vsel %vm491, %v3771, %v3773
        %v3775 = vrot.slane %v3655, 1
        %v3776 = vrot.slane %v3656, 1
        %v3777 = vsel %vm491, %v3775, %v3776
        %v3778 = vrot.slane %v3657, 1
        %v3779 = vsel %vm491, %v3776, %v3778
        %v3780 = vrot.slane %v3658, 1
        %v3781 = vrot.slane %v3659, 1
        %v3782 = vsel %vm491, %v3780, %v3781
        %v3783 = vrot.slane %v3660, 1
        %v3784 = vsel %vm491, %v3781, %v3783
        %v3785 = vrot.slane %v3661, 1
        %v3786 = vrot.slane %v3662, 1
        %v3787 = vsel %vm491, %v3785, %v3786
        %v3788 = vrot.slane %v3663, 1
        %v3789 = vsel %vm491, %v3786, %v3788
        %v3790 = vrot.slane %v3664, 1
        %v3791 = vrot.slane %v3665, 1
        %v3792 = vsel %vm491, %v3790, %v3791
        %v3793 = vrot.slane %v3666, 1
        %v3794 = vsel %vm491, %v3791, %v3793
        %v3795 = vrot.slane %v3667, 1
        %v3796 = vrot.slane %v3668, 1
        %v3797 = vsel %vm491, %v3795, %v3796
        %v3798 = vrot.slane %v3669, 1
        %v3799 = vsel %vm491, %v3796, %v3798
        %v3800 = vrot.slane %v3670, 1
        %v3801 = vrot.slane %v3671, 1
        %v3802 = vsel %vm491, %v3800, %v3801
        %v3803 = vrot.slane %v3672, 1
        %v3804 = vsel %vm491, %v3801, %v3803
        %v3805 = vrot.slane %v3673, 1
        %v3806 = vrot.slane %v3674, 1
        %v3807 = vsel %vm491, %v3805, %v3806
        %v3808 = vrot.slane %v3675, 1
        %v3809 = vsel %vm491, %v3806, %v3808
        %v3810 = vrot.slane %v3676, 1
        %v3811 = vrot.slane %v3677, 1
        %v3812 = vsel %vm491, %v3810, %v3811
        %v3813 = vrot.slane %v3678, 1
        %v3814 = vsel %vm491, %v3811, %v3813
        %v3815 = vrot.slane %v3679, 1
        %v3816 = vrot.slane %v3680, 1
        %v3817 = vsel %vm491, %v3815, %v3816
        %v3818 = vrot.slane %v3681, 1
        %v3819 = vsel %vm491, %v3816, %v3818
        %v3820 = vrot.slane %v3682, 1
        %v3821 = vrot.slane %v3683, 1
        %v3822 = vsel %vm491, %v3820, %v3821
        %v3823 = vrot.slane %v3684, 1
        %v3824 = vsel %vm491, %v3821, %v3823
        %v3825 = vrot.slane %v3685, 1
        %v3826 = vrot.slane %v3686, 1
        %v3827 = vsel %vm491, %v3825, %v3826
        %v3828 = vrot.slane %v3687, 1
        %v3829 = vsel %vm491, %v3826, %v3828
        %v3830 = vrot.slane %v3688, 1
        %v3831 = vrot.slane %v3689, 1
        %v3832 = vsel %vm491, %v3830, %v3831
        %v3833 = vrot.slane %v3690, 1
        %v3834 = vsel %vm491, %v3831, %v3833
        %v3835 = vrot.slane %v3691, 1
        %v3836 = vrot.slane %v3692, 1
        %v3837 = vsel %vm491, %v3835, %v3836
        %v3838 = vrot.slane %v3693, 1
        %v3839 = vsel %vm491, %v3836, %v3838
        %v3840 = vrot.slane %v3694, 1
        %v3841 = vrot.slane %v3695, 1
        %v3842 = vsel %vm491, %v3840, %v3841
        %v3843 = vrot.slane %v3696, 1
        %v3844 = vsel %vm491, %v3841, %v3843
        %v3845 = vrot.slane %v3697, 1
        %v3846 = vrot.slane %v3698, 1
        %v3847 = vsel %vm491, %v3845, %v3846
        %v3848 = vrot.slane %v3699, 1
        %v3849 = vsel %vm491, %v3846, %v3848
        %s3882 = scalar_lea.vmem [#allocation3], 128
        %v3883 = vld [vmem:[%s3882] sm:$0xff]
        %v3884 = vld [vmem:[%s3882 + $0x8] sm:$0xff]
        %v3885 = vld [vmem:[%s3882 + $0x10] sm:$0xff]
        %v3886 = vld [vmem:[%s3882 + $0x18] sm:$0xff]
        %v3887 = vld [vmem:[%s3882 + $0x20] sm:$0xff]
        %v3888 = vld [vmem:[%s3882 + $0x28] sm:$0xff]
        %v3889 = vld [vmem:[%s3882 + $0x30] sm:$0xff]
        %v3890 = vld [vmem:[%s3882 + $0x38] sm:$0xff]
        %v3891 = vld [vmem:[%s3882 + $0x40] sm:$0xff]
        %v3892 = vld [vmem:[%s3882 + $0x48] sm:$0xff]
        %v3893 = vld [vmem:[%s3882 + $0x50] sm:$0xff]
        %v3894 = vld [vmem:[%s3882 + $0x58] sm:$0xff]
        %v3895 = vld [vmem:[%s3882 + $0x60] sm:$0xff]
        %v3896 = vld [vmem:[%s3882 + $0x68] sm:$0xff]
        %v3897 = vld [vmem:[%s3882 + $0x70] sm:$0xff]
        %v3898 = vld [vmem:[%s3882 + $0x78] sm:$0xff]
        %3899 = vmatprep.subr.mxu0 0.0
        %3900 = vmatpush1.msra.mxu0 %v3883
        %3901 = vmatprep.subr.mxu0 0.0
        %3902 = vmatpush1.msra.mxu0 %v3884
        %3903 = vmatprep.subr.mxu0 0.0
        %3904 = vmatpush1.msra.mxu0 %v3885
        %3905 = vmatprep.subr.mxu0 0.0
        %3906 = vmatpush1.msra.mxu0 %v3886
        %3907 = vmatprep.subr.mxu0 0.0
        %3908 = vmatpush1.msra.mxu0 %v3887
        %3909 = vmatprep.subr.mxu0 0.0
        %3910 = vmatpush1.msra.mxu0 %v3888
        %3911 = vmatprep.subr.mxu0 0.0
        %3912 = vmatpush1.msra.mxu0 %v3889
        %3913 = vmatprep.subr.mxu0 0.0
        %3914 = vmatpush1.msra.mxu0 %v3890
        %3915 = vmatprep.subr.mxu0 0.0
        %3916 = vmatpush1.msra.mxu0 %v3891
        %3917 = vmatprep.subr.mxu0 0.0
        %3918 = vmatpush1.msra.mxu0 %v3892
        %3919 = vmatprep.subr.mxu0 0.0
        %3920 = vmatpush1.msra.mxu0 %v3893
        %3921 = vmatprep.subr.mxu0 0.0
        %3922 = vmatpush1.msra.mxu0 %v3894
        %3923 = vmatprep.subr.mxu0 0.0
        %3924 = vmatpush1.msra.mxu0 %v3895
        %3925 = vmatprep.subr.mxu0 0.0
        %3926 = vmatpush1.msra.mxu0 %v3896
        %3927 = vmatprep.subr.mxu0 0.0
        %3928 = vmatpush1.msra.mxu0 %v3897
        %3929 = vmatprep.subr.mxu0 0.0
        %3930 = vmatpush1.msra.mxu0 %v3898
        %3931 = vmatprep.subr.mxu0 0.0
        %3932 = vmatpush1.msra.mxu0 0.0
        %3933 = vmatprep.subr.mxu0 0.0
        %3934 = vmatpush1.msra.mxu0 0.0
        %3935 = vmatprep.subr.mxu0 0.0
        %3936 = vmatpush1.msra.mxu0 0.0
        %3937 = vmatprep.subr.mxu0 0.0
        %3938 = vmatpush1.msra.mxu0 0.0
        %3939 = vmatprep.subr.mxu0 0.0
        %3940 = vmatpush1.msra.mxu0 0.0
        %3941 = vmatprep.subr.mxu0 0.0
        %3942 = vmatpush1.msra.mxu0 0.0
        %3943 = vmatprep.subr.mxu0 0.0
        %3944 = vmatpush1.msra.mxu0 0.0
        %3945 = vmatprep.subr.mxu0 0.0
        %3946 = vmatpush1.msra.mxu0 0.0
        %3947 = vmatprep.subr.mxu0 0.0
        %3948 = vmatpush1.msra.mxu0 0.0
        %3949 = vmatprep.subr.mxu0 0.0
        %3950 = vmatpush1.msra.mxu0 0.0
        %3951 = vmatprep.subr.mxu0 0.0
        %3952 = vmatpush1.msra.mxu0 0.0
        %3953 = vmatprep.subr.mxu0 0.0
        %3954 = vmatpush1.msra.mxu0 0.0
        %3955 = vmatprep.subr.mxu0 0.0
        %3956 = vmatpush1.msra.mxu0 0.0
        %3957 = vmatprep.subr.mxu0 0.0
        %3958 = vmatpush1.msra.mxu0 0.0
        %3959 = vmatprep.subr.mxu0 0.0
        %3960 = vmatpush1.msra.mxu0 0.0
        %3961 = vmatprep.subr.mxu0 0.0
        %3962 = vmatpush1.msra.mxu0 0.0
        %3963 = vmatprep.mubr.f32.mxu0 0.0
        %3964 = vmatmul.mubr.f32.gmra.mrb[0].mxu0 %v3772
        %v3965 = vpop.f32.mrb[0].mxu0
        %v3966 = vadd.f32 0.0, %v3965
        %v3967 = vpop.f32.mrb[0].mxu0
        %3968 = vmatprep.mubr.f32.mxu0 0.0
        %3969 = vmatmul.mubr.f32.gmra.mrb[0].mxu0 %v3774
        %v3970 = vpop.f32.mrb[0].mxu0
        %v3971 = vadd.f32 0.0, %v3970
        %v3972 = vpop.f32.mrb[0].mxu0
        %3973 = vmatprep.mubr.f32.mxu0 0.0
        %3974 = vmatmul.mubr.f32.gmra.mrb[0].mxu0 %v3777
        %v3975 = vpop.f32.mrb[0].mxu0
        %v3976 = vadd.f32 0.0, %v3975
        %v3977 = vpop.f32.mrb[0].mxu0
        %3978 = vmatprep.mubr.f32.mxu0 0.0
        %3979 = vmatmul.mubr.f32.gmra.mrb[0].mxu0 %v3779
        %v3980 = vpop.f32.mrb[0].mxu0
        %v3981 = vadd.f32 0.0, %v3980
        %v3982 = vpop.f32.mrb[0].mxu0
        %3983 = vmatprep.mubr.f32.mxu0 0.0
        %3984 = vmatmul.mubr.f32.gmra.mrb[0].mxu0 %v3782
        %v3985 = vpop.f32.mrb[0].mxu0
        %v3986 = vadd.f32 0.0, %v3985
        %v3987 = vpop.f32.mrb[0].mxu0
        %3988 = vmatprep.mubr.f32.mxu0 0.0
        %3989 = vmatmul.mubr.f32.gmra.mrb[0].mxu0 %v3784
        %v3990 = vpop.f32.mrb[0].mxu0
        %v3991 = vadd.f32 0.0, %v3990
        %v3992 = vpop.f32.mrb[0].mxu0
        %3993 = vmatprep.mubr.f32.mxu0 0.0
        %3994 = vmatmul.mubr.f32.gmra.mrb[0].mxu0 %v3787
        %v3995 = vpop.f32.mrb[0].mxu0
        %v3996 = vadd.f32 0.0, %v3995
        %v3997 = vpop.f32.mrb[0].mxu0
        %3998 = vmatprep.mubr.f32.mxu0 0.0
        %3999 = vmatmul.mubr.f32.gmra.mrb[0].mxu0 %v3789
        %v4000 = vpop.f32.mrb[0].mxu0
        %v4001 = vadd.f32 0.0, %v4000
        %v4002 = vpop.f32.mrb[0].mxu0
        %4003 = vmatprep.mubr.f32.mxu0 0.0
        %4004 = vmatmul.mubr.f32.gmra.mrb[0].mxu0 %v3792
        %v4005 = vpop.f32.mrb[0].mxu0
        %v4006 = vadd.f32 0.0, %v4005
        %v4007 = vpop.f32.mrb[0].mxu0
        %4008 = vmatprep.mubr.f32.mxu0 0.0
        %4009 = vmatmul.mubr.f32.gmra.mrb[0].mxu0 %v3794
        %v4010 = vpop.f32.mrb[0].mxu0
        %v4011 = vadd.f32 0.0, %v4010
        %v4012 = vpop.f32.mrb[0].mxu0
        %4013 = vmatprep.mubr.f32.mxu0 0.0
        %4014 = vmatmul.mubr.f32.gmra.mrb[0].mxu0 %v3797
        %v4015 = vpop.f32.mrb[0].mxu0
        %v4016 = vadd.f32 0.0, %v4015
        %v4017 = vpop.f32.mrb[0].mxu0
        %4018 = vmatprep.mubr.f32.mxu0 0.0
        %4019 = vmatmul.mubr.f32.gmra.mrb[0].mxu0 %v3799
        %v4020 = vpop.f32.mrb[0].mxu0
        %v4021 = vadd.f32 0.0, %v4020
        %v4022 = vpop.f32.mrb[0].mxu0
        %4023 = vmatprep.mubr.f32.mxu0 0.0
        %4024 = vmatmul.mubr.f32.gmra.mrb[0].mxu0 %v3802
        %v4025 = vpop.f32.mrb[0].mxu0
        %v4026 = vadd.f32 0.0, %v4025
        %v4027 = vpop.f32.mrb[0].mxu0
        %4028 = vmatprep.mubr.f32.mxu0 0.0
        %4029 = vmatmul.mubr.f32.gmra.mrb[0].mxu0 %v3804
        %v4030 = vpop.f32.mrb[0].mxu0
        %v4031 = vadd.f32 0.0, %v4030
        %v4032 = vpop.f32.mrb[0].mxu0
        %4033 = vmatprep.mubr.f32.mxu0 0.0
        %4034 = vmatmul.mubr.f32.gmra.mrb[0].mxu0 %v3807
        %v4035 = vpop.f32.mrb[0].mxu0
        %v4036 = vadd.f32 0.0, %v4035
        %v4037 = vpop.f32.mrb[0].mxu0
        %4038 = vmatprep.mubr.f32.mxu0 0.0
        %4039 = vmatmul.mubr.f32.gmra.mrb[0].mxu0 %v3809
        %v4040 = vpop.f32.mrb[0].mxu0
        %v4041 = vadd.f32 0.0, %v4040
        %v4042 = vpop.f32.mrb[0].mxu0
        %4043 = vmatprep.mubr.f32.mxu0 0.0
        %4044 = vmatmul.mubr.f32.gmra.mrb[0].mxu0 %v3812
        %v4045 = vpop.f32.mrb[0].mxu0
        %v4046 = vadd.f32 0.0, %v4045
        %v4047 = vpop.f32.mrb[0].mxu0
        %4048 = vmatprep.mubr.f32.mxu0 0.0
        %4049 = vmatmul.mubr.f32.gmra.mrb[0].mxu0 %v3814
        %v4050 = vpop.f32.mrb[0].mxu0
        %v4051 = vadd.f32 0.0, %v4050
        %v4052 = vpop.f32.mrb[0].mxu0
        %4053 = vmatprep.mubr.f32.mxu0 0.0
        %4054 = vmatmul.mubr.f32.gmra.mrb[0].mxu0 %v3817
        %v4055 = vpop.f32.mrb[0].mxu0
        %v4056 = vadd.f32 0.0, %v4055
        %v4057 = vpop.f32.mrb[0].mxu0
        %4058 = vmatprep.mubr.f32.mxu0 0.0
        %4059 = vmatmul.mubr.f32.gmra.mrb[0].mxu0 %v3819
        %v4060 = vpop.f32.mrb[0].mxu0
        %v4061 = vadd.f32 0.0, %v4060
        %v4062 = vpop.f32.mrb[0].mxu0
        %4063 = vmatprep.mubr.f32.mxu0 0.0
        %4064 = vmatmul.mubr.f32.gmra.mrb[0].mxu0 %v3822
        %v4065 = vpop.f32.mrb[0].mxu0
        %v4066 = vadd.f32 0.0, %v4065
        %v4067 = vpop.f32.mrb[0].mxu0
        %4068 = vmatprep.mubr.f32.mxu0 0.0
        %4069 = vmatmul.mubr.f32.gmra.mrb[0].mxu0 %v3824
        %v4070 = vpop.f32.mrb[0].mxu0
        %v4071 = vadd.f32 0.0, %v4070
        %v4072 = vpop.f32.mrb[0].mxu0
        %4073 = vmatprep.mubr.f32.mxu0 0.0
        %4074 = vmatmul.mubr.f32.gmra.mrb[0].mxu0 %v3827
        %v4075 = vpop.f32.mrb[0].mxu0
        %v4076 = vadd.f32 0.0, %v4075
        %v4077 = vpop.f32.mrb[0].mxu0
        %4078 = vmatprep.mubr.f32.mxu0 0.0
        %4079 = vmatmul.mubr.f32.gmra.mrb[0].mxu0 %v3829
        %v4080 = vpop.f32.mrb[0].mxu0
        %v4081 = vadd.f32 0.0, %v4080
        %v4082 = vpop.f32.mrb[0].mxu0
        %4083 = vmatprep.mubr.f32.mxu0 0.0
        %4084 = vmatmul.mubr.f32.gmra.mrb[0].mxu0 %v3832
        %v4085 = vpop.f32.mrb[0].mxu0
        %v4086 = vadd.f32 0.0, %v4085
        %v4087 = vpop.f32.mrb[0].mxu0
        %4088 = vmatprep.mubr.f32.mxu0 0.0
        %4089 = vmatmul.mubr.f32.gmra.mrb[0].mxu0 %v3834
        %v4090 = vpop.f32.mrb[0].mxu0
        %v4091 = vadd.f32 0.0, %v4090
        %v4092 = vpop.f32.mrb[0].mxu0
        %4093 = vmatprep.mubr.f32.mxu0 0.0
        %4094 = vmatmul.mubr.f32.gmra.mrb[0].mxu0 %v3837
        %v4095 = vpop.f32.mrb[0].mxu0
        %v4096 = vadd.f32 0.0, %v4095
        %v4097 = vpop.f32.mrb[0].mxu0
        %4098 = vmatprep.mubr.f32.mxu0 0.0
        %4099 = vmatmul.mubr.f32.gmra.mrb[0].mxu0 %v3839
        %v4100 = vpop.f32.mrb[0].mxu0
        %v4101 = vadd.f32 0.0, %v4100
        %v4102 = vpop.f32.mrb[0].mxu0
        %4103 = vmatprep.mubr.f32.mxu0 0.0
        %4104 = vmatmul.mubr.f32.gmra.mrb[0].mxu0 %v3842
        %v4105 = vpop.f32.mrb[0].mxu0
        %v4106 = vadd.f32 0.0, %v4105
        %v4107 = vpop.f32.mrb[0].mxu0
        %4108 = vmatprep.mubr.f32.mxu0 0.0
        %4109 = vmatmul.mubr.f32.gmra.mrb[0].mxu0 %v3844
        %v4110 = vpop.f32.mrb[0].mxu0
        %v4111 = vadd.f32 0.0, %v4110
        %v4112 = vpop.f32.mrb[0].mxu0
        %4113 = vmatprep.mubr.f32.mxu0 0.0
        %4114 = vmatmul.mubr.f32.gmra.mrb[0].mxu0 %v3847
        %v4115 = vpop.f32.mrb[0].mxu0
        %v4116 = vadd.f32 0.0, %v4115
        %v4117 = vpop.f32.mrb[0].mxu0
        %4118 = vmatprep.mubr.f32.mxu0 0.0
        %4119 = vmatmul.mubr.f32.gmra.mrb[0].mxu0 %v3849
        %v4120 = vpop.f32.mrb[0].mxu0
        %v4121 = vadd.f32 0.0, %v4120
        %v4122 = vpop.f32.mrb[0].mxu0
        %4123 = vdwg.mxu0
        %4124 = vmatprep.subr.mxu0 0.0
        %4125 = vmatpush1.msra.mxu0 %v3706
        %4126 = vmatprep.subr.mxu0 0.0
        %4127 = vmatpush1.msra.mxu0 %v3707
        %4128 = vmatprep.subr.mxu0 0.0
        %4129 = vmatpush1.msra.mxu0 %v3708
        %4130 = vmatprep.subr.mxu0 0.0
        %4131 = vmatpush1.msra.mxu0 %v3709
        %4132 = vmatprep.subr.mxu0 0.0
        %4133 = vmatpush1.msra.mxu0 %v3710
        %4134 = vmatprep.subr.mxu0 0.0
        %4135 = vmatpush1.msra.mxu0 %v3711
        %4136 = vmatprep.subr.mxu0 0.0
        %4137 = vmatpush1.msra.mxu0 %v3712
        %4138 = vmatprep.subr.mxu0 0.0
        %4139 = vmatpush1.msra.mxu0 %v3713
        %4140 = vmatprep.subr.mxu0 0.0
        %4141 = vmatpush1.msra.mxu0 %v3714
        %4142 = vmatprep.subr.mxu0 0.0
        %4143 = vmatpush1.msra.mxu0 %v3715
        %4144 = vmatprep.subr.mxu0 0.0
        %4145 = vmatpush1.msra.mxu0 %v3716
        %4146 = vmatprep.subr.mxu0 0.0
        %4147 = vmatpush1.msra.mxu0 %v3717
        %4148 = vmatprep.subr.mxu0 0.0
        %4149 = vmatpush1.msra.mxu0 %v3718
        %4150 = vmatprep.subr.mxu0 0.0
        %4151 = vmatpush1.msra.mxu0 %v3719
        %4152 = vmatprep.subr.mxu0 0.0
        %4153 = vmatpush1.msra.mxu0 %v3720
        %4154 = vmatprep.subr.mxu0 0.0
        %4155 = vmatpush1.msra.mxu0 %v3721
        %4156 = vmatprep.subr.mxu0 0.0
        %4157 = vmatpush1.msra.mxu0 0.0
        %4158 = vmatprep.subr.mxu0 0.0
        %4159 = vmatpush1.msra.mxu0 0.0
        %4160 = vmatprep.subr.mxu0 0.0
        %4161 = vmatpush1.msra.mxu0 0.0
        %4162 = vmatprep.subr.mxu0 0.0
        %4163 = vmatpush1.msra.mxu0 0.0
        %4164 = vmatprep.subr.mxu0 0.0
        %4165 = vmatpush1.msra.mxu0 0.0
        %4166 = vmatprep.subr.mxu0 0.0
        %4167 = vmatpush1.msra.mxu0 0.0
        %4168 = vmatprep.subr.mxu0 0.0
        %4169 = vmatpush1.msra.mxu0 0.0
        %4170 = vmatprep.subr.mxu0 0.0
        %4171 = vmatpush1.msra.mxu0 0.0
        %4172 = vmatprep.subr.mxu0 0.0
        %4173 = vmatpush1.msra.mxu0 0.0
        %4174 = vmatprep.subr.mxu0 0.0
        %4175 = vmatpush1.msra.mxu0 0.0
        %4176 = vmatprep.subr.mxu0 0.0
        %4177 = vmatpush1.msra.mxu0 0.0
        %4178 = vmatprep.subr.mxu0 0.0
        %4179 = vmatpush1.msra.mxu0 0.0
        %4180 = vmatprep.subr.mxu0 0.0
        %4181 = vmatpush1.msra.mxu0 0.0
        %4182 = vmatprep.subr.mxu0 0.0
        %4183 = vmatpush1.msra.mxu0 0.0
        %4184 = vmatprep.subr.mxu0 0.0
        %4185 = vmatpush1.msra.mxu0 0.0
        %4186 = vmatprep.subr.mxu0 0.0
        %4187 = vmatpush1.msra.mxu0 0.0
        %4188 = vmatprep.mubr.f32.mxu0 0.0
        %4189 = vmatmul.mubr.f32.gmra.mrb[0].mxu0 %v3652
        %v4190 = vpop.f32.mrb[0].mxu0
        %v4191 = vadd.f32 %v3966, %v4190
        %v4192 = vpop.f32.mrb[0].mxu0
        %4193 = vmatprep.mubr.f32.mxu0 0.0
        %4194 = vmatmul.mubr.f32.gmra.mrb[0].mxu0 %v3653
        %v4195 = vpop.f32.mrb[0].mxu0
        %v4196 = vadd.f32 %v3971, %v4195
        %v4197 = vpop.f32.mrb[0].mxu0
        %4198 = vmatprep.mubr.f32.mxu0 0.0
        %4199 = vmatmul.mubr.f32.gmra.mrb[0].mxu0 %v3655
        %v4200 = vpop.f32.mrb[0].mxu0
        %v4201 = vadd.f32 %v3976, %v4200
        %v4202 = vpop.f32.mrb[0].mxu0
        %4203 = vmatprep.mubr.f32.mxu0 0.0
        %4204 = vmatmul.mubr.f32.gmra.mrb[0].mxu0 %v3656
        %v4205 = vpop.f32.mrb[0].mxu0
        %v4206 = vadd.f32 %v3981, %v4205
        %v4207 = vpop.f32.mrb[0].mxu0
        %4208 = vmatprep.mubr.f32.mxu0 0.0
        %4209 = vmatmul.mubr.f32.gmra.mrb[0].mxu0 %v3658
        %v4210 = vpop.f32.mrb[0].mxu0
        %v4211 = vadd.f32 %v3986, %v4210
        %v4212 = vpop.f32.mrb[0].mxu0
        %4213 = vmatprep.mubr.f32.mxu0 0.0
        %4214 = vmatmul.mubr.f32.gmra.mrb[0].mxu0 %v3659
        %v4215 = vpop.f32.mrb[0].mxu0
        %v4216 = vadd.f32 %v3991, %v4215
        %v4217 = vpop.f32.mrb[0].mxu0
        %4218 = vmatprep.mubr.f32.mxu0 0.0
        %4219 = vmatmul.mubr.f32.gmra.mrb[0].mxu0 %v3661
        %v4220 = vpop.f32.mrb[0].mxu0
        %v4221 = vadd.f32 %v3996, %v4220
        %v4222 = vpop.f32.mrb[0].mxu0
        %4223 = vmatprep.mubr.f32.mxu0 0.0
        %4224 = vmatmul.mubr.f32.gmra.mrb[0].mxu0 %v3662
        %v4225 = vpop.f32.mrb[0].mxu0
        %v4226 = vadd.f32 %v4001, %v4225
        %v4227 = vpop.f32.mrb[0].mxu0
        %4228 = vmatprep.mubr.f32.mxu0 0.0
        %4229 = vmatmul.mubr.f32.gmra.mrb[0].mxu0 %v3664
        %v4230 = vpop.f32.mrb[0].mxu0
        %v4231 = vadd.f32 %v4006, %v4230
        %v4232 = vpop.f32.mrb[0].mxu0
        %4233 = vmatprep.mubr.f32.mxu0 0.0
        %4234 = vmatmul.mubr.f32.gmra.mrb[0].mxu0 %v3665
        %v4235 = vpop.f32.mrb[0].mxu0
        %v4236 = vadd.f32 %v4011, %v4235
        %v4237 = vpop.f32.mrb[0].mxu0
        %4238 = vmatprep.mubr.f32.mxu0 0.0
        %4239 = vmatmul.mubr.f32.gmra.mrb[0].mxu0 %v3667
        %v4240 = vpop.f32.mrb[0].mxu0
        %v4241 = vadd.f32 %v4016, %v4240
        %v4242 = vpop.f32.mrb[0].mxu0
        %4243 = vmatprep.mubr.f32.mxu0 0.0
        %4244 = vmatmul.mubr.f32.gmra.mrb[0].mxu0 %v3668
        %v4245 = vpop.f32.mrb[0].mxu0
        %v4246 = vadd.f32 %v4021, %v4245
        %v4247 = vpop.f32.mrb[0].mxu0
        %4248 = vmatprep.mubr.f32.mxu0 0.0
        %4249 = vmatmul.mubr.f32.gmra.mrb[0].mxu0 %v3670
        %v4250 = vpop.f32.mrb[0].mxu0
        %v4251 = vadd.f32 %v4026, %v4250
        %v4252 = vpop.f32.mrb[0].mxu0
        %4253 = vmatprep.mubr.f32.mxu0 0.0
        %4254 = vmatmul.mubr.f32.gmra.mrb[0].mxu0 %v3671
        %v4255 = vpop.f32.mrb[0].mxu0
        %v4256 = vadd.f32 %v4031, %v4255
        %v4257 = vpop.f32.mrb[0].mxu0
        %4258 = vmatprep.mubr.f32.mxu0 0.0
        %4259 = vmatmul.mubr.f32.gmra.mrb[0].mxu0 %v3673
        %v4260 = vpop.f32.mrb[0].mxu0
        %v4261 = vadd.f32 %v4036, %v4260
        %v4262 = vpop.f32.mrb[0].mxu0
        %4263 = vmatprep.mubr.f32.mxu0 0.0
        %4264 = vmatmul.mubr.f32.gmra.mrb[0].mxu0 %v3674
        %v4265 = vpop.f32.mrb[0].mxu0
        %v4266 = vadd.f32 %v4041, %v4265
        %v4267 = vpop.f32.mrb[0].mxu0
        %4268 = vmatprep.mubr.f32.mxu0 0.0
        %4269 = vmatmul.mubr.f32.gmra.mrb[0].mxu0 %v3676
        %v4270 = vpop.f32.mrb[0].mxu0
        %v4271 = vadd.f32 %v4046, %v4270
        %v4272 = vpop.f32.mrb[0].mxu0
        %4273 = vmatprep.mubr.f32.mxu0 0.0
        %4274 = vmatmul.mubr.f32.gmra.mrb[0].mxu0 %v3677
        %v4275 = vpop.f32.mrb[0].mxu0
        %v4276 = vadd.f32 %v4051, %v4275
        %v4277 = vpop.f32.mrb[0].mxu0
        %4278 = vmatprep.mubr.f32.mxu0 0.0
        %4279 = vmatmul.mubr.f32.gmra.mrb[0].mxu0 %v3679
        %v4280 = vpop.f32.mrb[0].mxu0
        %v4281 = vadd.f32 %v4056, %v4280
        %v4282 = vpop.f32.mrb[0].mxu0
        %4283 = vmatprep.mubr.f32.mxu0 0.0
        %4284 = vmatmul.mubr.f32.gmra.mrb[0].mxu0 %v3680
        %v4285 = vpop.f32.mrb[0].mxu0
        %v4286 = vadd.f32 %v4061, %v4285
        %v4287 = vpop.f32.mrb[0].mxu0
        %4288 = vmatprep.mubr.f32.mxu0 0.0
        %4289 = vmatmul.mubr.f32.gmra.mrb[0].mxu0 %v3682
        %v4290 = vpop.f32.mrb[0].mxu0
        %v4291 = vadd.f32 %v4066, %v4290
        %v4292 = vpop.f32.mrb[0].mxu0
        %4293 = vmatprep.mubr.f32.mxu0 0.0
        %4294 = vmatmul.mubr.f32.gmra.mrb[0].mxu0 %v3683
        %v4295 = vpop.f32.mrb[0].mxu0
        %v4296 = vadd.f32 %v4071, %v4295
        %v4297 = vpop.f32.mrb[0].mxu0
        %4298 = vmatprep.mubr.f32.mxu0 0.0
        %4299 = vmatmul.mubr.f32.gmra.mrb[0].mxu0 %v3685
        %v4300 = vpop.f32.mrb[0].mxu0
        %v4301 = vadd.f32 %v4076, %v4300
        %v4302 = vpop.f32.mrb[0].mxu0
        %4303 = vmatprep.mubr.f32.mxu0 0.0
        %4304 = vmatmul.mubr.f32.gmra.mrb[0].mxu0 %v3686
        %v4305 = vpop.f32.mrb[0].mxu0
        %v4306 = vadd.f32 %v4081, %v4305
        %v4307 = vpop.f32.mrb[0].mxu0
        %4308 = vmatprep.mubr.f32.mxu0 0.0
        %4309 = vmatmul.mubr.f32.gmra.mrb[0].mxu0 %v3688
        %v4310 = vpop.f32.mrb[0].mxu0
        %v4311 = vadd.f32 %v4086, %v4310
        %v4312 = vpop.f32.mrb[0].mxu0
        %4313 = vmatprep.mubr.f32.mxu0 0.0
        %4314 = vmatmul.mubr.f32.gmra.mrb[0].mxu0 %v3689
        %v4315 = vpop.f32.mrb[0].mxu0
        %v4316 = vadd.f32 %v4091, %v4315
        %v4317 = vpop.f32.mrb[0].mxu0
        %4318 = vmatprep.mubr.f32.mxu0 0.0
        %4319 = vmatmul.mubr.f32.gmra.mrb[0].mxu0 %v3691
        %v4320 = vpop.f32.mrb[0].mxu0
        %v4321 = vadd.f32 %v4096, %v4320
        %v4322 = vpop.f32.mrb[0].mxu0
        %4323 = vmatprep.mubr.f32.mxu0 0.0
        %4324 = vmatmul.mubr.f32.gmra.mrb[0].mxu0 %v3692
        %v4325 = vpop.f32.mrb[0].mxu0
        %v4326 = vadd.f32 %v4101, %v4325
        %v4327 = vpop.f32.mrb[0].mxu0
        %4328 = vmatprep.mubr.f32.mxu0 0.0
        %4329 = vmatmul.mubr.f32.gmra.mrb[0].mxu0 %v3694
        %v4330 = vpop.f32.mrb[0].mxu0
        %v4331 = vadd.f32 %v4106, %v4330
        %v4332 = vpop.f32.mrb[0].mxu0
        %4333 = vmatprep.mubr.f32.mxu0 0.0
        %4334 = vmatmul.mubr.f32.gmra.mrb[0].mxu0 %v3695
        %v4335 = vpop.f32.mrb[0].mxu0
        %v4336 = vadd.f32 %v4111, %v4335
        %v4337 = vpop.f32.mrb[0].mxu0
        %4338 = vmatprep.mubr.f32.mxu0 0.0
        %4339 = vmatmul.mubr.f32.gmra.mrb[0].mxu0 %v3697
        %v4340 = vpop.f32.mrb[0].mxu0
        %v4341 = vadd.f32 %v4116, %v4340
        %v4342 = vpop.f32.mrb[0].mxu0
        %4343 = vmatprep.mubr.f32.mxu0 0.0
        %4344 = vmatmul.mubr.f32.gmra.mrb[0].mxu0 %v3698
        %v4345 = vpop.f32.mrb[0].mxu0
        %v4346 = vadd.f32 %v4121, %v4345
        %v4347 = vpop.f32.mrb[0].mxu0
        %4348 = vdwg.mxu0
        %v4349 = vrot.slane %v3652, 2
        %v4350 = vrot.slane %v3653, 2
        %v4351 = vsel %vm1071, %v4349, %v4350
        %v4352 = vrot.slane %v3654, 2
        %v4353 = vsel %vm1071, %v4350, %v4352
        %v4354 = vrot.slane %v3655, 2
        %v4355 = vrot.slane %v3656, 2
        %v4356 = vsel %vm1071, %v4354, %v4355
        %v4357 = vrot.slane %v3657, 2
        %v4358 = vsel %vm1071, %v4355, %v4357
        %v4359 = vrot.slane %v3658, 2
        %v4360 = vrot.slane %v3659, 2
        %v4361 = vsel %vm1071, %v4359, %v4360
        %v4362 = vrot.slane %v3660, 2
        %v4363 = vsel %vm1071, %v4360, %v4362
        %v4364 = vrot.slane %v3661, 2
        %v4365 = vrot.slane %v3662, 2
        %v4366 = vsel %vm1071, %v4364, %v4365
        %v4367 = vrot.slane %v3663, 2
        %v4368 = vsel %vm1071, %v4365, %v4367
        %v4369 = vrot.slane %v3664, 2
        %v4370 = vrot.slane %v3665, 2
        %v4371 = vsel %vm1071, %v4369, %v4370
        %v4372 = vrot.slane %v3666, 2
        %v4373 = vsel %vm1071, %v4370, %v4372
        %v4374 = vrot.slane %v3667, 2
        %v4375 = vrot.slane %v3668, 2
        %v4376 = vsel %vm1071, %v4374, %v4375
        %v4377 = vrot.slane %v3669, 2
        %v4378 = vsel %vm1071, %v4375, %v4377
        %v4379 = vrot.slane %v3670, 2
        %v4380 = vrot.slane %v3671, 2
        %v4381 = vsel %vm1071, %v4379, %v4380
        %v4382 = vrot.slane %v3672, 2
        %v4383 = vsel %vm1071, %v4380, %v4382
        %v4384 = vrot.slane %v3673, 2
        %v4385 = vrot.slane %v3674, 2
        %v4386 = vsel %vm1071, %v4384, %v4385
        %v4387 = vrot.slane %v3675, 2
        %v4388 = vsel %vm1071, %v4385, %v4387
        %v4389 = vrot.slane %v3676, 2
        %v4390 = vrot.slane %v3677, 2
        %v4391 = vsel %vm1071, %v4389, %v4390
        %v4392 = vrot.slane %v3678, 2
        %v4393 = vsel %vm1071, %v4390, %v4392
        %v4394 = vrot.slane %v3679, 2
        %v4395 = vrot.slane %v3680, 2
        %v4396 = vsel %vm1071, %v4394, %v4395
        %v4397 = vrot.slane %v3681, 2
        %v4398 = vsel %vm1071, %v4395, %v4397
        %v4399 = vrot.slane %v3682, 2
        %v4400 = vrot.slane %v3683, 2
        %v4401 = vsel %vm1071, %v4399, %v4400
        %v4402 = vrot.slane %v3684, 2
        %v4403 = vsel %vm1071, %v4400, %v4402
        %v4404 = vrot.slane %v3685, 2
        %v4405 = vrot.slane %v3686, 2
        %v4406 = vsel %vm1071, %v4404, %v4405
        %v4407 = vrot.slane %v3687, 2
        %v4408 = vsel %vm1071, %v4405, %v4407
        %v4409 = vrot.slane %v3688, 2
        %v4410 = vrot.slane %v3689, 2
        %v4411 = vsel %vm1071, %v4409, %v4410
        %v4412 = vrot.slane %v3690, 2
        %v4413 = vsel %vm1071, %v4410, %v4412
        %v4414 = vrot.slane %v3691, 2
        %v4415 = vrot.slane %v3692, 2
        %v4416 = vsel %vm1071, %v4414, %v4415
        %v4417 = vrot.slane %v3693, 2
        %v4418 = vsel %vm1071, %v4415, %v4417
        %v4419 = vrot.slane %v3694, 2
        %v4420 = vrot.slane %v3695, 2
        %v4421 = vsel %vm1071, %v4419, %v4420
        %v4422 = vrot.slane %v3696, 2
        %v4423 = vsel %vm1071, %v4420, %v4422
        %v4424 = vrot.slane %v3697, 2
        %v4425 = vrot.slane %v3698, 2
        %v4426 = vsel %vm1071, %v4424, %v4425
        %v4427 = vrot.slane %v3699, 2
        %v4428 = vsel %vm1071, %v4425, %v4427
        %s4461 = scalar_lea.vmem [#allocation3], 256
        %v4462 = vld [vmem:[%s4461] sm:$0xff]
        %v4463 = vld [vmem:[%s4461 + $0x8] sm:$0xff]
        %v4464 = vld [vmem:[%s4461 + $0x10] sm:$0xff]
        %v4465 = vld [vmem:[%s4461 + $0x18] sm:$0xff]
        %v4466 = vld [vmem:[%s4461 + $0x20] sm:$0xff]
        %v4467 = vld [vmem:[%s4461 + $0x28] sm:$0xff]
        %v4468 = vld [vmem:[%s4461 + $0x30] sm:$0xff]
        %v4469 = vld [vmem:[%s4461 + $0x38] sm:$0xff]
        %v4470 = vld [vmem:[%s4461 + $0x40] sm:$0xff]
        %v4471 = vld [vmem:[%s4461 + $0x48] sm:$0xff]
        %v4472 = vld [vmem:[%s4461 + $0x50] sm:$0xff]
        %v4473 = vld [vmem:[%s4461 + $0x58] sm:$0xff]
        %v4474 = vld [vmem:[%s4461 + $0x60] sm:$0xff]
        %v4475 = vld [vmem:[%s4461 + $0x68] sm:$0xff]
        %v4476 = vld [vmem:[%s4461 + $0x70] sm:$0xff]
        %v4477 = vld [vmem:[%s4461 + $0x78] sm:$0xff]
        %4478 = vmatprep.subr.mxu0 0.0
        %4479 = vmatpush1.msra.mxu0 %v4462
        %4480 = vmatprep.subr.mxu0 0.0
        %4481 = vmatpush1.msra.mxu0 %v4463
        %4482 = vmatprep.subr.mxu0 0.0
        %4483 = vmatpush1.msra.mxu0 %v4464
        %4484 = vmatprep.subr.mxu0 0.0
        %4485 = vmatpush1.msra.mxu0 %v4465
        %4486 = vmatprep.subr.mxu0 0.0
        %4487 = vmatpush1.msra.mxu0 %v4466
        %4488 = vmatprep.subr.mxu0 0.0
        %4489 = vmatpush1.msra.mxu0 %v4467
        %4490 = vmatprep.subr.mxu0 0.0
        %4491 = vmatpush1.msra.mxu0 %v4468
        %4492 = vmatprep.subr.mxu0 0.0
        %4493 = vmatpush1.msra.mxu0 %v4469
        %4494 = vmatprep.subr.mxu0 0.0
        %4495 = vmatpush1.msra.mxu0 %v4470
        %4496 = vmatprep.subr.mxu0 0.0
        %4497 = vmatpush1.msra.mxu0 %v4471
        %4498 = vmatprep.subr.mxu0 0.0
        %4499 = vmatpush1.msra.mxu0 %v4472
        %4500 = vmatprep.subr.mxu0 0.0
        %4501 = vmatpush1.msra.mxu0 %v4473
        %4502 = vmatprep.subr.mxu0 0.0
        %4503 = vmatpush1.msra.mxu0 %v4474
        %4504 = vmatprep.subr.mxu0 0.0
        %4505 = vmatpush1.msra.mxu0 %v4475
        %4506 = vmatprep.subr.mxu0 0.0
        %4507 = vmatpush1.msra.mxu0 %v4476
        %4508 = vmatprep.subr.mxu0 0.0
        %4509 = vmatpush1.msra.mxu0 %v4477
        %4510 = vmatprep.subr.mxu0 0.0
        %4511 = vmatpush1.msra.mxu0 0.0
        %4512 = vmatprep.subr.mxu0 0.0
        %4513 = vmatpush1.msra.mxu0 0.0
        %4514 = vmatprep.subr.mxu0 0.0
        %4515 = vmatpush1.msra.mxu0 0.0
        %4516 = vmatprep.subr.mxu0 0.0
        %4517 = vmatpush1.msra.mxu0 0.0
        %4518 = vmatprep.subr.mxu0 0.0
        %4519 = vmatpush1.msra.mxu0 0.0
        %4520 = vmatprep.subr.mxu0 0.0
        %4521 = vmatpush1.msra.mxu0 0.0
        %4522 = vmatprep.subr.mxu0 0.0
        %4523 = vmatpush1.msra.mxu0 0.0
        %4524 = vmatprep.subr.mxu0 0.0
        %4525 = vmatpush1.msra.mxu0 0.0
        %4526 = vmatprep.subr.mxu0 0.0
        %4527 = vmatpush1.msra.mxu0 0.0
        %4528 = vmatprep.subr.mxu0 0.0
        %4529 = vmatpush1.msra.mxu0 0.0
        %4530 = vmatprep.subr.mxu0 0.0
        %4531 = vmatpush1.msra.mxu0 0.0
        %4532 = vmatprep.subr.mxu0 0.0
        %4533 = vmatpush1.msra.mxu0 0.0
        %4534 = vmatprep.subr.mxu0 0.0
        %4535 = vmatpush1.msra.mxu0 0.0
        %4536 = vmatprep.subr.mxu0 0.0
        %4537 = vmatpush1.msra.mxu0 0.0
        %4538 = vmatprep.subr.mxu0 0.0
        %4539 = vmatpush1.msra.mxu0 0.0
        %4540 = vmatprep.subr.mxu0 0.0
        %4541 = vmatpush1.msra.mxu0 0.0
        %4542 = vmatprep.mubr.f32.mxu0 0.0
        %4543 = vmatmul.mubr.f32.gmra.mrb[0].mxu0 %v4351
        %v4544 = vpop.f32.mrb[0].mxu0
        %v4545 = vadd.f32 0.0, %v4544
        %v4546 = vpop.f32.mrb[0].mxu0
        %4547 = vmatprep.mubr.f32.mxu0 0.0
        %4548 = vmatmul.mubr.f32.gmra.mrb[0].mxu0 %v4353
        %v4549 = vpop.f32.mrb[0].mxu0
        %v4550 = vadd.f32 0.0, %v4549
        %v4551 = vpop.f32.mrb[0].mxu0
        %4552 = vmatprep.mubr.f32.mxu0 0.0
        %4553 = vmatmul.mubr.f32.gmra.mrb[0].mxu0 %v4356
        %v4554 = vpop.f32.mrb[0].mxu0
        %v4555 = vadd.f32 0.0, %v4554
        %v4556 = vpop.f32.mrb[0].mxu0
        %4557 = vmatprep.mubr.f32.mxu0 0.0
        %4558 = vmatmul.mubr.f32.gmra.mrb[0].mxu0 %v4358
        %v4559 = vpop.f32.mrb[0].mxu0
        %v4560 = vadd.f32 0.0, %v4559
        %v4561 = vpop.f32.mrb[0].mxu0
        %4562 = vmatprep.mubr.f32.mxu0 0.0
        %4563 = vmatmul.mubr.f32.gmra.mrb[0].mxu0 %v4361
        %v4564 = vpop.f32.mrb[0].mxu0
        %v4565 = vadd.f32 0.0, %v4564
        %v4566 = vpop.f32.mrb[0].mxu0
        %4567 = vmatprep.mubr.f32.mxu0 0.0
        %4568 = vmatmul.mubr.f32.gmra.mrb[0].mxu0 %v4363
        %v4569 = vpop.f32.mrb[0].mxu0
        %v4570 = vadd.f32 0.0, %v4569
        %v4571 = vpop.f32.mrb[0].mxu0
        %4572 = vmatprep.mubr.f32.mxu0 0.0
        %4573 = vmatmul.mubr.f32.gmra.mrb[0].mxu0 %v4366
        %v4574 = vpop.f32.mrb[0].mxu0
        %v4575 = vadd.f32 0.0, %v4574
        %v4576 = vpop.f32.mrb[0].mxu0
        %4577 = vmatprep.mubr.f32.mxu0 0.0
        %4578 = vmatmul.mubr.f32.gmra.mrb[0].mxu0 %v4368
        %v4579 = vpop.f32.mrb[0].mxu0
        %v4580 = vadd.f32 0.0, %v4579
        %v4581 = vpop.f32.mrb[0].mxu0
        %4582 = vmatprep.mubr.f32.mxu0 0.0
        %4583 = vmatmul.mubr.f32.gmra.mrb[0].mxu0 %v4371
        %v4584 = vpop.f32.mrb[0].mxu0
        %v4585 = vadd.f32 0.0, %v4584
        %v4586 = vpop.f32.mrb[0].mxu0
        %4587 = vmatprep.mubr.f32.mxu0 0.0
        %4588 = vmatmul.mubr.f32.gmra.mrb[0].mxu0 %v4373
        %v4589 = vpop.f32.mrb[0].mxu0
        %v4590 = vadd.f32 0.0, %v4589
        %v4591 = vpop.f32.mrb[0].mxu0
        %4592 = vmatprep.mubr.f32.mxu0 0.0
        %4593 = vmatmul.mubr.f32.gmra.mrb[0].mxu0 %v4376
        %v4594 = vpop.f32.mrb[0].mxu0
        %v4595 = vadd.f32 0.0, %v4594
        %v4596 = vpop.f32.mrb[0].mxu0
        %4597 = vmatprep.mubr.f32.mxu0 0.0
        %4598 = vmatmul.mubr.f32.gmra.mrb[0].mxu0 %v4378
        %v4599 = vpop.f32.mrb[0].mxu0
        %v4600 = vadd.f32 0.0, %v4599
        %v4601 = vpop.f32.mrb[0].mxu0
        %4602 = vmatprep.mubr.f32.mxu0 0.0
        %4603 = vmatmul.mubr.f32.gmra.mrb[0].mxu0 %v4381
        %v4604 = vpop.f32.mrb[0].mxu0
        %v4605 = vadd.f32 0.0, %v4604
        %v4606 = vpop.f32.mrb[0].mxu0
        %4607 = vmatprep.mubr.f32.mxu0 0.0
        %4608 = vmatmul.mubr.f32.gmra.mrb[0].mxu0 %v4383
        %v4609 = vpop.f32.mrb[0].mxu0
        %v4610 = vadd.f32 0.0, %v4609
        %v4611 = vpop.f32.mrb[0].mxu0
        %4612 = vmatprep.mubr.f32.mxu0 0.0
        %4613 = vmatmul.mubr.f32.gmra.mrb[0].mxu0 %v4386
        %v4614 = vpop.f32.mrb[0].mxu0
        %v4615 = vadd.f32 0.0, %v4614
        %v4616 = vpop.f32.mrb[0].mxu0
        %4617 = vmatprep.mubr.f32.mxu0 0.0
        %4618 = vmatmul.mubr.f32.gmra.mrb[0].mxu0 %v4388
        %v4619 = vpop.f32.mrb[0].mxu0
        %v4620 = vadd.f32 0.0, %v4619
        %v4621 = vpop.f32.mrb[0].mxu0
        %4622 = vmatprep.mubr.f32.mxu0 0.0
        %4623 = vmatmul.mubr.f32.gmra.mrb[0].mxu0 %v4391
        %v4624 = vpop.f32.mrb[0].mxu0
        %v4625 = vadd.f32 0.0, %v4624
        %v4626 = vpop.f32.mrb[0].mxu0
        %4627 = vmatprep.mubr.f32.mxu0 0.0
        %4628 = vmatmul.mubr.f32.gmra.mrb[0].mxu0 %v4393
        %v4629 = vpop.f32.mrb[0].mxu0
        %v4630 = vadd.f32 0.0, %v4629
        %v4631 = vpop.f32.mrb[0].mxu0
        %4632 = vmatprep.mubr.f32.mxu0 0.0
        %4633 = vmatmul.mubr.f32.gmra.mrb[0].mxu0 %v4396
        %v4634 = vpop.f32.mrb[0].mxu0
        %v4635 = vadd.f32 0.0, %v4634
        %v4636 = vpop.f32.mrb[0].mxu0
        %4637 = vmatprep.mubr.f32.mxu0 0.0
        %4638 = vmatmul.mubr.f32.gmra.mrb[0].mxu0 %v4398
        %v4639 = vpop.f32.mrb[0].mxu0
        %v4640 = vadd.f32 0.0, %v4639
        %v4641 = vpop.f32.mrb[0].mxu0
        %4642 = vmatprep.mubr.f32.mxu0 0.0
        %4643 = vmatmul.mubr.f32.gmra.mrb[0].mxu0 %v4401
        %v4644 = vpop.f32.mrb[0].mxu0
        %v4645 = vadd.f32 0.0, %v4644
        %v4646 = vpop.f32.mrb[0].mxu0
        %4647 = vmatprep.mubr.f32.mxu0 0.0
        %4648 = vmatmul.mubr.f32.gmra.mrb[0].mxu0 %v4403
        %v4649 = vpop.f32.mrb[0].mxu0
        %v4650 = vadd.f32 0.0, %v4649
        %v4651 = vpop.f32.mrb[0].mxu0
        %4652 = vmatprep.mubr.f32.mxu0 0.0
        %4653 = vmatmul.mubr.f32.gmra.mrb[0].mxu0 %v4406
        %v4654 = vpop.f32.mrb[0].mxu0
        %v4655 = vadd.f32 0.0, %v4654
        %v4656 = vpop.f32.mrb[0].mxu0
        %4657 = vmatprep.mubr.f32.mxu0 0.0
        %4658 = vmatmul.mubr.f32.gmra.mrb[0].mxu0 %v4408
        %v4659 = vpop.f32.mrb[0].mxu0
        %v4660 = vadd.f32 0.0, %v4659
        %v4661 = vpop.f32.mrb[0].mxu0
        %4662 = vmatprep.mubr.f32.mxu0 0.0
        %4663 = vmatmul.mubr.f32.gmra.mrb[0].mxu0 %v4411
        %v4664 = vpop.f32.mrb[0].mxu0
        %v4665 = vadd.f32 0.0, %v4664
        %v4666 = vpop.f32.mrb[0].mxu0
        %4667 = vmatprep.mubr.f32.mxu0 0.0
        %4668 = vmatmul.mubr.f32.gmra.mrb[0].mxu0 %v4413
        %v4669 = vpop.f32.mrb[0].mxu0
        %v4670 = vadd.f32 0.0, %v4669
        %v4671 = vpop.f32.mrb[0].mxu0
        %4672 = vmatprep.mubr.f32.mxu0 0.0
        %4673 = vmatmul.mubr.f32.gmra.mrb[0].mxu0 %v4416
        %v4674 = vpop.f32.mrb[0].mxu0
        %v4675 = vadd.f32 0.0, %v4674
        %v4676 = vpop.f32.mrb[0].mxu0
        %4677 = vmatprep.mubr.f32.mxu0 0.0
        %4678 = vmatmul.mubr.f32.gmra.mrb[0].mxu0 %v4418
        %v4679 = vpop.f32.mrb[0].mxu0
        %v4680 = vadd.f32 0.0, %v4679
        %v4681 = vpop.f32.mrb[0].mxu0
        %4682 = vmatprep.mubr.f32.mxu0 0.0
        %4683 = vmatmul.mubr.f32.gmra.mrb[0].mxu0 %v4421
        %v4684 = vpop.f32.mrb[0].mxu0
        %v4685 = vadd.f32 0.0, %v4684
        %v4686 = vpop.f32.mrb[0].mxu0
        %4687 = vmatprep.mubr.f32.mxu0 0.0
        %4688 = vmatmul.mubr.f32.gmra.mrb[0].mxu0 %v4423
        %v4689 = vpop.f32.mrb[0].mxu0
        %v4690 = vadd.f32 0.0, %v4689
        %v4691 = vpop.f32.mrb[0].mxu0
        %4692 = vmatprep.mubr.f32.mxu0 0.0
        %4693 = vmatmul.mubr.f32.gmra.mrb[0].mxu0 %v4426
        %v4694 = vpop.f32.mrb[0].mxu0
        %v4695 = vadd.f32 0.0, %v4694
        %v4696 = vpop.f32.mrb[0].mxu0
        %4697 = vmatprep.mubr.f32.mxu0 0.0
        %4698 = vmatmul.mubr.f32.gmra.mrb[0].mxu0 %v4428
        %v4699 = vpop.f32.mrb[0].mxu0
        %v4700 = vadd.f32 0.0, %v4699
        %v4701 = vpop.f32.mrb[0].mxu0
        %4702 = vdwg.mxu0
        %v4703 = vadd.f32 %v4191, %v4545
        %v4704 = vadd.f32 %v4196, %v4550
        %v4705 = vadd.f32 %v4201, %v4555
        %v4706 = vadd.f32 %v4206, %v4560
        %v4707 = vadd.f32 %v4211, %v4565
        %v4708 = vadd.f32 %v4216, %v4570
        %v4709 = vadd.f32 %v4221, %v4575
        %v4710 = vadd.f32 %v4226, %v4580
        %v4711 = vadd.f32 %v4231, %v4585
        %v4712 = vadd.f32 %v4236, %v4590
        %v4713 = vadd.f32 %v4241, %v4595
        %v4714 = vadd.f32 %v4246, %v4600
        %v4715 = vadd.f32 %v4251, %v4605
        %v4716 = vadd.f32 %v4256, %v4610
        %v4717 = vadd.f32 %v4261, %v4615
        %v4718 = vadd.f32 %v4266, %v4620
        %v4719 = vadd.f32 %v4271, %v4625
        %v4720 = vadd.f32 %v4276, %v4630
        %v4721 = vadd.f32 %v4281, %v4635
        %v4722 = vadd.f32 %v4286, %v4640
        %v4723 = vadd.f32 %v4291, %v4645
        %v4724 = vadd.f32 %v4296, %v4650
        %v4725 = vadd.f32 %v4301, %v4655
        %v4726 = vadd.f32 %v4306, %v4660
        %v4727 = vadd.f32 %v4311, %v4665
        %v4728 = vadd.f32 %v4316, %v4670
        %v4729 = vadd.f32 %v4321, %v4675
        %v4730 = vadd.f32 %v4326, %v4680
        %v4731 = vadd.f32 %v4331, %v4685
        %v4732 = vadd.f32 %v4336, %v4690
        %v4733 = vadd.f32 %v4341, %v4695
        %v4734 = vadd.f32 %v4346, %v4700
        %s4735 = scalar_lea.vmem [#allocation3], 384
        %v4736 = vld [vmem:[%s4735] sm:$0xff]
        %v4737 = vld [vmem:[%s4735 + $0x8] sm:$0xff]
        %v4738 = vld [vmem:[%s4735 + $0x10] sm:$0xff]
        %v4739 = vld [vmem:[%s4735 + $0x18] sm:$0xff]
        %v4740 = vld [vmem:[%s4735 + $0x20] sm:$0xff]
        %v4741 = vld [vmem:[%s4735 + $0x28] sm:$0xff]
        %v4742 = vld [vmem:[%s4735 + $0x30] sm:$0xff]
        %v4743 = vld [vmem:[%s4735 + $0x38] sm:$0xff]
        %v4744 = vld [vmem:[%s4735 + $0x40] sm:$0xff]
        %v4745 = vld [vmem:[%s4735 + $0x48] sm:$0xff]
        %v4746 = vld [vmem:[%s4735 + $0x50] sm:$0xff]
        %v4747 = vld [vmem:[%s4735 + $0x58] sm:$0xff]
        %v4748 = vld [vmem:[%s4735 + $0x60] sm:$0xff]
        %v4749 = vld [vmem:[%s4735 + $0x68] sm:$0xff]
        %v4750 = vld [vmem:[%s4735 + $0x70] sm:$0xff]
        %v4751 = vld [vmem:[%s4735 + $0x78] sm:$0xff]
        %4752 = vmatprep.subr.mxu0 0.0
        %4753 = vmatpush1.msra.mxu0 %v4736
        %4754 = vmatprep.subr.mxu0 0.0
        %4755 = vmatpush1.msra.mxu0 %v4737
        %4756 = vmatprep.subr.mxu0 0.0
        %4757 = vmatpush1.msra.mxu0 %v4738
        %4758 = vmatprep.subr.mxu0 0.0
        %4759 = vmatpush1.msra.mxu0 %v4739
        %4760 = vmatprep.subr.mxu0 0.0
        %4761 = vmatpush1.msra.mxu0 %v4740
        %4762 = vmatprep.subr.mxu0 0.0
        %4763 = vmatpush1.msra.mxu0 %v4741
        %4764 = vmatprep.subr.mxu0 0.0
        %4765 = vmatpush1.msra.mxu0 %v4742
        %4766 = vmatprep.subr.mxu0 0.0
        %4767 = vmatpush1.msra.mxu0 %v4743
        %4768 = vmatprep.subr.mxu0 0.0
        %4769 = vmatpush1.msra.mxu0 %v4744
        %4770 = vmatprep.subr.mxu0 0.0
        %4771 = vmatpush1.msra.mxu0 %v4745
        %4772 = vmatprep.subr.mxu0 0.0
        %4773 = vmatpush1.msra.mxu0 %v4746
        %4774 = vmatprep.subr.mxu0 0.0
        %4775 = vmatpush1.msra.mxu0 %v4747
        %4776 = vmatprep.subr.mxu0 0.0
        %4777 = vmatpush1.msra.mxu0 %v4748
        %4778 = vmatprep.subr.mxu0 0.0
        %4779 = vmatpush1.msra.mxu0 %v4749
        %4780 = vmatprep.subr.mxu0 0.0
        %4781 = vmatpush1.msra.mxu0 %v4750
        %4782 = vmatprep.subr.mxu0 0.0
        %4783 = vmatpush1.msra.mxu0 %v4751
        %4784 = vmatprep.subr.mxu0 0.0
        %4785 = vmatpush1.msra.mxu0 0.0
        %4786 = vmatprep.subr.mxu0 0.0
        %4787 = vmatpush1.msra.mxu0 0.0
        %4788 = vmatprep.subr.mxu0 0.0
        %4789 = vmatpush1.msra.mxu0 0.0
        %4790 = vmatprep.subr.mxu0 0.0
        %4791 = vmatpush1.msra.mxu0 0.0
        %4792 = vmatprep.subr.mxu0 0.0
        %4793 = vmatpush1.msra.mxu0 0.0
        %4794 = vmatprep.subr.mxu0 0.0
        %4795 = vmatpush1.msra.mxu0 0.0
        %4796 = vmatprep.subr.mxu0 0.0
        %4797 = vmatpush1.msra.mxu0 0.0
        %4798 = vmatprep.subr.mxu0 0.0
        %4799 = vmatpush1.msra.mxu0 0.0
        %4800 = vmatprep.subr.mxu0 0.0
        %4801 = vmatpush1.msra.mxu0 0.0
        %4802 = vmatprep.subr.mxu0 0.0
        %4803 = vmatpush1.msra.mxu0 0.0
        %4804 = vmatprep.subr.mxu0 0.0
        %4805 = vmatpush1.msra.mxu0 0.0
        %4806 = vmatprep.subr.mxu0 0.0
        %4807 = vmatpush1.msra.mxu0 0.0
        %4808 = vmatprep.subr.mxu0 0.0
        %4809 = vmatpush1.msra.mxu0 0.0
        %4810 = vmatprep.subr.mxu0 0.0
        %4811 = vmatpush1.msra.mxu0 0.0
        %4812 = vmatprep.subr.mxu0 0.0
        %4813 = vmatpush1.msra.mxu0 0.0
        %4814 = vmatprep.subr.mxu0 0.0
        %4815 = vmatpush1.msra.mxu0 0.0
        %4816 = vmatprep.mubr.f32.mxu0 0.0
        %4817 = vmatmul.mubr.f32.gmra.mrb[0].mxu0 %v3655
        %v4818 = vpop.f32.mrb[0].mxu0
        %v4819 = vadd.f32 0.0, %v4818
        %v4820 = vpop.f32.mrb[0].mxu0
        %4821 = vmatprep.mubr.f32.mxu0 0.0
        %4822 = vmatmul.mubr.f32.gmra.mrb[0].mxu0 %v3656
        %v4823 = vpop.f32.mrb[0].mxu0
        %v4824 = vadd.f32 0.0, %v4823
        %v4825 = vpop.f32.mrb[0].mxu0
        %4826 = vmatprep.mubr.f32.mxu0 0.0
        %4827 = vmatmul.mubr.f32.gmra.mrb[0].mxu0 %v3658
        %v4828 = vpop.f32.mrb[0].mxu0
        %v4829 = vadd.f32 0.0, %v4828
        %v4830 = vpop.f32.mrb[0].mxu0
        %4831 = vmatprep.mubr.f32.mxu0 0.0
        %4832 = vmatmul.mubr.f32.gmra.mrb[0].mxu0 %v3659
        %v4833 = vpop.f32.mrb[0].mxu0
        %v4834 = vadd.f32 0.0, %v4833
        %v4835 = vpop.f32.mrb[0].mxu0
        %4836 = vmatprep.mubr.f32.mxu0 0.0
        %4837 = vmatmul.mubr.f32.gmra.mrb[0].mxu0 %v3661
        %v4838 = vpop.f32.mrb[0].mxu0
        %v4839 = vadd.f32 0.0, %v4838
        %v4840 = vpop.f32.mrb[0].mxu0
        %4841 = vmatprep.mubr.f32.mxu0 0.0
        %4842 = vmatmul.mubr.f32.gmra.mrb[0].mxu0 %v3662
        %v4843 = vpop.f32.mrb[0].mxu0
        %v4844 = vadd.f32 0.0, %v4843
        %v4845 = vpop.f32.mrb[0].mxu0
        %4846 = vmatprep.mubr.f32.mxu0 0.0
        %4847 = vmatmul.mubr.f32.gmra.mrb[0].mxu0 %v3664
        %v4848 = vpop.f32.mrb[0].mxu0
        %v4849 = vadd.f32 0.0, %v4848
        %v4850 = vpop.f32.mrb[0].mxu0
        %4851 = vmatprep.mubr.f32.mxu0 0.0
        %4852 = vmatmul.mubr.f32.gmra.mrb[0].mxu0 %v3665
        %v4853 = vpop.f32.mrb[0].mxu0
        %v4854 = vadd.f32 0.0, %v4853
        %v4855 = vpop.f32.mrb[0].mxu0
        %4856 = vmatprep.mubr.f32.mxu0 0.0
        %4857 = vmatmul.mubr.f32.gmra.mrb[0].mxu0 %v3667
        %v4858 = vpop.f32.mrb[0].mxu0
        %v4859 = vadd.f32 0.0, %v4858
        %v4860 = vpop.f32.mrb[0].mxu0
        %4861 = vmatprep.mubr.f32.mxu0 0.0
        %4862 = vmatmul.mubr.f32.gmra.mrb[0].mxu0 %v3668
        %v4863 = vpop.f32.mrb[0].mxu0
        %v4864 = vadd.f32 0.0, %v4863
        %v4865 = vpop.f32.mrb[0].mxu0
        %4866 = vmatprep.mubr.f32.mxu0 0.0
        %4867 = vmatmul.mubr.f32.gmra.mrb[0].mxu0 %v3670
        %v4868 = vpop.f32.mrb[0].mxu0
        %v4869 = vadd.f32 0.0, %v4868
        %v4870 = vpop.f32.mrb[0].mxu0
        %4871 = vmatprep.mubr.f32.mxu0 0.0
        %4872 = vmatmul.mubr.f32.gmra.mrb[0].mxu0 %v3671
        %v4873 = vpop.f32.mrb[0].mxu0
        %v4874 = vadd.f32 0.0, %v4873
        %v4875 = vpop.f32.mrb[0].mxu0
        %4876 = vmatprep.mubr.f32.mxu0 0.0
        %4877 = vmatmul.mubr.f32.gmra.mrb[0].mxu0 %v3673
        %v4878 = vpop.f32.mrb[0].mxu0
        %v4879 = vadd.f32 0.0, %v4878
        %v4880 = vpop.f32.mrb[0].mxu0
        %4881 = vmatprep.mubr.f32.mxu0 0.0
        %4882 = vmatmul.mubr.f32.gmra.mrb[0].mxu0 %v3674
        %v4883 = vpop.f32.mrb[0].mxu0
        %v4884 = vadd.f32 0.0, %v4883
        %v4885 = vpop.f32.mrb[0].mxu0
        %4886 = vmatprep.mubr.f32.mxu0 0.0
        %4887 = vmatmul.mubr.f32.gmra.mrb[0].mxu0 %v3676
        %v4888 = vpop.f32.mrb[0].mxu0
        %v4889 = vadd.f32 0.0, %v4888
        %v4890 = vpop.f32.mrb[0].mxu0
        %4891 = vmatprep.mubr.f32.mxu0 0.0
        %4892 = vmatmul.mubr.f32.gmra.mrb[0].mxu0 %v3677
        %v4893 = vpop.f32.mrb[0].mxu0
        %v4894 = vadd.f32 0.0, %v4893
        %v4895 = vpop.f32.mrb[0].mxu0
        %4896 = vmatprep.mubr.f32.mxu0 0.0
        %4897 = vmatmul.mubr.f32.gmra.mrb[0].mxu0 %v3679
        %v4898 = vpop.f32.mrb[0].mxu0
        %v4899 = vadd.f32 0.0, %v4898
        %v4900 = vpop.f32.mrb[0].mxu0
        %4901 = vmatprep.mubr.f32.mxu0 0.0
        %4902 = vmatmul.mubr.f32.gmra.mrb[0].mxu0 %v3680
        %v4903 = vpop.f32.mrb[0].mxu0
        %v4904 = vadd.f32 0.0, %v4903
        %v4905 = vpop.f32.mrb[0].mxu0
        %4906 = vmatprep.mubr.f32.mxu0 0.0
        %4907 = vmatmul.mubr.f32.gmra.mrb[0].mxu0 %v3682
        %v4908 = vpop.f32.mrb[0].mxu0
        %v4909 = vadd.f32 0.0, %v4908
        %v4910 = vpop.f32.mrb[0].mxu0
        %4911 = vmatprep.mubr.f32.mxu0 0.0
        %4912 = vmatmul.mubr.f32.gmra.mrb[0].mxu0 %v3683
        %v4913 = vpop.f32.mrb[0].mxu0
        %v4914 = vadd.f32 0.0, %v4913
        %v4915 = vpop.f32.mrb[0].mxu0
        %4916 = vmatprep.mubr.f32.mxu0 0.0
        %4917 = vmatmul.mubr.f32.gmra.mrb[0].mxu0 %v3685
        %v4918 = vpop.f32.mrb[0].mxu0
        %v4919 = vadd.f32 0.0, %v4918
        %v4920 = vpop.f32.mrb[0].mxu0
        %4921 = vmatprep.mubr.f32.mxu0 0.0
        %4922 = vmatmul.mubr.f32.gmra.mrb[0].mxu0 %v3686
        %v4923 = vpop.f32.mrb[0].mxu0
        %v4924 = vadd.f32 0.0, %v4923
        %v4925 = vpop.f32.mrb[0].mxu0
        %4926 = vmatprep.mubr.f32.mxu0 0.0
        %4927 = vmatmul.mubr.f32.gmra.mrb[0].mxu0 %v3688
        %v4928 = vpop.f32.mrb[0].mxu0
        %v4929 = vadd.f32 0.0, %v4928
        %v4930 = vpop.f32.mrb[0].mxu0
        %4931 = vmatprep.mubr.f32.mxu0 0.0
        %4932 = vmatmul.mubr.f32.gmra.mrb[0].mxu0 %v3689
        %v4933 = vpop.f32.mrb[0].mxu0
        %v4934 = vadd.f32 0.0, %v4933
        %v4935 = vpop.f32.mrb[0].mxu0
        %4936 = vmatprep.mubr.f32.mxu0 0.0
        %4937 = vmatmul.mubr.f32.gmra.mrb[0].mxu0 %v3691
        %v4938 = vpop.f32.mrb[0].mxu0
        %v4939 = vadd.f32 0.0, %v4938
        %v4940 = vpop.f32.mrb[0].mxu0
        %4941 = vmatprep.mubr.f32.mxu0 0.0
        %4942 = vmatmul.mubr.f32.gmra.mrb[0].mxu0 %v3692
        %v4943 = vpop.f32.mrb[0].mxu0
        %v4944 = vadd.f32 0.0, %v4943
        %v4945 = vpop.f32.mrb[0].mxu0
        %4946 = vmatprep.mubr.f32.mxu0 0.0
        %4947 = vmatmul.mubr.f32.gmra.mrb[0].mxu0 %v3694
        %v4948 = vpop.f32.mrb[0].mxu0
        %v4949 = vadd.f32 0.0, %v4948
        %v4950 = vpop.f32.mrb[0].mxu0
        %4951 = vmatprep.mubr.f32.mxu0 0.0
        %4952 = vmatmul.mubr.f32.gmra.mrb[0].mxu0 %v3695
        %v4953 = vpop.f32.mrb[0].mxu0
        %v4954 = vadd.f32 0.0, %v4953
        %v4955 = vpop.f32.mrb[0].mxu0
        %4956 = vmatprep.mubr.f32.mxu0 0.0
        %4957 = vmatmul.mubr.f32.gmra.mrb[0].mxu0 %v3697
        %v4958 = vpop.f32.mrb[0].mxu0
        %v4959 = vadd.f32 0.0, %v4958
        %v4960 = vpop.f32.mrb[0].mxu0
        %4961 = vmatprep.mubr.f32.mxu0 0.0
        %4962 = vmatmul.mubr.f32.gmra.mrb[0].mxu0 %v3698
        %v4963 = vpop.f32.mrb[0].mxu0
        %v4964 = vadd.f32 0.0, %v4963
        %v4965 = vpop.f32.mrb[0].mxu0
        %4966 = vmatprep.mubr.f32.mxu0 0.0
        %4967 = vmatmul.mubr.f32.gmra.mrb[0].mxu0 %v3700
        %v4968 = vpop.f32.mrb[0].mxu0
        %v4969 = vadd.f32 0.0, %v4968
        %v4970 = vpop.f32.mrb[0].mxu0
        %4971 = vmatprep.mubr.f32.mxu0 0.0
        %4972 = vmatmul.mubr.f32.gmra.mrb[0].mxu0 %v3701
        %v4973 = vpop.f32.mrb[0].mxu0
        %v4974 = vadd.f32 0.0, %v4973
        %v4975 = vpop.f32.mrb[0].mxu0
        %4976 = vdwg.mxu0
        %v4977 = vadd.f32 %v4703, %v4819
        %v4978 = vadd.f32 %v4704, %v4824
        %v4979 = vadd.f32 %v4705, %v4829
        %v4980 = vadd.f32 %v4706, %v4834
        %v4981 = vadd.f32 %v4707, %v4839
        %v4982 = vadd.f32 %v4708, %v4844
        %v4983 = vadd.f32 %v4709, %v4849
        %v4984 = vadd.f32 %v4710, %v4854
        %v4985 = vadd.f32 %v4711, %v4859
        %v4986 = vadd.f32 %v4712, %v4864
        %v4987 = vadd.f32 %v4713, %v4869
        %v4988 = vadd.f32 %v4714, %v4874
        %v4989 = vadd.f32 %v4715, %v4879
        %v4990 = vadd.f32 %v4716, %v4884
        %v4991 = vadd.f32 %v4717, %v4889
        %v4992 = vadd.f32 %v4718, %v4894
        %v4993 = vadd.f32 %v4719, %v4899
        %v4994 = vadd.f32 %v4720, %v4904
        %v4995 = vadd.f32 %v4721, %v4909
        %v4996 = vadd.f32 %v4722, %v4914
        %v4997 = vadd.f32 %v4723, %v4919
        %v4998 = vadd.f32 %v4724, %v4924
        %v4999 = vadd.f32 %v4725, %v4929
        %v5000 = vadd.f32 %v4726, %v4934
        %v5001 = vadd.f32 %v4727, %v4939
        %v5002 = vadd.f32 %v4728, %v4944
        %v5003 = vadd.f32 %v4729, %v4949
        %v5004 = vadd.f32 %v4730, %v4954
        %v5005 = vadd.f32 %v4731, %v4959
        %v5006 = vadd.f32 %v4732, %v4964
        %v5007 = vadd.f32 %v4733, %v4969
        %v5008 = vadd.f32 %v4734, %v4974
        %v5012 = vrot.slane %v3700, 1
        %v5013 = vrot.slane %v3701, 1
        %v5014 = vsel %vm491, %v5012, %v5013
        %v5015 = vrot.slane %v3702, 1
        %v5016 = vsel %vm491, %v5013, %v5015
        %s5019 = scalar_lea.vmem [#allocation3], 512
        %v5020 = vld [vmem:[%s5019] sm:$0xff]
        %v5021 = vld [vmem:[%s5019 + $0x8] sm:$0xff]
        %v5022 = vld [vmem:[%s5019 + $0x10] sm:$0xff]
        %v5023 = vld [vmem:[%s5019 + $0x18] sm:$0xff]
        %v5024 = vld [vmem:[%s5019 + $0x20] sm:$0xff]
        %v5025 = vld [vmem:[%s5019 + $0x28] sm:$0xff]
        %v5026 = vld [vmem:[%s5019 + $0x30] sm:$0xff]
        %v5027 = vld [vmem:[%s5019 + $0x38] sm:$0xff]
        %v5028 = vld [vmem:[%s5019 + $0x40] sm:$0xff]
        %v5029 = vld [vmem:[%s5019 + $0x48] sm:$0xff]
        %v5030 = vld [vmem:[%s5019 + $0x50] sm:$0xff]
        %v5031 = vld [vmem:[%s5019 + $0x58] sm:$0xff]
        %v5032 = vld [vmem:[%s5019 + $0x60] sm:$0xff]
        %v5033 = vld [vmem:[%s5019 + $0x68] sm:$0xff]
        %v5034 = vld [vmem:[%s5019 + $0x70] sm:$0xff]
        %v5035 = vld [vmem:[%s5019 + $0x78] sm:$0xff]
        %5036 = vmatprep.subr.mxu0 0.0
        %5037 = vmatpush1.msra.mxu0 %v5020
        %5038 = vmatprep.subr.mxu0 0.0
        %5039 = vmatpush1.msra.mxu0 %v5021
        %5040 = vmatprep.subr.mxu0 0.0
        %5041 = vmatpush1.msra.mxu0 %v5022
        %5042 = vmatprep.subr.mxu0 0.0
        %5043 = vmatpush1.msra.mxu0 %v5023
        %5044 = vmatprep.subr.mxu0 0.0
        %5045 = vmatpush1.msra.mxu0 %v5024
        %5046 = vmatprep.subr.mxu0 0.0
        %5047 = vmatpush1.msra.mxu0 %v5025
        %5048 = vmatprep.subr.mxu0 0.0
        %5049 = vmatpush1.msra.mxu0 %v5026
        %5050 = vmatprep.subr.mxu0 0.0
        %5051 = vmatpush1.msra.mxu0 %v5027
        %5052 = vmatprep.subr.mxu0 0.0
        %5053 = vmatpush1.msra.mxu0 %v5028
        %5054 = vmatprep.subr.mxu0 0.0
        %5055 = vmatpush1.msra.mxu0 %v5029
        %5056 = vmatprep.subr.mxu0 0.0
        %5057 = vmatpush1.msra.mxu0 %v5030
        %5058 = vmatprep.subr.mxu0 0.0
        %5059 = vmatpush1.msra.mxu0 %v5031
        %5060 = vmatprep.subr.mxu0 0.0
        %5061 = vmatpush1.msra.mxu0 %v5032
        %5062 = vmatprep.subr.mxu0 0.0
        %5063 = vmatpush1.msra.mxu0 %v5033
        %5064 = vmatprep.subr.mxu0 0.0
        %5065 = vmatpush1.msra.mxu0 %v5034
        %5066 = vmatprep.subr.mxu0 0.0
        %5067 = vmatpush1.msra.mxu0 %v5035
        %5068 = vmatprep.subr.mxu0 0.0
        %5069 = vmatpush1.msra.mxu0 0.0
        %5070 = vmatprep.subr.mxu0 0.0
        %5071 = vmatpush1.msra.mxu0 0.0
        %5072 = vmatprep.subr.mxu0 0.0
        %5073 = vmatpush1.msra.mxu0 0.0
        %5074 = vmatprep.subr.mxu0 0.0
        %5075 = vmatpush1.msra.mxu0 0.0
        %5076 = vmatprep.subr.mxu0 0.0
        %5077 = vmatpush1.msra.mxu0 0.0
        %5078 = vmatprep.subr.mxu0 0.0
        %5079 = vmatpush1.msra.mxu0 0.0
        %5080 = vmatprep.subr.mxu0 0.0
        %5081 = vmatpush1.msra.mxu0 0.0
        %5082 = vmatprep.subr.mxu0 0.0
        %5083 = vmatpush1.msra.mxu0 0.0
        %5084 = vmatprep.subr.mxu0 0.0
        %5085 = vmatpush1.msra.mxu0 0.0
        %5086 = vmatprep.subr.mxu0 0.0
        %5087 = vmatpush1.msra.mxu0 0.0
        %5088 = vmatprep.subr.mxu0 0.0
        %5089 = vmatpush1.msra.mxu0 0.0
        %5090 = vmatprep.subr.mxu0 0.0
        %5091 = vmatpush1.msra.mxu0 0.0
        %5092 = vmatprep.subr.mxu0 0.0
        %5093 = vmatpush1.msra.mxu0 0.0
        %5094 = vmatprep.subr.mxu0 0.0
        %5095 = vmatpush1.msra.mxu0 0.0
        %5096 = vmatprep.subr.mxu0 0.0
        %5097 = vmatpush1.msra.mxu0 0.0
        %5098 = vmatprep.subr.mxu0 0.0
        %5099 = vmatpush1.msra.mxu0 0.0
        %5100 = vmatprep.mubr.f32.mxu0 0.0
        %5101 = vmatmul.mubr.f32.gmra.mrb[0].mxu0 %v3777
        %v5102 = vpop.f32.mrb[0].mxu0
        %v5103 = vadd.f32 0.0, %v5102
        %v5104 = vpop.f32.mrb[0].mxu0
        %5105 = vmatprep.mubr.f32.mxu0 0.0
        %5106 = vmatmul.mubr.f32.gmra.mrb[0].mxu0 %v3779
        %v5107 = vpop.f32.mrb[0].mxu0
        %v5108 = vadd.f32 0.0, %v5107
        %v5109 = vpop.f32.mrb[0].mxu0
        %5110 = vmatprep.mubr.f32.mxu0 0.0
        %5111 = vmatmul.mubr.f32.gmra.mrb[0].mxu0 %v3782
        %v5112 = vpop.f32.mrb[0].mxu0
        %v5113 = vadd.f32 0.0, %v5112
        %v5114 = vpop.f32.mrb[0].mxu0
        %5115 = vmatprep.mubr.f32.mxu0 0.0
        %5116 = vmatmul.mubr.f32.gmra.mrb[0].mxu0 %v3784
        %v5117 = vpop.f32.mrb[0].mxu0
        %v5118 = vadd.f32 0.0, %v5117
        %v5119 = vpop.f32.mrb[0].mxu0
        %5120 = vmatprep.mubr.f32.mxu0 0.0
        %5121 = vmatmul.mubr.f32.gmra.mrb[0].mxu0 %v3787
        %v5122 = vpop.f32.mrb[0].mxu0
        %v5123 = vadd.f32 0.0, %v5122
        %v5124 = vpop.f32.mrb[0].mxu0
        %5125 = vmatprep.mubr.f32.mxu0 0.0
        %5126 = vmatmul.mubr.f32.gmra.mrb[0].mxu0 %v3789
        %v5127 = vpop.f32.mrb[0].mxu0
        %v5128 = vadd.f32 0.0, %v5127
        %v5129 = vpop.f32.mrb[0].mxu0
        %5130 = vmatprep.mubr.f32.mxu0 0.0
        %5131 = vmatmul.mubr.f32.gmra.mrb[0].mxu0 %v3792
        %v5132 = vpop.f32.mrb[0].mxu0
        %v5133 = vadd.f32 0.0, %v5132
        %v5134 = vpop.f32.mrb[0].mxu0
        %5135 = vmatprep.mubr.f32.mxu0 0.0
        %5136 = vmatmul.mubr.f32.gmra.mrb[0].mxu0 %v3794
        %v5137 = vpop.f32.mrb[0].mxu0
        %v5138 = vadd.f32 0.0, %v5137
        %v5139 = vpop.f32.mrb[0].mxu0
        %5140 = vmatprep.mubr.f32.mxu0 0.0
        %5141 = vmatmul.mubr.f32.gmra.mrb[0].mxu0 %v3797
        %v5142 = vpop.f32.mrb[0].mxu0
        %v5143 = vadd.f32 0.0, %v5142
        %v5144 = vpop.f32.mrb[0].mxu0
        %5145 = vmatprep.mubr.f32.mxu0 0.0
        %5146 = vmatmul.mubr.f32.gmra.mrb[0].mxu0 %v3799
        %v5147 = vpop.f32.mrb[0].mxu0
        %v5148 = vadd.f32 0.0, %v5147
        %v5149 = vpop.f32.mrb[0].mxu0
        %5150 = vmatprep.mubr.f32.mxu0 0.0
        %5151 = vmatmul.mubr.f32.gmra.mrb[0].mxu0 %v3802
        %v5152 = vpop.f32.mrb[0].mxu0
        %v5153 = vadd.f32 0.0, %v5152
        %v5154 = vpop.f32.mrb[0].mxu0
        %5155 = vmatprep.mubr.f32.mxu0 0.0
        %5156 = vmatmul.mubr.f32.gmra.mrb[0].mxu0 %v3804
        %v5157 = vpop.f32.mrb[0].mxu0
        %v5158 = vadd.f32 0.0, %v5157
        %v5159 = vpop.f32.mrb[0].mxu0
        %5160 = vmatprep.mubr.f32.mxu0 0.0
        %5161 = vmatmul.mubr.f32.gmra.mrb[0].mxu0 %v3807
        %v5162 = vpop.f32.mrb[0].mxu0
        %v5163 = vadd.f32 0.0, %v5162
        %v5164 = vpop.f32.mrb[0].mxu0
        %5165 = vmatprep.mubr.f32.mxu0 0.0
        %5166 = vmatmul.mubr.f32.gmra.mrb[0].mxu0 %v3809
        %v5167 = vpop.f32.mrb[0].mxu0
        %v5168 = vadd.f32 0.0, %v5167
        %v5169 = vpop.f32.mrb[0].mxu0
        %5170 = vmatprep.mubr.f32.mxu0 0.0
        %5171 = vmatmul.mubr.f32.gmra.mrb[0].mxu0 %v3812
        %v5172 = vpop.f32.mrb[0].mxu0
        %v5173 = vadd.f32 0.0, %v5172
        %v5174 = vpop.f32.mrb[0].mxu0
        %5175 = vmatprep.mubr.f32.mxu0 0.0
        %5176 = vmatmul.mubr.f32.gmra.mrb[0].mxu0 %v3814
        %v5177 = vpop.f32.mrb[0].mxu0
        %v5178 = vadd.f32 0.0, %v5177
        %v5179 = vpop.f32.mrb[0].mxu0
        %5180 = vmatprep.mubr.f32.mxu0 0.0
        %5181 = vmatmul.mubr.f32.gmra.mrb[0].mxu0 %v3817
        %v5182 = vpop.f32.mrb[0].mxu0
        %v5183 = vadd.f32 0.0, %v5182
        %v5184 = vpop.f32.mrb[0].mxu0
        %5185 = vmatprep.mubr.f32.mxu0 0.0
        %5186 = vmatmul.mubr.f32.gmra.mrb[0].mxu0 %v3819
        %v5187 = vpop.f32.mrb[0].mxu0
        %v5188 = vadd.f32 0.0, %v5187
        %v5189 = vpop.f32.mrb[0].mxu0
        %5190 = vmatprep.mubr.f32.mxu0 0.0
        %5191 = vmatmul.mubr.f32.gmra.mrb[0].mxu0 %v3822
        %v5192 = vpop.f32.mrb[0].mxu0
        %v5193 = vadd.f32 0.0, %v5192
        %v5194 = vpop.f32.mrb[0].mxu0
        %5195 = vmatprep.mubr.f32.mxu0 0.0
        %5196 = vmatmul.mubr.f32.gmra.mrb[0].mxu0 %v3824
        %v5197 = vpop.f32.mrb[0].mxu0
        %v5198 = vadd.f32 0.0, %v5197
        %v5199 = vpop.f32.mrb[0].mxu0
        %5200 = vmatprep.mubr.f32.mxu0 0.0
        %5201 = vmatmul.mubr.f32.gmra.mrb[0].mxu0 %v3827
        %v5202 = vpop.f32.mrb[0].mxu0
        %v5203 = vadd.f32 0.0, %v5202
        %v5204 = vpop.f32.mrb[0].mxu0
        %5205 = vmatprep.mubr.f32.mxu0 0.0
        %5206 = vmatmul.mubr.f32.gmra.mrb[0].mxu0 %v3829
        %v5207 = vpop.f32.mrb[0].mxu0
        %v5208 = vadd.f32 0.0, %v5207
        %v5209 = vpop.f32.mrb[0].mxu0
        %5210 = vmatprep.mubr.f32.mxu0 0.0
        %5211 = vmatmul.mubr.f32.gmra.mrb[0].mxu0 %v3832
        %v5212 = vpop.f32.mrb[0].mxu0
        %v5213 = vadd.f32 0.0, %v5212
        %v5214 = vpop.f32.mrb[0].mxu0
        %5215 = vmatprep.mubr.f32.mxu0 0.0
        %5216 = vmatmul.mubr.f32.gmra.mrb[0].mxu0 %v3834
        %v5217 = vpop.f32.mrb[0].mxu0
        %v5218 = vadd.f32 0.0, %v5217
        %v5219 = vpop.f32.mrb[0].mxu0
        %5220 = vmatprep.mubr.f32.mxu0 0.0
        %5221 = vmatmul.mubr.f32.gmra.mrb[0].mxu0 %v3837
        %v5222 = vpop.f32.mrb[0].mxu0
        %v5223 = vadd.f32 0.0, %v5222
        %v5224 = vpop.f32.mrb[0].mxu0
        %5225 = vmatprep.mubr.f32.mxu0 0.0
        %5226 = vmatmul.mubr.f32.gmra.mrb[0].mxu0 %v3839
        %v5227 = vpop.f32.mrb[0].mxu0
        %v5228 = vadd.f32 0.0, %v5227
        %v5229 = vpop.f32.mrb[0].mxu0
        %5230 = vmatprep.mubr.f32.mxu0 0.0
        %5231 = vmatmul.mubr.f32.gmra.mrb[0].mxu0 %v3842
        %v5232 = vpop.f32.mrb[0].mxu0
        %v5233 = vadd.f32 0.0, %v5232
        %v5234 = vpop.f32.mrb[0].mxu0
        %5235 = vmatprep.mubr.f32.mxu0 0.0
        %5236 = vmatmul.mubr.f32.gmra.mrb[0].mxu0 %v3844
        %v5237 = vpop.f32.mrb[0].mxu0
        %v5238 = vadd.f32 0.0, %v5237
        %v5239 = vpop.f32.mrb[0].mxu0
        %5240 = vmatprep.mubr.f32.mxu0 0.0
        %5241 = vmatmul.mubr.f32.gmra.mrb[0].mxu0 %v3847
        %v5242 = vpop.f32.mrb[0].mxu0
        %v5243 = vadd.f32 0.0, %v5242
        %v5244 = vpop.f32.mrb[0].mxu0
        %5245 = vmatprep.mubr.f32.mxu0 0.0
        %5246 = vmatmul.mubr.f32.gmra.mrb[0].mxu0 %v3849
        %v5247 = vpop.f32.mrb[0].mxu0
        %v5248 = vadd.f32 0.0, %v5247
        %v5249 = vpop.f32.mrb[0].mxu0
        %5250 = vmatprep.mubr.f32.mxu0 0.0
        %5251 = vmatmul.mubr.f32.gmra.mrb[0].mxu0 %v5014
        %v5252 = vpop.f32.mrb[0].mxu0
        %v5253 = vadd.f32 0.0, %v5252
        %v5254 = vpop.f32.mrb[0].mxu0
        %5255 = vmatprep.mubr.f32.mxu0 0.0
        %5256 = vmatmul.mubr.f32.gmra.mrb[0].mxu0 %v5016
        %v5257 = vpop.f32.mrb[0].mxu0
        %v5258 = vadd.f32 0.0, %v5257
        %v5259 = vpop.f32.mrb[0].mxu0
        %5260 = vdwg.mxu0
        %v5261 = vadd.f32 %v4977, %v5103
        %v5262 = vadd.f32 %v4978, %v5108
        %v5263 = vadd.f32 %v4979, %v5113
        %v5264 = vadd.f32 %v4980, %v5118
        %v5265 = vadd.f32 %v4981, %v5123
        %v5266 = vadd.f32 %v4982, %v5128
        %v5267 = vadd.f32 %v4983, %v5133
        %v5268 = vadd.f32 %v4984, %v5138
        %v5269 = vadd.f32 %v4985, %v5143
        %v5270 = vadd.f32 %v4986, %v5148
        %v5271 = vadd.f32 %v4987, %v5153
        %v5272 = vadd.f32 %v4988, %v5158
        %v5273 = vadd.f32 %v4989, %v5163
        %v5274 = vadd.f32 %v4990, %v5168
        %v5275 = vadd.f32 %v4991, %v5173
        %v5276 = vadd.f32 %v4992, %v5178
        %v5277 = vadd.f32 %v4993, %v5183
        %v5278 = vadd.f32 %v4994, %v5188
        %v5279 = vadd.f32 %v4995, %v5193
        %v5280 = vadd.f32 %v4996, %v5198
        %v5281 = vadd.f32 %v4997, %v5203
        %v5282 = vadd.f32 %v4998, %v5208
        %v5283 = vadd.f32 %v4999, %v5213
        %v5284 = vadd.f32 %v5000, %v5218
        %v5285 = vadd.f32 %v5001, %v5223
        %v5286 = vadd.f32 %v5002, %v5228
        %v5287 = vadd.f32 %v5003, %v5233
        %v5288 = vadd.f32 %v5004, %v5238
        %v5289 = vadd.f32 %v5005, %v5243
        %v5290 = vadd.f32 %v5006, %v5248
        %v5291 = vadd.f32 %v5007, %v5253
        %v5292 = vadd.f32 %v5008, %v5258
        %v5293 = vrot.slane %v3700, 2
        %v5294 = vrot.slane %v3701, 2
        %v5295 = vsel %vm1071, %v5293, %v5294
        %v5296 = vrot.slane %v3702, 2
        %v5297 = vsel %vm1071, %v5294, %v5296
        %s5300 = scalar_lea.vmem [#allocation3], 640
        %v5301 = vld [vmem:[%s5300] sm:$0xff]
        %v5302 = vld [vmem:[%s5300 + $0x8] sm:$0xff]
        %v5303 = vld [vmem:[%s5300 + $0x10] sm:$0xff]
        %v5304 = vld [vmem:[%s5300 + $0x18] sm:$0xff]
        %v5305 = vld [vmem:[%s5300 + $0x20] sm:$0xff]
        %v5306 = vld [vmem:[%s5300 + $0x28] sm:$0xff]
        %v5307 = vld [vmem:[%s5300 + $0x30] sm:$0xff]
        %v5308 = vld [vmem:[%s5300 + $0x38] sm:$0xff]
        %v5309 = vld [vmem:[%s5300 + $0x40] sm:$0xff]
        %v5310 = vld [vmem:[%s5300 + $0x48] sm:$0xff]
        %v5311 = vld [vmem:[%s5300 + $0x50] sm:$0xff]
        %v5312 = vld [vmem:[%s5300 + $0x58] sm:$0xff]
        %v5313 = vld [vmem:[%s5300 + $0x60] sm:$0xff]
        %v5314 = vld [vmem:[%s5300 + $0x68] sm:$0xff]
        %v5315 = vld [vmem:[%s5300 + $0x70] sm:$0xff]
        %v5316 = vld [vmem:[%s5300 + $0x78] sm:$0xff]
        %5317 = vmatprep.subr.mxu0 0.0
        %5318 = vmatpush1.msra.mxu0 %v5301
        %5319 = vmatprep.subr.mxu0 0.0
        %5320 = vmatpush1.msra.mxu0 %v5302
        %5321 = vmatprep.subr.mxu0 0.0
        %5322 = vmatpush1.msra.mxu0 %v5303
        %5323 = vmatprep.subr.mxu0 0.0
        %5324 = vmatpush1.msra.mxu0 %v5304
        %5325 = vmatprep.subr.mxu0 0.0
        %5326 = vmatpush1.msra.mxu0 %v5305
        %5327 = vmatprep.subr.mxu0 0.0
        %5328 = vmatpush1.msra.mxu0 %v5306
        %5329 = vmatprep.subr.mxu0 0.0
        %5330 = vmatpush1.msra.mxu0 %v5307
        %5331 = vmatprep.subr.mxu0 0.0
        %5332 = vmatpush1.msra.mxu0 %v5308
        %5333 = vmatprep.subr.mxu0 0.0
        %5334 = vmatpush1.msra.mxu0 %v5309
        %5335 = vmatprep.subr.mxu0 0.0
        %5336 = vmatpush1.msra.mxu0 %v5310
        %5337 = vmatprep.subr.mxu0 0.0
        %5338 = vmatpush1.msra.mxu0 %v5311
        %5339 = vmatprep.subr.mxu0 0.0
        %5340 = vmatpush1.msra.mxu0 %v5312
        %5341 = vmatprep.subr.mxu0 0.0
        %5342 = vmatpush1.msra.mxu0 %v5313
        %5343 = vmatprep.subr.mxu0 0.0
        %5344 = vmatpush1.msra.mxu0 %v5314
        %5345 = vmatprep.subr.mxu0 0.0
        %5346 = vmatpush1.msra.mxu0 %v5315
        %5347 = vmatprep.subr.mxu0 0.0
        %5348 = vmatpush1.msra.mxu0 %v5316
        %5349 = vmatprep.subr.mxu0 0.0
        %5350 = vmatpush1.msra.mxu0 0.0
        %5351 = vmatprep.subr.mxu0 0.0
        %5352 = vmatpush1.msra.mxu0 0.0
        %5353 = vmatprep.subr.mxu0 0.0
        %5354 = vmatpush1.msra.mxu0 0.0
        %5355 = vmatprep.subr.mxu0 0.0
        %5356 = vmatpush1.msra.mxu0 0.0
        %5357 = vmatprep.subr.mxu0 0.0
        %5358 = vmatpush1.msra.mxu0 0.0
        %5359 = vmatprep.subr.mxu0 0.0
        %5360 = vmatpush1.msra.mxu0 0.0
        %5361 = vmatprep.subr.mxu0 0.0
        %5362 = vmatpush1.msra.mxu0 0.0
        %5363 = vmatprep.subr.mxu0 0.0
        %5364 = vmatpush1.msra.mxu0 0.0
        %5365 = vmatprep.subr.mxu0 0.0
        %5366 = vmatpush1.msra.mxu0 0.0
        %5367 = vmatprep.subr.mxu0 0.0
        %5368 = vmatpush1.msra.mxu0 0.0
        %5369 = vmatprep.subr.mxu0 0.0
        %5370 = vmatpush1.msra.mxu0 0.0
        %5371 = vmatprep.subr.mxu0 0.0
        %5372 = vmatpush1.msra.mxu0 0.0
        %5373 = vmatprep.subr.mxu0 0.0
        %5374 = vmatpush1.msra.mxu0 0.0
        %5375 = vmatprep.subr.mxu0 0.0
        %5376 = vmatpush1.msra.mxu0 0.0
        %5377 = vmatprep.subr.mxu0 0.0
        %5378 = vmatpush1.msra.mxu0 0.0
        %5379 = vmatprep.subr.mxu0 0.0
        %5380 = vmatpush1.msra.mxu0 0.0
        %5381 = vmatprep.mubr.f32.mxu0 0.0
        %5382 = vmatmul.mubr.f32.gmra.mrb[0].mxu0 %v4356
        %v5383 = vpop.f32.mrb[0].mxu0
        %v5384 = vadd.f32 0.0, %v5383
        %v5385 = vpop.f32.mrb[0].mxu0
        %5386 = vmatprep.mubr.f32.mxu0 0.0
        %5387 = vmatmul.mubr.f32.gmra.mrb[0].mxu0 %v4358
        %v5388 = vpop.f32.mrb[0].mxu0
        %v5389 = vadd.f32 0.0, %v5388
        %v5390 = vpop.f32.mrb[0].mxu0
        %5391 = vmatprep.mubr.f32.mxu0 0.0
        %5392 = vmatmul.mubr.f32.gmra.mrb[0].mxu0 %v4361
        %v5393 = vpop.f32.mrb[0].mxu0
        %v5394 = vadd.f32 0.0, %v5393
        %v5395 = vpop.f32.mrb[0].mxu0
        %5396 = vmatprep.mubr.f32.mxu0 0.0
        %5397 = vmatmul.mubr.f32.gmra.mrb[0].mxu0 %v4363
        %v5398 = vpop.f32.mrb[0].mxu0
        %v5399 = vadd.f32 0.0, %v5398
        %v5400 = vpop.f32.mrb[0].mxu0
        %5401 = vmatprep.mubr.f32.mxu0 0.0
        %5402 = vmatmul.mubr.f32.gmra.mrb[0].mxu0 %v4366
        %v5403 = vpop.f32.mrb[0].mxu0
        %v5404 = vadd.f32 0.0, %v5403
        %v5405 = vpop.f32.mrb[0].mxu0
        %5406 = vmatprep.mubr.f32.mxu0 0.0
        %5407 = vmatmul.mubr.f32.gmra.mrb[0].mxu0 %v4368
        %v5408 = vpop.f32.mrb[0].mxu0
        %v5409 = vadd.f32 0.0, %v5408
        %v5410 = vpop.f32.mrb[0].mxu0
        %5411 = vmatprep.mubr.f32.mxu0 0.0
        %5412 = vmatmul.mubr.f32.gmra.mrb[0].mxu0 %v4371
        %v5413 = vpop.f32.mrb[0].mxu0
        %v5414 = vadd.f32 0.0, %v5413
        %v5415 = vpop.f32.mrb[0].mxu0
        %5416 = vmatprep.mubr.f32.mxu0 0.0
        %5417 = vmatmul.mubr.f32.gmra.mrb[0].mxu0 %v4373
        %v5418 = vpop.f32.mrb[0].mxu0
        %v5419 = vadd.f32 0.0, %v5418
        %v5420 = vpop.f32.mrb[0].mxu0
        %5421 = vmatprep.mubr.f32.mxu0 0.0
        %5422 = vmatmul.mubr.f32.gmra.mrb[0].mxu0 %v4376
        %v5423 = vpop.f32.mrb[0].mxu0
        %v5424 = vadd.f32 0.0, %v5423
        %v5425 = vpop.f32.mrb[0].mxu0
        %5426 = vmatprep.mubr.f32.mxu0 0.0
        %5427 = vmatmul.mubr.f32.gmra.mrb[0].mxu0 %v4378
        %v5428 = vpop.f32.mrb[0].mxu0
        %v5429 = vadd.f32 0.0, %v5428
        %v5430 = vpop.f32.mrb[0].mxu0
        %5431 = vmatprep.mubr.f32.mxu0 0.0
        %5432 = vmatmul.mubr.f32.gmra.mrb[0].mxu0 %v4381
        %v5433 = vpop.f32.mrb[0].mxu0
        %v5434 = vadd.f32 0.0, %v5433
        %v5435 = vpop.f32.mrb[0].mxu0
        %5436 = vmatprep.mubr.f32.mxu0 0.0
        %5437 = vmatmul.mubr.f32.gmra.mrb[0].mxu0 %v4383
        %v5438 = vpop.f32.mrb[0].mxu0
        %v5439 = vadd.f32 0.0, %v5438
        %v5440 = vpop.f32.mrb[0].mxu0
        %5441 = vmatprep.mubr.f32.mxu0 0.0
        %5442 = vmatmul.mubr.f32.gmra.mrb[0].mxu0 %v4386
        %v5443 = vpop.f32.mrb[0].mxu0
        %v5444 = vadd.f32 0.0, %v5443
        %v5445 = vpop.f32.mrb[0].mxu0
        %5446 = vmatprep.mubr.f32.mxu0 0.0
        %5447 = vmatmul.mubr.f32.gmra.mrb[0].mxu0 %v4388
        %v5448 = vpop.f32.mrb[0].mxu0
        %v5449 = vadd.f32 0.0, %v5448
        %v5450 = vpop.f32.mrb[0].mxu0
        %5451 = vmatprep.mubr.f32.mxu0 0.0
        %5452 = vmatmul.mubr.f32.gmra.mrb[0].mxu0 %v4391
        %v5453 = vpop.f32.mrb[0].mxu0
        %v5454 = vadd.f32 0.0, %v5453
        %v5455 = vpop.f32.mrb[0].mxu0
        %5456 = vmatprep.mubr.f32.mxu0 0.0
        %5457 = vmatmul.mubr.f32.gmra.mrb[0].mxu0 %v4393
        %v5458 = vpop.f32.mrb[0].mxu0
        %v5459 = vadd.f32 0.0, %v5458
        %v5460 = vpop.f32.mrb[0].mxu0
        %5461 = vmatprep.mubr.f32.mxu0 0.0
        %5462 = vmatmul.mubr.f32.gmra.mrb[0].mxu0 %v4396
        %v5463 = vpop.f32.mrb[0].mxu0
        %v5464 = vadd.f32 0.0, %v5463
        %v5465 = vpop.f32.mrb[0].mxu0
        %5466 = vmatprep.mubr.f32.mxu0 0.0
        %5467 = vmatmul.mubr.f32.gmra.mrb[0].mxu0 %v4398
        %v5468 = vpop.f32.mrb[0].mxu0
        %v5469 = vadd.f32 0.0, %v5468
        %v5470 = vpop.f32.mrb[0].mxu0
        %5471 = vmatprep.mubr.f32.mxu0 0.0
        %5472 = vmatmul.mubr.f32.gmra.mrb[0].mxu0 %v4401
        %v5473 = vpop.f32.mrb[0].mxu0
        %v5474 = vadd.f32 0.0, %v5473
        %v5475 = vpop.f32.mrb[0].mxu0
        %5476 = vmatprep.mubr.f32.mxu0 0.0
        %5477 = vmatmul.mubr.f32.gmra.mrb[0].mxu0 %v4403
        %v5478 = vpop.f32.mrb[0].mxu0
        %v5479 = vadd.f32 0.0, %v5478
        %v5480 = vpop.f32.mrb[0].mxu0
        %5481 = vmatprep.mubr.f32.mxu0 0.0
        %5482 = vmatmul.mubr.f32.gmra.mrb[0].mxu0 %v4406
        %v5483 = vpop.f32.mrb[0].mxu0
        %v5484 = vadd.f32 0.0, %v5483
        %v5485 = vpop.f32.mrb[0].mxu0
        %5486 = vmatprep.mubr.f32.mxu0 0.0
        %5487 = vmatmul.mubr.f32.gmra.mrb[0].mxu0 %v4408
        %v5488 = vpop.f32.mrb[0].mxu0
        %v5489 = vadd.f32 0.0, %v5488
        %v5490 = vpop.f32.mrb[0].mxu0
        %5491 = vmatprep.mubr.f32.mxu0 0.0
        %5492 = vmatmul.mubr.f32.gmra.mrb[0].mxu0 %v4411
        %v5493 = vpop.f32.mrb[0].mxu0
        %v5494 = vadd.f32 0.0, %v5493
        %v5495 = vpop.f32.mrb[0].mxu0
        %5496 = vmatprep.mubr.f32.mxu0 0.0
        %5497 = vmatmul.mubr.f32.gmra.mrb[0].mxu0 %v4413
        %v5498 = vpop.f32.mrb[0].mxu0
        %v5499 = vadd.f32 0.0, %v5498
        %v5500 = vpop.f32.mrb[0].mxu0
        %5501 = vmatprep.mubr.f32.mxu0 0.0
        %5502 = vmatmul.mubr.f32.gmra.mrb[0].mxu0 %v4416
        %v5503 = vpop.f32.mrb[0].mxu0
        %v5504 = vadd.f32 0.0, %v5503
        %v5505 = vpop.f32.mrb[0].mxu0
        %5506 = vmatprep.mubr.f32.mxu0 0.0
        %5507 = vmatmul.mubr.f32.gmra.mrb[0].mxu0 %v4418
        %v5508 = vpop.f32.mrb[0].mxu0
        %v5509 = vadd.f32 0.0, %v5508
        %v5510 = vpop.f32.mrb[0].mxu0
        %5511 = vmatprep.mubr.f32.mxu0 0.0
        %5512 = vmatmul.mubr.f32.gmra.mrb[0].mxu0 %v4421
        %v5513 = vpop.f32.mrb[0].mxu0
        %v5514 = vadd.f32 0.0, %v5513
        %v5515 = vpop.f32.mrb[0].mxu0
        %5516 = vmatprep.mubr.f32.mxu0 0.0
        %5517 = vmatmul.mubr.f32.gmra.mrb[0].mxu0 %v4423
        %v5518 = vpop.f32.mrb[0].mxu0
        %v5519 = vadd.f32 0.0, %v5518
        %v5520 = vpop.f32.mrb[0].mxu0
        %5521 = vmatprep.mubr.f32.mxu0 0.0
        %5522 = vmatmul.mubr.f32.gmra.mrb[0].mxu0 %v4426
        %v5523 = vpop.f32.mrb[0].mxu0
        %v5524 = vadd.f32 0.0, %v5523
        %v5525 = vpop.f32.mrb[0].mxu0
        %5526 = vmatprep.mubr.f32.mxu0 0.0
        %5527 = vmatmul.mubr.f32.gmra.mrb[0].mxu0 %v4428
        %v5528 = vpop.f32.mrb[0].mxu0
        %v5529 = vadd.f32 0.0, %v5528
        %v5530 = vpop.f32.mrb[0].mxu0
        %5531 = vmatprep.mubr.f32.mxu0 0.0
        %5532 = vmatmul.mubr.f32.gmra.mrb[0].mxu0 %v5295
        %v5533 = vpop.f32.mrb[0].mxu0
        %v5534 = vadd.f32 0.0, %v5533
        %v5535 = vpop.f32.mrb[0].mxu0
        %5536 = vmatprep.mubr.f32.mxu0 0.0
        %5537 = vmatmul.mubr.f32.gmra.mrb[0].mxu0 %v5297
        %v5538 = vpop.f32.mrb[0].mxu0
        %v5539 = vadd.f32 0.0, %v5538
        %v5540 = vpop.f32.mrb[0].mxu0
        %5541 = vdwg.mxu0
        %v5542 = vadd.f32 %v5261, %v5384
        %v5543 = vadd.f32 %v5262, %v5389
        %v5544 = vadd.f32 %v5263, %v5394
        %v5545 = vadd.f32 %v5264, %v5399
        %v5546 = vadd.f32 %v5265, %v5404
        %v5547 = vadd.f32 %v5266, %v5409
        %v5548 = vadd.f32 %v5267, %v5414
        %v5549 = vadd.f32 %v5268, %v5419
        %v5550 = vadd.f32 %v5269, %v5424
        %v5551 = vadd.f32 %v5270, %v5429
        %v5552 = vadd.f32 %v5271, %v5434
        %v5553 = vadd.f32 %v5272, %v5439
        %v5554 = vadd.f32 %v5273, %v5444
        %v5555 = vadd.f32 %v5274, %v5449
        %v5556 = vadd.f32 %v5275, %v5454
        %v5557 = vadd.f32 %v5276, %v5459
        %v5558 = vadd.f32 %v5277, %v5464
        %v5559 = vadd.f32 %v5278, %v5469
        %v5560 = vadd.f32 %v5279, %v5474
        %v5561 = vadd.f32 %v5280, %v5479
        %v5562 = vadd.f32 %v5281, %v5484
        %v5563 = vadd.f32 %v5282, %v5489
        %v5564 = vadd.f32 %v5283, %v5494
        %v5565 = vadd.f32 %v5284, %v5499
        %v5566 = vadd.f32 %v5285, %v5504
        %v5567 = vadd.f32 %v5286, %v5509
        %v5568 = vadd.f32 %v5287, %v5514
        %v5569 = vadd.f32 %v5288, %v5519
        %v5570 = vadd.f32 %v5289, %v5524
        %v5571 = vadd.f32 %v5290, %v5529
        %v5572 = vadd.f32 %v5291, %v5534
        %v5573 = vadd.f32 %v5292, %v5539
        %s5574 = scalar_lea.vmem [#allocation3], 768
        %v5575 = vld [vmem:[%s5574] sm:$0xff]
        %v5576 = vld [vmem:[%s5574 + $0x8] sm:$0xff]
        %v5577 = vld [vmem:[%s5574 + $0x10] sm:$0xff]
        %v5578 = vld [vmem:[%s5574 + $0x18] sm:$0xff]
        %v5579 = vld [vmem:[%s5574 + $0x20] sm:$0xff]
        %v5580 = vld [vmem:[%s5574 + $0x28] sm:$0xff]
        %v5581 = vld [vmem:[%s5574 + $0x30] sm:$0xff]
        %v5582 = vld [vmem:[%s5574 + $0x38] sm:$0xff]
        %v5583 = vld [vmem:[%s5574 + $0x40] sm:$0xff]
        %v5584 = vld [vmem:[%s5574 + $0x48] sm:$0xff]
        %v5585 = vld [vmem:[%s5574 + $0x50] sm:$0xff]
        %v5586 = vld [vmem:[%s5574 + $0x58] sm:$0xff]
        %v5587 = vld [vmem:[%s5574 + $0x60] sm:$0xff]
        %v5588 = vld [vmem:[%s5574 + $0x68] sm:$0xff]
        %v5589 = vld [vmem:[%s5574 + $0x70] sm:$0xff]
        %v5590 = vld [vmem:[%s5574 + $0x78] sm:$0xff]
        %5591 = vmatprep.subr.mxu0 0.0
        %5592 = vmatpush1.msra.mxu0 %v5575
        %5593 = vmatprep.subr.mxu0 0.0
        %5594 = vmatpush1.msra.mxu0 %v5576
        %5595 = vmatprep.subr.mxu0 0.0
        %5596 = vmatpush1.msra.mxu0 %v5577
        %5597 = vmatprep.subr.mxu0 0.0
        %5598 = vmatpush1.msra.mxu0 %v5578
        %5599 = vmatprep.subr.mxu0 0.0
        %5600 = vmatpush1.msra.mxu0 %v5579
        %5601 = vmatprep.subr.mxu0 0.0
        %5602 = vmatpush1.msra.mxu0 %v5580
        %5603 = vmatprep.subr.mxu0 0.0
        %5604 = vmatpush1.msra.mxu0 %v5581
        %5605 = vmatprep.subr.mxu0 0.0
        %5606 = vmatpush1.msra.mxu0 %v5582
        %5607 = vmatprep.subr.mxu0 0.0
        %5608 = vmatpush1.msra.mxu0 %v5583
        %5609 = vmatprep.subr.mxu0 0.0
        %5610 = vmatpush1.msra.mxu0 %v5584
        %5611 = vmatprep.subr.mxu0 0.0
        %5612 = vmatpush1.msra.mxu0 %v5585
        %5613 = vmatprep.subr.mxu0 0.0
        %5614 = vmatpush1.msra.mxu0 %v5586
        %5615 = vmatprep.subr.mxu0 0.0
        %5616 = vmatpush1.msra.mxu0 %v5587
        %5617 = vmatprep.subr.mxu0 0.0
        %5618 = vmatpush1.msra.mxu0 %v5588
        %5619 = vmatprep.subr.mxu0 0.0
        %5620 = vmatpush1.msra.mxu0 %v5589
        %5621 = vmatprep.subr.mxu0 0.0
        %5622 = vmatpush1.msra.mxu0 %v5590
        %5623 = vmatprep.subr.mxu0 0.0
        %5624 = vmatpush1.msra.mxu0 0.0
        %5625 = vmatprep.subr.mxu0 0.0
        %5626 = vmatpush1.msra.mxu0 0.0
        %5627 = vmatprep.subr.mxu0 0.0
        %5628 = vmatpush1.msra.mxu0 0.0
        %5629 = vmatprep.subr.mxu0 0.0
        %5630 = vmatpush1.msra.mxu0 0.0
        %5631 = vmatprep.subr.mxu0 0.0
        %5632 = vmatpush1.msra.mxu0 0.0
        %5633 = vmatprep.subr.mxu0 0.0
        %5634 = vmatpush1.msra.mxu0 0.0
        %5635 = vmatprep.subr.mxu0 0.0
        %5636 = vmatpush1.msra.mxu0 0.0
        %5637 = vmatprep.subr.mxu0 0.0
        %5638 = vmatpush1.msra.mxu0 0.0
        %5639 = vmatprep.subr.mxu0 0.0
        %5640 = vmatpush1.msra.mxu0 0.0
        %5641 = vmatprep.subr.mxu0 0.0
        %5642 = vmatpush1.msra.mxu0 0.0
        %5643 = vmatprep.subr.mxu0 0.0
        %5644 = vmatpush1.msra.mxu0 0.0
        %5645 = vmatprep.subr.mxu0 0.0
        %5646 = vmatpush1.msra.mxu0 0.0
        %5647 = vmatprep.subr.mxu0 0.0
        %5648 = vmatpush1.msra.mxu0 0.0
        %5649 = vmatprep.subr.mxu0 0.0
        %5650 = vmatpush1.msra.mxu0 0.0
        %5651 = vmatprep.subr.mxu0 0.0
        %5652 = vmatpush1.msra.mxu0 0.0
        %5653 = vmatprep.subr.mxu0 0.0
        %5654 = vmatpush1.msra.mxu0 0.0
        %5655 = vmatprep.mubr.f32.mxu0 0.0
        %5656 = vmatmul.mubr.f32.gmra.mrb[0].mxu0 %v3658
        %v5657 = vpop.f32.mrb[0].mxu0
        %v5658 = vadd.f32 0.0, %v5657
        %v5659 = vpop.f32.mrb[0].mxu0
        %5660 = vmatprep.mubr.f32.mxu0 0.0
        %5661 = vmatmul.mubr.f32.gmra.mrb[0].mxu0 %v3659
        %v5662 = vpop.f32.mrb[0].mxu0
        %v5663 = vadd.f32 0.0, %v5662
        %v5664 = vpop.f32.mrb[0].mxu0
        %5665 = vmatprep.mubr.f32.mxu0 0.0
        %5666 = vmatmul.mubr.f32.gmra.mrb[0].mxu0 %v3661
        %v5667 = vpop.f32.mrb[0].mxu0
        %v5668 = vadd.f32 0.0, %v5667
        %v5669 = vpop.f32.mrb[0].mxu0
        %5670 = vmatprep.mubr.f32.mxu0 0.0
        %5671 = vmatmul.mubr.f32.gmra.mrb[0].mxu0 %v3662
        %v5672 = vpop.f32.mrb[0].mxu0
        %v5673 = vadd.f32 0.0, %v5672
        %v5674 = vpop.f32.mrb[0].mxu0
        %5675 = vmatprep.mubr.f32.mxu0 0.0
        %5676 = vmatmul.mubr.f32.gmra.mrb[0].mxu0 %v3664
        %v5677 = vpop.f32.mrb[0].mxu0
        %v5678 = vadd.f32 0.0, %v5677
        %v5679 = vpop.f32.mrb[0].mxu0
        %5680 = vmatprep.mubr.f32.mxu0 0.0
        %5681 = vmatmul.mubr.f32.gmra.mrb[0].mxu0 %v3665
        %v5682 = vpop.f32.mrb[0].mxu0
        %v5683 = vadd.f32 0.0, %v5682
        %v5684 = vpop.f32.mrb[0].mxu0
        %5685 = vmatprep.mubr.f32.mxu0 0.0
        %5686 = vmatmul.mubr.f32.gmra.mrb[0].mxu0 %v3667
        %v5687 = vpop.f32.mrb[0].mxu0
        %v5688 = vadd.f32 0.0, %v5687
        %v5689 = vpop.f32.mrb[0].mxu0
        %5690 = vmatprep.mubr.f32.mxu0 0.0
        %5691 = vmatmul.mubr.f32.gmra.mrb[0].mxu0 %v3668
        %v5692 = vpop.f32.mrb[0].mxu0
        %v5693 = vadd.f32 0.0, %v5692
        %v5694 = vpop.f32.mrb[0].mxu0
        %5695 = vmatprep.mubr.f32.mxu0 0.0
        %5696 = vmatmul.mubr.f32.gmra.mrb[0].mxu0 %v3670
        %v5697 = vpop.f32.mrb[0].mxu0
        %v5698 = vadd.f32 0.0, %v5697
        %v5699 = vpop.f32.mrb[0].mxu0
        %5700 = vmatprep.mubr.f32.mxu0 0.0
        %5701 = vmatmul.mubr.f32.gmra.mrb[0].mxu0 %v3671
        %v5702 = vpop.f32.mrb[0].mxu0
        %v5703 = vadd.f32 0.0, %v5702
        %v5704 = vpop.f32.mrb[0].mxu0
        %5705 = vmatprep.mubr.f32.mxu0 0.0
        %5706 = vmatmul.mubr.f32.gmra.mrb[0].mxu0 %v3673
        %v5707 = vpop.f32.mrb[0].mxu0
        %v5708 = vadd.f32 0.0, %v5707
        %v5709 = vpop.f32.mrb[0].mxu0
        %5710 = vmatprep.mubr.f32.mxu0 0.0
        %5711 = vmatmul.mubr.f32.gmra.mrb[0].mxu0 %v3674
        %v5712 = vpop.f32.mrb[0].mxu0
        %v5713 = vadd.f32 0.0, %v5712
        %v5714 = vpop.f32.mrb[0].mxu0
        %5715 = vmatprep.mubr.f32.mxu0 0.0
        %5716 = vmatmul.mubr.f32.gmra.mrb[0].mxu0 %v3676
        %v5717 = vpop.f32.mrb[0].mxu0
        %v5718 = vadd.f32 0.0, %v5717
        %v5719 = vpop.f32.mrb[0].mxu0
        %5720 = vmatprep.mubr.f32.mxu0 0.0
        %5721 = vmatmul.mubr.f32.gmra.mrb[0].mxu0 %v3677
        %v5722 = vpop.f32.mrb[0].mxu0
        %v5723 = vadd.f32 0.0, %v5722
        %v5724 = vpop.f32.mrb[0].mxu0
        %5725 = vmatprep.mubr.f32.mxu0 0.0
        %5726 = vmatmul.mubr.f32.gmra.mrb[0].mxu0 %v3679
        %v5727 = vpop.f32.mrb[0].mxu0
        %v5728 = vadd.f32 0.0, %v5727
        %v5729 = vpop.f32.mrb[0].mxu0
        %5730 = vmatprep.mubr.f32.mxu0 0.0
        %5731 = vmatmul.mubr.f32.gmra.mrb[0].mxu0 %v3680
        %v5732 = vpop.f32.mrb[0].mxu0
        %v5733 = vadd.f32 0.0, %v5732
        %v5734 = vpop.f32.mrb[0].mxu0
        %5735 = vmatprep.mubr.f32.mxu0 0.0
        %5736 = vmatmul.mubr.f32.gmra.mrb[0].mxu0 %v3682
        %v5737 = vpop.f32.mrb[0].mxu0
        %v5738 = vadd.f32 0.0, %v5737
        %v5739 = vpop.f32.mrb[0].mxu0
        %5740 = vmatprep.mubr.f32.mxu0 0.0
        %5741 = vmatmul.mubr.f32.gmra.mrb[0].mxu0 %v3683
        %v5742 = vpop.f32.mrb[0].mxu0
        %v5743 = vadd.f32 0.0, %v5742
        %v5744 = vpop.f32.mrb[0].mxu0
        %5745 = vmatprep.mubr.f32.mxu0 0.0
        %5746 = vmatmul.mubr.f32.gmra.mrb[0].mxu0 %v3685
        %v5747 = vpop.f32.mrb[0].mxu0
        %v5748 = vadd.f32 0.0, %v5747
        %v5749 = vpop.f32.mrb[0].mxu0
        %5750 = vmatprep.mubr.f32.mxu0 0.0
        %5751 = vmatmul.mubr.f32.gmra.mrb[0].mxu0 %v3686
        %v5752 = vpop.f32.mrb[0].mxu0
        %v5753 = vadd.f32 0.0, %v5752
        %v5754 = vpop.f32.mrb[0].mxu0
        %5755 = vmatprep.mubr.f32.mxu0 0.0
        %5756 = vmatmul.mubr.f32.gmra.mrb[0].mxu0 %v3688
        %v5757 = vpop.f32.mrb[0].mxu0
        %v5758 = vadd.f32 0.0, %v5757
        %v5759 = vpop.f32.mrb[0].mxu0
        %5760 = vmatprep.mubr.f32.mxu0 0.0
        %5761 = vmatmul.mubr.f32.gmra.mrb[0].mxu0 %v3689
        %v5762 = vpop.f32.mrb[0].mxu0
        %v5763 = vadd.f32 0.0, %v5762
        %v5764 = vpop.f32.mrb[0].mxu0
        %5765 = vmatprep.mubr.f32.mxu0 0.0
        %5766 = vmatmul.mubr.f32.gmra.mrb[0].mxu0 %v3691
        %v5767 = vpop.f32.mrb[0].mxu0
        %v5768 = vadd.f32 0.0, %v5767
        %v5769 = vpop.f32.mrb[0].mxu0
        %5770 = vmatprep.mubr.f32.mxu0 0.0
        %5771 = vmatmul.mubr.f32.gmra.mrb[0].mxu0 %v3692
        %v5772 = vpop.f32.mrb[0].mxu0
        %v5773 = vadd.f32 0.0, %v5772
        %v5774 = vpop.f32.mrb[0].mxu0
        %5775 = vmatprep.mubr.f32.mxu0 0.0
        %5776 = vmatmul.mubr.f32.gmra.mrb[0].mxu0 %v3694
        %v5777 = vpop.f32.mrb[0].mxu0
        %v5778 = vadd.f32 0.0, %v5777
        %v5779 = vpop.f32.mrb[0].mxu0
        %5780 = vmatprep.mubr.f32.mxu0 0.0
        %5781 = vmatmul.mubr.f32.gmra.mrb[0].mxu0 %v3695
        %v5782 = vpop.f32.mrb[0].mxu0
        %v5783 = vadd.f32 0.0, %v5782
        %v5784 = vpop.f32.mrb[0].mxu0
        %5785 = vmatprep.mubr.f32.mxu0 0.0
        %5786 = vmatmul.mubr.f32.gmra.mrb[0].mxu0 %v3697
        %v5787 = vpop.f32.mrb[0].mxu0
        %v5788 = vadd.f32 0.0, %v5787
        %v5789 = vpop.f32.mrb[0].mxu0
        %5790 = vmatprep.mubr.f32.mxu0 0.0
        %5791 = vmatmul.mubr.f32.gmra.mrb[0].mxu0 %v3698
        %v5792 = vpop.f32.mrb[0].mxu0
        %v5793 = vadd.f32 0.0, %v5792
        %v5794 = vpop.f32.mrb[0].mxu0
        %5795 = vmatprep.mubr.f32.mxu0 0.0
        %5796 = vmatmul.mubr.f32.gmra.mrb[0].mxu0 %v3700
        %v5797 = vpop.f32.mrb[0].mxu0
        %v5798 = vadd.f32 0.0, %v5797
        %v5799 = vpop.f32.mrb[0].mxu0
        %5800 = vmatprep.mubr.f32.mxu0 0.0
        %5801 = vmatmul.mubr.f32.gmra.mrb[0].mxu0 %v3701
        %v5802 = vpop.f32.mrb[0].mxu0
        %v5803 = vadd.f32 0.0, %v5802
        %v5804 = vpop.f32.mrb[0].mxu0
        %5805 = vmatprep.mubr.f32.mxu0 0.0
        %5806 = vmatmul.mubr.f32.gmra.mrb[0].mxu0 %v3703
        %v5807 = vpop.f32.mrb[0].mxu0
        %v5808 = vadd.f32 0.0, %v5807
        %v5809 = vpop.f32.mrb[0].mxu0
        %5810 = vmatprep.mubr.f32.mxu0 0.0
        %5811 = vmatmul.mubr.f32.gmra.mrb[0].mxu0 %v3704
        %v5812 = vpop.f32.mrb[0].mxu0
        %v5813 = vadd.f32 0.0, %v5812
        %v5814 = vpop.f32.mrb[0].mxu0
        %5815 = vdwg.mxu0
        %v5816 = vadd.f32 %v5542, %v5658
        %v5817 = vadd.f32 %v5543, %v5663
        %v5818 = vadd.f32 %v5544, %v5668
        %v5819 = vadd.f32 %v5545, %v5673
        %v5820 = vadd.f32 %v5546, %v5678
        %v5821 = vadd.f32 %v5547, %v5683
        %v5822 = vadd.f32 %v5548, %v5688
        %v5823 = vadd.f32 %v5549, %v5693
        %v5824 = vadd.f32 %v5550, %v5698
        %v5825 = vadd.f32 %v5551, %v5703
        %v5826 = vadd.f32 %v5552, %v5708
        %v5827 = vadd.f32 %v5553, %v5713
        %v5828 = vadd.f32 %v5554, %v5718
        %v5829 = vadd.f32 %v5555, %v5723
        %v5830 = vadd.f32 %v5556, %v5728
        %v5831 = vadd.f32 %v5557, %v5733
        %v5832 = vadd.f32 %v5558, %v5738
        %v5833 = vadd.f32 %v5559, %v5743
        %v5834 = vadd.f32 %v5560, %v5748
        %v5835 = vadd.f32 %v5561, %v5753
        %v5836 = vadd.f32 %v5562, %v5758
        %v5837 = vadd.f32 %v5563, %v5763
        %v5838 = vadd.f32 %v5564, %v5768
        %v5839 = vadd.f32 %v5565, %v5773
        %v5840 = vadd.f32 %v5566, %v5778
        %v5841 = vadd.f32 %v5567, %v5783
        %v5842 = vadd.f32 %v5568, %v5788
        %v5843 = vadd.f32 %v5569, %v5793
        %v5844 = vadd.f32 %v5570, %v5798
        %v5845 = vadd.f32 %v5571, %v5803
        %v5846 = vadd.f32 %v5572, %v5808
        %v5847 = vadd.f32 %v5573, %v5813
        %v5851 = vrot.slane %v3703, 1
        %v5852 = vrot.slane %v3704, 1
        %v5853 = vsel %vm491, %v5851, %v5852
        %v5854 = vrot.slane %v3705, 1
        %v5855 = vsel %vm491, %v5852, %v5854
        %s5858 = scalar_lea.vmem [#allocation3], 896
        %v5859 = vld [vmem:[%s5858] sm:$0xff]
        %v5860 = vld [vmem:[%s5858 + $0x8] sm:$0xff]
        %v5861 = vld [vmem:[%s5858 + $0x10] sm:$0xff]
        %v5862 = vld [vmem:[%s5858 + $0x18] sm:$0xff]
        %v5863 = vld [vmem:[%s5858 + $0x20] sm:$0xff]
        %v5864 = vld [vmem:[%s5858 + $0x28] sm:$0xff]
        %v5865 = vld [vmem:[%s5858 + $0x30] sm:$0xff]
        %v5866 = vld [vmem:[%s5858 + $0x38] sm:$0xff]
        %v5867 = vld [vmem:[%s5858 + $0x40] sm:$0xff]
        %v5868 = vld [vmem:[%s5858 + $0x48] sm:$0xff]
        %v5869 = vld [vmem:[%s5858 + $0x50] sm:$0xff]
        %v5870 = vld [vmem:[%s5858 + $0x58] sm:$0xff]
        %v5871 = vld [vmem:[%s5858 + $0x60] sm:$0xff]
        %v5872 = vld [vmem:[%s5858 + $0x68] sm:$0xff]
        %v5873 = vld [vmem:[%s5858 + $0x70] sm:$0xff]
        %v5874 = vld [vmem:[%s5858 + $0x78] sm:$0xff]
        %5875 = vmatprep.subr.mxu0 0.0
        %5876 = vmatpush1.msra.mxu0 %v5859
        %5877 = vmatprep.subr.mxu0 0.0
        %5878 = vmatpush1.msra.mxu0 %v5860
        %5879 = vmatprep.subr.mxu0 0.0
        %5880 = vmatpush1.msra.mxu0 %v5861
        %5881 = vmatprep.subr.mxu0 0.0
        %5882 = vmatpush1.msra.mxu0 %v5862
        %5883 = vmatprep.subr.mxu0 0.0
        %5884 = vmatpush1.msra.mxu0 %v5863
        %5885 = vmatprep.subr.mxu0 0.0
        %5886 = vmatpush1.msra.mxu0 %v5864
        %5887 = vmatprep.subr.mxu0 0.0
        %5888 = vmatpush1.msra.mxu0 %v5865
        %5889 = vmatprep.subr.mxu0 0.0
        %5890 = vmatpush1.msra.mxu0 %v5866
        %5891 = vmatprep.subr.mxu0 0.0
        %5892 = vmatpush1.msra.mxu0 %v5867
        %5893 = vmatprep.subr.mxu0 0.0
        %5894 = vmatpush1.msra.mxu0 %v5868
        %5895 = vmatprep.subr.mxu0 0.0
        %5896 = vmatpush1.msra.mxu0 %v5869
        %5897 = vmatprep.subr.mxu0 0.0
        %5898 = vmatpush1.msra.mxu0 %v5870
        %5899 = vmatprep.subr.mxu0 0.0
        %5900 = vmatpush1.msra.mxu0 %v5871
        %5901 = vmatprep.subr.mxu0 0.0
        %5902 = vmatpush1.msra.mxu0 %v5872
        %5903 = vmatprep.subr.mxu0 0.0
        %5904 = vmatpush1.msra.mxu0 %v5873
        %5905 = vmatprep.subr.mxu0 0.0
        %5906 = vmatpush1.msra.mxu0 %v5874
        %5907 = vmatprep.subr.mxu0 0.0
        %5908 = vmatpush1.msra.mxu0 0.0
        %5909 = vmatprep.subr.mxu0 0.0
        %5910 = vmatpush1.msra.mxu0 0.0
        %5911 = vmatprep.subr.mxu0 0.0
        %5912 = vmatpush1.msra.mxu0 0.0
        %5913 = vmatprep.subr.mxu0 0.0
        %5914 = vmatpush1.msra.mxu0 0.0
        %5915 = vmatprep.subr.mxu0 0.0
        %5916 = vmatpush1.msra.mxu0 0.0
        %5917 = vmatprep.subr.mxu0 0.0
        %5918 = vmatpush1.msra.mxu0 0.0
        %5919 = vmatprep.subr.mxu0 0.0
        %5920 = vmatpush1.msra.mxu0 0.0
        %5921 = vmatprep.subr.mxu0 0.0
        %5922 = vmatpush1.msra.mxu0 0.0
        %5923 = vmatprep.subr.mxu0 0.0
        %5924 = vmatpush1.msra.mxu0 0.0
        %5925 = vmatprep.subr.mxu0 0.0
        %5926 = vmatpush1.msra.mxu0 0.0
        %5927 = vmatprep.subr.mxu0 0.0
        %5928 = vmatpush1.msra.mxu0 0.0
        %5929 = vmatprep.subr.mxu0 0.0
        %5930 = vmatpush1.msra.mxu0 0.0
        %5931 = vmatprep.subr.mxu0 0.0
        %5932 = vmatpush1.msra.mxu0 0.0
        %5933 = vmatprep.subr.mxu0 0.0
        %5934 = vmatpush1.msra.mxu0 0.0
        %5935 = vmatprep.subr.mxu0 0.0
        %5936 = vmatpush1.msra.mxu0 0.0
        %5937 = vmatprep.subr.mxu0 0.0
        %5938 = vmatpush1.msra.mxu0 0.0
        %5939 = vmatprep.mubr.f32.mxu0 0.0
        %5940 = vmatmul.mubr.f32.gmra.mrb[0].mxu0 %v3782
        %v5941 = vpop.f32.mrb[0].mxu0
        %v5942 = vadd.f32 0.0, %v5941
        %v5943 = vpop.f32.mrb[0].mxu0
        %5944 = vmatprep.mubr.f32.mxu0 0.0
        %5945 = vmatmul.mubr.f32.gmra.mrb[0].mxu0 %v3784
        %v5946 = vpop.f32.mrb[0].mxu0
        %v5947 = vadd.f32 0.0, %v5946
        %v5948 = vpop.f32.mrb[0].mxu0
        %5949 = vmatprep.mubr.f32.mxu0 0.0
        %5950 = vmatmul.mubr.f32.gmra.mrb[0].mxu0 %v3787
        %v5951 = vpop.f32.mrb[0].mxu0
        %v5952 = vadd.f32 0.0, %v5951
        %v5953 = vpop.f32.mrb[0].mxu0
        %5954 = vmatprep.mubr.f32.mxu0 0.0
        %5955 = vmatmul.mubr.f32.gmra.mrb[0].mxu0 %v3789
        %v5956 = vpop.f32.mrb[0].mxu0
        %v5957 = vadd.f32 0.0, %v5956
        %v5958 = vpop.f32.mrb[0].mxu0
        %5959 = vmatprep.mubr.f32.mxu0 0.0
        %5960 = vmatmul.mubr.f32.gmra.mrb[0].mxu0 %v3792
        %v5961 = vpop.f32.mrb[0].mxu0
        %v5962 = vadd.f32 0.0, %v5961
        %v5963 = vpop.f32.mrb[0].mxu0
        %5964 = vmatprep.mubr.f32.mxu0 0.0
        %5965 = vmatmul.mubr.f32.gmra.mrb[0].mxu0 %v3794
        %v5966 = vpop.f32.mrb[0].mxu0
        %v5967 = vadd.f32 0.0, %v5966
        %v5968 = vpop.f32.mrb[0].mxu0
        %5969 = vmatprep.mubr.f32.mxu0 0.0
        %5970 = vmatmul.mubr.f32.gmra.mrb[0].mxu0 %v3797
        %v5971 = vpop.f32.mrb[0].mxu0
        %v5972 = vadd.f32 0.0, %v5971
        %v5973 = vpop.f32.mrb[0].mxu0
        %5974 = vmatprep.mubr.f32.mxu0 0.0
        %5975 = vmatmul.mubr.f32.gmra.mrb[0].mxu0 %v3799
        %v5976 = vpop.f32.mrb[0].mxu0
        %v5977 = vadd.f32 0.0, %v5976
        %v5978 = vpop.f32.mrb[0].mxu0
        %5979 = vmatprep.mubr.f32.mxu0 0.0
        %5980 = vmatmul.mubr.f32.gmra.mrb[0].mxu0 %v3802
        %v5981 = vpop.f32.mrb[0].mxu0
        %v5982 = vadd.f32 0.0, %v5981
        %v5983 = vpop.f32.mrb[0].mxu0
        %5984 = vmatprep.mubr.f32.mxu0 0.0
        %5985 = vmatmul.mubr.f32.gmra.mrb[0].mxu0 %v3804
        %v5986 = vpop.f32.mrb[0].mxu0
        %v5987 = vadd.f32 0.0, %v5986
        %v5988 = vpop.f32.mrb[0].mxu0
        %5989 = vmatprep.mubr.f32.mxu0 0.0
        %5990 = vmatmul.mubr.f32.gmra.mrb[0].mxu0 %v3807
        %v5991 = vpop.f32.mrb[0].mxu0
        %v5992 = vadd.f32 0.0, %v5991
        %v5993 = vpop.f32.mrb[0].mxu0
        %5994 = vmatprep.mubr.f32.mxu0 0.0
        %5995 = vmatmul.mubr.f32.gmra.mrb[0].mxu0 %v3809
        %v5996 = vpop.f32.mrb[0].mxu0
        %v5997 = vadd.f32 0.0, %v5996
        %v5998 = vpop.f32.mrb[0].mxu0
        %5999 = vmatprep.mubr.f32.mxu0 0.0
        %6000 = vmatmul.mubr.f32.gmra.mrb[0].mxu0 %v3812
        %v6001 = vpop.f32.mrb[0].mxu0
        %v6002 = vadd.f32 0.0, %v6001
        %v6003 = vpop.f32.mrb[0].mxu0
        %6004 = vmatprep.mubr.f32.mxu0 0.0
        %6005 = vmatmul.mubr.f32.gmra.mrb[0].mxu0 %v3814
        %v6006 = vpop.f32.mrb[0].mxu0
        %v6007 = vadd.f32 0.0, %v6006
        %v6008 = vpop.f32.mrb[0].mxu0
        %6009 = vmatprep.mubr.f32.mxu0 0.0
        %6010 = vmatmul.mubr.f32.gmra.mrb[0].mxu0 %v3817
        %v6011 = vpop.f32.mrb[0].mxu0
        %v6012 = vadd.f32 0.0, %v6011
        %v6013 = vpop.f32.mrb[0].mxu0
        %6014 = vmatprep.mubr.f32.mxu0 0.0
        %6015 = vmatmul.mubr.f32.gmra.mrb[0].mxu0 %v3819
        %v6016 = vpop.f32.mrb[0].mxu0
        %v6017 = vadd.f32 0.0, %v6016
        %v6018 = vpop.f32.mrb[0].mxu0
        %6019 = vmatprep.mubr.f32.mxu0 0.0
        %6020 = vmatmul.mubr.f32.gmra.mrb[0].mxu0 %v3822
        %v6021 = vpop.f32.mrb[0].mxu0
        %v6022 = vadd.f32 0.0, %v6021
        %v6023 = vpop.f32.mrb[0].mxu0
        %6024 = vmatprep.mubr.f32.mxu0 0.0
        %6025 = vmatmul.mubr.f32.gmra.mrb[0].mxu0 %v3824
        %v6026 = vpop.f32.mrb[0].mxu0
        %v6027 = vadd.f32 0.0, %v6026
        %v6028 = vpop.f32.mrb[0].mxu0
        %6029 = vmatprep.mubr.f32.mxu0 0.0
        %6030 = vmatmul.mubr.f32.gmra.mrb[0].mxu0 %v3827
        %v6031 = vpop.f32.mrb[0].mxu0
        %v6032 = vadd.f32 0.0, %v6031
        %v6033 = vpop.f32.mrb[0].mxu0
        %6034 = vmatprep.mubr.f32.mxu0 0.0
        %6035 = vmatmul.mubr.f32.gmra.mrb[0].mxu0 %v3829
        %v6036 = vpop.f32.mrb[0].mxu0
        %v6037 = vadd.f32 0.0, %v6036
        %v6038 = vpop.f32.mrb[0].mxu0
        %6039 = vmatprep.mubr.f32.mxu0 0.0
        %6040 = vmatmul.mubr.f32.gmra.mrb[0].mxu0 %v3832
        %v6041 = vpop.f32.mrb[0].mxu0
        %v6042 = vadd.f32 0.0, %v6041
        %v6043 = vpop.f32.mrb[0].mxu0
        %6044 = vmatprep.mubr.f32.mxu0 0.0
        %6045 = vmatmul.mubr.f32.gmra.mrb[0].mxu0 %v3834
        %v6046 = vpop.f32.mrb[0].mxu0
        %v6047 = vadd.f32 0.0, %v6046
        %v6048 = vpop.f32.mrb[0].mxu0
        %6049 = vmatprep.mubr.f32.mxu0 0.0
        %6050 = vmatmul.mubr.f32.gmra.mrb[0].mxu0 %v3837
        %v6051 = vpop.f32.mrb[0].mxu0
        %v6052 = vadd.f32 0.0, %v6051
        %v6053 = vpop.f32.mrb[0].mxu0
        %6054 = vmatprep.mubr.f32.mxu0 0.0
        %6055 = vmatmul.mubr.f32.gmra.mrb[0].mxu0 %v3839
        %v6056 = vpop.f32.mrb[0].mxu0
        %v6057 = vadd.f32 0.0, %v6056
        %v6058 = vpop.f32.mrb[0].mxu0
        %6059 = vmatprep.mubr.f32.mxu0 0.0
        %6060 = vmatmul.mubr.f32.gmra.mrb[0].mxu0 %v3842
        %v6061 = vpop.f32.mrb[0].mxu0
        %v6062 = vadd.f32 0.0, %v6061
        %v6063 = vpop.f32.mrb[0].mxu0
        %6064 = vmatprep.mubr.f32.mxu0 0.0
        %6065 = vmatmul.mubr.f32.gmra.mrb[0].mxu0 %v3844
        %v6066 = vpop.f32.mrb[0].mxu0
        %v6067 = vadd.f32 0.0, %v6066
        %v6068 = vpop.f32.mrb[0].mxu0
        %6069 = vmatprep.mubr.f32.mxu0 0.0
        %6070 = vmatmul.mubr.f32.gmra.mrb[0].mxu0 %v3847
        %v6071 = vpop.f32.mrb[0].mxu0
        %v6072 = vadd.f32 0.0, %v6071
        %v6073 = vpop.f32.mrb[0].mxu0
        %6074 = vmatprep.mubr.f32.mxu0 0.0
        %6075 = vmatmul.mubr.f32.gmra.mrb[0].mxu0 %v3849
        %v6076 = vpop.f32.mrb[0].mxu0
        %v6077 = vadd.f32 0.0, %v6076
        %v6078 = vpop.f32.mrb[0].mxu0
        %6079 = vmatprep.mubr.f32.mxu0 0.0
        %6080 = vmatmul.mubr.f32.gmra.mrb[0].mxu0 %v5014
        %v6081 = vpop.f32.mrb[0].mxu0
        %v6082 = vadd.f32 0.0, %v6081
        %v6083 = vpop.f32.mrb[0].mxu0
        %6084 = vmatprep.mubr.f32.mxu0 0.0
        %6085 = vmatmul.mubr.f32.gmra.mrb[0].mxu0 %v5016
        %v6086 = vpop.f32.mrb[0].mxu0
        %v6087 = vadd.f32 0.0, %v6086
        %v6088 = vpop.f32.mrb[0].mxu0
        %6089 = vmatprep.mubr.f32.mxu0 0.0
        %6090 = vmatmul.mubr.f32.gmra.mrb[0].mxu0 %v5853
        %v6091 = vpop.f32.mrb[0].mxu0
        %v6092 = vadd.f32 0.0, %v6091
        %v6093 = vpop.f32.mrb[0].mxu0
        %6094 = vmatprep.mubr.f32.mxu0 0.0
        %6095 = vmatmul.mubr.f32.gmra.mrb[0].mxu0 %v5855
        %v6096 = vpop.f32.mrb[0].mxu0
        %v6097 = vadd.f32 0.0, %v6096
        %v6098 = vpop.f32.mrb[0].mxu0
        %6099 = vdwg.mxu0
        %v6100 = vadd.f32 %v5816, %v5942
        %v6101 = vadd.f32 %v5817, %v5947
        %v6102 = vadd.f32 %v5818, %v5952
        %v6103 = vadd.f32 %v5819, %v5957
        %v6104 = vadd.f32 %v5820, %v5962
        %v6105 = vadd.f32 %v5821, %v5967
        %v6106 = vadd.f32 %v5822, %v5972
        %v6107 = vadd.f32 %v5823, %v5977
        %v6108 = vadd.f32 %v5824, %v5982
        %v6109 = vadd.f32 %v5825, %v5987
        %v6110 = vadd.f32 %v5826, %v5992
        %v6111 = vadd.f32 %v5827, %v5997
        %v6112 = vadd.f32 %v5828, %v6002
        %v6113 = vadd.f32 %v5829, %v6007
        %v6114 = vadd.f32 %v5830, %v6012
        %v6115 = vadd.f32 %v5831, %v6017
        %v6116 = vadd.f32 %v5832, %v6022
        %v6117 = vadd.f32 %v5833, %v6027
        %v6118 = vadd.f32 %v5834, %v6032
        %v6119 = vadd.f32 %v5835, %v6037
        %v6120 = vadd.f32 %v5836, %v6042
        %v6121 = vadd.f32 %v5837, %v6047
        %v6122 = vadd.f32 %v5838, %v6052
        %v6123 = vadd.f32 %v5839, %v6057
        %v6124 = vadd.f32 %v5840, %v6062
        %v6125 = vadd.f32 %v5841, %v6067
        %v6126 = vadd.f32 %v5842, %v6072
        %v6127 = vadd.f32 %v5843, %v6077
        %v6128 = vadd.f32 %v5844, %v6082
        %v6129 = vadd.f32 %v5845, %v6087
        %v6130 = vadd.f32 %v5846, %v6092
        %v6131 = vadd.f32 %v5847, %v6097
        %v6132 = vrot.slane %v3703, 2
        %v6133 = vrot.slane %v3704, 2
        %v6134 = vsel %vm1071, %v6132, %v6133
        %v6135 = vrot.slane %v3705, 2
        %v6136 = vsel %vm1071, %v6133, %v6135
        %s6139 = scalar_lea.vmem [#allocation3], 1024
        %v6140 = vld [vmem:[%s6139] sm:$0xff]
        %v6141 = vld [vmem:[%s6139 + $0x8] sm:$0xff]
        %v6142 = vld [vmem:[%s6139 + $0x10] sm:$0xff]
        %v6143 = vld [vmem:[%s6139 + $0x18] sm:$0xff]
        %v6144 = vld [vmem:[%s6139 + $0x20] sm:$0xff]
        %v6145 = vld [vmem:[%s6139 + $0x28] sm:$0xff]
        %v6146 = vld [vmem:[%s6139 + $0x30] sm:$0xff]
        %v6147 = vld [vmem:[%s6139 + $0x38] sm:$0xff]
        %v6148 = vld [vmem:[%s6139 + $0x40] sm:$0xff]
        %v6149 = vld [vmem:[%s6139 + $0x48] sm:$0xff]
        %v6150 = vld [vmem:[%s6139 + $0x50] sm:$0xff]
        %v6151 = vld [vmem:[%s6139 + $0x58] sm:$0xff]
        %v6152 = vld [vmem:[%s6139 + $0x60] sm:$0xff]
        %v6153 = vld [vmem:[%s6139 + $0x68] sm:$0xff]
        %v6154 = vld [vmem:[%s6139 + $0x70] sm:$0xff]
        %v6155 = vld [vmem:[%s6139 + $0x78] sm:$0xff]
        %6156 = vmatprep.subr.mxu0 0.0
        %6157 = vmatpush1.msra.mxu0 %v6140
        %6158 = vmatprep.subr.mxu0 0.0
        %6159 = vmatpush1.msra.mxu0 %v6141
        %6160 = vmatprep.subr.mxu0 0.0
        %6161 = vmatpush1.msra.mxu0 %v6142
        %6162 = vmatprep.subr.mxu0 0.0
        %6163 = vmatpush1.msra.mxu0 %v6143
        %6164 = vmatprep.subr.mxu0 0.0
        %6165 = vmatpush1.msra.mxu0 %v6144
        %6166 = vmatprep.subr.mxu0 0.0
        %6167 = vmatpush1.msra.mxu0 %v6145
        %6168 = vmatprep.subr.mxu0 0.0
        %6169 = vmatpush1.msra.mxu0 %v6146
        %6170 = vmatprep.subr.mxu0 0.0
        %6171 = vmatpush1.msra.mxu0 %v6147
        %6172 = vmatprep.subr.mxu0 0.0
        %6173 = vmatpush1.msra.mxu0 %v6148
        %6174 = vmatprep.subr.mxu0 0.0
        %6175 = vmatpush1.msra.mxu0 %v6149
        %6176 = vmatprep.subr.mxu0 0.0
        %6177 = vmatpush1.msra.mxu0 %v6150
        %6178 = vmatprep.subr.mxu0 0.0
        %6179 = vmatpush1.msra.mxu0 %v6151
        %6180 = vmatprep.subr.mxu0 0.0
        %6181 = vmatpush1.msra.mxu0 %v6152
        %6182 = vmatprep.subr.mxu0 0.0
        %6183 = vmatpush1.msra.mxu0 %v6153
        %6184 = vmatprep.subr.mxu0 0.0
        %6185 = vmatpush1.msra.mxu0 %v6154
        %6186 = vmatprep.subr.mxu0 0.0
        %6187 = vmatpush1.msra.mxu0 %v6155
        %6188 = vmatprep.subr.mxu0 0.0
        %6189 = vmatpush1.msra.mxu0 0.0
        %6190 = vmatprep.subr.mxu0 0.0
        %6191 = vmatpush1.msra.mxu0 0.0
        %6192 = vmatprep.subr.mxu0 0.0
        %6193 = vmatpush1.msra.mxu0 0.0
        %6194 = vmatprep.subr.mxu0 0.0
        %6195 = vmatpush1.msra.mxu0 0.0
        %6196 = vmatprep.subr.mxu0 0.0
        %6197 = vmatpush1.msra.mxu0 0.0
        %6198 = vmatprep.subr.mxu0 0.0
        %6199 = vmatpush1.msra.mxu0 0.0
        %6200 = vmatprep.subr.mxu0 0.0
        %6201 = vmatpush1.msra.mxu0 0.0
        %6202 = vmatprep.subr.mxu0 0.0
        %6203 = vmatpush1.msra.mxu0 0.0
        %6204 = vmatprep.subr.mxu0 0.0
        %6205 = vmatpush1.msra.mxu0 0.0
        %6206 = vmatprep.subr.mxu0 0.0
        %6207 = vmatpush1.msra.mxu0 0.0
        %6208 = vmatprep.subr.mxu0 0.0
        %6209 = vmatpush1.msra.mxu0 0.0
        %6210 = vmatprep.subr.mxu0 0.0
        %6211 = vmatpush1.msra.mxu0 0.0
        %6212 = vmatprep.subr.mxu0 0.0
        %6213 = vmatpush1.msra.mxu0 0.0
        %6214 = vmatprep.subr.mxu0 0.0
        %6215 = vmatpush1.msra.mxu0 0.0
        %6216 = vmatprep.subr.mxu0 0.0
        %6217 = vmatpush1.msra.mxu0 0.0
        %6218 = vmatprep.subr.mxu0 0.0
        %6219 = vmatpush1.msra.mxu0 0.0
        %6220 = vmatprep.mubr.f32.mxu0 0.0
        %6221 = vmatmul.mubr.f32.gmra.mrb[0].mxu0 %v4361
        %v6222 = vpop.f32.mrb[0].mxu0
        %v6223 = vadd.f32 0.0, %v6222
        %v6224 = vpop.f32.mrb[0].mxu0
        %6225 = vmatprep.mubr.f32.mxu0 0.0
        %6226 = vmatmul.mubr.f32.gmra.mrb[0].mxu0 %v4363
        %v6227 = vpop.f32.mrb[0].mxu0
        %v6228 = vadd.f32 0.0, %v6227
        %v6229 = vpop.f32.mrb[0].mxu0
        %6230 = vmatprep.mubr.f32.mxu0 0.0
        %6231 = vmatmul.mubr.f32.gmra.mrb[0].mxu0 %v4366
        %v6232 = vpop.f32.mrb[0].mxu0
        %v6233 = vadd.f32 0.0, %v6232
        %v6234 = vpop.f32.mrb[0].mxu0
        %6235 = vmatprep.mubr.f32.mxu0 0.0
        %6236 = vmatmul.mubr.f32.gmra.mrb[0].mxu0 %v4368
        %v6237 = vpop.f32.mrb[0].mxu0
        %v6238 = vadd.f32 0.0, %v6237
        %v6239 = vpop.f32.mrb[0].mxu0
        %6240 = vmatprep.mubr.f32.mxu0 0.0
        %6241 = vmatmul.mubr.f32.gmra.mrb[0].mxu0 %v4371
        %v6242 = vpop.f32.mrb[0].mxu0
        %v6243 = vadd.f32 0.0, %v6242
        %v6244 = vpop.f32.mrb[0].mxu0
        %6245 = vmatprep.mubr.f32.mxu0 0.0
        %6246 = vmatmul.mubr.f32.gmra.mrb[0].mxu0 %v4373
        %v6247 = vpop.f32.mrb[0].mxu0
        %v6248 = vadd.f32 0.0, %v6247
        %v6249 = vpop.f32.mrb[0].mxu0
        %6250 = vmatprep.mubr.f32.mxu0 0.0
        %6251 = vmatmul.mubr.f32.gmra.mrb[0].mxu0 %v4376
        %v6252 = vpop.f32.mrb[0].mxu0
        %v6253 = vadd.f32 0.0, %v6252
        %v6254 = vpop.f32.mrb[0].mxu0
        %6255 = vmatprep.mubr.f32.mxu0 0.0
        %6256 = vmatmul.mubr.f32.gmra.mrb[0].mxu0 %v4378
        %v6257 = vpop.f32.mrb[0].mxu0
        %v6258 = vadd.f32 0.0, %v6257
        %v6259 = vpop.f32.mrb[0].mxu0
        %6260 = vmatprep.mubr.f32.mxu0 0.0
        %6261 = vmatmul.mubr.f32.gmra.mrb[0].mxu0 %v4381
        %v6262 = vpop.f32.mrb[0].mxu0
        %v6263 = vadd.f32 0.0, %v6262
        %v6264 = vpop.f32.mrb[0].mxu0
        %6265 = vmatprep.mubr.f32.mxu0 0.0
        %6266 = vmatmul.mubr.f32.gmra.mrb[0].mxu0 %v4383
        %v6267 = vpop.f32.mrb[0].mxu0
        %v6268 = vadd.f32 0.0, %v6267
        %v6269 = vpop.f32.mrb[0].mxu0
        %6270 = vmatprep.mubr.f32.mxu0 0.0
        %6271 = vmatmul.mubr.f32.gmra.mrb[0].mxu0 %v4386
        %v6272 = vpop.f32.mrb[0].mxu0
        %v6273 = vadd.f32 0.0, %v6272
        %v6274 = vpop.f32.mrb[0].mxu0
        %6275 = vmatprep.mubr.f32.mxu0 0.0
        %6276 = vmatmul.mubr.f32.gmra.mrb[0].mxu0 %v4388
        %v6277 = vpop.f32.mrb[0].mxu0
        %v6278 = vadd.f32 0.0, %v6277
        %v6279 = vpop.f32.mrb[0].mxu0
        %6280 = vmatprep.mubr.f32.mxu0 0.0
        %6281 = vmatmul.mubr.f32.gmra.mrb[0].mxu0 %v4391
        %v6282 = vpop.f32.mrb[0].mxu0
        %v6283 = vadd.f32 0.0, %v6282
        %v6284 = vpop.f32.mrb[0].mxu0
        %6285 = vmatprep.mubr.f32.mxu0 0.0
        %6286 = vmatmul.mubr.f32.gmra.mrb[0].mxu0 %v4393
        %v6287 = vpop.f32.mrb[0].mxu0
        %v6288 = vadd.f32 0.0, %v6287
        %v6289 = vpop.f32.mrb[0].mxu0
        %6290 = vmatprep.mubr.f32.mxu0 0.0
        %6291 = vmatmul.mubr.f32.gmra.mrb[0].mxu0 %v4396
        %v6292 = vpop.f32.mrb[0].mxu0
        %v6293 = vadd.f32 0.0, %v6292
        %v6294 = vpop.f32.mrb[0].mxu0
        %6295 = vmatprep.mubr.f32.mxu0 0.0
        %6296 = vmatmul.mubr.f32.gmra.mrb[0].mxu0 %v4398
        %v6297 = vpop.f32.mrb[0].mxu0
        %v6298 = vadd.f32 0.0, %v6297
        %v6299 = vpop.f32.mrb[0].mxu0
        %6300 = vmatprep.mubr.f32.mxu0 0.0
        %6301 = vmatmul.mubr.f32.gmra.mrb[0].mxu0 %v4401
        %v6302 = vpop.f32.mrb[0].mxu0
        %v6303 = vadd.f32 0.0, %v6302
        %v6304 = vpop.f32.mrb[0].mxu0
        %6305 = vmatprep.mubr.f32.mxu0 0.0
        %6306 = vmatmul.mubr.f32.gmra.mrb[0].mxu0 %v4403
        %v6307 = vpop.f32.mrb[0].mxu0
        %v6308 = vadd.f32 0.0, %v6307
        %v6309 = vpop.f32.mrb[0].mxu0
        %6310 = vmatprep.mubr.f32.mxu0 0.0
        %6311 = vmatmul.mubr.f32.gmra.mrb[0].mxu0 %v4406
        %v6312 = vpop.f32.mrb[0].mxu0
        %v6313 = vadd.f32 0.0, %v6312
        %v6314 = vpop.f32.mrb[0].mxu0
        %6315 = vmatprep.mubr.f32.mxu0 0.0
        %6316 = vmatmul.mubr.f32.gmra.mrb[0].mxu0 %v4408
        %v6317 = vpop.f32.mrb[0].mxu0
        %v6318 = vadd.f32 0.0, %v6317
        %v6319 = vpop.f32.mrb[0].mxu0
        %6320 = vmatprep.mubr.f32.mxu0 0.0
        %6321 = vmatmul.mubr.f32.gmra.mrb[0].mxu0 %v4411
        %v6322 = vpop.f32.mrb[0].mxu0
        %v6323 = vadd.f32 0.0, %v6322
        %v6324 = vpop.f32.mrb[0].mxu0
        %6325 = vmatprep.mubr.f32.mxu0 0.0
        %6326 = vmatmul.mubr.f32.gmra.mrb[0].mxu0 %v4413
        %v6327 = vpop.f32.mrb[0].mxu0
        %v6328 = vadd.f32 0.0, %v6327
        %v6329 = vpop.f32.mrb[0].mxu0
        %6330 = vmatprep.mubr.f32.mxu0 0.0
        %6331 = vmatmul.mubr.f32.gmra.mrb[0].mxu0 %v4416
        %v6332 = vpop.f32.mrb[0].mxu0
        %v6333 = vadd.f32 0.0, %v6332
        %v6334 = vpop.f32.mrb[0].mxu0
        %6335 = vmatprep.mubr.f32.mxu0 0.0
        %6336 = vmatmul.mubr.f32.gmra.mrb[0].mxu0 %v4418
        %v6337 = vpop.f32.mrb[0].mxu0
        %v6338 = vadd.f32 0.0, %v6337
        %v6339 = vpop.f32.mrb[0].mxu0
        %6340 = vmatprep.mubr.f32.mxu0 0.0
        %6341 = vmatmul.mubr.f32.gmra.mrb[0].mxu0 %v4421
        %v6342 = vpop.f32.mrb[0].mxu0
        %v6343 = vadd.f32 0.0, %v6342
        %v6344 = vpop.f32.mrb[0].mxu0
        %6345 = vmatprep.mubr.f32.mxu0 0.0
        %6346 = vmatmul.mubr.f32.gmra.mrb[0].mxu0 %v4423
        %v6347 = vpop.f32.mrb[0].mxu0
        %v6348 = vadd.f32 0.0, %v6347
        %v6349 = vpop.f32.mrb[0].mxu0
        %6350 = vmatprep.mubr.f32.mxu0 0.0
        %6351 = vmatmul.mubr.f32.gmra.mrb[0].mxu0 %v4426
        %v6352 = vpop.f32.mrb[0].mxu0
        %v6353 = vadd.f32 0.0, %v6352
        %v6354 = vpop.f32.mrb[0].mxu0
        %6355 = vmatprep.mubr.f32.mxu0 0.0
        %6356 = vmatmul.mubr.f32.gmra.mrb[0].mxu0 %v4428
        %v6357 = vpop.f32.mrb[0].mxu0
        %v6358 = vadd.f32 0.0, %v6357
        %v6359 = vpop.f32.mrb[0].mxu0
        %6360 = vmatprep.mubr.f32.mxu0 0.0
        %6361 = vmatmul.mubr.f32.gmra.mrb[0].mxu0 %v5295
        %v6362 = vpop.f32.mrb[0].mxu0
        %v6363 = vadd.f32 0.0, %v6362
        %v6364 = vpop.f32.mrb[0].mxu0
        %6365 = vmatprep.mubr.f32.mxu0 0.0
        %6366 = vmatmul.mubr.f32.gmra.mrb[0].mxu0 %v5297
        %v6367 = vpop.f32.mrb[0].mxu0
        %v6368 = vadd.f32 0.0, %v6367
        %v6369 = vpop.f32.mrb[0].mxu0
        %6370 = vmatprep.mubr.f32.mxu0 0.0
        %6371 = vmatmul.mubr.f32.gmra.mrb[0].mxu0 %v6134
        %v6372 = vpop.f32.mrb[0].mxu0
        %v6373 = vadd.f32 0.0, %v6372
        %v6374 = vpop.f32.mrb[0].mxu0
        %6375 = vmatprep.mubr.f32.mxu0 0.0
        %6376 = vmatmul.mubr.f32.gmra.mrb[0].mxu0 %v6136
        %v6377 = vpop.f32.mrb[0].mxu0
        %v6378 = vadd.f32 0.0, %v6377
        %v6379 = vpop.f32.mrb[0].mxu0
        %6380 = vdwg.mxu0
        %v6381 = vadd.f32 %v6100, %v6223
        %v6382 = vadd.f32 %v6101, %v6228
        %v6383 = vadd.f32 %v6102, %v6233
        %v6384 = vadd.f32 %v6103, %v6238
        %v6385 = vadd.f32 %v6104, %v6243
        %v6386 = vadd.f32 %v6105, %v6248
        %v6387 = vadd.f32 %v6106, %v6253
        %v6388 = vadd.f32 %v6107, %v6258
        %v6389 = vadd.f32 %v6108, %v6263
        %v6390 = vadd.f32 %v6109, %v6268
        %v6391 = vadd.f32 %v6110, %v6273
        %v6392 = vadd.f32 %v6111, %v6278
        %v6393 = vadd.f32 %v6112, %v6283
        %v6394 = vadd.f32 %v6113, %v6288
        %v6395 = vadd.f32 %v6114, %v6293
        %v6396 = vadd.f32 %v6115, %v6298
        %v6397 = vadd.f32 %v6116, %v6303
        %v6398 = vadd.f32 %v6117, %v6308
        %v6399 = vadd.f32 %v6118, %v6313
        %v6400 = vadd.f32 %v6119, %v6318
        %v6401 = vadd.f32 %v6120, %v6323
        %v6402 = vadd.f32 %v6121, %v6328
        %v6403 = vadd.f32 %v6122, %v6333
        %v6404 = vadd.f32 %v6123, %v6338
        %v6405 = vadd.f32 %v6124, %v6343
        %v6406 = vadd.f32 %v6125, %v6348
        %v6407 = vadd.f32 %v6126, %v6353
        %v6408 = vadd.f32 %v6127, %v6358
        %v6409 = vadd.f32 %v6128, %v6363
        %v6410 = vadd.f32 %v6129, %v6368
        %v6411 = vadd.f32 %v6130, %v6373
        %v6412 = vadd.f32 %v6131, %v6378
        %v6413 = vld [vmem:[%s5] sm:$0x1]
        %v6415 = vlaneseq
        %v6416 = vshrl.u32 %v6415, 7
        %v6417 = vsub.s32 0, %v6416
        %v6418 = vrot.slane %v6413, %v6417
        %v6420 = vmul.f32 %v6381, %v6418
        %v6421 = vmul.f32 %v6382, %v6418
        %v6422 = vmul.f32 %v6383, %v6418
        %v6423 = vmul.f32 %v6384, %v6418
        %v6424 = vmul.f32 %v6385, %v6418
        %v6425 = vmul.f32 %v6386, %v6418
        %v6426 = vmul.f32 %v6387, %v6418
        %v6427 = vmul.f32 %v6388, %v6418
        %v6428 = vmul.f32 %v6389, %v6418
        %v6429 = vmul.f32 %v6390, %v6418
        %v6430 = vmul.f32 %v6391, %v6418
        %v6431 = vmul.f32 %v6392, %v6418
        %v6432 = vmul.f32 %v6393, %v6418
        %v6433 = vmul.f32 %v6394, %v6418
        %v6434 = vmul.f32 %v6395, %v6418
        %v6435 = vmul.f32 %v6396, %v6418
        %v6436 = vmul.f32 %v6397, %v6418
        %v6437 = vmul.f32 %v6398, %v6418
        %v6438 = vmul.f32 %v6399, %v6418
        %v6439 = vmul.f32 %v6400, %v6418
        %v6440 = vmul.f32 %v6401, %v6418
        %v6441 = vmul.f32 %v6402, %v6418
        %v6442 = vmul.f32 %v6403, %v6418
        %v6443 = vmul.f32 %v6404, %v6418
        %v6444 = vmul.f32 %v6405, %v6418
        %v6445 = vmul.f32 %v6406, %v6418
        %v6446 = vmul.f32 %v6407, %v6418
        %v6447 = vmul.f32 %v6408, %v6418
        %v6448 = vmul.f32 %v6409, %v6418
        %v6449 = vmul.f32 %v6410, %v6418
        %v6450 = vmul.f32 %v6411, %v6418
        %v6451 = vmul.f32 %v6412, %v6418
        %v6452 = vld [vmem:[%s6] sm:$0x1]
        %v6454 = vlaneseq
        %v6455 = vshrl.u32 %v6454, 7
        %v6456 = vsub.s32 0, %v6455
        %v6457 = vrot.slane %v6452, %v6456
        %v6459 = vadd.f32 %v6420, %v6457
        %v6460 = vadd.f32 %v6421, %v6457
        %v6461 = vadd.f32 %v6422, %v6457
        %v6462 = vadd.f32 %v6423, %v6457
        %v6463 = vadd.f32 %v6424, %v6457
        %v6464 = vadd.f32 %v6425, %v6457
        %v6465 = vadd.f32 %v6426, %v6457
        %v6466 = vadd.f32 %v6427, %v6457
        %v6467 = vadd.f32 %v6428, %v6457
        %v6468 = vadd.f32 %v6429, %v6457
        %v6469 = vadd.f32 %v6430, %v6457
        %v6470 = vadd.f32 %v6431, %v6457
        %v6471 = vadd.f32 %v6432, %v6457
        %v6472 = vadd.f32 %v6433, %v6457
        %v6473 = vadd.f32 %v6434, %v6457
        %v6474 = vadd.f32 %v6435, %v6457
        %v6475 = vadd.f32 %v6436, %v6457
        %v6476 = vadd.f32 %v6437, %v6457
        %v6477 = vadd.f32 %v6438, %v6457
        %v6478 = vadd.f32 %v6439, %v6457
        %v6479 = vadd.f32 %v6440, %v6457
        %v6480 = vadd.f32 %v6441, %v6457
        %v6481 = vadd.f32 %v6442, %v6457
        %v6482 = vadd.f32 %v6443, %v6457
        %v6483 = vadd.f32 %v6444, %v6457
        %v6484 = vadd.f32 %v6445, %v6457
        %v6485 = vadd.f32 %v6446, %v6457
        %v6486 = vadd.f32 %v6447, %v6457
        %v6487 = vadd.f32 %v6448, %v6457
        %v6488 = vadd.f32 %v6449, %v6457
        %v6489 = vadd.f32 %v6450, %v6457
        %v6490 = vadd.f32 %v6451, %v6457
        %v6491 = vadd.f32 %v6459, %v3620
        %v6492 = vadd.f32 %v6460, %v3621
        %v6493 = vadd.f32 %v6461, %v3622
        %v6494 = vadd.f32 %v6462, %v3623
        %v6495 = vadd.f32 %v6463, %v3624
        %v6496 = vadd.f32 %v6464, %v3625
        %v6497 = vadd.f32 %v6465, %v3626
        %v6498 = vadd.f32 %v6466, %v3627
        %v6499 = vadd.f32 %v6467, %v3628
        %v6500 = vadd.f32 %v6468, %v3629
        %v6501 = vadd.f32 %v6469, %v3630
        %v6502 = vadd.f32 %v6470, %v3631
        %v6503 = vadd.f32 %v6471, %v3632
        %v6504 = vadd.f32 %v6472, %v3633
        %v6505 = vadd.f32 %v6473, %v3634
        %v6506 = vadd.f32 %v6474, %v3635
        %v6507 = vadd.f32 %v6475, %v3636
        %v6508 = vadd.f32 %v6476, %v3637
        %v6509 = vadd.f32 %v6477, %v3638
        %v6510 = vadd.f32 %v6478, %v3639
        %v6511 = vadd.f32 %v6479, %v3640
        %v6512 = vadd.f32 %v6480, %v3641
        %v6513 = vadd.f32 %v6481, %v3642
        %v6514 = vadd.f32 %v6482, %v3643
        %v6515 = vadd.f32 %v6483, %v3644
        %v6516 = vadd.f32 %v6484, %v3645
        %v6517 = vadd.f32 %v6485, %v3646
        %v6518 = vadd.f32 %v6486, %v3647
        %v6519 = vadd.f32 %v6487, %v3648
        %v6520 = vadd.f32 %v6488, %v3649
        %v6521 = vadd.f32 %v6489, %v3650
        %v6522 = vadd.f32 %v6490, %v3651
        %v6523 = vmax.f32 %v6491, 0.0
        %v6524 = vmax.f32 %v6492, 0.0
        %v6525 = vmax.f32 %v6493, 0.0
        %v6526 = vmax.f32 %v6494, 0.0
        %v6527 = vmax.f32 %v6495, 0.0
        %v6528 = vmax.f32 %v6496, 0.0
        %v6529 = vmax.f32 %v6497, 0.0
        %v6530 = vmax.f32 %v6498, 0.0
        %v6531 = vmax.f32 %v6499, 0.0
        %v6532 = vmax.f32 %v6500, 0.0
        %v6533 = vmax.f32 %v6501, 0.0
        %v6534 = vmax.f32 %v6502, 0.0
        %v6535 = vmax.f32 %v6503, 0.0
        %v6536 = vmax.f32 %v6504, 0.0
        %v6537 = vmax.f32 %v6505, 0.0
        %v6538 = vmax.f32 %v6506, 0.0
        %v6539 = vmax.f32 %v6507, 0.0
        %v6540 = vmax.f32 %v6508, 0.0
        %v6541 = vmax.f32 %v6509, 0.0
        %v6542 = vmax.f32 %v6510, 0.0
        %v6543 = vmax.f32 %v6511, 0.0
        %v6544 = vmax.f32 %v6512, 0.0
        %v6545 = vmax.f32 %v6513, 0.0
        %v6546 = vmax.f32 %v6514, 0.0
        %v6547 = vmax.f32 %v6515, 0.0
        %v6548 = vmax.f32 %v6516, 0.0
        %v6549 = vmax.f32 %v6517, 0.0
        %v6550 = vmax.f32 %v6518, 0.0
        %v6551 = vmax.f32 %v6519, 0.0
        %v6552 = vmax.f32 %v6520, 0.0
        %v6553 = vmax.f32 %v6521, 0.0
        %v6554 = vmax.f32 %v6522, 0.0
        %6555 = vst [vmem:[%s367] sm:$0xff] %v6523
        %6556 = vst [vmem:[%s367 + $0x8] sm:$0xff] %v6524
        %6557 = vst [vmem:[%s367 + $0x10] sm:$0xff] %v6525
        %6558 = vst [vmem:[%s367 + $0x18] sm:$0xff] %v6526
        %6559 = vst [vmem:[%s367 + $0x20] sm:$0xff] %v6527
        %6560 = vst [vmem:[%s367 + $0x28] sm:$0xff] %v6528
        %6561 = vst [vmem:[%s367 + $0x30] sm:$0xff] %v6529
        %6562 = vst [vmem:[%s367 + $0x38] sm:$0xff] %v6530
        %6563 = vst [vmem:[%s367 + $0x40] sm:$0xff] %v6531
        %6564 = vst [vmem:[%s367 + $0x48] sm:$0xff] %v6532
        %6565 = vst [vmem:[%s367 + $0x50] sm:$0xff] %v6533
        %6566 = vst [vmem:[%s367 + $0x58] sm:$0xff] %v6534
        %6567 = vst [vmem:[%s367 + $0x60] sm:$0xff] %v6535
        %6568 = vst [vmem:[%s367 + $0x68] sm:$0xff] %v6536
        %6569 = vst [vmem:[%s367 + $0x70] sm:$0xff] %v6537
        %6570 = vst [vmem:[%s367 + $0x78] sm:$0xff] %v6538
        %6571 = vst [vmem:[%s367 + $0x80] sm:$0xff] %v6539
        %6572 = vst [vmem:[%s367 + $0x88] sm:$0xff] %v6540
        %6573 = vst [vmem:[%s367 + $0x90] sm:$0xff] %v6541
        %6574 = vst [vmem:[%s367 + $0x98] sm:$0xff] %v6542
        %6575 = vst [vmem:[%s367 + $0xa0] sm:$0xff] %v6543
        %6576 = vst [vmem:[%s367 + $0xa8] sm:$0xff] %v6544
        %6577 = vst [vmem:[%s367 + $0xb0] sm:$0xff] %v6545
        %6578 = vst [vmem:[%s367 + $0xb8] sm:$0xff] %v6546
        %6579 = vst [vmem:[%s367 + $0xc0] sm:$0xff] %v6547
        %6580 = vst [vmem:[%s367 + $0xc8] sm:$0xff] %v6548
        %6581 = vst [vmem:[%s367 + $0xd0] sm:$0xff] %v6549
        %6582 = vst [vmem:[%s367 + $0xd8] sm:$0xff] %v6550
        %6583 = vst [vmem:[%s367 + $0xe0] sm:$0xff] %v6551
        %6584 = vst [vmem:[%s367 + $0xe8] sm:$0xff] %v6552
        %6585 = vst [vmem:[%s367 + $0xf0] sm:$0xff] %v6553
        %6586 = vst [vmem:[%s367 + $0xf8] sm:$0xff] %v6554
        %s6587 = sand.u32 %s248, 1
        %s6588 = scalar_lea.sflag [#allocation5], %s6587
        %s6589 = sand.u32 %s248, 1
        %s6590 = smul.addr %s6589, 256
        %s6591 = scalar_lea.vmem [#allocation6], %s6590
        // Predicated region
        $region65: #{tpu_custom_call.1} parent=59 // pred_check
          %p6592 = pneg %p258
        $region66: #{tpu_custom_call.1} parent=59 // pred_check_branch
          %6594 = sbr.rel (%p6592) target = $region68
        $region67: #{tpu_custom_call.1} parent=59 // pred_region
          %s6596 = ssub.s32 4096, 4096
          %6597 = vsyncadd %s6588, %s6596
          %s6598 = smul.addr %s25, 32
          %s6599 = smul.addr %s6598, 128
          %s6600 = scalar_lea.hbm %s10, %s6599
          %s6601 = sshll.u32 %s6591, 4
          %s6602 = int_to_ptr.vmem [resolvable:$true] %s6601
          %6607 = dma.vmem_to_hbm [thread:$0]  %s6602, 4096, %s6600, %s6588, 128, 128, 8
        $region68: #{tpu_custom_call.1} parent=59 // pred_fallthru
          _
      $region60: #{tpu_custom_call.1} parent=5 // pred_fallthru
        _
      %p6608 = scmp.le.s32.totalorder 2, %s20
      // Predicated region
      $region69: #{tpu_custom_call.1} parent=5 // pred_check
        %p6609 = pneg %p6608
      $region70: #{tpu_custom_call.1} parent=5 // pred_check_branch
        %6611 = sbr.rel (%p6609) target = $region72
      $region71: #{tpu_custom_call.1} parent=5 // pred_region
        %s6612 = ssub.s32 %s20, 2
        // Predicated region
        $region73: #{tpu_custom_call.1} parent=71 // pred_check
          %p6613 = pneg %p264
        $region74: #{tpu_custom_call.1} parent=71 // pred_check_branch
          %6615 = sbr.rel (%p6613) target = $region76
        $region75: #{tpu_custom_call.1} parent=71 // pred_region
          %s6616 = sand.u32 %s249, 1
          %s6617 = scalar_lea.sflag [#allocation5], %s6616
          %s6618 = sand.u32 %s249, 1
          %s6619 = smul.addr %s6618, 256
          %s6620 = scalar_lea.vmem [#allocation6], %s6619
          %6621 = dma.done %s6617, 4096
        $region76: #{tpu_custom_call.1} parent=71 // pred_fallthru
          _
      $region72: #{tpu_custom_call.1} parent=5 // pred_fallthru
        _
    $region6: #{tpu_custom_call.1} parent=1 // loop_footer
      %s24 = sadd.s32 1, %s20
    $region7: #{tpu_custom_call.1} parent=1 // loop_footer_branch
      %19 = sbr.rel target = $region3
    $region8: #{tpu_custom_call.1} parent=1 // loop_exit
      _
    %6622 = vsyncpa [#allocation4], 1
    %s6623 = scalar_lea.sflag [#allocation4], 1
    %6624 = vsyncpa %s6623, 1
    %6625 = vsyncpa [#allocation5], 1
    %s6626 = scalar_lea.sflag [#allocation5], 1
    %6627 = vsyncpa %s6626, 1

</llo_original>
